<compile_context>
chip_gen: v7x
topology: tpu7x:2x2x1
jax: 0.10.0
libtpu: 0.0.40
codegen_flags: <defaults>
</compile_context>

<pallas_src>
import jax
import jax.numpy as jnp
from jax.experimental import pallas as pl
from jax.experimental.pallas import tpu as pltpu


_VMEM_LIMIT = 48 * 1024 * 1024  # safe on v5e/v6e (128 MiB) and v7x (64 MiB)
_LANE = 128


def _round_up(x, m):
    return (x + m - 1) // m * m


# ----------------------------- Pallas kernels ------------------------------

def _mm_shift_relu_kernel(x_ref, w_ref, shift_ref, o_ref):
    # bf16 x bf16 -> f32 accumulate on the MXU; f32 epilogue (add + relu).
    acc = jnp.dot(x_ref[...], w_ref[...], preferred_element_type=jnp.float32)
    o_ref[...] = jnp.maximum(acc + shift_ref[...], 0.0).astype(o_ref.dtype)


def _mm_shift_add_relu_kernel(x_ref, w_ref, shift_ref, res_ref, o_ref):
    acc = jnp.dot(x_ref[...], w_ref[...], preferred_element_type=jnp.float32)
    y = acc + shift_ref[...] + res_ref[...]
    o_ref[...] = jnp.maximum(y, 0.0).astype(o_ref.dtype)


def _conv3x3x3_kernel(xpad_ref, w_ref, shift_ref, o_ref):
    """One output depth-slice of a 3x3x3 conv (stride 1, pad 1) + BN shift + relu.

    xpad_ref : (D+2, H+2, W+2, C)  bf16  — whole padded volume for one sample,
               resident in VMEM across the depth grid axis (constant index_map).
    w_ref    : (27, C, C)          bf16  — BN scale pre-folded into columns.
    shift_ref: (1, C)              f32
    o_ref    : (H, W, C)           bf16
    """
    d = pl.program_id(1)
    H, W, C = o_ref.shape
    acc = jnp.zeros((H * W, C), jnp.float32)
    for kd in range(3):
        for kh in range(3):
            for kw in range(3):
                tap = xpad_ref[pl.ds(d + kd, 1), pl.ds(kh, H), pl.ds(kw, W), :]
                tap = tap.reshape(H * W, C)
                acc = acc + jnp.dot(tap, w_ref[kd * 9 + kh * 3 + kw],
                                    preferred_element_type=jnp.float32)
    y = acc + shift_ref[...]
    o_ref[...] = jnp.maximum(y, 0.0).reshape(H, W, C).astype(o_ref.dtype)


# ------------------------------ kernel wrappers -----------------------------

def fused_mm_shift_relu(x, w, shift, residual=None, out_dtype=jnp.float32,
                        tm=512):
    """relu((x @ w) + shift [+ residual]) tiled over the token axis.

    x: (T, K) bf16, w: (K, N) bf16 (BN scale folded in), shift: (N,) f32.
    """
    T, K = x.shape
    Kw, Nc = w.shape
    assert K == Kw
    tm = min(tm, _round_up(T, 8))
    Tp = _round_up(T, tm)
    if Tp != T:  # tail padding so any token count works
        x = jnp.pad(x, ((0, Tp - T), (0, 0)))
        if residual is not None:
            residual = jnp.pad(residual, ((0, Tp - T), (0, 0)))
    shift2 = shift.reshape(1, Nc).astype(jnp.float32)

    in_specs = [
        pl.BlockSpec((tm, K), lambda i: (i, 0)),    # activations, tiled over T
        pl.BlockSpec((K, Nc), lambda i: (0, 0)),    # weight, fully resident
        pl.BlockSpec((1, Nc), lambda i: (0, 0)),    # BN shift
    ]
    args = [x, w, shift2]
    if residual is not None:
        in_specs.append(pl.BlockSpec((tm, Nc), lambda i: (i, 0)))
        args.append(residual)
        kernel = _mm_shift_add_relu_kernel
    else:
        kernel = _mm_shift_relu_kernel

    out = pl.pallas_call(
        kernel,
        out_shape=jax.ShapeDtypeStruct((Tp, Nc), out_dtype),
        grid=(Tp // tm,),
        in_specs=in_specs,
        out_specs=pl.BlockSpec((tm, Nc), lambda i: (i, 0)),
        compiler_params=pltpu.CompilerParams(
            dimension_semantics=("parallel",),
            vmem_limit_bytes=_VMEM_LIMIT),
    )(*args)
    return out[:T] if Tp != T else out


def conv3x3x3_bn_relu(y_grid, w_taps, shift):
    """3x3x3 conv (stride 1, pad 1, dil 1) + BN shift + relu, taps formed in-VMEM."""
    N, D, H, W, C = y_grid.shape
    assert w_taps.shape == (27, C, C)
    # One small spatial pad instead of a 27x im2col HBM round trip.
    xpad = jnp.pad(y_grid, ((0, 0), (1, 1), (1, 1), (1, 1), (0, 0)))
    shift2 = shift.reshape(1, C).astype(jnp.float32)

    return pl.pallas_call(
        _conv3x3x3_kernel,
        out_shape=jax.ShapeDtypeStruct((N, D, H, W, C), jnp.bfloat16),
        grid=(N, D),
        in_specs=[
            # Whole padded volume of sample n; index_map constant over d, so the
            # block stays resident in VMEM across the depth axis (no re-DMA).
            pl.BlockSpec((None, D + 2, H + 2, W + 2, C),
                         lambda n, d: (n, 0, 0, 0, 0)),
            pl.BlockSpec((27, C, C), lambda n, d: (0, 0, 0)),
            pl.BlockSpec((1, C), lambda n, d: (0, 0)),
        ],
        out_specs=pl.BlockSpec((None, None, H, W, C),
                               lambda n, d: (n, d, 0, 0, 0)),
        compiler_params=pltpu.CompilerParams(
            dimension_semantics=("parallel", "arbitrary"),
            vmem_limit_bytes=_VMEM_LIMIT),
    )(xpad, w_taps, shift2)


# ------------------------------ parameter helpers ---------------------------

def _bn_fold(gamma, beta, mean, var, eps=1e-5):
    scale = gamma / jnp.sqrt(var + eps)
    shift = beta - mean * scale
    return scale, shift


def _pad2(w, rows, cols):
    r, c = w.shape
    return jnp.pad(w, ((0, rows - r), (0, cols - c)))


def _pad1(v, n):
    return jnp.pad(v, (0, n - v.shape[0])).astype(jnp.float32)


class BottleneckPallas:
    expansion = 4

    def __init__(self, key, inplanes, planes, stride=1, padding=1, k=2,
                 groups=1, base_width=64, dilation=1):
        assert stride == 1 and groups == 1 and padding == 1 and dilation == 1, \
            "demo covers stride=1, groups=1, padding=dilation=1"
        width = int(planes * (base_width / 64.0)) * groups
        out_ch = planes * self.expansion
        assert inplanes == out_ch, "no-downsample residual needs inplanes == planes*4"
        self.inplanes, self.width, self.out_ch = inplanes, width, out_ch
        # Pad channel dims to 128 so all matmul/store tiles are lane-dense.
        self.cin_p = _round_up(inplanes, _LANE)
        self.wp = _round_up(width, _LANE)
        self.cout_p = _round_up(out_ch, _LANE)

        keys = jax.random.split(key, 12)
        normal = lambda kk, s: jax.random.normal(kk, s, dtype=jnp.float32)

        # conv1: 1x1x1, PyTorch weight (width, inplanes) -> stored (inplanes, width)
        w1 = normal(keys[0], (inplanes, width)) * 0.1
        g1 = normal(keys[1], (width,)) * 0.1 + 1.0
        b1 = normal(keys[2], (width,)) * 0.1
        m1 = normal(keys[3], (width,)) * 0.1
        v1 = jnp.abs(normal(keys[3], (width,))) * 0.1 + 1.0
        s1, sh1 = _bn_fold(g1, b1, m1, v1)
        self.w1 = _pad2(w1 * s1[None, :], self.cin_p, self.wp).astype(jnp.bfloat16)
        self.shift1 = _pad1(sh1, self.wp)

        # conv2: 3x3x3, PyTorch weight (width, width, 3, 3, 3) -> 27 taps (in, out)
        # TODO(synk): swap in the real TSSTANet attention module for conv2 if available.
        w2 = normal(keys[4], (width, width, 3, 3, 3)) * 0.05
        g2 = normal(keys[5], (width,)) * 0.1 + 1.0
        b2 = normal(keys[6], (width,)) * 0.1
        m2 = normal(keys[7], (width,)) * 0.1
        v2 = jnp.abs(normal(keys[7], (width,))) * 0.1 + 1.0
        s2, sh2 = _bn_fold(g2, b2, m2, v2)
        w2_taps = jnp.transpose(w2, (2, 3, 4, 1, 0)).reshape(27, width, width)
        w2_taps = w2_taps * s2[None, None, :]
        self.w2 = jnp.pad(
            w2_taps, ((0, 0), (0, self.wp - width), (0, self.wp - width))
        ).astype(jnp.bfloat16)
        self.shift2 = _pad1(sh2, self.wp)

        # conv3: 1x1x1, PyTorch weight (out_ch, width) -> stored (width, out_ch)
        w3 = normal(keys[8], (width, out_ch)) * 0.1
        g3 = normal(keys[9], (out_ch,)) * 0.1 + 1.0
        b3 = normal(keys[10], (out_ch,)) * 0.1
        m3 = normal(keys[11], (out_ch,)) * 0.1
        v3 = jnp.abs(normal(keys[11], (out_ch,))) * 0.1 + 1.0
        s3, sh3 = _bn_fold(g3, b3, m3, v3)
        self.w3 = _pad2(w3 * s3[None, :], self.wp, self.cout_p).astype(jnp.bfloat16)
        self.shift3 = _pad1(sh3, self.cout_p)

    def __call__(self, x_ncdhw):
        N, C, D, H, W = x_ncdhw.shape
        assert C == self.inplanes
        T = N * D * H * W

        # NCDHW -> NDHWC at the module boundary only.
        # TODO(synk): keep the whole network channels-last to drop this transpose.
        x = jnp.transpose(x_ncdhw, (0, 2, 3, 4, 1)).astype(jnp.float32)
        x = jnp.pad(x, ((0, 0), (0, 0), (0, 0), (0, 0), (0, self.cin_p - C)))
        x_tok = x.reshape(T, self.cin_p)              # f32 residual path
        x_tok_bf16 = x_tok.astype(jnp.bfloat16)       # bf16 MXU operand

        # conv1 + bn1 + relu (BN scale pre-folded into w1)
        y1 = fused_mm_shift_relu(x_tok_bf16, self.w1, self.shift1,
                                 out_dtype=jnp.bfloat16)

        # conv2 (3x3x3) + bn2 + relu — halo handled in-VMEM, no im2col in HBM
        y1_grid = y1.reshape(N, D, H, W, self.wp)
        y2 = conv3x3x3_bn_relu(y1_grid, self.w2, self.shift2)

        # conv3 + bn3 + residual add + relu (fused)
        y3 = fused_mm_shift_relu(y2.reshape(T, self.wp), self.w3, self.shift3,
                                 residual=x_tok, out_dtype=jnp.float32)

        out = y3[:, :self.out_ch].reshape(N, D, H, W, self.out_ch)
        return jnp.transpose(out, (0, 4, 1, 2, 3))    # back to NCDHW


if __name__ == "__main__":
    key = jax.random.PRNGKey(0)
    k_param, k_x = jax.random.split(key)

    planes = 4
    inplanes = planes * BottleneckPallas.expansion   # 16 -> residual works w/o downsample
    block = BottleneckPallas(k_param, inplanes=inplanes, planes=planes)

    # (N, C, D, H, W) = (2, 16, 4, 8, 8)
    x = jax.random.normal(k_x, (2, inplanes, 4, 8, 8), dtype=jnp.float32)

    fwd = jax.jit(block.__call__)
    out = jax.block_until_ready(fwd(x))
    assert out.shape == (2, inplanes, 4, 8, 8)
    assert bool(jnp.all(out >= 0.0))   # final ReLU
    print("KERNEL_OK")
</pallas_src>

<mosaic_0001>
module attributes {stable_mosaic.version = 11 : i64} {
  func.func @_mm_shift_add_relu_kernel(%arg0: i32, %arg1: memref<512x128xbf16, #tpu.memory_space<vmem>>, %arg2: memref<128x128xbf16, #tpu.memory_space<vmem>>, %arg3: memref<1x128xf32, #tpu.memory_space<vmem>>, %arg4: memref<512x128xf32, #tpu.memory_space<vmem>>, %arg5: memref<512x128xf32, #tpu.memory_space<vmem>>) attributes {dimension_semantics = [#tpu.dimension_semantics<parallel>], iteration_bounds = array<i64: 1>, scalar_prefetch = 0 : i64, scratch_operands = 0 : i64, tpu.core_type = #tpu.core_type<tc>, window_params = [{transform_indices = @transform_0, window_bounds = array<i64: 512, 128>}, {pipeline_mode = #tpu.pipeline_mode<synchronous>, transform_indices = @transform_1, window_bounds = array<i64: 128, 128>}, {pipeline_mode = #tpu.pipeline_mode<synchronous>, transform_indices = @transform_2, window_bounds = array<i64: 1, 128>}, {transform_indices = @transform_3, window_bounds = array<i64: 512, 128>}, {transform_indices = @transform_4, window_bounds = array<i64: 512, 128>}]} {
    %c0 = arith.constant 0 : index
    %c0_0 = arith.constant 0 : index
    %0 = vector.load %arg1[%c0, %c0_0] : memref<512x128xbf16, #tpu.memory_space<vmem>>, vector<512x128xbf16>
    %c0_1 = arith.constant 0 : index
    %c0_2 = arith.constant 0 : index
    %1 = vector.load %arg2[%c0_1, %c0_2] : memref<128x128xbf16, #tpu.memory_space<vmem>>, vector<128x128xbf16>
    %cst = arith.constant dense<0.000000e+00> : vector<512x128xf32>
    %2 = tpu.matmul %0, %1, %cst {dimension_numbers = #tpu.dot_dimension_numbers<[1], [0], [0], [1], [0, 0, 1, 1], [], []>} : vector<512x128xbf16>, vector<128x128xbf16>, vector<512x128xf32> -> vector<512x128xf32>
    %c0_3 = arith.constant 0 : index
    %c0_4 = arith.constant 0 : index
    %3 = vector.load %arg3[%c0_3, %c0_4] : memref<1x128xf32, #tpu.memory_space<vmem>>, vector<1x128xf32>
    %4 = vector.broadcast %3 : vector<1x128xf32> to vector<512x128xf32>
    %5 = arith.addf %2, %4 : vector<512x128xf32>
    %c0_5 = arith.constant 0 : index
    %c0_6 = arith.constant 0 : index
    %6 = vector.load %arg4[%c0_5, %c0_6] : memref<512x128xf32, #tpu.memory_space<vmem>>, vector<512x128xf32>
    %7 = arith.addf %5, %6 : vector<512x128xf32>
    %cst_7 = arith.constant 0.000000e+00 : f32
    %8 = vector.broadcast %cst_7 : f32 to vector<512x128xf32>
    %9 = arith.maximumf %7, %8 : vector<512x128xf32>
    %c0_8 = arith.constant 0 : index
    %c0_9 = arith.constant 0 : index
    %10 = vector.load %arg5[%c0_8, %c0_9] : memref<512x128xf32, #tpu.memory_space<vmem>>, vector<512x128xf32>
    tpu.vector_store %arg5[%c0_8, %c0_9], %9 {strides = array<i32>} : memref<512x128xf32, #tpu.memory_space<vmem>>, vector<512x128xf32>,
    return
  }
  func.func @transform_0(%arg0: i32) -> (i32, i32) {
    %c0_i32 = arith.constant 0 : i32
    %c0_i32_0 = arith.constant 0 : i32
    return %arg0, %c0_i32 : i32, i32
  }
  func.func @transform_1(%arg0: i32) -> (i32, i32) {
    %c0_i32 = arith.constant 0 : i32
    %c0_i32_0 = arith.constant 0 : i32
    %c0_i32_1 = arith.constant 0 : i32
    return %c0_i32, %c0_i32_0 : i32, i32
  }
  func.func @transform_2(%arg0: i32) -> (i32, i32) {
    %c0_i32 = arith.constant 0 : i32
    %c0_i32_0 = arith.constant 0 : i32
    %c0_i32_1 = arith.constant 0 : i32
    return %c0_i32, %c0_i32_0 : i32, i32
  }
  func.func @transform_3(%arg0: i32) -> (i32, i32) {
    %c0_i32 = arith.constant 0 : i32
    %c0_i32_0 = arith.constant 0 : i32
    return %arg0, %c0_i32 : i32, i32
  }
  func.func @transform_4(%arg0: i32) -> (i32, i32) {
    %c0_i32 = arith.constant 0 : i32
    %c0_i32_0 = arith.constant 0 : i32
    return %arg0, %c0_i32 : i32, i32
  }
}

module attributes {stable_mosaic.version = 11 : i64} {
  func.func @_mm_shift_relu_kernel(%arg0: i32, %arg1: memref<512x128xbf16, #tpu.memory_space<vmem>>, %arg2: memref<128x128xbf16, #tpu.memory_space<vmem>>, %arg3: memref<1x128xf32, #tpu.memory_space<vmem>>, %arg4: memref<512x128xbf16, #tpu.memory_space<vmem>>) attributes {dimension_semantics = [#tpu.dimension_semantics<parallel>], iteration_bounds = array<i64: 1>, scalar_prefetch = 0 : i64, scratch_operands = 0 : i64, tpu.core_type = #tpu.core_type<tc>, window_params = [{transform_indices = @transform_0, window_bounds = array<i64: 512, 128>}, {pipeline_mode = #tpu.pipeline_mode<synchronous>, transform_indices = @transform_1, window_bounds = array<i64: 128, 128>}, {pipeline_mode = #tpu.pipeline_mode<synchronous>, transform_indices = @transform_2, window_bounds = array<i64: 1, 128>}, {transform_indices = @transform_3, window_bounds = array<i64: 512, 128>}]} {
    %c0 = arith.constant 0 : index
    %c0_0 = arith.constant 0 : index
    %0 = vector.load %arg1[%c0, %c0_0] : memref<512x128xbf16, #tpu.memory_space<vmem>>, vector<512x128xbf16>
    %c0_1 = arith.constant 0 : index
    %c0_2 = arith.constant 0 : index
    %1 = vector.load %arg2[%c0_1, %c0_2] : memref<128x128xbf16, #tpu.memory_space<vmem>>, vector<128x128xbf16>
    %cst = arith.constant dense<0.000000e+00> : vector<512x128xf32>
    %2 = tpu.matmul %0, %1, %cst {dimension_numbers = #tpu.dot_dimension_numbers<[1], [0], [0], [1], [0, 0, 1, 1], [], []>} : vector<512x128xbf16>, vector<128x128xbf16>, vector<512x128xf32> -> vector<512x128xf32>
    %c0_3 = arith.constant 0 : index
    %c0_4 = arith.constant 0 : index
    %3 = vector.load %arg3[%c0_3, %c0_4] : memref<1x128xf32, #tpu.memory_space<vmem>>, vector<1x128xf32>
    %4 = vector.broadcast %3 : vector<1x128xf32> to vector<512x128xf32>
    %5 = arith.addf %2, %4 : vector<512x128xf32>
    %cst_5 = arith.constant 0.000000e+00 : f32
    %6 = vector.broadcast %cst_5 : f32 to vector<512x128xf32>
    %7 = arith.maximumf %5, %6 : vector<512x128xf32>
    %8 = arith.truncf %7 : vector<512x128xf32> to vector<512x128xbf16>
    %c0_6 = arith.constant 0 : index
    %c0_7 = arith.constant 0 : index
    %9 = vector.load %arg4[%c0_6, %c0_7] : memref<512x128xbf16, #tpu.memory_space<vmem>>, vector<512x128xbf16>
    tpu.vector_store %arg4[%c0_6, %c0_7], %8 {strides = array<i32>} : memref<512x128xbf16, #tpu.memory_space<vmem>>, vector<512x128xbf16>,
    return
  }
  func.func @transform_0(%arg0: i32) -> (i32, i32) {
    %c0_i32 = arith.constant 0 : i32
    %c0_i32_0 = arith.constant 0 : i32
    return %arg0, %c0_i32 : i32, i32
  }
  func.func @transform_1(%arg0: i32) -> (i32, i32) {
    %c0_i32 = arith.constant 0 : i32
    %c0_i32_0 = arith.constant 0 : i32
    %c0_i32_1 = arith.constant 0 : i32
    return %c0_i32, %c0_i32_0 : i32, i32
  }
  func.func @transform_2(%arg0: i32) -> (i32, i32) {
    %c0_i32 = arith.constant 0 : i32
    %c0_i32_0 = arith.constant 0 : i32
    %c0_i32_1 = arith.constant 0 : i32
    return %c0_i32, %c0_i32_0 : i32, i32
  }
  func.func @transform_3(%arg0: i32) -> (i32, i32) {
    %c0_i32 = arith.constant 0 : i32
    %c0_i32_0 = arith.constant 0 : i32
    return %arg0, %c0_i32 : i32, i32
  }
}

module attributes {stable_mosaic.version = 11 : i64} {
  func.func @_conv3x3x3_kernel(%arg0: i32, %arg1: i32, %arg2: memref<1x6x10x10x128xbf16, #tpu.memory_space<vmem>>, %arg3: memref<27x128x128xbf16, #tpu.memory_space<vmem>>, %arg4: memref<1x128xf32, #tpu.memory_space<vmem>>, %arg5: memref<1x1x8x8x128xbf16, #tpu.memory_space<vmem>>) attributes {dimension_semantics = [#tpu.dimension_semantics<parallel>, #tpu.dimension_semantics<arbitrary>], iteration_bounds = array<i64: 2, 4>, scalar_prefetch = 0 : i64, scratch_operands = 0 : i64, tpu.core_type = #tpu.core_type<tc>, window_params = [{transform_indices = @transform_0, window_bounds = array<i64: 1, 6, 10, 10, 128>}, {pipeline_mode = #tpu.pipeline_mode<synchronous>, transform_indices = @transform_1, window_bounds = array<i64: 27, 128, 128>}, {pipeline_mode = #tpu.pipeline_mode<synchronous>, transform_indices = @transform_2, window_bounds = array<i64: 1, 128>}, {transform_indices = @transform_3, window_bounds = array<i64: 1, 1, 8, 8, 128>}]} {
    %cst = arith.constant 0.000000e+00 : f32
    %0 = vector.broadcast %cst : f32 to vector<64x128xf32>
    %c0_i32 = arith.constant 0 : i32
    %1 = arith.addi %arg1, %c0_i32 : i32
    %c0 = arith.constant 0 : index
    %2 = arith.index_cast %1 : i32 to index
    %c0_0 = arith.constant 0 : index
    %c0_1 = arith.constant 0 : index
    %c0_2 = arith.constant 0 : index
    %3 = vector.load %arg2[%c0, %2, %c0_0, %c0_1, %c0_2] : memref<1x6x10x10x128xbf16, #tpu.memory_space<vmem>>, vector<1x1x8x8x128xbf16>
    %4 = vector.shape_cast %3 : vector<1x1x8x8x128xbf16> to vector<1x8x8x128xbf16>
    %5 = vector.shape_cast %4 : vector<1x8x8x128xbf16> to vector<64x128xbf16>
    %c0_3 = arith.constant 0 : index
    %c0_4 = arith.constant 0 : index
    %c0_5 = arith.constant 0 : index
    %6 = vector.load %arg3[%c0_3, %c0_4, %c0_5] : memref<27x128x128xbf16, #tpu.memory_space<vmem>>, vector<1x128x128xbf16>
    %7 = vector.shape_cast %6 : vector<1x128x128xbf16> to vector<128x128xbf16>
    %cst_6 = arith.constant dense<0.000000e+00> : vector<64x128xf32>
    %8 = tpu.matmul %5, %7, %cst_6 {dimension_numbers = #tpu.dot_dimension_numbers<[1], [0], [0], [1], [0, 0, 1, 1], [], []>} : vector<64x128xbf16>, vector<128x128xbf16>, vector<64x128xf32> -> vector<64x128xf32>
    %9 = arith.addf %0, %8 : vector<64x128xf32>
    %c0_i32_7 = arith.constant 0 : i32
    %10 = arith.addi %arg1, %c0_i32_7 : i32
    %c0_8 = arith.constant 0 : index
    %11 = arith.index_cast %10 : i32 to index
    %c0_9 = arith.constant 0 : index
    %c1 = arith.constant 1 : index
    %c0_10 = arith.constant 0 : index
    %12 = vector.load %arg2[%c0_8, %11, %c0_9, %c1, %c0_10] : memref<1x6x10x10x128xbf16, #tpu.memory_space<vmem>>, vector<1x1x8x8x128xbf16>
    %13 = vector.shape_cast %12 : vector<1x1x8x8x128xbf16> to vector<1x8x8x128xbf16>
    %14 = vector.shape_cast %13 : vector<1x8x8x128xbf16> to vector<64x128xbf16>
    %c1_11 = arith.constant 1 : index
    %c0_12 = arith.constant 0 : index
    %c0_13 = arith.constant 0 : index
    %15 = vector.load %arg3[%c1_11, %c0_12, %c0_13] : memref<27x128x128xbf16, #tpu.memory_space<vmem>>, vector<1x128x128xbf16>
    %16 = vector.shape_cast %15 : vector<1x128x128xbf16> to vector<128x128xbf16>
    %cst_14 = arith.constant dense<0.000000e+00> : vector<64x128xf32>
    %17 = tpu.matmul %14, %16, %cst_14 {dimension_numbers = #tpu.dot_dimension_numbers<[1], [0], [0], [1], [0, 0, 1, 1], [], []>} : vector<64x128xbf16>, vector<128x128xbf16>, vector<64x128xf32> -> vector<64x128xf32>
    %18 = arith.addf %9, %17 : vector<64x128xf32>
    %c0_i32_15 = arith.constant 0 : i32
    %19 = arith.addi %arg1, %c0_i32_15 : i32
    %c0_16 = arith.constant 0 : index
    %20 = arith.index_cast %19 : i32 to index
    %c0_17 = arith.constant 0 : index
    %c2 = arith.constant 2 : index
    %c0_18 = arith.constant 0 : index
    %21 = vector.load %arg2[%c0_16, %20, %c0_17, %c2, %c0_18] : memref<1x6x10x10x128xbf16, #tpu.memory_space<vmem>>, vector<1x1x8x8x128xbf16>
    %22 = vector.shape_cast %21 : vector<1x1x8x8x128xbf16> to vector<1x8x8x128xbf16>
    %23 = vector.shape_cast %22 : vector<1x8x8x128xbf16> to vector<64x128xbf16>
    %c2_19 = arith.constant 2 : index
    %c0_20 = arith.constant 0 : index
    %c0_21 = arith.constant 0 : index
    %24 = vector.load %arg3[%c2_19, %c0_20, %c0_21] : memref<27x128x128xbf16, #tpu.memory_space<vmem>>, vector<1x128x128xbf16>
    %25 = vector.shape_cast %24 : vector<1x128x128xbf16> to vector<128x128xbf16>
    %cst_22 = arith.constant dense<0.000000e+00> : vector<64x128xf32>
    %26 = tpu.matmul %23, %25, %cst_22 {dimension_numbers = #tpu.dot_dimension_numbers<[1], [0], [0], [1], [0, 0, 1, 1], [], []>} : vector<64x128xbf16>, vector<128x128xbf16>, vector<64x128xf32> -> vector<64x128xf32>
    %27 = arith.addf %18, %26 : vector<64x128xf32>
    %c0_i32_23 = arith.constant 0 : i32
    %28 = arith.addi %arg1, %c0_i32_23 : i32
    %c0_24 = arith.constant 0 : index
    %29 = arith.index_cast %28 : i32 to index
    %c1_25 = arith.constant 1 : index
    %c0_26 = arith.constant 0 : index
    %c0_27 = arith.constant 0 : index
    %30 = vector.load %arg2[%c0_24, %29, %c1_25, %c0_26, %c0_27] : memref<1x6x10x10x128xbf16, #tpu.memory_space<vmem>>, vector<1x1x8x8x128xbf16>
    %31 = vector.shape_cast %30 : vector<1x1x8x8x128xbf16> to vector<1x8x8x128xbf16>
    %32 = vector.shape_cast %31 : vector<1x8x8x128xbf16> to vector<64x128xbf16>
    %c3 = arith.constant 3 : index
    %c0_28 = arith.constant 0 : index
    %c0_29 = arith.constant 0 : index
    %33 = vector.load %arg3[%c3, %c0_28, %c0_29] : memref<27x128x128xbf16, #tpu.memory_space<vmem>>, vector<1x128x128xbf16>
    %34 = vector.shape_cast %33 : vector<1x128x128xbf16> to vector<128x128xbf16>
    %cst_30 = arith.constant dense<0.000000e+00> : vector<64x128xf32>
    %35 = tpu.matmul %32, %34, %cst_30 {dimension_numbers = #tpu.dot_dimension_numbers<[1], [0], [0], [1], [0, 0, 1, 1], [], []>} : vector<64x128xbf16>, vector<128x128xbf16>, vector<64x128xf32> -> vector<64x128xf32>
    %36 = arith.addf %27, %35 : vector<64x128xf32>
    %c0_i32_31 = arith.constant 0 : i32
    %37 = arith.addi %arg1, %c0_i32_31 : i32
    %c0_32 = arith.constant 0 : index
    %38 = arith.index_cast %37 : i32 to index
    %c1_33 = arith.constant 1 : index
    %c1_34 = arith.constant 1 : index
    %c0_35 = arith.constant 0 : index
    %39 = vector.load %arg2[%c0_32, %38, %c1_33, %c1_34, %c0_35] : memref<1x6x10x10x128xbf16, #tpu.memory_space<vmem>>, vector<1x1x8x8x128xbf16>
    %40 = vector.shape_cast %39 : vector<1x1x8x8x128xbf16> to vector<1x8x8x128xbf16>
    %41 = vector.shape_cast %40 : vector<1x8x8x128xbf16> to vector<64x128xbf16>
    %c4 = arith.constant 4 : index
    %c0_36 = arith.constant 0 : index
    %c0_37 = arith.constant 0 : index
    %42 = vector.load %arg3[%c4, %c0_36, %c0_37] : memref<27x128x128xbf16, #tpu.memory_space<vmem>>, vector<1x128x128xbf16>
    %43 = vector.shape_cast %42 : vector<1x128x128xbf16> to vector<128x128xbf16>
    %cst_38 = arith.constant dense<0.000000e+00> : vector<64x128xf32>
    %44 = tpu.matmul %41, %43, %cst_38 {dimension_numbers = #tpu.dot_dimension_numbers<[1], [0], [0], [1], [0, 0, 1, 1], [], []>} : vector<64x128xbf16>, vector<128x128xbf16>, vector<64x128xf32> -> vector<64x128xf32>
    %45 = arith.addf %36, %44 : vector<64x128xf32>
    %c0_i32_39 = arith.constant 0 : i32
    %46 = arith.addi %arg1, %c0_i32_39 : i32
    %c0_40 = arith.constant 0 : index
    %47 = arith.index_cast %46 : i32 to index
    %c1_41 = arith.constant 1 : index
    %c2_42 = arith.constant 2 : index
    %c0_43 = arith.constant 0 : index
    %48 = vector.load %arg2[%c0_40, %47, %c1_41, %c2_42, %c0_43] : memref<1x6x10x10x128xbf16, #tpu.memory_space<vmem>>, vector<1x1x8x8x128xbf16>
    %49 = vector.shape_cast %48 : vector<1x1x8x8x128xbf16> to vector<1x8x8x128xbf16>
    %50 = vector.shape_cast %49 : vector<1x8x8x128xbf16> to vector<64x128xbf16>
    %c5 = arith.constant 5 : index
    %c0_44 = arith.constant 0 : index
    %c0_45 = arith.constant 0 : index
    %51 = vector.load %arg3[%c5, %c0_44, %c0_45] : memref<27x128x128xbf16, #tpu.memory_space<vmem>>, vector<1x128x128xbf16>
    %52 = vector.shape_cast %51 : vector<1x128x128xbf16> to vector<128x128xbf16>
    %cst_46 = arith.constant dense<0.000000e+00> : vector<64x128xf32>
    %53 = tpu.matmul %50, %52, %cst_46 {dimension_numbers = #tpu.dot_dimension_numbers<[1], [0], [0], [1], [0, 0, 1, 1], [], []>} : vector<64x128xbf16>, vector<128x128xbf16>, vector<64x128xf32> -> vector<64x128xf32>
    %54 = arith.addf %45, %53 : vector<64x128xf32>
    %c0_i32_47 = arith.constant 0 : i32
    %55 = arith.addi %arg1, %c0_i32_47 : i32
    %c0_48 = arith.constant 0 : index
    %56 = arith.index_cast %55 : i32 to index
    %c2_49 = arith.constant 2 : index
    %c0_50 = arith.constant 0 : index
    %c0_51 = arith.constant 0 : index
    %57 = vector.load %arg2[%c0_48, %56, %c2_49, %c0_50, %c0_51] : memref<1x6x10x10x128xbf16, #tpu.memory_space<vmem>>, vector<1x1x8x8x128xbf16>
    %58 = vector.shape_cast %57 : vector<1x1x8x8x128xbf16> to vector<1x8x8x128xbf16>
    %59 = vector.shape_cast %58 : vector<1x8x8x128xbf16> to vector<64x128xbf16>
    %c6 = arith.constant 6 : index
    %c0_52 = arith.constant 0 : index
    %c0_53 = arith.constant 0 : index
    %60 = vector.load %arg3[%c6, %c0_52, %c0_53] : memref<27x128x128xbf16, #tpu.memory_space<vmem>>, vector<1x128x128xbf16>
    %61 = vector.shape_cast %60 : vector<1x128x128xbf16> to vector<128x128xbf16>
    %cst_54 = arith.constant dense<0.000000e+00> : vector<64x128xf32>
    %62 = tpu.matmul %59, %61, %cst_54 {dimension_numbers = #tpu.dot_dimension_numbers<[1], [0], [0], [1], [0, 0, 1, 1], [], []>} : vector<64x128xbf16>, vector<128x128xbf16>, vector<64x128xf32> -> vector<64x128xf32>
    %63 = arith.addf %54, %62 : vector<64x128xf32>
    %c0_i32_55 = arith.constant 0 : i32
    %64 = arith.addi %arg1, %c0_i32_55 : i32
    %c0_56 = arith.constant 0 : index
    %65 = arith.index_cast %64 : i32 to index
    %c2_57 = arith.constant 2 : index
    %c1_58 = arith.constant 1 : index
    %c0_59 = arith.constant 0 : index
    %66 = vector.load %arg2[%c0_56, %65, %c2_57, %c1_58, %c0_59] : memref<1x6x10x10x128xbf16, #tpu.memory_space<vmem>>, vector<1x1x8x8x128xbf16>
    %67 = vector.shape_cast %66 : vector<1x1x8x8x128xbf16> to vector<1x8x8x128xbf16>
    %68 = vector.shape_cast %67 : vector<1x8x8x128xbf16> to vector<64x128xbf16>
    %c7 = arith.constant 7 : index
    %c0_60 = arith.constant 0 : index
    %c0_61 = arith.constant 0 : index
    %69 = vector.load %arg3[%c7, %c0_60, %c0_61] : memref<27x128x128xbf16, #tpu.memory_space<vmem>>, vector<1x128x128xbf16>
    %70 = vector.shape_cast %69 : vector<1x128x128xbf16> to vector<128x128xbf16>
    %cst_62 = arith.constant dense<0.000000e+00> : vector<64x128xf32>
    %71 = tpu.matmul %68, %70, %cst_62 {dimension_numbers = #tpu.dot_dimension_numbers<[1], [0], [0], [1], [0, 0, 1, 1], [], []>} : vector<64x128xbf16>, vector<128x128xbf16>, vector<64x128xf32> -> vector<64x128xf32>
    %72 = arith.addf %63, %71 : vector<64x128xf32>
    %c0_i32_63 = arith.constant 0 : i32
    %73 = arith.addi %arg1, %c0_i32_63 : i32
    %c0_64 = arith.constant 0 : index
    %74 = arith.index_cast %73 : i32 to index
    %c2_65 = arith.constant 2 : index
    %c2_66 = arith.constant 2 : index
    %c0_67 = arith.constant 0 : index
    %75 = vector.load %arg2[%c0_64, %74, %c2_65, %c2_66, %c0_67] : memref<1x6x10x10x128xbf16, #tpu.memory_space<vmem>>, vector<1x1x8x8x128xbf16>
    %76 = vector.shape_cast %75 : vector<1x1x8x8x128xbf16> to vector<1x8x8x128xbf16>
    %77 = vector.shape_cast %76 : vector<1x8x8x128xbf16> to vector<64x128xbf16>
    %c8 = arith.constant 8 : index
    %c0_68 = arith.constant 0 : index
    %c0_69 = arith.constant 0 : index
    %78 = vector.load %arg3[%c8, %c0_68, %c0_69] : memref<27x128x128xbf16, #tpu.memory_space<vmem>>, vector<1x128x128xbf16>
    %79 = vector.shape_cast %78 : vector<1x128x128xbf16> to vector<128x128xbf16>
    %cst_70 = arith.constant dense<0.000000e+00> : vector<64x128xf32>
    %80 = tpu.matmul %77, %79, %cst_70 {dimension_numbers = #tpu.dot_dimension_numbers<[1], [0], [0], [1], [0, 0, 1, 1], [], []>} : vector<64x128xbf16>, vector<128x128xbf16>, vector<64x128xf32> -> vector<64x128xf32>
    %81 = arith.addf %72, %80 : vector<64x128xf32>
    %c1_i32 = arith.constant 1 : i32
    %82 = arith.addi %arg1, %c1_i32 : i32
    %c0_71 = arith.constant 0 : index
    %83 = arith.index_cast %82 : i32 to index
    %c0_72 = arith.constant 0 : index
    %c0_73 = arith.constant 0 : index
    %c0_74 = arith.constant 0 : index
    %84 = vector.load %arg2[%c0_71, %83, %c0_72, %c0_73, %c0_74] : memref<1x6x10x10x128xbf16, #tpu.memory_space<vmem>>, vector<1x1x8x8x128xbf16>
    %85 = vector.shape_cast %84 : vector<1x1x8x8x128xbf16> to vector<1x8x8x128xbf16>
    %86 = vector.shape_cast %85 : vector<1x8x8x128xbf16> to vector<64x128xbf16>
    %c9 = arith.constant 9 : index
    %c0_75 = arith.constant 0 : index
    %c0_76 = arith.constant 0 : index
    %87 = vector.load %arg3[%c9, %c0_75, %c0_76] : memref<27x128x128xbf16, #tpu.memory_space<vmem>>, vector<1x128x128xbf16>
    %88 = vector.shape_cast %87 : vector<1x128x128xbf16> to vector<128x128xbf16>
    %cst_77 = arith.constant dense<0.000000e+00> : vector<64x128xf32>
    %89 = tpu.matmul %86, %88, %cst_77 {dimension_numbers = #tpu.dot_dimension_numbers<[1], [0], [0], [1], [0, 0, 1, 1], [], []>} : vector<64x128xbf16>, vector<128x128xbf16>, vector<64x128xf32> -> vector<64x128xf32>
    %90 = arith.addf %81, %89 : vector<64x128xf32>
    %c1_i32_78 = arith.constant 1 : i32
    %91 = arith.addi %arg1, %c1_i32_78 : i32
    %c0_79 = arith.constant 0 : index
    %92 = arith.index_cast %91 : i32 to index
    %c0_80 = arith.constant 0 : index
    %c1_81 = arith.constant 1 : index
    %c0_82 = arith.constant 0 : index
    %93 = vector.load %arg2[%c0_79, %92, %c0_80, %c1_81, %c0_82] : memref<1x6x10x10x128xbf16, #tpu.memory_space<vmem>>, vector<1x1x8x8x128xbf16>
    %94 = vector.shape_cast %93 : vector<1x1x8x8x128xbf16> to vector<1x8x8x128xbf16>
    %95 = vector.shape_cast %94 : vector<1x8x8x128xbf16> to vector<64x128xbf16>
    %c10 = arith.constant 10 : index
    %c0_83 = arith.constant 0 : index
    %c0_84 = arith.constant 0 : index
    %96 = vector.load %arg3[%c10, %c0_83, %c0_84] : memref<27x128x128xbf16, #tpu.memory_space<vmem>>, vector<1x128x128xbf16>
    %97 = vector.shape_cast %96 : vector<1x128x128xbf16> to vector<128x128xbf16>
    %cst_85 = arith.constant dense<0.000000e+00> : vector<64x128xf32>
    %98 = tpu.matmul %95, %97, %cst_85 {dimension_numbers = #tpu.dot_dimension_numbers<[1], [0], [0], [1], [0, 0, 1, 1], [], []>} : vector<64x128xbf16>, vector<128x128xbf16>, vector<64x128xf32> -> vector<64x128xf32>
    %99 = arith.addf %90, %98 : vector<64x128xf32>
    %c1_i32_86 = arith.constant 1 : i32
    %100 = arith.addi %arg1, %c1_i32_86 : i32
    %c0_87 = arith.constant 0 : index
    %101 = arith.index_cast %100 : i32 to index
    %c0_88 = arith.constant 0 : index
    %c2_89 = arith.constant 2 : index
    %c0_90 = arith.constant 0 : index
    %102 = vector.load %arg2[%c0_87, %101, %c0_88, %c2_89, %c0_90] : memref<1x6x10x10x128xbf16, #tpu.memory_space<vmem>>, vector<1x1x8x8x128xbf16>
    %103 = vector.shape_cast %102 : vector<1x1x8x8x128xbf16> to vector<1x8x8x128xbf16>
    %104 = vector.shape_cast %103 : vector<1x8x8x128xbf16> to vector<64x128xbf16>
    %c11 = arith.constant 11 : index
    %c0_91 = arith.constant 0 : index
    %c0_92 = arith.constant 0 : index
    %105 = vector.load %arg3[%c11, %c0_91, %c0_92] : memref<27x128x128xbf16, #tpu.memory_space<vmem>>, vector<1x128x128xbf16>
    %106 = vector.shape_cast %105 : vector<1x128x128xbf16> to vector<128x128xbf16>
    %cst_93 = arith.constant dense<0.000000e+00> : vector<64x128xf32>
    %107 = tpu.matmul %104, %106, %cst_93 {dimension_numbers = #tpu.dot_dimension_numbers<[1], [0], [0], [1], [0, 0, 1, 1], [], []>} : vector<64x128xbf16>, vector<128x128xbf16>, vector<64x128xf32> -> vector<64x128xf32>
    %108 = arith.addf %99, %107 : vector<64x128xf32>
    %c1_i32_94 = arith.constant 1 : i32
    %109 = arith.addi %arg1, %c1_i32_94 : i32
    %c0_95 = arith.constant 0 : index
    %110 = arith.index_cast %109 : i32 to index
    %c1_96 = arith.constant 1 : index
    %c0_97 = arith.constant 0 : index
    %c0_98 = arith.constant 0 : index
    %111 = vector.load %arg2[%c0_95, %110, %c1_96, %c0_97, %c0_98] : memref<1x6x10x10x128xbf16, #tpu.memory_space<vmem>>, vector<1x1x8x8x128xbf16>
    %112 = vector.shape_cast %111 : vector<1x1x8x8x128xbf16> to vector<1x8x8x128xbf16>
    %113 = vector.shape_cast %112 : vector<1x8x8x128xbf16> to vector<64x128xbf16>
    %c12 = arith.constant 12 : index
    %c0_99 = arith.constant 0 : index
    %c0_100 = arith.constant 0 : index
    %114 = vector.load %arg3[%c12, %c0_99, %c0_100] : memref<27x128x128xbf16, #tpu.memory_space<vmem>>, vector<1x128x128xbf16>
    %115 = vector.shape_cast %114 : vector<1x128x128xbf16> to vector<128x128xbf16>
    %cst_101 = arith.constant dense<0.000000e+00> : vector<64x128xf32>
    %116 = tpu.matmul %113, %115, %cst_101 {dimension_numbers = #tpu.dot_dimension_numbers<[1], [0], [0], [1], [0, 0, 1, 1], [], []>} : vector<64x128xbf16>, vector<128x128xbf16>, vector<64x128xf32> -> vector<64x128xf32>
    %117 = arith.addf %108, %116 : vector<64x128xf32>
    %c1_i32_102 = arith.constant 1 : i32
    %118 = arith.addi %arg1, %c1_i32_102 : i32
    %c0_103 = arith.constant 0 : index
    %119 = arith.index_cast %118 : i32 to index
    %c1_104 = arith.constant 1 : index
    %c1_105 = arith.constant 1 : index
    %c0_106 = arith.constant 0 : index
    %120 = vector.load %arg2[%c0_103, %119, %c1_104, %c1_105, %c0_106] : memref<1x6x10x10x128xbf16, #tpu.memory_space<vmem>>, vector<1x1x8x8x128xbf16>
    %121 = vector.shape_cast %120 : vector<1x1x8x8x128xbf16> to vector<1x8x8x128xbf16>
    %122 = vector.shape_cast %121 : vector<1x8x8x128xbf16> to vector<64x128xbf16>
    %c13 = arith.constant 13 : index
    %c0_107 = arith.constant 0 : index
    %c0_108 = arith.constant 0 : index
    %123 = vector.load %arg3[%c13, %c0_107, %c0_108] : memref<27x128x128xbf16, #tpu.memory_space<vmem>>, vector<1x128x128xbf16>
    %124 = vector.shape_cast %123 : vector<1x128x128xbf16> to vector<128x128xbf16>
    %cst_109 = arith.constant dense<0.000000e+00> : vector<64x128xf32>
    %125 = tpu.matmul %122, %124, %cst_109 {dimension_numbers = #tpu.dot_dimension_numbers<[1], [0], [0], [1], [0, 0, 1, 1], [], []>} : vector<64x128xbf16>, vector<128x128xbf16>, vector<64x128xf32> -> vector<64x128xf32>
    %126 = arith.addf %117, %125 : vector<64x128xf32>
    %c1_i32_110 = arith.constant 1 : i32
    %127 = arith.addi %arg1, %c1_i32_110 : i32
    %c0_111 = arith.constant 0 : index
    %128 = arith.index_cast %127 : i32 to index
    %c1_112 = arith.constant 1 : index
    %c2_113 = arith.constant 2 : index
    %c0_114 = arith.constant 0 : index
    %129 = vector.load %arg2[%c0_111, %128, %c1_112, %c2_113, %c0_114] : memref<1x6x10x10x128xbf16, #tpu.memory_space<vmem>>, vector<1x1x8x8x128xbf16>
    %130 = vector.shape_cast %129 : vector<1x1x8x8x128xbf16> to vector<1x8x8x128xbf16>
    %131 = vector.shape_cast %130 : vector<1x8x8x128xbf16> to vector<64x128xbf16>
    %c14 = arith.constant 14 : index
    %c0_115 = arith.constant 0 : index
    %c0_116 = arith.constant 0 : index
    %132 = vector.load %arg3[%c14, %c0_115, %c0_116] : memref<27x128x128xbf16, #tpu.memory_space<vmem>>, vector<1x128x128xbf16>
    %133 = vector.shape_cast %132 : vector<1x128x128xbf16> to vector<128x128xbf16>
    %cst_117 = arith.constant dense<0.000000e+00> : vector<64x128xf32>
    %134 = tpu.matmul %131, %133, %cst_117 {dimension_numbers = #tpu.dot_dimension_numbers<[1], [0], [0], [1], [0, 0, 1, 1], [], []>} : vector<64x128xbf16>, vector<128x128xbf16>, vector<64x128xf32> -> vector<64x128xf32>
    %135 = arith.addf %126, %134 : vector<64x128xf32>
    %c1_i32_118 = arith.constant 1 : i32
    %136 = arith.addi %arg1, %c1_i32_118 : i32
    %c0_119 = arith.constant 0 : index
    %137 = arith.index_cast %136 : i32 to index
    %c2_120 = arith.constant 2 : index
    %c0_121 = arith.constant 0 : index
    %c0_122 = arith.constant 0 : index
    %138 = vector.load %arg2[%c0_119, %137, %c2_120, %c0_121, %c0_122] : memref<1x6x10x10x128xbf16, #tpu.memory_space<vmem>>, vector<1x1x8x8x128xbf16>
    %139 = vector.shape_cast %138 : vector<1x1x8x8x128xbf16> to vector<1x8x8x128xbf16>
    %140 = vector.shape_cast %139 : vector<1x8x8x128xbf16> to vector<64x128xbf16>
    %c15 = arith.constant 15 : index
    %c0_123 = arith.constant 0 : index
    %c0_124 = arith.constant 0 : index
    %141 = vector.load %arg3[%c15, %c0_123, %c0_124] : memref<27x128x128xbf16, #tpu.memory_space<vmem>>, vector<1x128x128xbf16>
    %142 = vector.shape_cast %141 : vector<1x128x128xbf16> to vector<128x128xbf16>
    %cst_125 = arith.constant dense<0.000000e+00> : vector<64x128xf32>
    %143 = tpu.matmul %140, %142, %cst_125 {dimension_numbers = #tpu.dot_dimension_numbers<[1], [0], [0], [1], [0, 0, 1, 1], [], []>} : vector<64x128xbf16>, vector<128x128xbf16>, vector<64x128xf32> -> vector<64x128xf32>
    %144 = arith.addf %135, %143 : vector<64x128xf32>
    %c1_i32_126 = arith.constant 1 : i32
    %145 = arith.addi %arg1, %c1_i32_126 : i32
    %c0_127 = arith.constant 0 : index
    %146 = arith.index_cast %145 : i32 to index
    %c2_128 = arith.constant 2 : index
    %c1_129 = arith.constant 1 : index
    %c0_130 = arith.constant 0 : index
    %147 = vector.load %arg2[%c0_127, %146, %c2_128, %c1_129, %c0_130] : memref<1x6x10x10x128xbf16, #tpu.memory_space<vmem>>, vector<1x1x8x8x128xbf16>
    %148 = vector.shape_cast %147 : vector<1x1x8x8x128xbf16> to vector<1x8x8x128xbf16>
    %149 = vector.shape_cast %148 : vector<1x8x8x128xbf16> to vector<64x128xbf16>
    %c16 = arith.constant 16 : index
    %c0_131 = arith.constant 0 : index
    %c0_132 = arith.constant 0 : index
    %150 = vector.load %arg3[%c16, %c0_131, %c0_132] : memref<27x128x128xbf16, #tpu.memory_space<vmem>>, vector<1x128x128xbf16>
    %151 = vector.shape_cast %150 : vector<1x128x128xbf16> to vector<128x128xbf16>
    %cst_133 = arith.constant dense<0.000000e+00> : vector<64x128xf32>
    %152 = tpu.matmul %149, %151, %cst_133 {dimension_numbers = #tpu.dot_dimension_numbers<[1], [0], [0], [1], [0, 0, 1, 1], [], []>} : vector<64x128xbf16>, vector<128x128xbf16>, vector<64x128xf32> -> vector<64x128xf32>
    %153 = arith.addf %144, %152 : vector<64x128xf32>
    %c1_i32_134 = arith.constant 1 : i32
    %154 = arith.addi %arg1, %c1_i32_134 : i32
    %c0_135 = arith.constant 0 : index
    %155 = arith.index_cast %154 : i32 to index
    %c2_136 = arith.constant 2 : index
    %c2_137 = arith.constant 2 : index
    %c0_138 = arith.constant 0 : index
    %156 = vector.load %arg2[%c0_135, %155, %c2_136, %c2_137, %c0_138] : memref<1x6x10x10x128xbf16, #tpu.memory_space<vmem>>, vector<1x1x8x8x128xbf16>
    %157 = vector.shape_cast %156 : vector<1x1x8x8x128xbf16> to vector<1x8x8x128xbf16>
    %158 = vector.shape_cast %157 : vector<1x8x8x128xbf16> to vector<64x128xbf16>
    %c17 = arith.constant 17 : index
    %c0_139 = arith.constant 0 : index
    %c0_140 = arith.constant 0 : index
    %159 = vector.load %arg3[%c17, %c0_139, %c0_140] : memref<27x128x128xbf16, #tpu.memory_space<vmem>>, vector<1x128x128xbf16>
    %160 = vector.shape_cast %159 : vector<1x128x128xbf16> to vector<128x128xbf16>
    %cst_141 = arith.constant dense<0.000000e+00> : vector<64x128xf32>
    %161 = tpu.matmul %158, %160, %cst_141 {dimension_numbers = #tpu.dot_dimension_numbers<[1], [0], [0], [1], [0, 0, 1, 1], [], []>} : vector<64x128xbf16>, vector<128x128xbf16>, vector<64x128xf32> -> vector<64x128xf32>
    %162 = arith.addf %153, %161 : vector<64x128xf32>
    %c2_i32 = arith.constant 2 : i32
    %163 = arith.addi %arg1, %c2_i32 : i32
    %c0_142 = arith.constant 0 : index
    %164 = arith.index_cast %163 : i32 to index
    %c0_143 = arith.constant 0 : index
    %c0_144 = arith.constant 0 : index
    %c0_145 = arith.constant 0 : index
    %165 = vector.load %arg2[%c0_142, %164, %c0_143, %c0_144, %c0_145] : memref<1x6x10x10x128xbf16, #tpu.memory_space<vmem>>, vector<1x1x8x8x128xbf16>
    %166 = vector.shape_cast %165 : vector<1x1x8x8x128xbf16> to vector<1x8x8x128xbf16>
    %167 = vector.shape_cast %166 : vector<1x8x8x128xbf16> to vector<64x128xbf16>
    %c18 = arith.constant 18 : index
    %c0_146 = arith.constant 0 : index
    %c0_147 = arith.constant 0 : index
    %168 = vector.load %arg3[%c18, %c0_146, %c0_147] : memref<27x128x128xbf16, #tpu.memory_space<vmem>>, vector<1x128x128xbf16>
    %169 = vector.shape_cast %168 : vector<1x128x128xbf16> to vector<128x128xbf16>
    %cst_148 = arith.constant dense<0.000000e+00> : vector<64x128xf32>
    %170 = tpu.matmul %167, %169, %cst_148 {dimension_numbers = #tpu.dot_dimension_numbers<[1], [0], [0], [1], [0, 0, 1, 1], [], []>} : vector<64x128xbf16>, vector<128x128xbf16>, vector<64x128xf32> -> vector<64x128xf32>
    %171 = arith.addf %162, %170 : vector<64x128xf32>
    %c2_i32_149 = arith.constant 2 : i32
    %172 = arith.addi %arg1, %c2_i32_149 : i32
    %c0_150 = arith.constant 0 : index
    %173 = arith.index_cast %172 : i32 to index
    %c0_151 = arith.constant 0 : index
    %c1_152 = arith.constant 1 : index
    %c0_153 = arith.constant 0 : index
    %174 = vector.load %arg2[%c0_150, %173, %c0_151, %c1_152, %c0_153] : memref<1x6x10x10x128xbf16, #tpu.memory_space<vmem>>, vector<1x1x8x8x128xbf16>
    %175 = vector.shape_cast %174 : vector<1x1x8x8x128xbf16> to vector<1x8x8x128xbf16>
    %176 = vector.shape_cast %175 : vector<1x8x8x128xbf16> to vector<64x128xbf16>
    %c19 = arith.constant 19 : index
    %c0_154 = arith.constant 0 : index
    %c0_155 = arith.constant 0 : index
    %177 = vector.load %arg3[%c19, %c0_154, %c0_155] : memref<27x128x128xbf16, #tpu.memory_space<vmem>>, vector<1x128x128xbf16>
    %178 = vector.shape_cast %177 : vector<1x128x128xbf16> to vector<128x128xbf16>
    %cst_156 = arith.constant dense<0.000000e+00> : vector<64x128xf32>
    %179 = tpu.matmul %176, %178, %cst_156 {dimension_numbers = #tpu.dot_dimension_numbers<[1], [0], [0], [1], [0, 0, 1, 1], [], []>} : vector<64x128xbf16>, vector<128x128xbf16>, vector<64x128xf32> -> vector<64x128xf32>
    %180 = arith.addf %171, %179 : vector<64x128xf32>
    %c2_i32_157 = arith.constant 2 : i32
    %181 = arith.addi %arg1, %c2_i32_157 : i32
    %c0_158 = arith.constant 0 : index
    %182 = arith.index_cast %181 : i32 to index
    %c0_159 = arith.constant 0 : index
    %c2_160 = arith.constant 2 : index
    %c0_161 = arith.constant 0 : index
    %183 = vector.load %arg2[%c0_158, %182, %c0_159, %c2_160, %c0_161] : memref<1x6x10x10x128xbf16, #tpu.memory_space<vmem>>, vector<1x1x8x8x128xbf16>
    %184 = vector.shape_cast %183 : vector<1x1x8x8x128xbf16> to vector<1x8x8x128xbf16>
    %185 = vector.shape_cast %184 : vector<1x8x8x128xbf16> to vector<64x128xbf16>
    %c20 = arith.constant 20 : index
    %c0_162 = arith.constant 0 : index
    %c0_163 = arith.constant 0 : index
    %186 = vector.load %arg3[%c20, %c0_162, %c0_163] : memref<27x128x128xbf16, #tpu.memory_space<vmem>>, vector<1x128x128xbf16>
    %187 = vector.shape_cast %186 : vector<1x128x128xbf16> to vector<128x128xbf16>
    %cst_164 = arith.constant dense<0.000000e+00> : vector<64x128xf32>
    %188 = tpu.matmul %185, %187, %cst_164 {dimension_numbers = #tpu.dot_dimension_numbers<[1], [0], [0], [1], [0, 0, 1, 1], [], []>} : vector<64x128xbf16>, vector<128x128xbf16>, vector<64x128xf32> -> vector<64x128xf32>
    %189 = arith.addf %180, %188 : vector<64x128xf32>
    %c2_i32_165 = arith.constant 2 : i32
    %190 = arith.addi %arg1, %c2_i32_165 : i32
    %c0_166 = arith.constant 0 : index
    %191 = arith.index_cast %190 : i32 to index
    %c1_167 = arith.constant 1 : index
    %c0_168 = arith.constant 0 : index
    %c0_169 = arith.constant 0 : index
    %192 = vector.load %arg2[%c0_166, %191, %c1_167, %c0_168, %c0_169] : memref<1x6x10x10x128xbf16, #tpu.memory_space<vmem>>, vector<1x1x8x8x128xbf16>
    %193 = vector.shape_cast %192 : vector<1x1x8x8x128xbf16> to vector<1x8x8x128xbf16>
    %194 = vector.shape_cast %193 : vector<1x8x8x128xbf16> to vector<64x128xbf16>
    %c21 = arith.constant 21 : index
    %c0_170 = arith.constant 0 : index
    %c0_171 = arith.constant 0 : index
    %195 = vector.load %arg3[%c21, %c0_170, %c0_171] : memref<27x128x128xbf16, #tpu.memory_space<vmem>>, vector<1x128x128xbf16>
    %196 = vector.shape_cast %195 : vector<1x128x128xbf16> to vector<128x128xbf16>
    %cst_172 = arith.constant dense<0.000000e+00> : vector<64x128xf32>
    %197 = tpu.matmul %194, %196, %cst_172 {dimension_numbers = #tpu.dot_dimension_numbers<[1], [0], [0], [1], [0, 0, 1, 1], [], []>} : vector<64x128xbf16>, vector<128x128xbf16>, vector<64x128xf32> -> vector<64x128xf32>
    %198 = arith.addf %189, %197 : vector<64x128xf32>
    %c2_i32_173 = arith.constant 2 : i32
    %199 = arith.addi %arg1, %c2_i32_173 : i32
    %c0_174 = arith.constant 0 : index
    %200 = arith.index_cast %199 : i32 to index
    %c1_175 = arith.constant 1 : index
    %c1_176 = arith.constant 1 : index
    %c0_177 = arith.constant 0 : index
    %201 = vector.load %arg2[%c0_174, %200, %c1_175, %c1_176, %c0_177] : memref<1x6x10x10x128xbf16, #tpu.memory_space<vmem>>, vector<1x1x8x8x128xbf16>
    %202 = vector.shape_cast %201 : vector<1x1x8x8x128xbf16> to vector<1x8x8x128xbf16>
    %203 = vector.shape_cast %202 : vector<1x8x8x128xbf16> to vector<64x128xbf16>
    %c22 = arith.constant 22 : index
    %c0_178 = arith.constant 0 : index
    %c0_179 = arith.constant 0 : index
    %204 = vector.load %arg3[%c22, %c0_178, %c0_179] : memref<27x128x128xbf16, #tpu.memory_space<vmem>>, vector<1x128x128xbf16>
    %205 = vector.shape_cast %204 : vector<1x128x128xbf16> to vector<128x128xbf16>
    %cst_180 = arith.constant dense<0.000000e+00> : vector<64x128xf32>
    %206 = tpu.matmul %203, %205, %cst_180 {dimension_numbers = #tpu.dot_dimension_numbers<[1], [0], [0], [1], [0, 0, 1, 1], [], []>} : vector<64x128xbf16>, vector<128x128xbf16>, vector<64x128xf32> -> vector<64x128xf32>
    %207 = arith.addf %198, %206 : vector<64x128xf32>
    %c2_i32_181 = arith.constant 2 : i32
    %208 = arith.addi %arg1, %c2_i32_181 : i32
    %c0_182 = arith.constant 0 : index
    %209 = arith.index_cast %208 : i32 to index
    %c1_183 = arith.constant 1 : index
    %c2_184 = arith.constant 2 : index
    %c0_185 = arith.constant 0 : index
    %210 = vector.load %arg2[%c0_182, %209, %c1_183, %c2_184, %c0_185] : memref<1x6x10x10x128xbf16, #tpu.memory_space<vmem>>, vector<1x1x8x8x128xbf16>
    %211 = vector.shape_cast %210 : vector<1x1x8x8x128xbf16> to vector<1x8x8x128xbf16>
    %212 = vector.shape_cast %211 : vector<1x8x8x128xbf16> to vector<64x128xbf16>
    %c23 = arith.constant 23 : index
    %c0_186 = arith.constant 0 : index
    %c0_187 = arith.constant 0 : index
    %213 = vector.load %arg3[%c23, %c0_186, %c0_187] : memref<27x128x128xbf16, #tpu.memory_space<vmem>>, vector<1x128x128xbf16>
    %214 = vector.shape_cast %213 : vector<1x128x128xbf16> to vector<128x128xbf16>
    %cst_188 = arith.constant dense<0.000000e+00> : vector<64x128xf32>
    %215 = tpu.matmul %212, %214, %cst_188 {dimension_numbers = #tpu.dot_dimension_numbers<[1], [0], [0], [1], [0, 0, 1, 1], [], []>} : vector<64x128xbf16>, vector<128x128xbf16>, vector<64x128xf32> -> vector<64x128xf32>
    %216 = arith.addf %207, %215 : vector<64x128xf32>
    %c2_i32_189 = arith.constant 2 : i32
    %217 = arith.addi %arg1, %c2_i32_189 : i32
    %c0_190 = arith.constant 0 : index
    %218 = arith.index_cast %217 : i32 to index
    %c2_191 = arith.constant 2 : index
    %c0_192 = arith.constant 0 : index
    %c0_193 = arith.constant 0 : index
    %219 = vector.load %arg2[%c0_190, %218, %c2_191, %c0_192, %c0_193] : memref<1x6x10x10x128xbf16, #tpu.memory_space<vmem>>, vector<1x1x8x8x128xbf16>
    %220 = vector.shape_cast %219 : vector<1x1x8x8x128xbf16> to vector<1x8x8x128xbf16>
    %221 = vector.shape_cast %220 : vector<1x8x8x128xbf16> to vector<64x128xbf16>
    %c24 = arith.constant 24 : index
    %c0_194 = arith.constant 0 : index
    %c0_195 = arith.constant 0 : index
    %222 = vector.load %arg3[%c24, %c0_194, %c0_195] : memref<27x128x128xbf16, #tpu.memory_space<vmem>>, vector<1x128x128xbf16>
    %223 = vector.shape_cast %222 : vector<1x128x128xbf16> to vector<128x128xbf16>
    %cst_196 = arith.constant dense<0.000000e+00> : vector<64x128xf32>
    %224 = tpu.matmul %221, %223, %cst_196 {dimension_numbers = #tpu.dot_dimension_numbers<[1], [0], [0], [1], [0, 0, 1, 1], [], []>} : vector<64x128xbf16>, vector<128x128xbf16>, vector<64x128xf32> -> vector<64x128xf32>
    %225 = arith.addf %216, %224 : vector<64x128xf32>
    %c2_i32_197 = arith.constant 2 : i32
    %226 = arith.addi %arg1, %c2_i32_197 : i32
    %c0_198 = arith.constant 0 : index
    %227 = arith.index_cast %226 : i32 to index
    %c2_199 = arith.constant 2 : index
    %c1_200 = arith.constant 1 : index
    %c0_201 = arith.constant 0 : index
    %228 = vector.load %arg2[%c0_198, %227, %c2_199, %c1_200, %c0_201] : memref<1x6x10x10x128xbf16, #tpu.memory_space<vmem>>, vector<1x1x8x8x128xbf16>
    %229 = vector.shape_cast %228 : vector<1x1x8x8x128xbf16> to vector<1x8x8x128xbf16>
    %230 = vector.shape_cast %229 : vector<1x8x8x128xbf16> to vector<64x128xbf16>
    %c25 = arith.constant 25 : index
    %c0_202 = arith.constant 0 : index
    %c0_203 = arith.constant 0 : index
    %231 = vector.load %arg3[%c25, %c0_202, %c0_203] : memref<27x128x128xbf16, #tpu.memory_space<vmem>>, vector<1x128x128xbf16>
    %232 = vector.shape_cast %231 : vector<1x128x128xbf16> to vector<128x128xbf16>
    %cst_204 = arith.constant dense<0.000000e+00> : vector<64x128xf32>
    %233 = tpu.matmul %230, %232, %cst_204 {dimension_numbers = #tpu.dot_dimension_numbers<[1], [0], [0], [1], [0, 0, 1, 1], [], []>} : vector<64x128xbf16>, vector<128x128xbf16>, vector<64x128xf32> -> vector<64x128xf32>
    %234 = arith.addf %225, %233 : vector<64x128xf32>
    %c2_i32_205 = arith.constant 2 : i32
    %235 = arith.addi %arg1, %c2_i32_205 : i32
    %c0_206 = arith.constant 0 : index
    %236 = arith.index_cast %235 : i32 to index
    %c2_207 = arith.constant 2 : index
    %c2_208 = arith.constant 2 : index
    %c0_209 = arith.constant 0 : index
    %237 = vector.load %arg2[%c0_206, %236, %c2_207, %c2_208, %c0_209] : memref<1x6x10x10x128xbf16, #tpu.memory_space<vmem>>, vector<1x1x8x8x128xbf16>
    %238 = vector.shape_cast %237 : vector<1x1x8x8x128xbf16> to vector<1x8x8x128xbf16>
    %239 = vector.shape_cast %238 : vector<1x8x8x128xbf16> to vector<64x128xbf16>
    %c26 = arith.constant 26 : index
    %c0_210 = arith.constant 0 : index
    %c0_211 = arith.constant 0 : index
    %240 = vector.load %arg3[%c26, %c0_210, %c0_211] : memref<27x128x128xbf16, #tpu.memory_space<vmem>>, vector<1x128x128xbf16>
    %241 = vector.shape_cast %240 : vector<1x128x128xbf16> to vector<128x128xbf16>
    %cst_212 = arith.constant dense<0.000000e+00> : vector<64x128xf32>
    %242 = tpu.matmul %239, %241, %cst_212 {dimension_numbers = #tpu.dot_dimension_numbers<[1], [0], [0], [1], [0, 0, 1, 1], [], []>} : vector<64x128xbf16>, vector<128x128xbf16>, vector<64x128xf32> -> vector<64x128xf32>
    %243 = arith.addf %234, %242 : vector<64x128xf32>
    %c0_213 = arith.constant 0 : index
    %c0_214 = arith.constant 0 : index
    %244 = vector.load %arg4[%c0_213, %c0_214] : memref<1x128xf32, #tpu.memory_space<vmem>>, vector<1x128xf32>
    %245 = vector.broadcast %244 : vector<1x128xf32> to vector<64x128xf32>
    %246 = arith.addf %243, %245 : vector<64x128xf32>
    %cst_215 = arith.constant 0.000000e+00 : f32
    %247 = vector.broadcast %cst_215 : f32 to vector<64x128xf32>
    %248 = arith.maximumf %246, %247 : vector<64x128xf32>
    %249 = vector.shape_cast %248 : vector<64x128xf32> to vector<8x8x128xf32>
    %250 = arith.truncf %249 : vector<8x8x128xf32> to vector<8x8x128xbf16>
    %c0_216 = arith.constant 0 : index
    %c0_217 = arith.constant 0 : index
    %c0_218 = arith.constant 0 : index
    %c0_219 = arith.constant 0 : index
    %c0_220 = arith.constant 0 : index
    %251 = vector.load %arg5[%c0_216, %c0_217, %c0_218, %c0_219, %c0_220] : memref<1x1x8x8x128xbf16, #tpu.memory_space<vmem>>, vector<1x1x8x8x128xbf16>
    %252 = vector.shape_cast %251 : vector<1x1x8x8x128xbf16> to vector<8x8x128xbf16>
    %253 = vector.shape_cast %250 : vector<8x8x128xbf16> to vector<1x1x8x8x128xbf16>
    tpu.vector_store %arg5[%c0_216, %c0_217, %c0_218, %c0_219, %c0_220], %253 {strides = array<i32>} : memref<1x1x8x8x128xbf16, #tpu.memory_space<vmem>>, vector<1x1x8x8x128xbf16>,
    return
  }
  func.func @transform_0(%arg0: i32, %arg1: i32) -> (i32, i32, i32, i32, i32) {
    %c0_i32 = arith.constant 0 : i32
    %c0_i32_0 = arith.constant 0 : i32
    %c0_i32_1 = arith.constant 0 : i32
    %c0_i32_2 = arith.constant 0 : i32
    %c0_i32_3 = arith.constant 0 : i32
    return %arg0, %c0_i32, %c0_i32_0, %c0_i32_1, %c0_i32_2 : i32, i32, i32, i32, i32
  }
  func.func @transform_1(%arg0: i32, %arg1: i32) -> (i32, i32, i32) {
    %c0_i32 = arith.constant 0 : i32
    %c0_i32_0 = arith.constant 0 : i32
    %c0_i32_1 = arith.constant 0 : i32
    %c0_i32_2 = arith.constant 0 : i32
    return %c0_i32, %c0_i32_0, %c0_i32_1 : i32, i32, i32
  }
  func.func @transform_2(%arg0: i32, %arg1: i32) -> (i32, i32) {
    %c0_i32 = arith.constant 0 : i32
    %c0_i32_0 = arith.constant 0 : i32
    %c0_i32_1 = arith.constant 0 : i32
    return %c0_i32, %c0_i32_0 : i32, i32
  }
  func.func @transform_3(%arg0: i32, %arg1: i32) -> (i32, i32, i32, i32, i32) {
    %c0_i32 = arith.constant 0 : i32
    %c0_i32_0 = arith.constant 0 : i32
    %c0_i32_1 = arith.constant 0 : i32
    %c0_i32_2 = arith.constant 0 : i32
    return %arg0, %arg1, %c0_i32, %c0_i32_0, %c0_i32_1 : i32, i32, i32, i32, i32
  }
}

</mosaic_0001>

<llo_original>
// kernel: a_call__.5
$region0: #{a_call__.5}
  #allocation0 [shape = 'u32[]', space=smem, size = 0x4, offset = 0x4, fixed_abs, tag = 'smem constant byte address 0x4 - core index']
  #allocation1 [shape = 'u32[144,128]{1,0:T(1,128)}', space=vmem, size = 0x12000, scoped, tag = 'internal scratch']
  %s0 = inlined_call_operand.vmem [shape: bf16[512,128], index: 0, kind: input, shape index: {}]
  %s1 = inlined_call_operand.vmem [shape: bf16[128,128], index: 1, kind: input, shape index: {}]
  %s2 = inlined_call_operand.vmem [shape: f32[1,128], index: 2, kind: input, shape index: {}]
  %s3 = inlined_call_operand.vmem [shape: f32[512,128], index: 3, kind: input, shape index: {}]
  %s4 = inlined_call_operand.hbm [shape: f32[512,128], index: 4, kind: output, shape index: {}]
  %s5 = sld [smem:[#allocation0]]
  $region26: #{a_call__.5} parent=0
    _
  %s7 = ssub.s32 1, %s5
  %s8 = scalar_select 0, %s7, %s5
  $region1: #{a_call__.5} parent=0
    #allocation2 [shape = 'u8[262144]{0}', space=vmem, size = 0x40000, scoped, tag = 'output window, operand 0, single buffered']
    #allocation3 [shape = 's32[1]{0}', space=sflag, size = 0x4, scoped, tag = 'scoped memory for a_call__.5']
    %9 = vsyncpa [#allocation3], 0
    // Predicated region
    $region2: #{a_call__.5} parent=1 // pred_check
      _
    $region3: #{a_call__.5} parent=1 // pred_check_branch
      %11 = sbr.rel (0) target = $region5
    $region4: #{a_call__.5} parent=1 // pred_region
      _
    $region5: #{a_call__.5} parent=1 // pred_fallthru
      _
    // Predicated region
    $region6: #{a_call__.5} parent=1 // pred_check
      _
    $region7: #{a_call__.5} parent=1 // pred_check_branch
      %13 = sbr.rel (0) target = $region9
    $region8: #{a_call__.5} parent=1 // pred_region
      _
    $region9: #{a_call__.5} parent=1 // pred_fallthru
      _
    // Predicated region
    $region10: #{a_call__.5} parent=1 // pred_check
      _
    $region11: #{a_call__.5} parent=1 // pred_check_branch
      %15 = sbr.rel (0) target = $region13
    $region12: #{a_call__.5} parent=1 // pred_region
      _
    $region13: #{a_call__.5} parent=1 // pred_fallthru
      _
    // Predicated region
    $region14: #{a_call__.5} parent=1 // pred_check
      _
    $region15: #{a_call__.5} parent=1 // pred_check_branch
      %17 = sbr.rel (0) target = $region17
    $region16: #{a_call__.5} parent=1 // pred_region
      _
    $region17: #{a_call__.5} parent=1 // pred_fallthru
      _
    %v19 = vld [vmem:[%s0] sm:$0xf]
    %v20 = vld [vmem:[%s0 + $0x4] sm:$0xf]
    %v21 = vld [vmem:[%s0 + $0x8] sm:$0xf]
    %v22 = vld [vmem:[%s0 + $0xc] sm:$0xf]
    %v23 = vld [vmem:[%s0 + $0x10] sm:$0xf]
    %v24 = vld [vmem:[%s0 + $0x14] sm:$0xf]
    %v25 = vld [vmem:[%s0 + $0x18] sm:$0xf]
    %v26 = vld [vmem:[%s0 + $0x1c] sm:$0xf]
    %v27 = vld [vmem:[%s0 + $0x20] sm:$0xf]
    %v28 = vld [vmem:[%s0 + $0x24] sm:$0xf]
    %v29 = vld [vmem:[%s0 + $0x28] sm:$0xf]
    %v30 = vld [vmem:[%s0 + $0x2c] sm:$0xf]
    %v31 = vld [vmem:[%s0 + $0x30] sm:$0xf]
    %v32 = vld [vmem:[%s0 + $0x34] sm:$0xf]
    %v33 = vld [vmem:[%s0 + $0x38] sm:$0xf]
    %v34 = vld [vmem:[%s0 + $0x3c] sm:$0xf]
    %v35 = vld [vmem:[%s0 + $0x40] sm:$0xf]
    %v36 = vld [vmem:[%s0 + $0x44] sm:$0xf]
    %v37 = vld [vmem:[%s0 + $0x48] sm:$0xf]
    %v38 = vld [vmem:[%s0 + $0x4c] sm:$0xf]
    %v39 = vld [vmem:[%s0 + $0x50] sm:$0xf]
    %v40 = vld [vmem:[%s0 + $0x54] sm:$0xf]
    %v41 = vld [vmem:[%s0 + $0x58] sm:$0xf]
    %v42 = vld [vmem:[%s0 + $0x5c] sm:$0xf]
    %v43 = vld [vmem:[%s0 + $0x60] sm:$0xf]
    %v44 = vld [vmem:[%s0 + $0x64] sm:$0xf]
    %v45 = vld [vmem:[%s0 + $0x68] sm:$0xf]
    %v46 = vld [vmem:[%s0 + $0x6c] sm:$0xf]
    %v47 = vld [vmem:[%s0 + $0x70] sm:$0xf]
    %v48 = vld [vmem:[%s0 + $0x74] sm:$0xf]
    %v49 = vld [vmem:[%s0 + $0x78] sm:$0xf]
    %v50 = vld [vmem:[%s0 + $0x7c] sm:$0xf]
    %v51 = vld [vmem:[%s0 + $0x80] sm:$0xf]
    %v52 = vld [vmem:[%s0 + $0x84] sm:$0xf]
    %v53 = vld [vmem:[%s0 + $0x88] sm:$0xf]
    %v54 = vld [vmem:[%s0 + $0x8c] sm:$0xf]
    %v55 = vld [vmem:[%s0 + $0x90] sm:$0xf]
    %v56 = vld [vmem:[%s0 + $0x94] sm:$0xf]
    %v57 = vld [vmem:[%s0 + $0x98] sm:$0xf]
    %v58 = vld [vmem:[%s0 + $0x9c] sm:$0xf]
    %v59 = vld [vmem:[%s0 + $0xa0] sm:$0xf]
    %v60 = vld [vmem:[%s0 + $0xa4] sm:$0xf]
    %v61 = vld [vmem:[%s0 + $0xa8] sm:$0xf]
    %v62 = vld [vmem:[%s0 + $0xac] sm:$0xf]
    %v63 = vld [vmem:[%s0 + $0xb0] sm:$0xf]
    %v64 = vld [vmem:[%s0 + $0xb4] sm:$0xf]
    %v65 = vld [vmem:[%s0 + $0xb8] sm:$0xf]
    %v66 = vld [vmem:[%s0 + $0xbc] sm:$0xf]
    %v67 = vld [vmem:[%s0 + $0xc0] sm:$0xf]
    %v68 = vld [vmem:[%s0 + $0xc4] sm:$0xf]
    %v69 = vld [vmem:[%s0 + $0xc8] sm:$0xf]
    %v70 = vld [vmem:[%s0 + $0xcc] sm:$0xf]
    %v71 = vld [vmem:[%s0 + $0xd0] sm:$0xf]
    %v72 = vld [vmem:[%s0 + $0xd4] sm:$0xf]
    %v73 = vld [vmem:[%s0 + $0xd8] sm:$0xf]
    %v74 = vld [vmem:[%s0 + $0xdc] sm:$0xf]
    %v75 = vld [vmem:[%s0 + $0xe0] sm:$0xf]
    %v76 = vld [vmem:[%s0 + $0xe4] sm:$0xf]
    %v77 = vld [vmem:[%s0 + $0xe8] sm:$0xf]
    %v78 = vld [vmem:[%s0 + $0xec] sm:$0xf]
    %v79 = vld [vmem:[%s0 + $0xf0] sm:$0xf]
    %v80 = vld [vmem:[%s0 + $0xf4] sm:$0xf]
    %v81 = vld [vmem:[%s0 + $0xf8] sm:$0xf]
    %v82 = vld [vmem:[%s0 + $0xfc] sm:$0xf]
    %v83 = vld [vmem:[%s1] sm:$0xf]
    %v84 = vld [vmem:[%s1 + $0x4] sm:$0xf]
    %v85 = vld [vmem:[%s1 + $0x8] sm:$0xf]
    %v86 = vld [vmem:[%s1 + $0xc] sm:$0xf]
    %v87 = vld [vmem:[%s1 + $0x10] sm:$0xf]
    %v88 = vld [vmem:[%s1 + $0x14] sm:$0xf]
    %v89 = vld [vmem:[%s1 + $0x18] sm:$0xf]
    %v90 = vld [vmem:[%s1 + $0x1c] sm:$0xf]
    %v91 = vld [vmem:[%s1 + $0x20] sm:$0xf]
    %v92 = vld [vmem:[%s1 + $0x24] sm:$0xf]
    %v93 = vld [vmem:[%s1 + $0x28] sm:$0xf]
    %v94 = vld [vmem:[%s1 + $0x2c] sm:$0xf]
    %v95 = vld [vmem:[%s1 + $0x30] sm:$0xf]
    %v96 = vld [vmem:[%s1 + $0x34] sm:$0xf]
    %v97 = vld [vmem:[%s1 + $0x38] sm:$0xf]
    %v98 = vld [vmem:[%s1 + $0x3c] sm:$0xf]
    %v99 = vld [vmem:[%s2] sm:$0x1]
    %v101 = vlaneseq
    %v102 = vshrl.u32 %v101, 7
    %v103 = vsub.s32 0, %v102
    %v104 = vrot.slane %v99, %v103
    %v170 = vunpack.c.l.b16 %v19
    %v171 = vunpack.c.l.b16 %v20
    %v172 = vunpack.c.l.b16 %v21
    %v173 = vunpack.c.l.b16 %v22
    %v174 = vunpack.c.l.b16 %v23
    %v175 = vunpack.c.l.b16 %v24
    %v176 = vunpack.c.l.b16 %v25
    %v177 = vunpack.c.l.b16 %v26
    %v178 = vunpack.c.l.b16 %v27
    %v179 = vunpack.c.l.b16 %v28
    %v180 = vunpack.c.l.b16 %v29
    %v181 = vunpack.c.l.b16 %v30
    %v182 = vunpack.c.l.b16 %v31
    %v183 = vunpack.c.l.b16 %v32
    %v184 = vunpack.c.l.b16 %v33
    %v185 = vunpack.c.l.b16 %v34
    %v186 = vunpack.c.l.b16 %v35
    %v187 = vunpack.c.l.b16 %v36
    %v188 = vunpack.c.l.b16 %v37
    %v189 = vunpack.c.l.b16 %v38
    %v190 = vunpack.c.l.b16 %v39
    %v191 = vunpack.c.l.b16 %v40
    %v192 = vunpack.c.l.b16 %v41
    %v193 = vunpack.c.l.b16 %v42
    %v194 = vunpack.c.l.b16 %v43
    %v195 = vunpack.c.l.b16 %v44
    %v196 = vunpack.c.l.b16 %v45
    %v197 = vunpack.c.l.b16 %v46
    %v198 = vunpack.c.l.b16 %v47
    %v199 = vunpack.c.l.b16 %v48
    %v200 = vunpack.c.l.b16 %v49
    %v201 = vunpack.c.l.b16 %v50
    %v202 = vunpack.c.l.b16 %v51
    %v203 = vunpack.c.l.b16 %v52
    %v204 = vunpack.c.l.b16 %v53
    %v205 = vunpack.c.l.b16 %v54
    %v206 = vunpack.c.l.b16 %v55
    %v207 = vunpack.c.l.b16 %v56
    %v208 = vunpack.c.l.b16 %v57
    %v209 = vunpack.c.l.b16 %v58
    %v210 = vunpack.c.l.b16 %v59
    %v211 = vunpack.c.l.b16 %v60
    %v212 = vunpack.c.l.b16 %v61
    %v213 = vunpack.c.l.b16 %v62
    %v214 = vunpack.c.l.b16 %v63
    %v215 = vunpack.c.l.b16 %v64
    %v216 = vunpack.c.l.b16 %v65
    %v217 = vunpack.c.l.b16 %v66
    %v218 = vunpack.c.l.b16 %v67
    %v219 = vunpack.c.l.b16 %v68
    %v220 = vunpack.c.l.b16 %v69
    %v221 = vunpack.c.l.b16 %v70
    %v222 = vunpack.c.l.b16 %v71
    %v223 = vunpack.c.l.b16 %v72
    %v224 = vunpack.c.l.b16 %v73
    %v225 = vunpack.c.l.b16 %v74
    %v226 = vunpack.c.l.b16 %v75
    %v227 = vunpack.c.l.b16 %v76
    %v228 = vunpack.c.l.b16 %v77
    %v229 = vunpack.c.l.b16 %v78
    %v230 = vunpack.c.l.b16 %v79
    %v231 = vunpack.c.l.b16 %v80
    %v232 = vunpack.c.l.b16 %v81
    %v233 = vunpack.c.l.b16 %v82
    %v234 = vpack.c.b16 %v171, %v170
    %v235 = vpack.c.b16 %v173, %v172
    %v236 = vpack.c.b16 %v175, %v174
    %v237 = vpack.c.b16 %v177, %v176
    %v238 = vpack.c.b16 %v179, %v178
    %v239 = vpack.c.b16 %v181, %v180
    %v240 = vpack.c.b16 %v183, %v182
    %v241 = vpack.c.b16 %v185, %v184
    %v242 = vpack.c.b16 %v187, %v186
    %v243 = vpack.c.b16 %v189, %v188
    %v244 = vpack.c.b16 %v191, %v190
    %v245 = vpack.c.b16 %v193, %v192
    %v246 = vpack.c.b16 %v195, %v194
    %v247 = vpack.c.b16 %v197, %v196
    %v248 = vpack.c.b16 %v199, %v198
    %v249 = vpack.c.b16 %v201, %v200
    %v250 = vpack.c.b16 %v203, %v202
    %v251 = vpack.c.b16 %v205, %v204
    %v252 = vpack.c.b16 %v207, %v206
    %v253 = vpack.c.b16 %v209, %v208
    %v254 = vpack.c.b16 %v211, %v210
    %v255 = vpack.c.b16 %v213, %v212
    %v256 = vpack.c.b16 %v215, %v214
    %v257 = vpack.c.b16 %v217, %v216
    %v258 = vpack.c.b16 %v219, %v218
    %v259 = vpack.c.b16 %v221, %v220
    %v260 = vpack.c.b16 %v223, %v222
    %v261 = vpack.c.b16 %v225, %v224
    %v262 = vpack.c.b16 %v227, %v226
    %v263 = vpack.c.b16 %v229, %v228
    %v264 = vpack.c.b16 %v231, %v230
    %v265 = vpack.c.b16 %v233, %v232
    %v314 = vunpack.c.l.b16 %v83
    %v315 = vunpack.c.l.b16 %v84
    %v316 = vunpack.c.l.b16 %v85
    %v317 = vunpack.c.l.b16 %v86
    %v318 = vunpack.c.l.b16 %v87
    %v319 = vunpack.c.l.b16 %v88
    %v320 = vunpack.c.l.b16 %v89
    %v321 = vunpack.c.l.b16 %v90
    %v322 = vunpack.c.l.b16 %v91
    %v323 = vunpack.c.l.b16 %v92
    %v324 = vunpack.c.l.b16 %v93
    %v325 = vunpack.c.l.b16 %v94
    %v326 = vunpack.c.l.b16 %v95
    %v327 = vunpack.c.l.b16 %v96
    %v328 = vunpack.c.l.b16 %v97
    %v329 = vunpack.c.l.b16 %v98
    %v330 = vpack.c.b16 %v315, %v314
    %v331 = vpack.c.b16 %v317, %v316
    %v332 = vpack.c.b16 %v319, %v318
    %v333 = vpack.c.b16 %v321, %v320
    %v334 = vpack.c.b16 %v323, %v322
    %v335 = vpack.c.b16 %v325, %v324
    %v336 = vpack.c.b16 %v327, %v326
    %v337 = vpack.c.b16 %v329, %v328
    %346 = vmatprep.subr.bf16.mxu0 0
    %347 = vmatpush1.bf16.msra.mxu0 %v330
    %348 = vmatprep.subr.bf16.mxu0 0
    %349 = vmatpush1.bf16.msra.mxu0 %v331
    %350 = vmatprep.subr.bf16.mxu0 0
    %351 = vmatpush1.bf16.msra.mxu0 %v332
    %352 = vmatprep.subr.bf16.mxu0 0
    %353 = vmatpush1.bf16.msra.mxu0 %v333
    %354 = vmatprep.subr.bf16.mxu0 0
    %355 = vmatpush1.bf16.msra.mxu0 %v334
    %356 = vmatprep.subr.bf16.mxu0 0
    %357 = vmatpush1.bf16.msra.mxu0 %v335
    %358 = vmatprep.subr.bf16.mxu0 0
    %359 = vmatpush1.bf16.msra.mxu0 %v336
    %360 = vmatprep.subr.bf16.mxu0 0
    %361 = vmatpush1.bf16.msra.mxu0 %v337
    %362 = vmatprep.subr.bf16.mxu0 0
    %363 = vmatpush1.bf16.msra.mxu0 0
    %364 = vmatprep.subr.bf16.mxu0 0
    %365 = vmatpush1.bf16.msra.mxu0 0
    %366 = vmatprep.subr.bf16.mxu0 0
    %367 = vmatpush1.bf16.msra.mxu0 0
    %368 = vmatprep.subr.bf16.mxu0 0
    %369 = vmatpush1.bf16.msra.mxu0 0
    %370 = vmatprep.subr.bf16.mxu0 0
    %371 = vmatpush1.bf16.msra.mxu0 0
    %372 = vmatprep.subr.bf16.mxu0 0
    %373 = vmatpush1.bf16.msra.mxu0 0
    %374 = vmatprep.subr.bf16.mxu0 0
    %375 = vmatpush1.bf16.msra.mxu0 0
    %376 = vmatprep.subr.bf16.mxu0 0
    %377 = vmatpush1.bf16.msra.mxu0 0
    %378 = vmatprep.mubr.bf16.mxu0 0
    %379 = vmatmul.mubr.bf16.gmra.mrb[0].mxu0 %v234
    %v380 = vpop.f32.mrb[0].mxu0
    %v381 = vadd.f32 %v104, %v380
    %v382 = vpop.f32.mrb[0].mxu0
    %v383 = vpop.f32.mrb[0].mxu0
    %v384 = vadd.f32 %v104, %v383
    %v385 = vpop.f32.mrb[0].mxu0
    %386 = vmatprep.mubr.bf16.mxu0 0
    %387 = vmatmul.mubr.bf16.gmra.mrb[0].mxu0 %v235
    %v388 = vpop.f32.mrb[0].mxu0
    %v389 = vadd.f32 %v104, %v388
    %v390 = vpop.f32.mrb[0].mxu0
    %v391 = vpop.f32.mrb[0].mxu0
    %v392 = vadd.f32 %v104, %v391
    %v393 = vpop.f32.mrb[0].mxu0
    %394 = vmatprep.mubr.bf16.mxu0 0
    %395 = vmatmul.mubr.bf16.gmra.mrb[0].mxu0 %v236
    %v396 = vpop.f32.mrb[0].mxu0
    %v397 = vadd.f32 %v104, %v396
    %v398 = vpop.f32.mrb[0].mxu0
    %v399 = vpop.f32.mrb[0].mxu0
    %v400 = vadd.f32 %v104, %v399
    %v401 = vpop.f32.mrb[0].mxu0
    %402 = vmatprep.mubr.bf16.mxu0 0
    %403 = vmatmul.mubr.bf16.gmra.mrb[0].mxu0 %v237
    %v404 = vpop.f32.mrb[0].mxu0
    %v405 = vadd.f32 %v104, %v404
    %v406 = vpop.f32.mrb[0].mxu0
    %v407 = vpop.f32.mrb[0].mxu0
    %v408 = vadd.f32 %v104, %v407
    %v409 = vpop.f32.mrb[0].mxu0
    %410 = vmatprep.mubr.bf16.mxu0 0
    %411 = vmatmul.mubr.bf16.gmra.mrb[0].mxu0 %v238
    %v412 = vpop.f32.mrb[0].mxu0
    %v413 = vadd.f32 %v104, %v412
    %v414 = vpop.f32.mrb[0].mxu0
    %v415 = vpop.f32.mrb[0].mxu0
    %v416 = vadd.f32 %v104, %v415
    %v417 = vpop.f32.mrb[0].mxu0
    %418 = vmatprep.mubr.bf16.mxu0 0
    %419 = vmatmul.mubr.bf16.gmra.mrb[0].mxu0 %v239
    %v420 = vpop.f32.mrb[0].mxu0
    %v421 = vadd.f32 %v104, %v420
    %v422 = vpop.f32.mrb[0].mxu0
    %v423 = vpop.f32.mrb[0].mxu0
    %v424 = vadd.f32 %v104, %v423
    %v425 = vpop.f32.mrb[0].mxu0
    %426 = vmatprep.mubr.bf16.mxu0 0
    %427 = vmatmul.mubr.bf16.gmra.mrb[0].mxu0 %v240
    %v428 = vpop.f32.mrb[0].mxu0
    %v429 = vadd.f32 %v104, %v428
    %v430 = vpop.f32.mrb[0].mxu0
    %v431 = vpop.f32.mrb[0].mxu0
    %v432 = vadd.f32 %v104, %v431
    %v433 = vpop.f32.mrb[0].mxu0
    %434 = vmatprep.mubr.bf16.mxu0 0
    %435 = vmatmul.mubr.bf16.gmra.mrb[0].mxu0 %v241
    %v436 = vpop.f32.mrb[0].mxu0
    %v437 = vadd.f32 %v104, %v436
    %v438 = vpop.f32.mrb[0].mxu0
    %v439 = vpop.f32.mrb[0].mxu0
    %v440 = vadd.f32 %v104, %v439
    %v441 = vpop.f32.mrb[0].mxu0
    %442 = vmatprep.mubr.bf16.mxu0 0
    %443 = vmatmul.mubr.bf16.gmra.mrb[0].mxu0 %v242
    %v444 = vpop.f32.mrb[0].mxu0
    %v445 = vadd.f32 %v104, %v444
    %v446 = vpop.f32.mrb[0].mxu0
    %v447 = vpop.f32.mrb[0].mxu0
    %v448 = vadd.f32 %v104, %v447
    %v449 = vpop.f32.mrb[0].mxu0
    %450 = vmatprep.mubr.bf16.mxu0 0
    %451 = vmatmul.mubr.bf16.gmra.mrb[0].mxu0 %v243
    %v452 = vpop.f32.mrb[0].mxu0
    %v453 = vadd.f32 %v104, %v452
    %v454 = vpop.f32.mrb[0].mxu0
    %v455 = vpop.f32.mrb[0].mxu0
    %v456 = vadd.f32 %v104, %v455
    %v457 = vpop.f32.mrb[0].mxu0
    %458 = vmatprep.mubr.bf16.mxu0 0
    %459 = vmatmul.mubr.bf16.gmra.mrb[0].mxu0 %v244
    %v460 = vpop.f32.mrb[0].mxu0
    %v461 = vadd.f32 %v104, %v460
    %v462 = vpop.f32.mrb[0].mxu0
    %v463 = vpop.f32.mrb[0].mxu0
    %v464 = vadd.f32 %v104, %v463
    %v465 = vpop.f32.mrb[0].mxu0
    %466 = vmatprep.mubr.bf16.mxu0 0
    %467 = vmatmul.mubr.bf16.gmra.mrb[0].mxu0 %v245
    %v468 = vpop.f32.mrb[0].mxu0
    %v469 = vadd.f32 %v104, %v468
    %v470 = vpop.f32.mrb[0].mxu0
    %v471 = vpop.f32.mrb[0].mxu0
    %v472 = vadd.f32 %v104, %v471
    %v473 = vpop.f32.mrb[0].mxu0
    %474 = vmatprep.mubr.bf16.mxu0 0
    %475 = vmatmul.mubr.bf16.gmra.mrb[0].mxu0 %v246
    %v476 = vpop.f32.mrb[0].mxu0
    %v477 = vadd.f32 %v104, %v476
    %v478 = vpop.f32.mrb[0].mxu0
    %v479 = vpop.f32.mrb[0].mxu0
    %v480 = vadd.f32 %v104, %v479
    %v481 = vpop.f32.mrb[0].mxu0
    %482 = vmatprep.mubr.bf16.mxu0 0
    %483 = vmatmul.mubr.bf16.gmra.mrb[0].mxu0 %v247
    %v484 = vpop.f32.mrb[0].mxu0
    %v485 = vadd.f32 %v104, %v484
    %v486 = vpop.f32.mrb[0].mxu0
    %v487 = vpop.f32.mrb[0].mxu0
    %v488 = vadd.f32 %v104, %v487
    %v489 = vpop.f32.mrb[0].mxu0
    %490 = vmatprep.mubr.bf16.mxu0 0
    %491 = vmatmul.mubr.bf16.gmra.mrb[0].mxu0 %v248
    %v492 = vpop.f32.mrb[0].mxu0
    %v493 = vadd.f32 %v104, %v492
    %v494 = vpop.f32.mrb[0].mxu0
    %v495 = vpop.f32.mrb[0].mxu0
    %v496 = vadd.f32 %v104, %v495
    %v497 = vpop.f32.mrb[0].mxu0
    %498 = vmatprep.mubr.bf16.mxu0 0
    %499 = vmatmul.mubr.bf16.gmra.mrb[0].mxu0 %v249
    %v500 = vpop.f32.mrb[0].mxu0
    %v501 = vadd.f32 %v104, %v500
    %v502 = vpop.f32.mrb[0].mxu0
    %v503 = vpop.f32.mrb[0].mxu0
    %v504 = vadd.f32 %v104, %v503
    %v505 = vpop.f32.mrb[0].mxu0
    %506 = vmatprep.mubr.bf16.mxu0 0
    %507 = vmatmul.mubr.bf16.gmra.mrb[0].mxu0 %v250
    %v508 = vpop.f32.mrb[0].mxu0
    %v509 = vadd.f32 %v104, %v508
    %v510 = vpop.f32.mrb[0].mxu0
    %v511 = vpop.f32.mrb[0].mxu0
    %v512 = vadd.f32 %v104, %v511
    %v513 = vpop.f32.mrb[0].mxu0
    %514 = vmatprep.mubr.bf16.mxu0 0
    %515 = vmatmul.mubr.bf16.gmra.mrb[0].mxu0 %v251
    %v516 = vpop.f32.mrb[0].mxu0
    %v517 = vadd.f32 %v104, %v516
    %v518 = vpop.f32.mrb[0].mxu0
    %v519 = vpop.f32.mrb[0].mxu0
    %v520 = vadd.f32 %v104, %v519
    %v521 = vpop.f32.mrb[0].mxu0
    %522 = vmatprep.mubr.bf16.mxu0 0
    %523 = vmatmul.mubr.bf16.gmra.mrb[0].mxu0 %v252
    %v524 = vpop.f32.mrb[0].mxu0
    %v525 = vadd.f32 %v104, %v524
    %v526 = vpop.f32.mrb[0].mxu0
    %v527 = vpop.f32.mrb[0].mxu0
    %v528 = vadd.f32 %v104, %v527
    %v529 = vpop.f32.mrb[0].mxu0
    %530 = vmatprep.mubr.bf16.mxu0 0
    %531 = vmatmul.mubr.bf16.gmra.mrb[0].mxu0 %v253
    %v532 = vpop.f32.mrb[0].mxu0
    %v533 = vadd.f32 %v104, %v532
    %v534 = vpop.f32.mrb[0].mxu0
    %v535 = vpop.f32.mrb[0].mxu0
    %v536 = vadd.f32 %v104, %v535
    %v537 = vpop.f32.mrb[0].mxu0
    %538 = vmatprep.mubr.bf16.mxu0 0
    %539 = vmatmul.mubr.bf16.gmra.mrb[0].mxu0 %v254
    %v540 = vpop.f32.mrb[0].mxu0
    %v541 = vadd.f32 %v104, %v540
    %v542 = vpop.f32.mrb[0].mxu0
    %v543 = vpop.f32.mrb[0].mxu0
    %v544 = vadd.f32 %v104, %v543
    %v545 = vpop.f32.mrb[0].mxu0
    %546 = vmatprep.mubr.bf16.mxu0 0
    %547 = vmatmul.mubr.bf16.gmra.mrb[0].mxu0 %v255
    %v548 = vpop.f32.mrb[0].mxu0
    %v549 = vadd.f32 %v104, %v548
    %v550 = vpop.f32.mrb[0].mxu0
    %v551 = vpop.f32.mrb[0].mxu0
    %v552 = vadd.f32 %v104, %v551
    %v553 = vpop.f32.mrb[0].mxu0
    %554 = vmatprep.mubr.bf16.mxu0 0
    %555 = vmatmul.mubr.bf16.gmra.mrb[0].mxu0 %v256
    %v556 = vpop.f32.mrb[0].mxu0
    %v557 = vadd.f32 %v104, %v556
    %v558 = vpop.f32.mrb[0].mxu0
    %v559 = vpop.f32.mrb[0].mxu0
    %v560 = vadd.f32 %v104, %v559
    %v561 = vpop.f32.mrb[0].mxu0
    %562 = vmatprep.mubr.bf16.mxu0 0
    %563 = vmatmul.mubr.bf16.gmra.mrb[0].mxu0 %v257
    %v564 = vpop.f32.mrb[0].mxu0
    %v565 = vadd.f32 %v104, %v564
    %v566 = vpop.f32.mrb[0].mxu0
    %v567 = vpop.f32.mrb[0].mxu0
    %v568 = vadd.f32 %v104, %v567
    %v569 = vpop.f32.mrb[0].mxu0
    %570 = vmatprep.mubr.bf16.mxu0 0
    %571 = vmatmul.mubr.bf16.gmra.mrb[0].mxu0 %v258
    %v572 = vpop.f32.mrb[0].mxu0
    %v573 = vadd.f32 %v104, %v572
    %v574 = vpop.f32.mrb[0].mxu0
    %v575 = vpop.f32.mrb[0].mxu0
    %v576 = vadd.f32 %v104, %v575
    %v577 = vpop.f32.mrb[0].mxu0
    %578 = vmatprep.mubr.bf16.mxu0 0
    %579 = vmatmul.mubr.bf16.gmra.mrb[0].mxu0 %v259
    %v580 = vpop.f32.mrb[0].mxu0
    %v581 = vadd.f32 %v104, %v580
    %v582 = vpop.f32.mrb[0].mxu0
    %v583 = vpop.f32.mrb[0].mxu0
    %v584 = vadd.f32 %v104, %v583
    %v585 = vpop.f32.mrb[0].mxu0
    %586 = vmatprep.mubr.bf16.mxu0 0
    %587 = vmatmul.mubr.bf16.gmra.mrb[0].mxu0 %v260
    %v588 = vpop.f32.mrb[0].mxu0
    %v589 = vadd.f32 %v104, %v588
    %v590 = vpop.f32.mrb[0].mxu0
    %v591 = vpop.f32.mrb[0].mxu0
    %v592 = vadd.f32 %v104, %v591
    %v593 = vpop.f32.mrb[0].mxu0
    %594 = vmatprep.mubr.bf16.mxu0 0
    %595 = vmatmul.mubr.bf16.gmra.mrb[0].mxu0 %v261
    %v596 = vpop.f32.mrb[0].mxu0
    %v597 = vadd.f32 %v104, %v596
    %v598 = vpop.f32.mrb[0].mxu0
    %v599 = vpop.f32.mrb[0].mxu0
    %v600 = vadd.f32 %v104, %v599
    %v601 = vpop.f32.mrb[0].mxu0
    %602 = vmatprep.mubr.bf16.mxu0 0
    %603 = vmatmul.mubr.bf16.gmra.mrb[0].mxu0 %v262
    %v604 = vpop.f32.mrb[0].mxu0
    %v605 = vadd.f32 %v104, %v604
    %v606 = vpop.f32.mrb[0].mxu0
    %v607 = vpop.f32.mrb[0].mxu0
    %v608 = vadd.f32 %v104, %v607
    %v609 = vpop.f32.mrb[0].mxu0
    %610 = vmatprep.mubr.bf16.mxu0 0
    %611 = vmatmul.mubr.bf16.gmra.mrb[0].mxu0 %v263
    %v612 = vpop.f32.mrb[0].mxu0
    %v613 = vadd.f32 %v104, %v612
    %v614 = vpop.f32.mrb[0].mxu0
    %v615 = vpop.f32.mrb[0].mxu0
    %v616 = vadd.f32 %v104, %v615
    %v617 = vpop.f32.mrb[0].mxu0
    %618 = vmatprep.mubr.bf16.mxu0 0
    %619 = vmatmul.mubr.bf16.gmra.mrb[0].mxu0 %v264
    %v620 = vpop.f32.mrb[0].mxu0
    %v621 = vadd.f32 %v104, %v620
    %v622 = vpop.f32.mrb[0].mxu0
    %v623 = vpop.f32.mrb[0].mxu0
    %v624 = vadd.f32 %v104, %v623
    %v625 = vpop.f32.mrb[0].mxu0
    %626 = vmatprep.mubr.bf16.mxu0 0
    %627 = vmatmul.mubr.bf16.gmra.mrb[0].mxu0 %v265
    %v628 = vpop.f32.mrb[0].mxu0
    %v629 = vadd.f32 %v104, %v628
    %v630 = vpop.f32.mrb[0].mxu0
    %v631 = vpop.f32.mrb[0].mxu0
    %v632 = vadd.f32 %v104, %v631
    %v633 = vpop.f32.mrb[0].mxu0
    %634 = vdwg.mxu0
    %v635 = vld [vmem:[%s3] sm:$0xff]
    %v636 = vld [vmem:[%s3 + $0x8] sm:$0xff]
    %v637 = vld [vmem:[%s3 + $0x10] sm:$0xff]
    %v638 = vld [vmem:[%s3 + $0x18] sm:$0xff]
    %v639 = vld [vmem:[%s3 + $0x20] sm:$0xff]
    %v640 = vld [vmem:[%s3 + $0x28] sm:$0xff]
    %v641 = vld [vmem:[%s3 + $0x30] sm:$0xff]
    %v642 = vld [vmem:[%s3 + $0x38] sm:$0xff]
    %v643 = vld [vmem:[%s3 + $0x40] sm:$0xff]
    %v644 = vld [vmem:[%s3 + $0x48] sm:$0xff]
    %v645 = vld [vmem:[%s3 + $0x50] sm:$0xff]
    %v646 = vld [vmem:[%s3 + $0x58] sm:$0xff]
    %v647 = vld [vmem:[%s3 + $0x60] sm:$0xff]
    %v648 = vld [vmem:[%s3 + $0x68] sm:$0xff]
    %v649 = vld [vmem:[%s3 + $0x70] sm:$0xff]
    %v650 = vld [vmem:[%s3 + $0x78] sm:$0xff]
    %v651 = vld [vmem:[%s3 + $0x80] sm:$0xff]
    %v652 = vld [vmem:[%s3 + $0x88] sm:$0xff]
    %v653 = vld [vmem:[%s3 + $0x90] sm:$0xff]
    %v654 = vld [vmem:[%s3 + $0x98] sm:$0xff]
    %v655 = vld [vmem:[%s3 + $0xa0] sm:$0xff]
    %v656 = vld [vmem:[%s3 + $0xa8] sm:$0xff]
    %v657 = vld [vmem:[%s3 + $0xb0] sm:$0xff]
    %v658 = vld [vmem:[%s3 + $0xb8] sm:$0xff]
    %v659 = vld [vmem:[%s3 + $0xc0] sm:$0xff]
    %v660 = vld [vmem:[%s3 + $0xc8] sm:$0xff]
    %v661 = vld [vmem:[%s3 + $0xd0] sm:$0xff]
    %v662 = vld [vmem:[%s3 + $0xd8] sm:$0xff]
    %v663 = vld [vmem:[%s3 + $0xe0] sm:$0xff]
    %v664 = vld [vmem:[%s3 + $0xe8] sm:$0xff]
    %v665 = vld [vmem:[%s3 + $0xf0] sm:$0xff]
    %v666 = vld [vmem:[%s3 + $0xf8] sm:$0xff]
    %v667 = vld [vmem:[%s3 + $0x100] sm:$0xff]
    %v668 = vld [vmem:[%s3 + $0x108] sm:$0xff]
    %v669 = vld [vmem:[%s3 + $0x110] sm:$0xff]
    %v670 = vld [vmem:[%s3 + $0x118] sm:$0xff]
    %v671 = vld [vmem:[%s3 + $0x120] sm:$0xff]
    %v672 = vld [vmem:[%s3 + $0x128] sm:$0xff]
    %v673 = vld [vmem:[%s3 + $0x130] sm:$0xff]
    %v674 = vld [vmem:[%s3 + $0x138] sm:$0xff]
    %v675 = vld [vmem:[%s3 + $0x140] sm:$0xff]
    %v676 = vld [vmem:[%s3 + $0x148] sm:$0xff]
    %v677 = vld [vmem:[%s3 + $0x150] sm:$0xff]
    %v678 = vld [vmem:[%s3 + $0x158] sm:$0xff]
    %v679 = vld [vmem:[%s3 + $0x160] sm:$0xff]
    %v680 = vld [vmem:[%s3 + $0x168] sm:$0xff]
    %v681 = vld [vmem:[%s3 + $0x170] sm:$0xff]
    %v682 = vld [vmem:[%s3 + $0x178] sm:$0xff]
    %v683 = vld [vmem:[%s3 + $0x180] sm:$0xff]
    %v684 = vld [vmem:[%s3 + $0x188] sm:$0xff]
    %v685 = vld [vmem:[%s3 + $0x190] sm:$0xff]
    %v686 = vld [vmem:[%s3 + $0x198] sm:$0xff]
    %v687 = vld [vmem:[%s3 + $0x1a0] sm:$0xff]
    %v688 = vld [vmem:[%s3 + $0x1a8] sm:$0xff]
    %v689 = vld [vmem:[%s3 + $0x1b0] sm:$0xff]
    %v690 = vld [vmem:[%s3 + $0x1b8] sm:$0xff]
    %v691 = vld [vmem:[%s3 + $0x1c0] sm:$0xff]
    %v692 = vld [vmem:[%s3 + $0x1c8] sm:$0xff]
    %v693 = vld [vmem:[%s3 + $0x1d0] sm:$0xff]
    %v694 = vld [vmem:[%s3 + $0x1d8] sm:$0xff]
    %v695 = vld [vmem:[%s3 + $0x1e0] sm:$0xff]
    %v696 = vld [vmem:[%s3 + $0x1e8] sm:$0xff]
    %v697 = vld [vmem:[%s3 + $0x1f0] sm:$0xff]
    %v698 = vld [vmem:[%s3 + $0x1f8] sm:$0xff]
    %v699 = vadd.f32 %v381, %v635
    %v700 = vadd.f32 %v384, %v636
    %v701 = vadd.f32 %v389, %v637
    %v702 = vadd.f32 %v392, %v638
    %v703 = vadd.f32 %v397, %v639
    %v704 = vadd.f32 %v400, %v640
    %v705 = vadd.f32 %v405, %v641
    %v706 = vadd.f32 %v408, %v642
    %v707 = vadd.f32 %v413, %v643
    %v708 = vadd.f32 %v416, %v644
    %v709 = vadd.f32 %v421, %v645
    %v710 = vadd.f32 %v424, %v646
    %v711 = vadd.f32 %v429, %v647
    %v712 = vadd.f32 %v432, %v648
    %v713 = vadd.f32 %v437, %v649
    %v714 = vadd.f32 %v440, %v650
    %v715 = vadd.f32 %v445, %v651
    %v716 = vadd.f32 %v448, %v652
    %v717 = vadd.f32 %v453, %v653
    %v718 = vadd.f32 %v456, %v654
    %v719 = vadd.f32 %v461, %v655
    %v720 = vadd.f32 %v464, %v656
    %v721 = vadd.f32 %v469, %v657
    %v722 = vadd.f32 %v472, %v658
    %v723 = vadd.f32 %v477, %v659
    %v724 = vadd.f32 %v480, %v660
    %v725 = vadd.f32 %v485, %v661
    %v726 = vadd.f32 %v488, %v662
    %v727 = vadd.f32 %v493, %v663
    %v728 = vadd.f32 %v496, %v664
    %v729 = vadd.f32 %v501, %v665
    %v730 = vadd.f32 %v504, %v666
    %v731 = vadd.f32 %v509, %v667
    %v732 = vadd.f32 %v512, %v668
    %v733 = vadd.f32 %v517, %v669
    %v734 = vadd.f32 %v520, %v670
    %v735 = vadd.f32 %v525, %v671
    %v736 = vadd.f32 %v528, %v672
    %v737 = vadd.f32 %v533, %v673
    %v738 = vadd.f32 %v536, %v674
    %v739 = vadd.f32 %v541, %v675
    %v740 = vadd.f32 %v544, %v676
    %v741 = vadd.f32 %v549, %v677
    %v742 = vadd.f32 %v552, %v678
    %v743 = vadd.f32 %v557, %v679
    %v744 = vadd.f32 %v560, %v680
    %v745 = vadd.f32 %v565, %v681
    %v746 = vadd.f32 %v568, %v682
    %v747 = vadd.f32 %v573, %v683
    %v748 = vadd.f32 %v576, %v684
    %v749 = vadd.f32 %v581, %v685
    %v750 = vadd.f32 %v584, %v686
    %v751 = vadd.f32 %v589, %v687
    %v752 = vadd.f32 %v592, %v688
    %v753 = vadd.f32 %v597, %v689
    %v754 = vadd.f32 %v600, %v690
    %v755 = vadd.f32 %v605, %v691
    %v756 = vadd.f32 %v608, %v692
    %v757 = vadd.f32 %v613, %v693
    %v758 = vadd.f32 %v616, %v694
    %v759 = vadd.f32 %v621, %v695
    %v760 = vadd.f32 %v624, %v696
    %v761 = vadd.f32 %v629, %v697
    %v762 = vadd.f32 %v632, %v698
    %v763 = vmax.f32 %v699, 0.0
    %v764 = vmax.f32 %v700, 0.0
    %v765 = vmax.f32 %v701, 0.0
    %v766 = vmax.f32 %v702, 0.0
    %v767 = vmax.f32 %v703, 0.0
    %v768 = vmax.f32 %v704, 0.0
    %v769 = vmax.f32 %v705, 0.0
    %v770 = vmax.f32 %v706, 0.0
    %v771 = vmax.f32 %v707, 0.0
    %v772 = vmax.f32 %v708, 0.0
    %v773 = vmax.f32 %v709, 0.0
    %v774 = vmax.f32 %v710, 0.0
    %v775 = vmax.f32 %v711, 0.0
    %v776 = vmax.f32 %v712, 0.0
    %v777 = vmax.f32 %v713, 0.0
    %v778 = vmax.f32 %v714, 0.0
    %v779 = vmax.f32 %v715, 0.0
    %v780 = vmax.f32 %v716, 0.0
    %v781 = vmax.f32 %v717, 0.0
    %v782 = vmax.f32 %v718, 0.0
    %v783 = vmax.f32 %v719, 0.0
    %v784 = vmax.f32 %v720, 0.0
    %v785 = vmax.f32 %v721, 0.0
    %v786 = vmax.f32 %v722, 0.0
    %v787 = vmax.f32 %v723, 0.0
    %v788 = vmax.f32 %v724, 0.0
    %v789 = vmax.f32 %v725, 0.0
    %v790 = vmax.f32 %v726, 0.0
    %v791 = vmax.f32 %v727, 0.0
    %v792 = vmax.f32 %v728, 0.0
    %v793 = vmax.f32 %v729, 0.0
    %v794 = vmax.f32 %v730, 0.0
    %v795 = vmax.f32 %v731, 0.0
    %v796 = vmax.f32 %v732, 0.0
    %v797 = vmax.f32 %v733, 0.0
    %v798 = vmax.f32 %v734, 0.0
    %v799 = vmax.f32 %v735, 0.0
    %v800 = vmax.f32 %v736, 0.0
    %v801 = vmax.f32 %v737, 0.0
    %v802 = vmax.f32 %v738, 0.0
    %v803 = vmax.f32 %v739, 0.0
    %v804 = vmax.f32 %v740, 0.0
    %v805 = vmax.f32 %v741, 0.0
    %v806 = vmax.f32 %v742, 0.0
    %v807 = vmax.f32 %v743, 0.0
    %v808 = vmax.f32 %v744, 0.0
    %v809 = vmax.f32 %v745, 0.0
    %v810 = vmax.f32 %v746, 0.0
    %v811 = vmax.f32 %v747, 0.0
    %v812 = vmax.f32 %v748, 0.0
    %v813 = vmax.f32 %v749, 0.0
    %v814 = vmax.f32 %v750, 0.0
    %v815 = vmax.f32 %v751, 0.0
    %v816 = vmax.f32 %v752, 0.0
    %v817 = vmax.f32 %v753, 0.0
    %v818 = vmax.f32 %v754, 0.0
    %v819 = vmax.f32 %v755, 0.0
    %v820 = vmax.f32 %v756, 0.0
    %v821 = vmax.f32 %v757, 0.0
    %v822 = vmax.f32 %v758, 0.0
    %v823 = vmax.f32 %v759, 0.0
    %v824 = vmax.f32 %v760, 0.0
    %v825 = vmax.f32 %v761, 0.0
    %v826 = vmax.f32 %v762, 0.0
    %827 = vst [vmem:[#allocation2] sm:$0xff] %v763
    %828 = vst [vmem:[#allocation2 + $0x8] sm:$0xff] %v764
    %829 = vst [vmem:[#allocation2 + $0x10] sm:$0xff] %v765
    %830 = vst [vmem:[#allocation2 + $0x18] sm:$0xff] %v766
    %831 = vst [vmem:[#allocation2 + $0x20] sm:$0xff] %v767
    %832 = vst [vmem:[#allocation2 + $0x28] sm:$0xff] %v768
    %833 = vst [vmem:[#allocation2 + $0x30] sm:$0xff] %v769
    %834 = vst [vmem:[#allocation2 + $0x38] sm:$0xff] %v770
    %835 = vst [vmem:[#allocation2 + $0x40] sm:$0xff] %v771
    %836 = vst [vmem:[#allocation2 + $0x48] sm:$0xff] %v772
    %837 = vst [vmem:[#allocation2 + $0x50] sm:$0xff] %v773
    %838 = vst [vmem:[#allocation2 + $0x58] sm:$0xff] %v774
    %839 = vst [vmem:[#allocation2 + $0x60] sm:$0xff] %v775
    %840 = vst [vmem:[#allocation2 + $0x68] sm:$0xff] %v776
    %841 = vst [vmem:[#allocation2 + $0x70] sm:$0xff] %v777
    %842 = vst [vmem:[#allocation2 + $0x78] sm:$0xff] %v778
    %843 = vst [vmem:[#allocation2 + $0x80] sm:$0xff] %v779
    %844 = vst [vmem:[#allocation2 + $0x88] sm:$0xff] %v780
    %845 = vst [vmem:[#allocation2 + $0x90] sm:$0xff] %v781
    %846 = vst [vmem:[#allocation2 + $0x98] sm:$0xff] %v782
    %847 = vst [vmem:[#allocation2 + $0xa0] sm:$0xff] %v783
    %848 = vst [vmem:[#allocation2 + $0xa8] sm:$0xff] %v784
    %849 = vst [vmem:[#allocation2 + $0xb0] sm:$0xff] %v785
    %850 = vst [vmem:[#allocation2 + $0xb8] sm:$0xff] %v786
    %851 = vst [vmem:[#allocation2 + $0xc0] sm:$0xff] %v787
    %852 = vst [vmem:[#allocation2 + $0xc8] sm:$0xff] %v788
    %853 = vst [vmem:[#allocation2 + $0xd0] sm:$0xff] %v789
    %854 = vst [vmem:[#allocation2 + $0xd8] sm:$0xff] %v790
    %855 = vst [vmem:[#allocation2 + $0xe0] sm:$0xff] %v791
    %856 = vst [vmem:[#allocation2 + $0xe8] sm:$0xff] %v792
    %857 = vst [vmem:[#allocation2 + $0xf0] sm:$0xff] %v793
    %858 = vst [vmem:[#allocation2 + $0xf8] sm:$0xff] %v794
    %859 = vst [vmem:[#allocation2 + $0x100] sm:$0xff] %v795
    %860 = vst [vmem:[#allocation2 + $0x108] sm:$0xff] %v796
    %861 = vst [vmem:[#allocation2 + $0x110] sm:$0xff] %v797
    %862 = vst [vmem:[#allocation2 + $0x118] sm:$0xff] %v798
    %863 = vst [vmem:[#allocation2 + $0x120] sm:$0xff] %v799
    %864 = vst [vmem:[#allocation2 + $0x128] sm:$0xff] %v800
    %865 = vst [vmem:[#allocation2 + $0x130] sm:$0xff] %v801
    %866 = vst [vmem:[#allocation2 + $0x138] sm:$0xff] %v802
    %867 = vst [vmem:[#allocation2 + $0x140] sm:$0xff] %v803
    %868 = vst [vmem:[#allocation2 + $0x148] sm:$0xff] %v804
    %869 = vst [vmem:[#allocation2 + $0x150] sm:$0xff] %v805
    %870 = vst [vmem:[#allocation2 + $0x158] sm:$0xff] %v806
    %871 = vst [vmem:[#allocation2 + $0x160] sm:$0xff] %v807
    %872 = vst [vmem:[#allocation2 + $0x168] sm:$0xff] %v808
    %873 = vst [vmem:[#allocation2 + $0x170] sm:$0xff] %v809
    %874 = vst [vmem:[#allocation2 + $0x178] sm:$0xff] %v810
    %875 = vst [vmem:[#allocation2 + $0x180] sm:$0xff] %v811
    %876 = vst [vmem:[#allocation2 + $0x188] sm:$0xff] %v812
    %877 = vst [vmem:[#allocation2 + $0x190] sm:$0xff] %v813
    %878 = vst [vmem:[#allocation2 + $0x198] sm:$0xff] %v814
    %879 = vst [vmem:[#allocation2 + $0x1a0] sm:$0xff] %v815
    %880 = vst [vmem:[#allocation2 + $0x1a8] sm:$0xff] %v816
    %881 = vst [vmem:[#allocation2 + $0x1b0] sm:$0xff] %v817
    %882 = vst [vmem:[#allocation2 + $0x1b8] sm:$0xff] %v818
    %883 = vst [vmem:[#allocation2 + $0x1c0] sm:$0xff] %v819
    %884 = vst [vmem:[#allocation2 + $0x1c8] sm:$0xff] %v820
    %885 = vst [vmem:[#allocation2 + $0x1d0] sm:$0xff] %v821
    %886 = vst [vmem:[#allocation2 + $0x1d8] sm:$0xff] %v822
    %887 = vst [vmem:[#allocation2 + $0x1e0] sm:$0xff] %v823
    %888 = vst [vmem:[#allocation2 + $0x1e8] sm:$0xff] %v824
    %889 = vst [vmem:[#allocation2 + $0x1f0] sm:$0xff] %v825
    %890 = vst [vmem:[#allocation2 + $0x1f8] sm:$0xff] %v826
    // Predicated region
    $region18: #{a_call__.5} parent=1 // pred_check
      _
    $region19: #{a_call__.5} parent=1 // pred_check_branch
      %892 = sbr.rel (0) target = $region21
    $region20: #{a_call__.5} parent=1 // pred_region
      %s894 = ssub.s32 8192, 8192
      %895 = vsyncadd [#allocation3], %s894
      %s896 = sshll.u32 [#allocation2], 4
      %s897 = int_to_ptr.vmem [resolvable:$true] %s896
      %902 = dma.vmem_to_hbm [thread:$0]  %s897, 8192, %s4, [#allocation3], 128, 128, 8
    $region21: #{a_call__.5} parent=1 // pred_fallthru
      _
    // Predicated region
    $region22: #{a_call__.5} parent=1 // pred_check
      _
    $region23: #{a_call__.5} parent=1 // pred_check_branch
      %904 = sbr.rel (0) target = $region25
    $region24: #{a_call__.5} parent=1 // pred_region
      %905 = dma.done [#allocation3], 8192
    $region25: #{a_call__.5} parent=1 // pred_fallthru
      _
    %906 = vsyncpa [#allocation3], 1

// kernel: a_call__.3
$region0: #{a_call__.3}
  #allocation0 [shape = 'u32[]', space=smem, size = 0x4, offset = 0x4, fixed_abs, tag = 'smem constant byte address 0x4 - core index']
  #allocation1 [shape = 'u32[144,128]{1,0:T(1,128)}', space=vmem, size = 0x12000, scoped, tag = 'internal scratch']
  %s0 = inlined_call_operand.vmem [shape: bf16[512,128], index: 0, kind: input, shape index: {}]
  %s1 = inlined_call_operand.vmem [shape: bf16[128,128], index: 1, kind: input, shape index: {}]
  %s2 = inlined_call_operand.vmem [shape: f32[1,128], index: 2, kind: input, shape index: {}]
  %s3 = inlined_call_operand.vmem [shape: bf16[512,128], index: 3, kind: output, shape index: {}]
  %s4 = sld [smem:[#allocation0]]
  $region22: #{a_call__.3} parent=0
    _
  %s6 = ssub.s32 1, %s4
  %s7 = scalar_select 0, %s6, %s4
  // Predicated region
  $region2: #{a_call__.3} parent=0 // pred_check
    _
  $region3: #{a_call__.3} parent=0 // pred_check_branch
    %9 = sbr.rel (0) target = $region5
  $region4: #{a_call__.3} parent=0 // pred_region
    _
  $region5: #{a_call__.3} parent=0 // pred_fallthru
    _
  // Predicated region
  $region6: #{a_call__.3} parent=0 // pred_check
    _
  $region7: #{a_call__.3} parent=0 // pred_check_branch
    %11 = sbr.rel (0) target = $region9
  $region8: #{a_call__.3} parent=0 // pred_region
    _
  $region9: #{a_call__.3} parent=0 // pred_fallthru
    _
  // Predicated region
  $region10: #{a_call__.3} parent=0 // pred_check
    _
  $region11: #{a_call__.3} parent=0 // pred_check_branch
    %13 = sbr.rel (0) target = $region13
  $region12: #{a_call__.3} parent=0 // pred_region
    _
  $region13: #{a_call__.3} parent=0 // pred_fallthru
    _
  %v15 = vld [vmem:[%s0] sm:$0xf]
  %v16 = vld [vmem:[%s0 + $0x4] sm:$0xf]
  %v17 = vld [vmem:[%s0 + $0x8] sm:$0xf]
  %v18 = vld [vmem:[%s0 + $0xc] sm:$0xf]
  %v19 = vld [vmem:[%s0 + $0x10] sm:$0xf]
  %v20 = vld [vmem:[%s0 + $0x14] sm:$0xf]
  %v21 = vld [vmem:[%s0 + $0x18] sm:$0xf]
  %v22 = vld [vmem:[%s0 + $0x1c] sm:$0xf]
  %v23 = vld [vmem:[%s0 + $0x20] sm:$0xf]
  %v24 = vld [vmem:[%s0 + $0x24] sm:$0xf]
  %v25 = vld [vmem:[%s0 + $0x28] sm:$0xf]
  %v26 = vld [vmem:[%s0 + $0x2c] sm:$0xf]
  %v27 = vld [vmem:[%s0 + $0x30] sm:$0xf]
  %v28 = vld [vmem:[%s0 + $0x34] sm:$0xf]
  %v29 = vld [vmem:[%s0 + $0x38] sm:$0xf]
  %v30 = vld [vmem:[%s0 + $0x3c] sm:$0xf]
  %v31 = vld [vmem:[%s0 + $0x40] sm:$0xf]
  %v32 = vld [vmem:[%s0 + $0x44] sm:$0xf]
  %v33 = vld [vmem:[%s0 + $0x48] sm:$0xf]
  %v34 = vld [vmem:[%s0 + $0x4c] sm:$0xf]
  %v35 = vld [vmem:[%s0 + $0x50] sm:$0xf]
  %v36 = vld [vmem:[%s0 + $0x54] sm:$0xf]
  %v37 = vld [vmem:[%s0 + $0x58] sm:$0xf]
  %v38 = vld [vmem:[%s0 + $0x5c] sm:$0xf]
  %v39 = vld [vmem:[%s0 + $0x60] sm:$0xf]
  %v40 = vld [vmem:[%s0 + $0x64] sm:$0xf]
  %v41 = vld [vmem:[%s0 + $0x68] sm:$0xf]
  %v42 = vld [vmem:[%s0 + $0x6c] sm:$0xf]
  %v43 = vld [vmem:[%s0 + $0x70] sm:$0xf]
  %v44 = vld [vmem:[%s0 + $0x74] sm:$0xf]
  %v45 = vld [vmem:[%s0 + $0x78] sm:$0xf]
  %v46 = vld [vmem:[%s0 + $0x7c] sm:$0xf]
  %v47 = vld [vmem:[%s0 + $0x80] sm:$0xf]
  %v48 = vld [vmem:[%s0 + $0x84] sm:$0xf]
  %v49 = vld [vmem:[%s0 + $0x88] sm:$0xf]
  %v50 = vld [vmem:[%s0 + $0x8c] sm:$0xf]
  %v51 = vld [vmem:[%s0 + $0x90] sm:$0xf]
  %v52 = vld [vmem:[%s0 + $0x94] sm:$0xf]
  %v53 = vld [vmem:[%s0 + $0x98] sm:$0xf]
  %v54 = vld [vmem:[%s0 + $0x9c] sm:$0xf]
  %v55 = vld [vmem:[%s0 + $0xa0] sm:$0xf]
  %v56 = vld [vmem:[%s0 + $0xa4] sm:$0xf]
  %v57 = vld [vmem:[%s0 + $0xa8] sm:$0xf]
  %v58 = vld [vmem:[%s0 + $0xac] sm:$0xf]
  %v59 = vld [vmem:[%s0 + $0xb0] sm:$0xf]
  %v60 = vld [vmem:[%s0 + $0xb4] sm:$0xf]
  %v61 = vld [vmem:[%s0 + $0xb8] sm:$0xf]
  %v62 = vld [vmem:[%s0 + $0xbc] sm:$0xf]
  %v63 = vld [vmem:[%s0 + $0xc0] sm:$0xf]
  %v64 = vld [vmem:[%s0 + $0xc4] sm:$0xf]
  %v65 = vld [vmem:[%s0 + $0xc8] sm:$0xf]
  %v66 = vld [vmem:[%s0 + $0xcc] sm:$0xf]
  %v67 = vld [vmem:[%s0 + $0xd0] sm:$0xf]
  %v68 = vld [vmem:[%s0 + $0xd4] sm:$0xf]
  %v69 = vld [vmem:[%s0 + $0xd8] sm:$0xf]
  %v70 = vld [vmem:[%s0 + $0xdc] sm:$0xf]
  %v71 = vld [vmem:[%s0 + $0xe0] sm:$0xf]
  %v72 = vld [vmem:[%s0 + $0xe4] sm:$0xf]
  %v73 = vld [vmem:[%s0 + $0xe8] sm:$0xf]
  %v74 = vld [vmem:[%s0 + $0xec] sm:$0xf]
  %v75 = vld [vmem:[%s0 + $0xf0] sm:$0xf]
  %v76 = vld [vmem:[%s0 + $0xf4] sm:$0xf]
  %v77 = vld [vmem:[%s0 + $0xf8] sm:$0xf]
  %v78 = vld [vmem:[%s0 + $0xfc] sm:$0xf]
  %v79 = vld [vmem:[%s1] sm:$0xf]
  %v80 = vld [vmem:[%s1 + $0x4] sm:$0xf]
  %v81 = vld [vmem:[%s1 + $0x8] sm:$0xf]
  %v82 = vld [vmem:[%s1 + $0xc] sm:$0xf]
  %v83 = vld [vmem:[%s1 + $0x10] sm:$0xf]
  %v84 = vld [vmem:[%s1 + $0x14] sm:$0xf]
  %v85 = vld [vmem:[%s1 + $0x18] sm:$0xf]
  %v86 = vld [vmem:[%s1 + $0x1c] sm:$0xf]
  %v87 = vld [vmem:[%s1 + $0x20] sm:$0xf]
  %v88 = vld [vmem:[%s1 + $0x24] sm:$0xf]
  %v89 = vld [vmem:[%s1 + $0x28] sm:$0xf]
  %v90 = vld [vmem:[%s1 + $0x2c] sm:$0xf]
  %v91 = vld [vmem:[%s1 + $0x30] sm:$0xf]
  %v92 = vld [vmem:[%s1 + $0x34] sm:$0xf]
  %v93 = vld [vmem:[%s1 + $0x38] sm:$0xf]
  %v94 = vld [vmem:[%s1 + $0x3c] sm:$0xf]
  %v95 = vld [vmem:[%s2] sm:$0x1]
  %v97 = vlaneseq
  %v98 = vshrl.u32 %v97, 7
  %v99 = vsub.s32 0, %v98
  %v100 = vrot.slane %v95, %v99
  %v166 = vunpack.c.l.b16 %v15
  %v167 = vunpack.c.l.b16 %v16
  %v168 = vunpack.c.l.b16 %v17
  %v169 = vunpack.c.l.b16 %v18
  %v170 = vunpack.c.l.b16 %v19
  %v171 = vunpack.c.l.b16 %v20
  %v172 = vunpack.c.l.b16 %v21
  %v173 = vunpack.c.l.b16 %v22
  %v174 = vunpack.c.l.b16 %v23
  %v175 = vunpack.c.l.b16 %v24
  %v176 = vunpack.c.l.b16 %v25
  %v177 = vunpack.c.l.b16 %v26
  %v178 = vunpack.c.l.b16 %v27
  %v179 = vunpack.c.l.b16 %v28
  %v180 = vunpack.c.l.b16 %v29
  %v181 = vunpack.c.l.b16 %v30
  %v182 = vunpack.c.l.b16 %v31
  %v183 = vunpack.c.l.b16 %v32
  %v184 = vunpack.c.l.b16 %v33
  %v185 = vunpack.c.l.b16 %v34
  %v186 = vunpack.c.l.b16 %v35
  %v187 = vunpack.c.l.b16 %v36
  %v188 = vunpack.c.l.b16 %v37
  %v189 = vunpack.c.l.b16 %v38
  %v190 = vunpack.c.l.b16 %v39
  %v191 = vunpack.c.l.b16 %v40
  %v192 = vunpack.c.l.b16 %v41
  %v193 = vunpack.c.l.b16 %v42
  %v194 = vunpack.c.l.b16 %v43
  %v195 = vunpack.c.l.b16 %v44
  %v196 = vunpack.c.l.b16 %v45
  %v197 = vunpack.c.l.b16 %v46
  %v198 = vunpack.c.l.b16 %v47
  %v199 = vunpack.c.l.b16 %v48
  %v200 = vunpack.c.l.b16 %v49
  %v201 = vunpack.c.l.b16 %v50
  %v202 = vunpack.c.l.b16 %v51
  %v203 = vunpack.c.l.b16 %v52
  %v204 = vunpack.c.l.b16 %v53
  %v205 = vunpack.c.l.b16 %v54
  %v206 = vunpack.c.l.b16 %v55
  %v207 = vunpack.c.l.b16 %v56
  %v208 = vunpack.c.l.b16 %v57
  %v209 = vunpack.c.l.b16 %v58
  %v210 = vunpack.c.l.b16 %v59
  %v211 = vunpack.c.l.b16 %v60
  %v212 = vunpack.c.l.b16 %v61
  %v213 = vunpack.c.l.b16 %v62
  %v214 = vunpack.c.l.b16 %v63
  %v215 = vunpack.c.l.b16 %v64
  %v216 = vunpack.c.l.b16 %v65
  %v217 = vunpack.c.l.b16 %v66
  %v218 = vunpack.c.l.b16 %v67
  %v219 = vunpack.c.l.b16 %v68
  %v220 = vunpack.c.l.b16 %v69
  %v221 = vunpack.c.l.b16 %v70
  %v222 = vunpack.c.l.b16 %v71
  %v223 = vunpack.c.l.b16 %v72
  %v224 = vunpack.c.l.b16 %v73
  %v225 = vunpack.c.l.b16 %v74
  %v226 = vunpack.c.l.b16 %v75
  %v227 = vunpack.c.l.b16 %v76
  %v228 = vunpack.c.l.b16 %v77
  %v229 = vunpack.c.l.b16 %v78
  %v230 = vpack.c.b16 %v167, %v166
  %v231 = vpack.c.b16 %v169, %v168
  %v232 = vpack.c.b16 %v171, %v170
  %v233 = vpack.c.b16 %v173, %v172
  %v234 = vpack.c.b16 %v175, %v174
  %v235 = vpack.c.b16 %v177, %v176
  %v236 = vpack.c.b16 %v179, %v178
  %v237 = vpack.c.b16 %v181, %v180
  %v238 = vpack.c.b16 %v183, %v182
  %v239 = vpack.c.b16 %v185, %v184
  %v240 = vpack.c.b16 %v187, %v186
  %v241 = vpack.c.b16 %v189, %v188
  %v242 = vpack.c.b16 %v191, %v190
  %v243 = vpack.c.b16 %v193, %v192
  %v244 = vpack.c.b16 %v195, %v194
  %v245 = vpack.c.b16 %v197, %v196
  %v246 = vpack.c.b16 %v199, %v198
  %v247 = vpack.c.b16 %v201, %v200
  %v248 = vpack.c.b16 %v203, %v202
  %v249 = vpack.c.b16 %v205, %v204
  %v250 = vpack.c.b16 %v207, %v206
  %v251 = vpack.c.b16 %v209, %v208
  %v252 = vpack.c.b16 %v211, %v210
  %v253 = vpack.c.b16 %v213, %v212
  %v254 = vpack.c.b16 %v215, %v214
  %v255 = vpack.c.b16 %v217, %v216
  %v256 = vpack.c.b16 %v219, %v218
  %v257 = vpack.c.b16 %v221, %v220
  %v258 = vpack.c.b16 %v223, %v222
  %v259 = vpack.c.b16 %v225, %v224
  %v260 = vpack.c.b16 %v227, %v226
  %v261 = vpack.c.b16 %v229, %v228
  %v310 = vunpack.c.l.b16 %v79
  %v311 = vunpack.c.l.b16 %v80
  %v312 = vunpack.c.l.b16 %v81
  %v313 = vunpack.c.l.b16 %v82
  %v314 = vunpack.c.l.b16 %v83
  %v315 = vunpack.c.l.b16 %v84
  %v316 = vunpack.c.l.b16 %v85
  %v317 = vunpack.c.l.b16 %v86
  %v318 = vunpack.c.l.b16 %v87
  %v319 = vunpack.c.l.b16 %v88
  %v320 = vunpack.c.l.b16 %v89
  %v321 = vunpack.c.l.b16 %v90
  %v322 = vunpack.c.l.b16 %v91
  %v323 = vunpack.c.l.b16 %v92
  %v324 = vunpack.c.l.b16 %v93
  %v325 = vunpack.c.l.b16 %v94
  %v326 = vpack.c.b16 %v311, %v310
  %v327 = vpack.c.b16 %v313, %v312
  %v328 = vpack.c.b16 %v315, %v314
  %v329 = vpack.c.b16 %v317, %v316
  %v330 = vpack.c.b16 %v319, %v318
  %v331 = vpack.c.b16 %v321, %v320
  %v332 = vpack.c.b16 %v323, %v322
  %v333 = vpack.c.b16 %v325, %v324
  %342 = vmatprep.subr.bf16.mxu0 0
  %343 = vmatpush1.bf16.msra.mxu0 %v326
  %344 = vmatprep.subr.bf16.mxu0 0
  %345 = vmatpush1.bf16.msra.mxu0 %v327
  %346 = vmatprep.subr.bf16.mxu0 0
  %347 = vmatpush1.bf16.msra.mxu0 %v328
  %348 = vmatprep.subr.bf16.mxu0 0
  %349 = vmatpush1.bf16.msra.mxu0 %v329
  %350 = vmatprep.subr.bf16.mxu0 0
  %351 = vmatpush1.bf16.msra.mxu0 %v330
  %352 = vmatprep.subr.bf16.mxu0 0
  %353 = vmatpush1.bf16.msra.mxu0 %v331
  %354 = vmatprep.subr.bf16.mxu0 0
  %355 = vmatpush1.bf16.msra.mxu0 %v332
  %356 = vmatprep.subr.bf16.mxu0 0
  %357 = vmatpush1.bf16.msra.mxu0 %v333
  %358 = vmatprep.subr.bf16.mxu0 0
  %359 = vmatpush1.bf16.msra.mxu0 0
  %360 = vmatprep.subr.bf16.mxu0 0
  %361 = vmatpush1.bf16.msra.mxu0 0
  %362 = vmatprep.subr.bf16.mxu0 0
  %363 = vmatpush1.bf16.msra.mxu0 0
  %364 = vmatprep.subr.bf16.mxu0 0
  %365 = vmatpush1.bf16.msra.mxu0 0
  %366 = vmatprep.subr.bf16.mxu0 0
  %367 = vmatpush1.bf16.msra.mxu0 0
  %368 = vmatprep.subr.bf16.mxu0 0
  %369 = vmatpush1.bf16.msra.mxu0 0
  %370 = vmatprep.subr.bf16.mxu0 0
  %371 = vmatpush1.bf16.msra.mxu0 0
  %372 = vmatprep.subr.bf16.mxu0 0
  %373 = vmatpush1.bf16.msra.mxu0 0
  %374 = vmatprep.mubr.bf16.mxu0 0
  %375 = vmatmul.mubr.bf16.gmra.mrb[0].mxu0 %v230
  %v376 = vpop.f32.mrb[0].mxu0
  %v377 = vadd.f32 %v100, %v376
  %v378 = vpop.f32.mrb[0].mxu0
  %v379 = vpop.f32.mrb[0].mxu0
  %v380 = vadd.f32 %v100, %v379
  %v381 = vpop.f32.mrb[0].mxu0
  %382 = vmatprep.mubr.bf16.mxu0 0
  %383 = vmatmul.mubr.bf16.gmra.mrb[0].mxu0 %v231
  %v384 = vpop.f32.mrb[0].mxu0
  %v385 = vadd.f32 %v100, %v384
  %v386 = vpop.f32.mrb[0].mxu0
  %v387 = vpop.f32.mrb[0].mxu0
  %v388 = vadd.f32 %v100, %v387
  %v389 = vpop.f32.mrb[0].mxu0
  %390 = vmatprep.mubr.bf16.mxu0 0
  %391 = vmatmul.mubr.bf16.gmra.mrb[0].mxu0 %v232
  %v392 = vpop.f32.mrb[0].mxu0
  %v393 = vadd.f32 %v100, %v392
  %v394 = vpop.f32.mrb[0].mxu0
  %v395 = vpop.f32.mrb[0].mxu0
  %v396 = vadd.f32 %v100, %v395
  %v397 = vpop.f32.mrb[0].mxu0
  %398 = vmatprep.mubr.bf16.mxu0 0
  %399 = vmatmul.mubr.bf16.gmra.mrb[0].mxu0 %v233
  %v400 = vpop.f32.mrb[0].mxu0
  %v401 = vadd.f32 %v100, %v400
  %v402 = vpop.f32.mrb[0].mxu0
  %v403 = vpop.f32.mrb[0].mxu0
  %v404 = vadd.f32 %v100, %v403
  %v405 = vpop.f32.mrb[0].mxu0
  %406 = vmatprep.mubr.bf16.mxu0 0
  %407 = vmatmul.mubr.bf16.gmra.mrb[0].mxu0 %v234
  %v408 = vpop.f32.mrb[0].mxu0
  %v409 = vadd.f32 %v100, %v408
  %v410 = vpop.f32.mrb[0].mxu0
  %v411 = vpop.f32.mrb[0].mxu0
  %v412 = vadd.f32 %v100, %v411
  %v413 = vpop.f32.mrb[0].mxu0
  %414 = vmatprep.mubr.bf16.mxu0 0
  %415 = vmatmul.mubr.bf16.gmra.mrb[0].mxu0 %v235
  %v416 = vpop.f32.mrb[0].mxu0
  %v417 = vadd.f32 %v100, %v416
  %v418 = vpop.f32.mrb[0].mxu0
  %v419 = vpop.f32.mrb[0].mxu0
  %v420 = vadd.f32 %v100, %v419
  %v421 = vpop.f32.mrb[0].mxu0
  %422 = vmatprep.mubr.bf16.mxu0 0
  %423 = vmatmul.mubr.bf16.gmra.mrb[0].mxu0 %v236
  %v424 = vpop.f32.mrb[0].mxu0
  %v425 = vadd.f32 %v100, %v424
  %v426 = vpop.f32.mrb[0].mxu0
  %v427 = vpop.f32.mrb[0].mxu0
  %v428 = vadd.f32 %v100, %v427
  %v429 = vpop.f32.mrb[0].mxu0
  %430 = vmatprep.mubr.bf16.mxu0 0
  %431 = vmatmul.mubr.bf16.gmra.mrb[0].mxu0 %v237
  %v432 = vpop.f32.mrb[0].mxu0
  %v433 = vadd.f32 %v100, %v432
  %v434 = vpop.f32.mrb[0].mxu0
  %v435 = vpop.f32.mrb[0].mxu0
  %v436 = vadd.f32 %v100, %v435
  %v437 = vpop.f32.mrb[0].mxu0
  %438 = vmatprep.mubr.bf16.mxu0 0
  %439 = vmatmul.mubr.bf16.gmra.mrb[0].mxu0 %v238
  %v440 = vpop.f32.mrb[0].mxu0
  %v441 = vadd.f32 %v100, %v440
  %v442 = vpop.f32.mrb[0].mxu0
  %v443 = vpop.f32.mrb[0].mxu0
  %v444 = vadd.f32 %v100, %v443
  %v445 = vpop.f32.mrb[0].mxu0
  %446 = vmatprep.mubr.bf16.mxu0 0
  %447 = vmatmul.mubr.bf16.gmra.mrb[0].mxu0 %v239
  %v448 = vpop.f32.mrb[0].mxu0
  %v449 = vadd.f32 %v100, %v448
  %v450 = vpop.f32.mrb[0].mxu0
  %v451 = vpop.f32.mrb[0].mxu0
  %v452 = vadd.f32 %v100, %v451
  %v453 = vpop.f32.mrb[0].mxu0
  %454 = vmatprep.mubr.bf16.mxu0 0
  %455 = vmatmul.mubr.bf16.gmra.mrb[0].mxu0 %v240
  %v456 = vpop.f32.mrb[0].mxu0
  %v457 = vadd.f32 %v100, %v456
  %v458 = vpop.f32.mrb[0].mxu0
  %v459 = vpop.f32.mrb[0].mxu0
  %v460 = vadd.f32 %v100, %v459
  %v461 = vpop.f32.mrb[0].mxu0
  %462 = vmatprep.mubr.bf16.mxu0 0
  %463 = vmatmul.mubr.bf16.gmra.mrb[0].mxu0 %v241
  %v464 = vpop.f32.mrb[0].mxu0
  %v465 = vadd.f32 %v100, %v464
  %v466 = vpop.f32.mrb[0].mxu0
  %v467 = vpop.f32.mrb[0].mxu0
  %v468 = vadd.f32 %v100, %v467
  %v469 = vpop.f32.mrb[0].mxu0
  %470 = vmatprep.mubr.bf16.mxu0 0
  %471 = vmatmul.mubr.bf16.gmra.mrb[0].mxu0 %v242
  %v472 = vpop.f32.mrb[0].mxu0
  %v473 = vadd.f32 %v100, %v472
  %v474 = vpop.f32.mrb[0].mxu0
  %v475 = vpop.f32.mrb[0].mxu0
  %v476 = vadd.f32 %v100, %v475
  %v477 = vpop.f32.mrb[0].mxu0
  %478 = vmatprep.mubr.bf16.mxu0 0
  %479 = vmatmul.mubr.bf16.gmra.mrb[0].mxu0 %v243
  %v480 = vpop.f32.mrb[0].mxu0
  %v481 = vadd.f32 %v100, %v480
  %v482 = vpop.f32.mrb[0].mxu0
  %v483 = vpop.f32.mrb[0].mxu0
  %v484 = vadd.f32 %v100, %v483
  %v485 = vpop.f32.mrb[0].mxu0
  %486 = vmatprep.mubr.bf16.mxu0 0
  %487 = vmatmul.mubr.bf16.gmra.mrb[0].mxu0 %v244
  %v488 = vpop.f32.mrb[0].mxu0
  %v489 = vadd.f32 %v100, %v488
  %v490 = vpop.f32.mrb[0].mxu0
  %v491 = vpop.f32.mrb[0].mxu0
  %v492 = vadd.f32 %v100, %v491
  %v493 = vpop.f32.mrb[0].mxu0
  %494 = vmatprep.mubr.bf16.mxu0 0
  %495 = vmatmul.mubr.bf16.gmra.mrb[0].mxu0 %v245
  %v496 = vpop.f32.mrb[0].mxu0
  %v497 = vadd.f32 %v100, %v496
  %v498 = vpop.f32.mrb[0].mxu0
  %v499 = vpop.f32.mrb[0].mxu0
  %v500 = vadd.f32 %v100, %v499
  %v501 = vpop.f32.mrb[0].mxu0
  %502 = vmatprep.mubr.bf16.mxu0 0
  %503 = vmatmul.mubr.bf16.gmra.mrb[0].mxu0 %v246
  %v504 = vpop.f32.mrb[0].mxu0
  %v505 = vadd.f32 %v100, %v504
  %v506 = vpop.f32.mrb[0].mxu0
  %v507 = vpop.f32.mrb[0].mxu0
  %v508 = vadd.f32 %v100, %v507
  %v509 = vpop.f32.mrb[0].mxu0
  %510 = vmatprep.mubr.bf16.mxu0 0
  %511 = vmatmul.mubr.bf16.gmra.mrb[0].mxu0 %v247
  %v512 = vpop.f32.mrb[0].mxu0
  %v513 = vadd.f32 %v100, %v512
  %v514 = vpop.f32.mrb[0].mxu0
  %v515 = vpop.f32.mrb[0].mxu0
  %v516 = vadd.f32 %v100, %v515
  %v517 = vpop.f32.mrb[0].mxu0
  %518 = vmatprep.mubr.bf16.mxu0 0
  %519 = vmatmul.mubr.bf16.gmra.mrb[0].mxu0 %v248
  %v520 = vpop.f32.mrb[0].mxu0
  %v521 = vadd.f32 %v100, %v520
  %v522 = vpop.f32.mrb[0].mxu0
  %v523 = vpop.f32.mrb[0].mxu0
  %v524 = vadd.f32 %v100, %v523
  %v525 = vpop.f32.mrb[0].mxu0
  %526 = vmatprep.mubr.bf16.mxu0 0
  %527 = vmatmul.mubr.bf16.gmra.mrb[0].mxu0 %v249
  %v528 = vpop.f32.mrb[0].mxu0
  %v529 = vadd.f32 %v100, %v528
  %v530 = vpop.f32.mrb[0].mxu0
  %v531 = vpop.f32.mrb[0].mxu0
  %v532 = vadd.f32 %v100, %v531
  %v533 = vpop.f32.mrb[0].mxu0
  %534 = vmatprep.mubr.bf16.mxu0 0
  %535 = vmatmul.mubr.bf16.gmra.mrb[0].mxu0 %v250
  %v536 = vpop.f32.mrb[0].mxu0
  %v537 = vadd.f32 %v100, %v536
  %v538 = vpop.f32.mrb[0].mxu0
  %v539 = vpop.f32.mrb[0].mxu0
  %v540 = vadd.f32 %v100, %v539
  %v541 = vpop.f32.mrb[0].mxu0
  %542 = vmatprep.mubr.bf16.mxu0 0
  %543 = vmatmul.mubr.bf16.gmra.mrb[0].mxu0 %v251
  %v544 = vpop.f32.mrb[0].mxu0
  %v545 = vadd.f32 %v100, %v544
  %v546 = vpop.f32.mrb[0].mxu0
  %v547 = vpop.f32.mrb[0].mxu0
  %v548 = vadd.f32 %v100, %v547
  %v549 = vpop.f32.mrb[0].mxu0
  %550 = vmatprep.mubr.bf16.mxu0 0
  %551 = vmatmul.mubr.bf16.gmra.mrb[0].mxu0 %v252
  %v552 = vpop.f32.mrb[0].mxu0
  %v553 = vadd.f32 %v100, %v552
  %v554 = vpop.f32.mrb[0].mxu0
  %v555 = vpop.f32.mrb[0].mxu0
  %v556 = vadd.f32 %v100, %v555
  %v557 = vpop.f32.mrb[0].mxu0
  %558 = vmatprep.mubr.bf16.mxu0 0
  %559 = vmatmul.mubr.bf16.gmra.mrb[0].mxu0 %v253
  %v560 = vpop.f32.mrb[0].mxu0
  %v561 = vadd.f32 %v100, %v560
  %v562 = vpop.f32.mrb[0].mxu0
  %v563 = vpop.f32.mrb[0].mxu0
  %v564 = vadd.f32 %v100, %v563
  %v565 = vpop.f32.mrb[0].mxu0
  %566 = vmatprep.mubr.bf16.mxu0 0
  %567 = vmatmul.mubr.bf16.gmra.mrb[0].mxu0 %v254
  %v568 = vpop.f32.mrb[0].mxu0
  %v569 = vadd.f32 %v100, %v568
  %v570 = vpop.f32.mrb[0].mxu0
  %v571 = vpop.f32.mrb[0].mxu0
  %v572 = vadd.f32 %v100, %v571
  %v573 = vpop.f32.mrb[0].mxu0
  %574 = vmatprep.mubr.bf16.mxu0 0
  %575 = vmatmul.mubr.bf16.gmra.mrb[0].mxu0 %v255
  %v576 = vpop.f32.mrb[0].mxu0
  %v577 = vadd.f32 %v100, %v576
  %v578 = vpop.f32.mrb[0].mxu0
  %v579 = vpop.f32.mrb[0].mxu0
  %v580 = vadd.f32 %v100, %v579
  %v581 = vpop.f32.mrb[0].mxu0
  %582 = vmatprep.mubr.bf16.mxu0 0
  %583 = vmatmul.mubr.bf16.gmra.mrb[0].mxu0 %v256
  %v584 = vpop.f32.mrb[0].mxu0
  %v585 = vadd.f32 %v100, %v584
  %v586 = vpop.f32.mrb[0].mxu0
  %v587 = vpop.f32.mrb[0].mxu0
  %v588 = vadd.f32 %v100, %v587
  %v589 = vpop.f32.mrb[0].mxu0
  %590 = vmatprep.mubr.bf16.mxu0 0
  %591 = vmatmul.mubr.bf16.gmra.mrb[0].mxu0 %v257
  %v592 = vpop.f32.mrb[0].mxu0
  %v593 = vadd.f32 %v100, %v592
  %v594 = vpop.f32.mrb[0].mxu0
  %v595 = vpop.f32.mrb[0].mxu0
  %v596 = vadd.f32 %v100, %v595
  %v597 = vpop.f32.mrb[0].mxu0
  %598 = vmatprep.mubr.bf16.mxu0 0
  %599 = vmatmul.mubr.bf16.gmra.mrb[0].mxu0 %v258
  %v600 = vpop.f32.mrb[0].mxu0
  %v601 = vadd.f32 %v100, %v600
  %v602 = vpop.f32.mrb[0].mxu0
  %v603 = vpop.f32.mrb[0].mxu0
  %v604 = vadd.f32 %v100, %v603
  %v605 = vpop.f32.mrb[0].mxu0
  %606 = vmatprep.mubr.bf16.mxu0 0
  %607 = vmatmul.mubr.bf16.gmra.mrb[0].mxu0 %v259
  %v608 = vpop.f32.mrb[0].mxu0
  %v609 = vadd.f32 %v100, %v608
  %v610 = vpop.f32.mrb[0].mxu0
  %v611 = vpop.f32.mrb[0].mxu0
  %v612 = vadd.f32 %v100, %v611
  %v613 = vpop.f32.mrb[0].mxu0
  %614 = vmatprep.mubr.bf16.mxu0 0
  %615 = vmatmul.mubr.bf16.gmra.mrb[0].mxu0 %v260
  %v616 = vpop.f32.mrb[0].mxu0
  %v617 = vadd.f32 %v100, %v616
  %v618 = vpop.f32.mrb[0].mxu0
  %v619 = vpop.f32.mrb[0].mxu0
  %v620 = vadd.f32 %v100, %v619
  %v621 = vpop.f32.mrb[0].mxu0
  %622 = vmatprep.mubr.bf16.mxu0 0
  %623 = vmatmul.mubr.bf16.gmra.mrb[0].mxu0 %v261
  %v624 = vpop.f32.mrb[0].mxu0
  %v625 = vadd.f32 %v100, %v624
  %v626 = vpop.f32.mrb[0].mxu0
  %v627 = vpop.f32.mrb[0].mxu0
  %v628 = vadd.f32 %v100, %v627
  %v629 = vpop.f32.mrb[0].mxu0
  %630 = vdwg.mxu0
  %v631 = vmax.f32 %v377, 0.0
  %v632 = vmax.f32 %v380, 0.0
  %v633 = vmax.f32 %v385, 0.0
  %v634 = vmax.f32 %v388, 0.0
  %v635 = vmax.f32 %v393, 0.0
  %v636 = vmax.f32 %v396, 0.0
  %v637 = vmax.f32 %v401, 0.0
  %v638 = vmax.f32 %v404, 0.0
  %v639 = vmax.f32 %v409, 0.0
  %v640 = vmax.f32 %v412, 0.0
  %v641 = vmax.f32 %v417, 0.0
  %v642 = vmax.f32 %v420, 0.0
  %v643 = vmax.f32 %v425, 0.0
  %v644 = vmax.f32 %v428, 0.0
  %v645 = vmax.f32 %v433, 0.0
  %v646 = vmax.f32 %v436, 0.0
  %v647 = vmax.f32 %v441, 0.0
  %v648 = vmax.f32 %v444, 0.0
  %v649 = vmax.f32 %v449, 0.0
  %v650 = vmax.f32 %v452, 0.0
  %v651 = vmax.f32 %v457, 0.0
  %v652 = vmax.f32 %v460, 0.0
  %v653 = vmax.f32 %v465, 0.0
  %v654 = vmax.f32 %v468, 0.0
  %v655 = vmax.f32 %v473, 0.0
  %v656 = vmax.f32 %v476, 0.0
  %v657 = vmax.f32 %v481, 0.0
  %v658 = vmax.f32 %v484, 0.0
  %v659 = vmax.f32 %v489, 0.0
  %v660 = vmax.f32 %v492, 0.0
  %v661 = vmax.f32 %v497, 0.0
  %v662 = vmax.f32 %v500, 0.0
  %v663 = vmax.f32 %v505, 0.0
  %v664 = vmax.f32 %v508, 0.0
  %v665 = vmax.f32 %v513, 0.0
  %v666 = vmax.f32 %v516, 0.0
  %v667 = vmax.f32 %v521, 0.0
  %v668 = vmax.f32 %v524, 0.0
  %v669 = vmax.f32 %v529, 0.0
  %v670 = vmax.f32 %v532, 0.0
  %v671 = vmax.f32 %v537, 0.0
  %v672 = vmax.f32 %v540, 0.0
  %v673 = vmax.f32 %v545, 0.0
  %v674 = vmax.f32 %v548, 0.0
  %v675 = vmax.f32 %v553, 0.0
  %v676 = vmax.f32 %v556, 0.0
  %v677 = vmax.f32 %v561, 0.0
  %v678 = vmax.f32 %v564, 0.0
  %v679 = vmax.f32 %v569, 0.0
  %v680 = vmax.f32 %v572, 0.0
  %v681 = vmax.f32 %v577, 0.0
  %v682 = vmax.f32 %v580, 0.0
  %v683 = vmax.f32 %v585, 0.0
  %v684 = vmax.f32 %v588, 0.0
  %v685 = vmax.f32 %v593, 0.0
  %v686 = vmax.f32 %v596, 0.0
  %v687 = vmax.f32 %v601, 0.0
  %v688 = vmax.f32 %v604, 0.0
  %v689 = vmax.f32 %v609, 0.0
  %v690 = vmax.f32 %v612, 0.0
  %v691 = vmax.f32 %v617, 0.0
  %v692 = vmax.f32 %v620, 0.0
  %v693 = vmax.f32 %v625, 0.0
  %v694 = vmax.f32 %v628, 0.0
  %v695 = vpack.c.bf16 %v632, %v631
  %v696 = vpack.c.bf16 %v634, %v633
  %v697 = vpack.c.bf16 %v636, %v635
  %v698 = vpack.c.bf16 %v638, %v637
  %v699 = vpack.c.bf16 %v640, %v639
  %v700 = vpack.c.bf16 %v642, %v641
  %v701 = vpack.c.bf16 %v644, %v643
  %v702 = vpack.c.bf16 %v646, %v645
  %v703 = vpack.c.bf16 %v648, %v647
  %v704 = vpack.c.bf16 %v650, %v649
  %v705 = vpack.c.bf16 %v652, %v651
  %v706 = vpack.c.bf16 %v654, %v653
  %v707 = vpack.c.bf16 %v656, %v655
  %v708 = vpack.c.bf16 %v658, %v657
  %v709 = vpack.c.bf16 %v660, %v659
  %v710 = vpack.c.bf16 %v662, %v661
  %v711 = vpack.c.bf16 %v664, %v663
  %v712 = vpack.c.bf16 %v666, %v665
  %v713 = vpack.c.bf16 %v668, %v667
  %v714 = vpack.c.bf16 %v670, %v669
  %v715 = vpack.c.bf16 %v672, %v671
  %v716 = vpack.c.bf16 %v674, %v673
  %v717 = vpack.c.bf16 %v676, %v675
  %v718 = vpack.c.bf16 %v678, %v677
  %v719 = vpack.c.bf16 %v680, %v679
  %v720 = vpack.c.bf16 %v682, %v681
  %v721 = vpack.c.bf16 %v684, %v683
  %v722 = vpack.c.bf16 %v686, %v685
  %v723 = vpack.c.bf16 %v688, %v687
  %v724 = vpack.c.bf16 %v690, %v689
  %v725 = vpack.c.bf16 %v692, %v691
  %v726 = vpack.c.bf16 %v694, %v693
  %v759 = vunpack.c.l.b16 %v695
  %v760 = vunpack.c.h.b16 %v695
  %v761 = vunpack.c.l.b16 %v696
  %v762 = vunpack.c.h.b16 %v696
  %v763 = vunpack.c.l.b16 %v697
  %v764 = vunpack.c.h.b16 %v697
  %v765 = vunpack.c.l.b16 %v698
  %v766 = vunpack.c.h.b16 %v698
  %v767 = vunpack.c.l.b16 %v699
  %v768 = vunpack.c.h.b16 %v699
  %v769 = vunpack.c.l.b16 %v700
  %v770 = vunpack.c.h.b16 %v700
  %v771 = vunpack.c.l.b16 %v701
  %v772 = vunpack.c.h.b16 %v701
  %v773 = vunpack.c.l.b16 %v702
  %v774 = vunpack.c.h.b16 %v702
  %v775 = vunpack.c.l.b16 %v703
  %v776 = vunpack.c.h.b16 %v703
  %v777 = vunpack.c.l.b16 %v704
  %v778 = vunpack.c.h.b16 %v704
  %v779 = vunpack.c.l.b16 %v705
  %v780 = vunpack.c.h.b16 %v705
  %v781 = vunpack.c.l.b16 %v706
  %v782 = vunpack.c.h.b16 %v706
  %v783 = vunpack.c.l.b16 %v707
  %v784 = vunpack.c.h.b16 %v707
  %v785 = vunpack.c.l.b16 %v708
  %v786 = vunpack.c.h.b16 %v708
  %v787 = vunpack.c.l.b16 %v709
  %v788 = vunpack.c.h.b16 %v709
  %v789 = vunpack.c.l.b16 %v710
  %v790 = vunpack.c.h.b16 %v710
  %v791 = vunpack.c.l.b16 %v711
  %v792 = vunpack.c.h.b16 %v711
  %v793 = vunpack.c.l.b16 %v712
  %v794 = vunpack.c.h.b16 %v712
  %v795 = vunpack.c.l.b16 %v713
  %v796 = vunpack.c.h.b16 %v713
  %v797 = vunpack.c.l.b16 %v714
  %v798 = vunpack.c.h.b16 %v714
  %v799 = vunpack.c.l.b16 %v715
  %v800 = vunpack.c.h.b16 %v715
  %v801 = vunpack.c.l.b16 %v716
  %v802 = vunpack.c.h.b16 %v716
  %v803 = vunpack.c.l.b16 %v717
  %v804 = vunpack.c.h.b16 %v717
  %v805 = vunpack.c.l.b16 %v718
  %v806 = vunpack.c.h.b16 %v718
  %v807 = vunpack.c.l.b16 %v719
  %v808 = vunpack.c.h.b16 %v719
  %v809 = vunpack.c.l.b16 %v720
  %v810 = vunpack.c.h.b16 %v720
  %v811 = vunpack.c.l.b16 %v721
  %v812 = vunpack.c.h.b16 %v721
  %v813 = vunpack.c.l.b16 %v722
  %v814 = vunpack.c.h.b16 %v722
  %v815 = vunpack.c.l.b16 %v723
  %v816 = vunpack.c.h.b16 %v723
  %v817 = vunpack.c.l.b16 %v724
  %v818 = vunpack.c.h.b16 %v724
  %v819 = vunpack.c.l.b16 %v725
  %v820 = vunpack.c.h.b16 %v725
  %v821 = vunpack.c.l.b16 %v726
  %v822 = vunpack.c.h.b16 %v726
  %v823 = vpack.c.b16 %v759, %v759
  %v824 = vpack.c.b16 %v760, %v760
  %v825 = vpack.c.b16 %v761, %v761
  %v826 = vpack.c.b16 %v762, %v762
  %v827 = vpack.c.b16 %v763, %v763
  %v828 = vpack.c.b16 %v764, %v764
  %v829 = vpack.c.b16 %v765, %v765
  %v830 = vpack.c.b16 %v766, %v766
  %v831 = vpack.c.b16 %v767, %v767
  %v832 = vpack.c.b16 %v768, %v768
  %v833 = vpack.c.b16 %v769, %v769
  %v834 = vpack.c.b16 %v770, %v770
  %v835 = vpack.c.b16 %v771, %v771
  %v836 = vpack.c.b16 %v772, %v772
  %v837 = vpack.c.b16 %v773, %v773
  %v838 = vpack.c.b16 %v774, %v774
  %v839 = vpack.c.b16 %v775, %v775
  %v840 = vpack.c.b16 %v776, %v776
  %v841 = vpack.c.b16 %v777, %v777
  %v842 = vpack.c.b16 %v778, %v778
  %v843 = vpack.c.b16 %v779, %v779
  %v844 = vpack.c.b16 %v780, %v780
  %v845 = vpack.c.b16 %v781, %v781
  %v846 = vpack.c.b16 %v782, %v782
  %v847 = vpack.c.b16 %v783, %v783
  %v848 = vpack.c.b16 %v784, %v784
  %v849 = vpack.c.b16 %v785, %v785
  %v850 = vpack.c.b16 %v786, %v786
  %v851 = vpack.c.b16 %v787, %v787
  %v852 = vpack.c.b16 %v788, %v788
  %v853 = vpack.c.b16 %v789, %v789
  %v854 = vpack.c.b16 %v790, %v790
  %v855 = vpack.c.b16 %v791, %v791
  %v856 = vpack.c.b16 %v792, %v792
  %v857 = vpack.c.b16 %v793, %v793
  %v858 = vpack.c.b16 %v794, %v794
  %v859 = vpack.c.b16 %v795, %v795
  %v860 = vpack.c.b16 %v796, %v796
  %v861 = vpack.c.b16 %v797, %v797
  %v862 = vpack.c.b16 %v798, %v798
  %v863 = vpack.c.b16 %v799, %v799
  %v864 = vpack.c.b16 %v800, %v800
  %v865 = vpack.c.b16 %v801, %v801
  %v866 = vpack.c.b16 %v802, %v802
  %v867 = vpack.c.b16 %v803, %v803
  %v868 = vpack.c.b16 %v804, %v804
  %v869 = vpack.c.b16 %v805, %v805
  %v870 = vpack.c.b16 %v806, %v806
  %v871 = vpack.c.b16 %v807, %v807
  %v872 = vpack.c.b16 %v808, %v808
  %v873 = vpack.c.b16 %v809, %v809
  %v874 = vpack.c.b16 %v810, %v810
  %v875 = vpack.c.b16 %v811, %v811
  %v876 = vpack.c.b16 %v812, %v812
  %v877 = vpack.c.b16 %v813, %v813
  %v878 = vpack.c.b16 %v814, %v814
  %v879 = vpack.c.b16 %v815, %v815
  %v880 = vpack.c.b16 %v816, %v816
  %v881 = vpack.c.b16 %v817, %v817
  %v882 = vpack.c.b16 %v818, %v818
  %v883 = vpack.c.b16 %v819, %v819
  %v884 = vpack.c.b16 %v820, %v820
  %v885 = vpack.c.b16 %v821, %v821
  %v886 = vpack.c.b16 %v822, %v822
  %951 = vst [vmem:[%s3] sm:$0xf] %v823
  %952 = vst [vmem:[%s3 + $0x4] sm:$0xf] %v824
  %953 = vst [vmem:[%s3 + $0x8] sm:$0xf] %v825
  %954 = vst [vmem:[%s3 + $0xc] sm:$0xf] %v826
  %955 = vst [vmem:[%s3 + $0x10] sm:$0xf] %v827
  %956 = vst [vmem:[%s3 + $0x14] sm:$0xf] %v828
  %957 = vst [vmem:[%s3 + $0x18] sm:$0xf] %v829
  %958 = vst [vmem:[%s3 + $0x1c] sm:$0xf] %v830
  %959 = vst [vmem:[%s3 + $0x20] sm:$0xf] %v831
  %960 = vst [vmem:[%s3 + $0x24] sm:$0xf] %v832
  %961 = vst [vmem:[%s3 + $0x28] sm:$0xf] %v833
  %962 = vst [vmem:[%s3 + $0x2c] sm:$0xf] %v834
  %963 = vst [vmem:[%s3 + $0x30] sm:$0xf] %v835
  %964 = vst [vmem:[%s3 + $0x34] sm:$0xf] %v836
  %965 = vst [vmem:[%s3 + $0x38] sm:$0xf] %v837
  %966 = vst [vmem:[%s3 + $0x3c] sm:$0xf] %v838
  %967 = vst [vmem:[%s3 + $0x40] sm:$0xf] %v839
  %968 = vst [vmem:[%s3 + $0x44] sm:$0xf] %v840
  %969 = vst [vmem:[%s3 + $0x48] sm:$0xf] %v841
  %970 = vst [vmem:[%s3 + $0x4c] sm:$0xf] %v842
  %971 = vst [vmem:[%s3 + $0x50] sm:$0xf] %v843
  %972 = vst [vmem:[%s3 + $0x54] sm:$0xf] %v844
  %973 = vst [vmem:[%s3 + $0x58] sm:$0xf] %v845
  %974 = vst [vmem:[%s3 + $0x5c] sm:$0xf] %v846
  %975 = vst [vmem:[%s3 + $0x60] sm:$0xf] %v847
  %976 = vst [vmem:[%s3 + $0x64] sm:$0xf] %v848
  %977 = vst [vmem:[%s3 + $0x68] sm:$0xf] %v849
  %978 = vst [vmem:[%s3 + $0x6c] sm:$0xf] %v850
  %979 = vst [vmem:[%s3 + $0x70] sm:$0xf] %v851
  %980 = vst [vmem:[%s3 + $0x74] sm:$0xf] %v852
  %981 = vst [vmem:[%s3 + $0x78] sm:$0xf] %v853
  %982 = vst [vmem:[%s3 + $0x7c] sm:$0xf] %v854
  %983 = vst [vmem:[%s3 + $0x80] sm:$0xf] %v855
  %984 = vst [vmem:[%s3 + $0x84] sm:$0xf] %v856
  %985 = vst [vmem:[%s3 + $0x88] sm:$0xf] %v857
  %986 = vst [vmem:[%s3 + $0x8c] sm:$0xf] %v858
  %987 = vst [vmem:[%s3 + $0x90] sm:$0xf] %v859
  %988 = vst [vmem:[%s3 + $0x94] sm:$0xf] %v860
  %989 = vst [vmem:[%s3 + $0x98] sm:$0xf] %v861
  %990 = vst [vmem:[%s3 + $0x9c] sm:$0xf] %v862
  %991 = vst [vmem:[%s3 + $0xa0] sm:$0xf] %v863
  %992 = vst [vmem:[%s3 + $0xa4] sm:$0xf] %v864
  %993 = vst [vmem:[%s3 + $0xa8] sm:$0xf] %v865
  %994 = vst [vmem:[%s3 + $0xac] sm:$0xf] %v866
  %995 = vst [vmem:[%s3 + $0xb0] sm:$0xf] %v867
  %996 = vst [vmem:[%s3 + $0xb4] sm:$0xf] %v868
  %997 = vst [vmem:[%s3 + $0xb8] sm:$0xf] %v869
  %998 = vst [vmem:[%s3 + $0xbc] sm:$0xf] %v870
  %999 = vst [vmem:[%s3 + $0xc0] sm:$0xf] %v871
  %1000 = vst [vmem:[%s3 + $0xc4] sm:$0xf] %v872
  %1001 = vst [vmem:[%s3 + $0xc8] sm:$0xf] %v873
  %1002 = vst [vmem:[%s3 + $0xcc] sm:$0xf] %v874
  %1003 = vst [vmem:[%s3 + $0xd0] sm:$0xf] %v875
  %1004 = vst [vmem:[%s3 + $0xd4] sm:$0xf] %v876
  %1005 = vst [vmem:[%s3 + $0xd8] sm:$0xf] %v877
  %1006 = vst [vmem:[%s3 + $0xdc] sm:$0xf] %v878
  %1007 = vst [vmem:[%s3 + $0xe0] sm:$0xf] %v879
  %1008 = vst [vmem:[%s3 + $0xe4] sm:$0xf] %v880
  %1009 = vst [vmem:[%s3 + $0xe8] sm:$0xf] %v881
  %1010 = vst [vmem:[%s3 + $0xec] sm:$0xf] %v882
  %1011 = vst [vmem:[%s3 + $0xf0] sm:$0xf] %v883
  %1012 = vst [vmem:[%s3 + $0xf4] sm:$0xf] %v884
  %1013 = vst [vmem:[%s3 + $0xf8] sm:$0xf] %v885
  %1014 = vst [vmem:[%s3 + $0xfc] sm:$0xf] %v886
  // Predicated region
  $region14: #{a_call__.3} parent=0 // pred_check
    _
  $region15: #{a_call__.3} parent=0 // pred_check_branch
    %1016 = sbr.rel (0) target = $region17
  $region16: #{a_call__.3} parent=0 // pred_region
    _
  $region17: #{a_call__.3} parent=0 // pred_fallthru
    _
  // Predicated region
  $region18: #{a_call__.3} parent=0 // pred_check
    _
  $region19: #{a_call__.3} parent=0 // pred_check_branch
    %1018 = sbr.rel (0) target = $region21
  $region20: #{a_call__.3} parent=0 // pred_region
    _
  $region21: #{a_call__.3} parent=0 // pred_fallthru
    _

// kernel: a_call__.4
$region0: #{a_call__.4}
  #allocation0 [shape = 'u32[]', space=smem, size = 0x4, offset = 0x4, fixed_abs, tag = 'smem constant byte address 0x4 - core index']
  #allocation1 [shape = 'u32[144,128]{1,0:T(1,128)}', space=vmem, size = 0x12000, scoped, tag = 'internal scratch']
  %s0 = inlined_call_operand.vmem [shape: bf16[2,6,10,10,128], index: 0, kind: input, shape index: {}]
  %s1 = inlined_call_operand.vmem [shape: bf16[27,128,128], index: 1, kind: input, shape index: {}]
  %s2 = inlined_call_operand.vmem [shape: f32[1,128], index: 2, kind: input, shape index: {}]
  %s3 = inlined_call_operand.vmem [shape: bf16[2,4,8,8,128], index: 3, kind: output, shape index: {}]
  %s4 = sld [smem:[#allocation0]]
  $region45: #{a_call__.4} parent=0
    _
  %s6 = ssub.s32 1, %s4
  %s7 = scalar_select 0, %s6, %s4
  loop: start=0, step=1, limit=10
  $region2: #{a_call__.4} parent=0 // loop_pre_header
    _
  $region3: #{a_call__.4} parent=0 // loop_header
    %s9 = sphi 0, %s13
    %p10 = scmp.ge.s32.totalorder %s9, 10
    %s16 = sphi 0, %s28
    %s17 = sphi 0, %s24
    %s18 = sphi 0, %s16
    %s19 = sphi 0, %s17
    %s20 = sphi 0, %s18
    %s21 = sphi 0, %s19
    %s31 = sphi 0, %s33
    %s34 = sphi 0, %s31
    %s35 = sphi 0, %s34
    %s51 = sphi 0, %s35
    %s55 = sphi 0, %s55
    %s57 = sphi 0, %s55
    %s58 = sphi 0, %s57
    %s72 = sphi 0, %s58
    %s76 = sphi 0, %s76
    %s78 = sphi 0, %s76
    %s79 = sphi 0, %s78
    %s93 = sphi 0, %s79
    %s101 = sphi 0, %s103
    %s104 = sphi 0, %s101
    %s105 = sphi 0, %s104
    %s121 = sphi 0, %s105
  $region4: #{a_call__.4} parent=0 // loop_header_branch
    %12 = sbr.rel (%p10) target = $region8
  $region5: #{a_call__.4} parent=0 // loop_body
    %s14 = ssub.s32 %s9, 1
    %s15 = ssub.s32 %s9, 2
    %s22 = sadd.s32 1, %s17
    %p23 = scmp.ge.s32.totalorder %s22, 4
    %s24 = scalar_select %p23, 0, %s22
    %s25 = sadd.s32 1, %s16
    %s26 = scalar_select %p23, %s25, %s16
    %p27 = scmp.ge.s32.totalorder %s26, 2
    %s28 = scalar_select %p27, 0, %s26
    %s29 = ssub.s32 %s16, %s28
    %p30 = scmp.eq.s32.totalorder %s29, 0
    %s32 = sadd.s32 %s31, 1
    %s33 = scalar_select %p30, %s31, %s32
    %p36 = pneg %p30
    %p37 = scmp.eq.s32.totalorder %s9, 7
    %p38 = por %p36, %p37
    %p39 = scmp.ne.s32.totalorder %s31, %s34
    %p40 = scmp.eq.s32.totalorder %s9, 0
    %p41 = por %p39, %p40
    %p42 = scmp.ne.s32.totalorder %s31, %s34
    %p43 = scmp.eq.s32.totalorder %s14, 7
    %p44 = por %p42, %p43
    %p45 = scmp.ne.s32.totalorder %s34, %s35
    %p46 = scmp.eq.s32.totalorder %s14, 0
    %p47 = por %p45, %p46
    %p48 = scmp.ne.s32.totalorder %s34, %s35
    %p49 = scmp.eq.s32.totalorder %s15, 7
    %p50 = por %p48, %p49
    %p52 = scmp.ne.s32.totalorder %s35, %s51
    %p53 = scmp.eq.s32.totalorder %s15, 0
    %p54 = por %p52, %p53
    %s56 = sadd.s32 %s55, 1
    %p59 = scmp.eq.s32.totalorder %s9, 7
    %p60 = scmp.ne.s32.totalorder %s55, %s57
    %p61 = scmp.eq.s32.totalorder %s9, 0
    %p62 = por %p60, %p61
    %p63 = scmp.ne.s32.totalorder %s55, %s57
    %p64 = scmp.eq.s32.totalorder %s14, 7
    %p65 = por %p63, %p64
    %p66 = scmp.ne.s32.totalorder %s57, %s58
    %p67 = scmp.eq.s32.totalorder %s14, 0
    %p68 = por %p66, %p67
    %p69 = scmp.ne.s32.totalorder %s57, %s58
    %p70 = scmp.eq.s32.totalorder %s15, 7
    %p71 = por %p69, %p70
    %p73 = scmp.ne.s32.totalorder %s58, %s72
    %p74 = scmp.eq.s32.totalorder %s15, 0
    %p75 = por %p73, %p74
    %s77 = sadd.s32 %s76, 1
    %p80 = scmp.eq.s32.totalorder %s9, 7
    %p81 = scmp.ne.s32.totalorder %s76, %s78
    %p82 = scmp.eq.s32.totalorder %s9, 0
    %p83 = por %p81, %p82
    %p84 = scmp.ne.s32.totalorder %s76, %s78
    %p85 = scmp.eq.s32.totalorder %s14, 7
    %p86 = por %p84, %p85
    %p87 = scmp.ne.s32.totalorder %s78, %s79
    %p88 = scmp.eq.s32.totalorder %s14, 0
    %p89 = por %p87, %p88
    %p90 = scmp.ne.s32.totalorder %s78, %s79
    %p91 = scmp.eq.s32.totalorder %s15, 7
    %p92 = por %p90, %p91
    %p94 = scmp.ne.s32.totalorder %s79, %s93
    %p95 = scmp.eq.s32.totalorder %s15, 0
    %p96 = por %p94, %p95
    %s97 = ssub.s32 %s16, %s28
    %s98 = ssub.s32 %s17, %s24
    %s99 = sor.u32 %s97, %s98
    %p100 = scmp.eq.s32.totalorder %s99, 0
    %s102 = sadd.s32 %s101, 1
    %s103 = scalar_select %p100, %s101, %s102
    %p106 = pneg %p100
    %p107 = scmp.eq.s32.totalorder %s9, 7
    %p108 = por %p106, %p107
    %p109 = scmp.ne.s32.totalorder %s101, %s104
    %p110 = scmp.eq.s32.totalorder %s9, 0
    %p111 = por %p109, %p110
    %p112 = scmp.ne.s32.totalorder %s101, %s104
    %p113 = scmp.eq.s32.totalorder %s14, 7
    %p114 = por %p112, %p113
    %p115 = scmp.ne.s32.totalorder %s104, %s105
    %p116 = scmp.eq.s32.totalorder %s14, 0
    %p117 = por %p115, %p116
    %p118 = scmp.ne.s32.totalorder %s104, %s105
    %p119 = scmp.eq.s32.totalorder %s15, 7
    %p120 = por %p118, %p119
    %p122 = scmp.ne.s32.totalorder %s105, %s121
    %p123 = scmp.eq.s32.totalorder %s15, 0
    %p124 = por %p122, %p123
    %p125 = scmp.le.s32.totalorder 1, %s9
    %p126 = scmp.lt.s32.totalorder %s9, 9
    %p127 = pnand %p125, %p126
    %p128 = pneg %p127
    // Predicated region
    $region9: #{a_call__.4} parent=5 // pred_check
      _
    $region10: #{a_call__.4} parent=5 // pred_check_branch
      %130 = sbr.rel (%p127) target = $region12
    $region11: #{a_call__.4} parent=5 // pred_region
      %s131 = ssub.s32 %s9, 1
      // Predicated region
      $region13: #{a_call__.4} parent=11 // pred_check
        %p132 = pneg %p68
      $region14: #{a_call__.4} parent=11 // pred_check_branch
        %134 = sbr.rel (%p132) target = $region16
      $region15: #{a_call__.4} parent=11 // pred_region
        _
      $region16: #{a_call__.4} parent=11 // pred_fallthru
        _
      // Predicated region
      $region17: #{a_call__.4} parent=11 // pred_check
        %p135 = pneg %p89
      $region18: #{a_call__.4} parent=11 // pred_check_branch
        %137 = sbr.rel (%p135) target = $region20
      $region19: #{a_call__.4} parent=11 // pred_region
        _
      $region20: #{a_call__.4} parent=11 // pred_fallthru
        _
    $region12: #{a_call__.4} parent=5 // pred_fallthru
      _
    %p138 = scmp.lt.s32.totalorder %s9, 8
    // Predicated region
    $region21: #{a_call__.4} parent=5 // pred_check
      %p139 = pneg %p138
    $region22: #{a_call__.4} parent=5 // pred_check_branch
      %141 = sbr.rel (%p139) target = $region24
    $region23: #{a_call__.4} parent=5 // pred_region
      // Predicated region
      $region25: #{a_call__.4} parent=23 // pred_check
        %p142 = pneg %p41
      $region26: #{a_call__.4} parent=23 // pred_check_branch
        %144 = sbr.rel (%p142) target = $region28
      $region27: #{a_call__.4} parent=23 // pred_region
        %p145 = scmp.lt.s32.totalorder %s16, 1
        %s146 = scalar_select %p145, %s16, 1
        %s147 = smul.addr %s146, 120
        %s148 = smul.addr %s147, 4
        %s149 = scalar_lea.vmem %s0, %s148
      $region28: #{a_call__.4} parent=23 // pred_fallthru
        _
    $region24: #{a_call__.4} parent=5 // pred_fallthru
      _
    %p150 = scmp.le.s32.totalorder 1, %s9
    %p151 = scmp.lt.s32.totalorder %s9, 9
    %p152 = pnand %p150, %p151
    %p153 = pneg %p152
    // Predicated region
    $region29: #{a_call__.4} parent=5 // pred_check
      _
    $region30: #{a_call__.4} parent=5 // pred_check_branch
      %155 = sbr.rel (%p152) target = $region32
    $region31: #{a_call__.4} parent=5 // pred_region
      %s156 = ssub.s32 %s9, 1
      %p157 = scmp.lt.s32.totalorder %s18, 1
      %s158 = scalar_select %p157, %s18, 1
      %s159 = smul.addr %s158, 120
      %s160 = smul.addr %s159, 4
      %s161 = scalar_lea.vmem %s0, %s160
      %p162 = pneg %p47
      %p163 = pneg %p44
      %p164 = pneg %p68
      %p165 = pneg %p65
      %p166 = pneg %p89
      %p167 = pneg %p86
      %p168 = pneg %p117
      %p169 = pneg %p114
      %p170 = scmp.lt.s32.totalorder %s18, 1
      %s171 = scalar_select %p170, %s18, 1
      %p172 = scmp.lt.s32.totalorder %s19, 3
      %s173 = scalar_select %p172, %s19, 3
      %s174 = smul.addr %s173, 8
      %s175 = smul.addr %s171, 32
      %s176 = sadd.s32 %s174, %s175
      %s177 = smul.addr %s176, 4
      %s178 = scalar_lea.vmem %s3, %s177
      %p179 = scmp.lt.s32.totalorder %s18, 1
      %s180 = scalar_select %p179, %s18, 1
      %s181 = smul.addr %s180, 120
      %s182 = smul.addr %s181, 4
      %s183 = scalar_lea.vmem %s0, %s182
      %p184 = scmp.lt.s32.totalorder %s18, 1
      %s185 = scalar_select %p184, %s18, 1
      %p186 = scmp.lt.s32.totalorder %s19, 3
      %s187 = scalar_select %p186, %s19, 3
      %s188 = smul.addr %s187, 8
      %s189 = smul.addr %s185, 32
      %s190 = sadd.s32 %s188, %s189
      %s191 = smul.addr %s190, 4
      %s192 = scalar_lea.vmem %s3, %s191
      %s194 = smul.u32 %s19, 20
      %s195 = smul.addr %s194, 4
      %s196 = scalar_lea.vmem %s183, %s195
      %v197 = vld [vmem:[%s196] sm:$0xf]
      %v198 = vld [vmem:[%s196 + $0x8] sm:$0xf]
      %v199 = vld [vmem:[%s196 + $0x10] sm:$0xf]
      %v200 = vld [vmem:[%s196 + $0x18] sm:$0xf]
      %v201 = vld [vmem:[%s196 + $0x20] sm:$0xf]
      %v202 = vld [vmem:[%s196 + $0x28] sm:$0xf]
      %v203 = vld [vmem:[%s196 + $0x30] sm:$0xf]
      %v204 = vld [vmem:[%s196 + $0x38] sm:$0xf]
      %v205 = vld [vmem:[%s1] sm:$0xf]
      %v206 = vld [vmem:[%s1 + $0x4] sm:$0xf]
      %v207 = vld [vmem:[%s1 + $0x8] sm:$0xf]
      %v208 = vld [vmem:[%s1 + $0xc] sm:$0xf]
      %v209 = vld [vmem:[%s1 + $0x10] sm:$0xf]
      %v210 = vld [vmem:[%s1 + $0x14] sm:$0xf]
      %v211 = vld [vmem:[%s1 + $0x18] sm:$0xf]
      %v212 = vld [vmem:[%s1 + $0x1c] sm:$0xf]
      %v213 = vld [vmem:[%s1 + $0x20] sm:$0xf]
      %v214 = vld [vmem:[%s1 + $0x24] sm:$0xf]
      %v215 = vld [vmem:[%s1 + $0x28] sm:$0xf]
      %v216 = vld [vmem:[%s1 + $0x2c] sm:$0xf]
      %v217 = vld [vmem:[%s1 + $0x30] sm:$0xf]
      %v218 = vld [vmem:[%s1 + $0x34] sm:$0xf]
      %v219 = vld [vmem:[%s1 + $0x38] sm:$0xf]
      %v220 = vld [vmem:[%s1 + $0x3c] sm:$0xf]
      %v221 = vld [vmem:[%s196 + $0x4] sm:$0x1]
      %v222 = vld [vmem:[%s196 + $0xc] sm:$0x1]
      %v223 = vld [vmem:[%s196 + $0x14] sm:$0x1]
      %v224 = vld [vmem:[%s196 + $0x1c] sm:$0x1]
      %v225 = vld [vmem:[%s196 + $0x24] sm:$0x1]
      %v226 = vld [vmem:[%s196 + $0x2c] sm:$0x1]
      %v227 = vld [vmem:[%s196 + $0x34] sm:$0x1]
      %v228 = vld [vmem:[%s196 + $0x3c] sm:$0x1]
      %vm229 = vsmask.f32 3328
      %vm230 = vsmask.f32 7440
      %vm231 = vmor %vm229, %vm230
      %v233 = vshrl.u32 %v197, 16
      %v235 = vrot.slane %v233, 4
      %v236 = vshll.u32 %v197, 16
      %v238 = vrot.slane %v236, 5
      %v239 = vor.u32 %v235, %v238
      %v240 = vrot.slane %v239, 4
      %v242 = vshll.u32 %v221, 16
      %v244 = vrot.slane %v242, 5
      %v245 = vsel %vm231, %v240, %v244
      %v247 = vshrl.u32 %v198, 16
      %v249 = vrot.slane %v247, 4
      %v250 = vshll.u32 %v198, 16
      %v252 = vrot.slane %v250, 5
      %v253 = vor.u32 %v249, %v252
      %v254 = vrot.slane %v253, 4
      %v256 = vshll.u32 %v222, 16
      %v258 = vrot.slane %v256, 5
      %v259 = vsel %vm231, %v254, %v258
      %v261 = vshrl.u32 %v199, 16
      %v263 = vrot.slane %v261, 4
      %v264 = vshll.u32 %v199, 16
      %v266 = vrot.slane %v264, 5
      %v267 = vor.u32 %v263, %v266
      %v268 = vrot.slane %v267, 4
      %v270 = vshll.u32 %v223, 16
      %v272 = vrot.slane %v270, 5
      %v273 = vsel %vm231, %v268, %v272
      %v275 = vshrl.u32 %v200, 16
      %v277 = vrot.slane %v275, 4
      %v278 = vshll.u32 %v200, 16
      %v280 = vrot.slane %v278, 5
      %v281 = vor.u32 %v277, %v280
      %v282 = vrot.slane %v281, 4
      %v284 = vshll.u32 %v224, 16
      %v286 = vrot.slane %v284, 5
      %v287 = vsel %vm231, %v282, %v286
      %v289 = vshrl.u32 %v201, 16
      %v291 = vrot.slane %v289, 4
      %v292 = vshll.u32 %v201, 16
      %v294 = vrot.slane %v292, 5
      %v295 = vor.u32 %v291, %v294
      %v296 = vrot.slane %v295, 4
      %v298 = vshll.u32 %v225, 16
      %v300 = vrot.slane %v298, 5
      %v301 = vsel %vm231, %v296, %v300
      %v303 = vshrl.u32 %v202, 16
      %v305 = vrot.slane %v303, 4
      %v306 = vshll.u32 %v202, 16
      %v308 = vrot.slane %v306, 5
      %v309 = vor.u32 %v305, %v308
      %v310 = vrot.slane %v309, 4
      %v312 = vshll.u32 %v226, 16
      %v314 = vrot.slane %v312, 5
      %v315 = vsel %vm231, %v310, %v314
      %v317 = vshrl.u32 %v203, 16
      %v319 = vrot.slane %v317, 4
      %v320 = vshll.u32 %v203, 16
      %v322 = vrot.slane %v320, 5
      %v323 = vor.u32 %v319, %v322
      %v324 = vrot.slane %v323, 4
      %v326 = vshll.u32 %v227, 16
      %v328 = vrot.slane %v326, 5
      %v329 = vsel %vm231, %v324, %v328
      %v331 = vshrl.u32 %v204, 16
      %v333 = vrot.slane %v331, 4
      %v334 = vshll.u32 %v204, 16
      %v336 = vrot.slane %v334, 5
      %v337 = vor.u32 %v333, %v336
      %v338 = vrot.slane %v337, 4
      %v340 = vshll.u32 %v228, 16
      %v342 = vrot.slane %v340, 5
      %v343 = vsel %vm231, %v338, %v342
      %s344 = scalar_lea.vmem %s1, 64
      %v345 = vld [vmem:[%s344] sm:$0xf]
      %v346 = vld [vmem:[%s344 + $0x4] sm:$0xf]
      %v347 = vld [vmem:[%s344 + $0x8] sm:$0xf]
      %v348 = vld [vmem:[%s344 + $0xc] sm:$0xf]
      %v349 = vld [vmem:[%s344 + $0x10] sm:$0xf]
      %v350 = vld [vmem:[%s344 + $0x14] sm:$0xf]
      %v351 = vld [vmem:[%s344 + $0x18] sm:$0xf]
      %v352 = vld [vmem:[%s344 + $0x1c] sm:$0xf]
      %v353 = vld [vmem:[%s344 + $0x20] sm:$0xf]
      %v354 = vld [vmem:[%s344 + $0x24] sm:$0xf]
      %v355 = vld [vmem:[%s344 + $0x28] sm:$0xf]
      %v356 = vld [vmem:[%s344 + $0x2c] sm:$0xf]
      %v357 = vld [vmem:[%s344 + $0x30] sm:$0xf]
      %v358 = vld [vmem:[%s344 + $0x34] sm:$0xf]
      %v359 = vld [vmem:[%s344 + $0x38] sm:$0xf]
      %v360 = vld [vmem:[%s344 + $0x3c] sm:$0xf]
      %v361 = vunpack.c.l.b16 %v245
      %v362 = vunpack.c.l.b16 %v259
      %v363 = vunpack.c.l.b16 %v273
      %v364 = vunpack.c.l.b16 %v287
      %v365 = vunpack.c.l.b16 %v301
      %v366 = vunpack.c.l.b16 %v315
      %v367 = vunpack.c.l.b16 %v329
      %v368 = vunpack.c.l.b16 %v343
      %v369 = vpack.c.b16 %v362, %v361
      %v370 = vpack.c.b16 %v364, %v363
      %v371 = vpack.c.b16 %v366, %v365
      %v372 = vpack.c.b16 %v368, %v367
      %v393 = vunpack.c.l.b16 %v345
      %v394 = vunpack.c.l.b16 %v346
      %v395 = vunpack.c.l.b16 %v347
      %v396 = vunpack.c.l.b16 %v348
      %v397 = vunpack.c.l.b16 %v349
      %v398 = vunpack.c.l.b16 %v350
      %v399 = vunpack.c.l.b16 %v351
      %v400 = vunpack.c.l.b16 %v352
      %v401 = vunpack.c.l.b16 %v353
      %v402 = vunpack.c.l.b16 %v354
      %v403 = vunpack.c.l.b16 %v355
      %v404 = vunpack.c.l.b16 %v356
      %v405 = vunpack.c.l.b16 %v357
      %v406 = vunpack.c.l.b16 %v358
      %v407 = vunpack.c.l.b16 %v359
      %v408 = vunpack.c.l.b16 %v360
      %v409 = vpack.c.b16 %v394, %v393
      %v410 = vpack.c.b16 %v396, %v395
      %v411 = vpack.c.b16 %v398, %v397
      %v412 = vpack.c.b16 %v400, %v399
      %v413 = vpack.c.b16 %v402, %v401
      %v414 = vpack.c.b16 %v404, %v403
      %v415 = vpack.c.b16 %v406, %v405
      %v416 = vpack.c.b16 %v408, %v407
      %425 = vmatprep.subr.bf16.mxu0 0
      %426 = vmatpush1.bf16.msra.mxu0 %v409
      %427 = vmatprep.subr.bf16.mxu0 0
      %428 = vmatpush1.bf16.msra.mxu0 %v410
      %429 = vmatprep.subr.bf16.mxu0 0
      %430 = vmatpush1.bf16.msra.mxu0 %v411
      %431 = vmatprep.subr.bf16.mxu0 0
      %432 = vmatpush1.bf16.msra.mxu0 %v412
      %433 = vmatprep.subr.bf16.mxu0 0
      %434 = vmatpush1.bf16.msra.mxu0 %v413
      %435 = vmatprep.subr.bf16.mxu0 0
      %436 = vmatpush1.bf16.msra.mxu0 %v414
      %437 = vmatprep.subr.bf16.mxu0 0
      %438 = vmatpush1.bf16.msra.mxu0 %v415
      %439 = vmatprep.subr.bf16.mxu0 0
      %440 = vmatpush1.bf16.msra.mxu0 %v416
      %441 = vmatprep.subr.bf16.mxu0 0
      %442 = vmatpush1.bf16.msra.mxu0 0
      %443 = vmatprep.subr.bf16.mxu0 0
      %444 = vmatpush1.bf16.msra.mxu0 0
      %445 = vmatprep.subr.bf16.mxu0 0
      %446 = vmatpush1.bf16.msra.mxu0 0
      %447 = vmatprep.subr.bf16.mxu0 0
      %448 = vmatpush1.bf16.msra.mxu0 0
      %449 = vmatprep.subr.bf16.mxu0 0
      %450 = vmatpush1.bf16.msra.mxu0 0
      %451 = vmatprep.subr.bf16.mxu0 0
      %452 = vmatpush1.bf16.msra.mxu0 0
      %453 = vmatprep.subr.bf16.mxu0 0
      %454 = vmatpush1.bf16.msra.mxu0 0
      %455 = vmatprep.subr.bf16.mxu0 0
      %456 = vmatpush1.bf16.msra.mxu0 0
      %457 = vmatprep.mubr.bf16.mxu0 0
      %458 = vmatmul.mubr.bf16.gmra.mrb[0].mxu0 %v369
      %v459 = vpop.f32.mrb[0].mxu0
      %v460 = vadd.f32 0.0, %v459
      %v461 = vpop.f32.mrb[0].mxu0
      %v462 = vpop.f32.mrb[0].mxu0
      %v463 = vadd.f32 0.0, %v462
      %v464 = vpop.f32.mrb[0].mxu0
      %465 = vmatprep.mubr.bf16.mxu0 0
      %466 = vmatmul.mubr.bf16.gmra.mrb[0].mxu0 %v370
      %v467 = vpop.f32.mrb[0].mxu0
      %v468 = vadd.f32 0.0, %v467
      %v469 = vpop.f32.mrb[0].mxu0
      %v470 = vpop.f32.mrb[0].mxu0
      %v471 = vadd.f32 0.0, %v470
      %v472 = vpop.f32.mrb[0].mxu0
      %473 = vmatprep.mubr.bf16.mxu0 0
      %474 = vmatmul.mubr.bf16.gmra.mrb[0].mxu0 %v371
      %v475 = vpop.f32.mrb[0].mxu0
      %v476 = vadd.f32 0.0, %v475
      %v477 = vpop.f32.mrb[0].mxu0
      %v478 = vpop.f32.mrb[0].mxu0
      %v479 = vadd.f32 0.0, %v478
      %v480 = vpop.f32.mrb[0].mxu0
      %481 = vmatprep.mubr.bf16.mxu0 0
      %482 = vmatmul.mubr.bf16.gmra.mrb[0].mxu0 %v372
      %v483 = vpop.f32.mrb[0].mxu0
      %v484 = vadd.f32 0.0, %v483
      %v485 = vpop.f32.mrb[0].mxu0
      %v486 = vpop.f32.mrb[0].mxu0
      %v487 = vadd.f32 0.0, %v486
      %v488 = vpop.f32.mrb[0].mxu0
      %489 = vdwg.mxu0
      %v498 = vunpack.c.l.b16 %v197
      %v499 = vunpack.c.l.b16 %v198
      %v500 = vunpack.c.l.b16 %v199
      %v501 = vunpack.c.l.b16 %v200
      %v502 = vunpack.c.l.b16 %v201
      %v503 = vunpack.c.l.b16 %v202
      %v504 = vunpack.c.l.b16 %v203
      %v505 = vunpack.c.l.b16 %v204
      %v506 = vpack.c.b16 %v499, %v498
      %v507 = vpack.c.b16 %v501, %v500
      %v508 = vpack.c.b16 %v503, %v502
      %v509 = vpack.c.b16 %v505, %v504
      %v530 = vunpack.c.l.b16 %v205
      %v531 = vunpack.c.l.b16 %v206
      %v532 = vunpack.c.l.b16 %v207
      %v533 = vunpack.c.l.b16 %v208
      %v534 = vunpack.c.l.b16 %v209
      %v535 = vunpack.c.l.b16 %v210
      %v536 = vunpack.c.l.b16 %v211
      %v537 = vunpack.c.l.b16 %v212
      %v538 = vunpack.c.l.b16 %v213
      %v539 = vunpack.c.l.b16 %v214
      %v540 = vunpack.c.l.b16 %v215
      %v541 = vunpack.c.l.b16 %v216
      %v542 = vunpack.c.l.b16 %v217
      %v543 = vunpack.c.l.b16 %v218
      %v544 = vunpack.c.l.b16 %v219
      %v545 = vunpack.c.l.b16 %v220
      %v546 = vpack.c.b16 %v531, %v530
      %v547 = vpack.c.b16 %v533, %v532
      %v548 = vpack.c.b16 %v535, %v534
      %v549 = vpack.c.b16 %v537, %v536
      %v550 = vpack.c.b16 %v539, %v538
      %v551 = vpack.c.b16 %v541, %v540
      %v552 = vpack.c.b16 %v543, %v542
      %v553 = vpack.c.b16 %v545, %v544
      %562 = vmatprep.subr.bf16.mxu0 0
      %563 = vmatpush1.bf16.msra.mxu0 %v546
      %564 = vmatprep.subr.bf16.mxu0 0
      %565 = vmatpush1.bf16.msra.mxu0 %v547
      %566 = vmatprep.subr.bf16.mxu0 0
      %567 = vmatpush1.bf16.msra.mxu0 %v548
      %568 = vmatprep.subr.bf16.mxu0 0
      %569 = vmatpush1.bf16.msra.mxu0 %v549
      %570 = vmatprep.subr.bf16.mxu0 0
      %571 = vmatpush1.bf16.msra.mxu0 %v550
      %572 = vmatprep.subr.bf16.mxu0 0
      %573 = vmatpush1.bf16.msra.mxu0 %v551
      %574 = vmatprep.subr.bf16.mxu0 0
      %575 = vmatpush1.bf16.msra.mxu0 %v552
      %576 = vmatprep.subr.bf16.mxu0 0
      %577 = vmatpush1.bf16.msra.mxu0 %v553
      %578 = vmatprep.subr.bf16.mxu0 0
      %579 = vmatpush1.bf16.msra.mxu0 0
      %580 = vmatprep.subr.bf16.mxu0 0
      %581 = vmatpush1.bf16.msra.mxu0 0
      %582 = vmatprep.subr.bf16.mxu0 0
      %583 = vmatpush1.bf16.msra.mxu0 0
      %584 = vmatprep.subr.bf16.mxu0 0
      %585 = vmatpush1.bf16.msra.mxu0 0
      %586 = vmatprep.subr.bf16.mxu0 0
      %587 = vmatpush1.bf16.msra.mxu0 0
      %588 = vmatprep.subr.bf16.mxu0 0
      %589 = vmatpush1.bf16.msra.mxu0 0
      %590 = vmatprep.subr.bf16.mxu0 0
      %591 = vmatpush1.bf16.msra.mxu0 0
      %592 = vmatprep.subr.bf16.mxu0 0
      %593 = vmatpush1.bf16.msra.mxu0 0
      %594 = vmatprep.mubr.bf16.mxu0 0
      %595 = vmatmul.mubr.bf16.gmra.mrb[0].mxu0 %v506
      %v596 = vpop.f32.mrb[0].mxu0
      %v597 = vadd.f32 %v460, %v596
      %v598 = vpop.f32.mrb[0].mxu0
      %v599 = vpop.f32.mrb[0].mxu0
      %v600 = vadd.f32 %v463, %v599
      %v601 = vpop.f32.mrb[0].mxu0
      %602 = vmatprep.mubr.bf16.mxu0 0
      %603 = vmatmul.mubr.bf16.gmra.mrb[0].mxu0 %v507
      %v604 = vpop.f32.mrb[0].mxu0
      %v605 = vadd.f32 %v468, %v604
      %v606 = vpop.f32.mrb[0].mxu0
      %v607 = vpop.f32.mrb[0].mxu0
      %v608 = vadd.f32 %v471, %v607
      %v609 = vpop.f32.mrb[0].mxu0
      %610 = vmatprep.mubr.bf16.mxu0 0
      %611 = vmatmul.mubr.bf16.gmra.mrb[0].mxu0 %v508
      %v612 = vpop.f32.mrb[0].mxu0
      %v613 = vadd.f32 %v476, %v612
      %v614 = vpop.f32.mrb[0].mxu0
      %v615 = vpop.f32.mrb[0].mxu0
      %v616 = vadd.f32 %v479, %v615
      %v617 = vpop.f32.mrb[0].mxu0
      %618 = vmatprep.mubr.bf16.mxu0 0
      %619 = vmatmul.mubr.bf16.gmra.mrb[0].mxu0 %v509
      %v620 = vpop.f32.mrb[0].mxu0
      %v621 = vadd.f32 %v484, %v620
      %v622 = vpop.f32.mrb[0].mxu0
      %v623 = vpop.f32.mrb[0].mxu0
      %v624 = vadd.f32 %v487, %v623
      %v625 = vpop.f32.mrb[0].mxu0
      %626 = vdwg.mxu0
      %v627 = vld [vmem:[%s196] sm:$0xe]
      %v628 = vld [vmem:[%s196 + $0x8] sm:$0xe]
      %v629 = vld [vmem:[%s196 + $0x10] sm:$0xe]
      %v630 = vld [vmem:[%s196 + $0x18] sm:$0xe]
      %v631 = vld [vmem:[%s196 + $0x20] sm:$0xe]
      %v632 = vld [vmem:[%s196 + $0x28] sm:$0xe]
      %v633 = vld [vmem:[%s196 + $0x30] sm:$0xe]
      %v634 = vld [vmem:[%s196 + $0x38] sm:$0xe]
      %vm651 = vcmask 1042432
      %vm652 = vcmask 1046532
      %vm653 = vmor %vm651, %vm652
      %v654 = vrot.slane %v627, 5
      %v655 = vrot.slane %v654, 4
      %v656 = vrot.slane %v221, 5
      %v657 = vsel %vm653, %v655, %v656
      %v658 = vrot.slane %v628, 5
      %v659 = vrot.slane %v658, 4
      %v660 = vrot.slane %v222, 5
      %v661 = vsel %vm653, %v659, %v660
      %v662 = vrot.slane %v629, 5
      %v663 = vrot.slane %v662, 4
      %v664 = vrot.slane %v223, 5
      %v665 = vsel %vm653, %v663, %v664
      %v666 = vrot.slane %v630, 5
      %v667 = vrot.slane %v666, 4
      %v668 = vrot.slane %v224, 5
      %v669 = vsel %vm653, %v667, %v668
      %v670 = vrot.slane %v631, 5
      %v671 = vrot.slane %v670, 4
      %v672 = vrot.slane %v225, 5
      %v673 = vsel %vm653, %v671, %v672
      %v674 = vrot.slane %v632, 5
      %v675 = vrot.slane %v674, 4
      %v676 = vrot.slane %v226, 5
      %v677 = vsel %vm653, %v675, %v676
      %v678 = vrot.slane %v633, 5
      %v679 = vrot.slane %v678, 4
      %v680 = vrot.slane %v227, 5
      %v681 = vsel %vm653, %v679, %v680
      %v682 = vrot.slane %v634, 5
      %v683 = vrot.slane %v682, 4
      %v684 = vrot.slane %v228, 5
      %v685 = vsel %vm653, %v683, %v684
      %s686 = scalar_lea.vmem %s1, 128
      %v687 = vld [vmem:[%s686] sm:$0xf]
      %v688 = vld [vmem:[%s686 + $0x4] sm:$0xf]
      %v689 = vld [vmem:[%s686 + $0x8] sm:$0xf]
      %v690 = vld [vmem:[%s686 + $0xc] sm:$0xf]
      %v691 = vld [vmem:[%s686 + $0x10] sm:$0xf]
      %v692 = vld [vmem:[%s686 + $0x14] sm:$0xf]
      %v693 = vld [vmem:[%s686 + $0x18] sm:$0xf]
      %v694 = vld [vmem:[%s686 + $0x1c] sm:$0xf]
      %v695 = vld [vmem:[%s686 + $0x20] sm:$0xf]
      %v696 = vld [vmem:[%s686 + $0x24] sm:$0xf]
      %v697 = vld [vmem:[%s686 + $0x28] sm:$0xf]
      %v698 = vld [vmem:[%s686 + $0x2c] sm:$0xf]
      %v699 = vld [vmem:[%s686 + $0x30] sm:$0xf]
      %v700 = vld [vmem:[%s686 + $0x34] sm:$0xf]
      %v701 = vld [vmem:[%s686 + $0x38] sm:$0xf]
      %v702 = vld [vmem:[%s686 + $0x3c] sm:$0xf]
      %v703 = vunpack.c.l.b16 %v657
      %v704 = vunpack.c.l.b16 %v661
      %v705 = vunpack.c.l.b16 %v665
      %v706 = vunpack.c.l.b16 %v669
      %v707 = vunpack.c.l.b16 %v673
      %v708 = vunpack.c.l.b16 %v677
      %v709 = vunpack.c.l.b16 %v681
      %v710 = vunpack.c.l.b16 %v685
      %v711 = vpack.c.b16 %v704, %v703
      %v712 = vpack.c.b16 %v706, %v705
      %v713 = vpack.c.b16 %v708, %v707
      %v714 = vpack.c.b16 %v710, %v709
      %v735 = vunpack.c.l.b16 %v687
      %v736 = vunpack.c.l.b16 %v688
      %v737 = vunpack.c.l.b16 %v689
      %v738 = vunpack.c.l.b16 %v690
      %v739 = vunpack.c.l.b16 %v691
      %v740 = vunpack.c.l.b16 %v692
      %v741 = vunpack.c.l.b16 %v693
      %v742 = vunpack.c.l.b16 %v694
      %v743 = vunpack.c.l.b16 %v695
      %v744 = vunpack.c.l.b16 %v696
      %v745 = vunpack.c.l.b16 %v697
      %v746 = vunpack.c.l.b16 %v698
      %v747 = vunpack.c.l.b16 %v699
      %v748 = vunpack.c.l.b16 %v700
      %v749 = vunpack.c.l.b16 %v701
      %v750 = vunpack.c.l.b16 %v702
      %v751 = vpack.c.b16 %v736, %v735
      %v752 = vpack.c.b16 %v738, %v737
      %v753 = vpack.c.b16 %v740, %v739
      %v754 = vpack.c.b16 %v742, %v741
      %v755 = vpack.c.b16 %v744, %v743
      %v756 = vpack.c.b16 %v746, %v745
      %v757 = vpack.c.b16 %v748, %v747
      %v758 = vpack.c.b16 %v750, %v749
      %767 = vmatprep.subr.bf16.mxu0 0
      %768 = vmatpush1.bf16.msra.mxu0 %v751
      %769 = vmatprep.subr.bf16.mxu0 0
      %770 = vmatpush1.bf16.msra.mxu0 %v752
      %771 = vmatprep.subr.bf16.mxu0 0
      %772 = vmatpush1.bf16.msra.mxu0 %v753
      %773 = vmatprep.subr.bf16.mxu0 0
      %774 = vmatpush1.bf16.msra.mxu0 %v754
      %775 = vmatprep.subr.bf16.mxu0 0
      %776 = vmatpush1.bf16.msra.mxu0 %v755
      %777 = vmatprep.subr.bf16.mxu0 0
      %778 = vmatpush1.bf16.msra.mxu0 %v756
      %779 = vmatprep.subr.bf16.mxu0 0
      %780 = vmatpush1.bf16.msra.mxu0 %v757
      %781 = vmatprep.subr.bf16.mxu0 0
      %782 = vmatpush1.bf16.msra.mxu0 %v758
      %783 = vmatprep.subr.bf16.mxu0 0
      %784 = vmatpush1.bf16.msra.mxu0 0
      %785 = vmatprep.subr.bf16.mxu0 0
      %786 = vmatpush1.bf16.msra.mxu0 0
      %787 = vmatprep.subr.bf16.mxu0 0
      %788 = vmatpush1.bf16.msra.mxu0 0
      %789 = vmatprep.subr.bf16.mxu0 0
      %790 = vmatpush1.bf16.msra.mxu0 0
      %791 = vmatprep.subr.bf16.mxu0 0
      %792 = vmatpush1.bf16.msra.mxu0 0
      %793 = vmatprep.subr.bf16.mxu0 0
      %794 = vmatpush1.bf16.msra.mxu0 0
      %795 = vmatprep.subr.bf16.mxu0 0
      %796 = vmatpush1.bf16.msra.mxu0 0
      %797 = vmatprep.subr.bf16.mxu0 0
      %798 = vmatpush1.bf16.msra.mxu0 0
      %799 = vmatprep.mubr.bf16.mxu0 0
      %800 = vmatmul.mubr.bf16.gmra.mrb[0].mxu0 %v711
      %v801 = vpop.f32.mrb[0].mxu0
      %v802 = vadd.f32 0.0, %v801
      %v803 = vpop.f32.mrb[0].mxu0
      %v804 = vpop.f32.mrb[0].mxu0
      %v805 = vadd.f32 0.0, %v804
      %v806 = vpop.f32.mrb[0].mxu0
      %807 = vmatprep.mubr.bf16.mxu0 0
      %808 = vmatmul.mubr.bf16.gmra.mrb[0].mxu0 %v712
      %v809 = vpop.f32.mrb[0].mxu0
      %v810 = vadd.f32 0.0, %v809
      %v811 = vpop.f32.mrb[0].mxu0
      %v812 = vpop.f32.mrb[0].mxu0
      %v813 = vadd.f32 0.0, %v812
      %v814 = vpop.f32.mrb[0].mxu0
      %815 = vmatprep.mubr.bf16.mxu0 0
      %816 = vmatmul.mubr.bf16.gmra.mrb[0].mxu0 %v713
      %v817 = vpop.f32.mrb[0].mxu0
      %v818 = vadd.f32 0.0, %v817
      %v819 = vpop.f32.mrb[0].mxu0
      %v820 = vpop.f32.mrb[0].mxu0
      %v821 = vadd.f32 0.0, %v820
      %v822 = vpop.f32.mrb[0].mxu0
      %823 = vmatprep.mubr.bf16.mxu0 0
      %824 = vmatmul.mubr.bf16.gmra.mrb[0].mxu0 %v714
      %v825 = vpop.f32.mrb[0].mxu0
      %v826 = vadd.f32 0.0, %v825
      %v827 = vpop.f32.mrb[0].mxu0
      %v828 = vpop.f32.mrb[0].mxu0
      %v829 = vadd.f32 0.0, %v828
      %v830 = vpop.f32.mrb[0].mxu0
      %831 = vdwg.mxu0
      %v832 = vadd.f32 %v597, %v802
      %v833 = vadd.f32 %v600, %v805
      %v834 = vadd.f32 %v605, %v810
      %v835 = vadd.f32 %v608, %v813
      %v836 = vadd.f32 %v613, %v818
      %v837 = vadd.f32 %v616, %v821
      %v838 = vadd.f32 %v621, %v826
      %v839 = vadd.f32 %v624, %v829
      %s840 = sadd.s32 2, %s194
      %s841 = smul.addr %s840, 4
      %s842 = scalar_lea.vmem %s183, %s841
      %v843 = vld [vmem:[%s842] sm:$0xf]
      %v844 = vld [vmem:[%s842 + $0x8] sm:$0xf]
      %v845 = vld [vmem:[%s842 + $0x10] sm:$0xf]
      %v846 = vld [vmem:[%s842 + $0x18] sm:$0xf]
      %v847 = vld [vmem:[%s842 + $0x20] sm:$0xf]
      %v848 = vld [vmem:[%s842 + $0x28] sm:$0xf]
      %v849 = vld [vmem:[%s842 + $0x30] sm:$0xf]
      %v850 = vld [vmem:[%s842 + $0x38] sm:$0xf]
      %s851 = scalar_lea.vmem %s1, 192
      %v852 = vld [vmem:[%s851] sm:$0xf]
      %v853 = vld [vmem:[%s851 + $0x4] sm:$0xf]
      %v854 = vld [vmem:[%s851 + $0x8] sm:$0xf]
      %v855 = vld [vmem:[%s851 + $0xc] sm:$0xf]
      %v856 = vld [vmem:[%s851 + $0x10] sm:$0xf]
      %v857 = vld [vmem:[%s851 + $0x14] sm:$0xf]
      %v858 = vld [vmem:[%s851 + $0x18] sm:$0xf]
      %v859 = vld [vmem:[%s851 + $0x1c] sm:$0xf]
      %v860 = vld [vmem:[%s851 + $0x20] sm:$0xf]
      %v861 = vld [vmem:[%s851 + $0x24] sm:$0xf]
      %v862 = vld [vmem:[%s851 + $0x28] sm:$0xf]
      %v863 = vld [vmem:[%s851 + $0x2c] sm:$0xf]
      %v864 = vld [vmem:[%s851 + $0x30] sm:$0xf]
      %v865 = vld [vmem:[%s851 + $0x34] sm:$0xf]
      %v866 = vld [vmem:[%s851 + $0x38] sm:$0xf]
      %v867 = vld [vmem:[%s851 + $0x3c] sm:$0xf]
      %v876 = vunpack.c.l.b16 %v843
      %v877 = vunpack.c.l.b16 %v844
      %v878 = vunpack.c.l.b16 %v845
      %v879 = vunpack.c.l.b16 %v846
      %v880 = vunpack.c.l.b16 %v847
      %v881 = vunpack.c.l.b16 %v848
      %v882 = vunpack.c.l.b16 %v849
      %v883 = vunpack.c.l.b16 %v850
      %v884 = vpack.c.b16 %v877, %v876
      %v885 = vpack.c.b16 %v879, %v878
      %v886 = vpack.c.b16 %v881, %v880
      %v887 = vpack.c.b16 %v883, %v882
      %v908 = vunpack.c.l.b16 %v852
      %v909 = vunpack.c.l.b16 %v853
      %v910 = vunpack.c.l.b16 %v854
      %v911 = vunpack.c.l.b16 %v855
      %v912 = vunpack.c.l.b16 %v856
      %v913 = vunpack.c.l.b16 %v857
      %v914 = vunpack.c.l.b16 %v858
      %v915 = vunpack.c.l.b16 %v859
      %v916 = vunpack.c.l.b16 %v860
      %v917 = vunpack.c.l.b16 %v861
      %v918 = vunpack.c.l.b16 %v862
      %v919 = vunpack.c.l.b16 %v863
      %v920 = vunpack.c.l.b16 %v864
      %v921 = vunpack.c.l.b16 %v865
      %v922 = vunpack.c.l.b16 %v866
      %v923 = vunpack.c.l.b16 %v867
      %v924 = vpack.c.b16 %v909, %v908
      %v925 = vpack.c.b16 %v911, %v910
      %v926 = vpack.c.b16 %v913, %v912
      %v927 = vpack.c.b16 %v915, %v914
      %v928 = vpack.c.b16 %v917, %v916
      %v929 = vpack.c.b16 %v919, %v918
      %v930 = vpack.c.b16 %v921, %v920
      %v931 = vpack.c.b16 %v923, %v922
      %940 = vmatprep.subr.bf16.mxu0 0
      %941 = vmatpush1.bf16.msra.mxu0 %v924
      %942 = vmatprep.subr.bf16.mxu0 0
      %943 = vmatpush1.bf16.msra.mxu0 %v925
      %944 = vmatprep.subr.bf16.mxu0 0
      %945 = vmatpush1.bf16.msra.mxu0 %v926
      %946 = vmatprep.subr.bf16.mxu0 0
      %947 = vmatpush1.bf16.msra.mxu0 %v927
      %948 = vmatprep.subr.bf16.mxu0 0
      %949 = vmatpush1.bf16.msra.mxu0 %v928
      %950 = vmatprep.subr.bf16.mxu0 0
      %951 = vmatpush1.bf16.msra.mxu0 %v929
      %952 = vmatprep.subr.bf16.mxu0 0
      %953 = vmatpush1.bf16.msra.mxu0 %v930
      %954 = vmatprep.subr.bf16.mxu0 0
      %955 = vmatpush1.bf16.msra.mxu0 %v931
      %956 = vmatprep.subr.bf16.mxu0 0
      %957 = vmatpush1.bf16.msra.mxu0 0
      %958 = vmatprep.subr.bf16.mxu0 0
      %959 = vmatpush1.bf16.msra.mxu0 0
      %960 = vmatprep.subr.bf16.mxu0 0
      %961 = vmatpush1.bf16.msra.mxu0 0
      %962 = vmatprep.subr.bf16.mxu0 0
      %963 = vmatpush1.bf16.msra.mxu0 0
      %964 = vmatprep.subr.bf16.mxu0 0
      %965 = vmatpush1.bf16.msra.mxu0 0
      %966 = vmatprep.subr.bf16.mxu0 0
      %967 = vmatpush1.bf16.msra.mxu0 0
      %968 = vmatprep.subr.bf16.mxu0 0
      %969 = vmatpush1.bf16.msra.mxu0 0
      %970 = vmatprep.subr.bf16.mxu0 0
      %971 = vmatpush1.bf16.msra.mxu0 0
      %972 = vmatprep.mubr.bf16.mxu0 0
      %973 = vmatmul.mubr.bf16.gmra.mrb[0].mxu0 %v884
      %v974 = vpop.f32.mrb[0].mxu0
      %v975 = vadd.f32 0.0, %v974
      %v976 = vpop.f32.mrb[0].mxu0
      %v977 = vpop.f32.mrb[0].mxu0
      %v978 = vadd.f32 0.0, %v977
      %v979 = vpop.f32.mrb[0].mxu0
      %980 = vmatprep.mubr.bf16.mxu0 0
      %981 = vmatmul.mubr.bf16.gmra.mrb[0].mxu0 %v885
      %v982 = vpop.f32.mrb[0].mxu0
      %v983 = vadd.f32 0.0, %v982
      %v984 = vpop.f32.mrb[0].mxu0
      %v985 = vpop.f32.mrb[0].mxu0
      %v986 = vadd.f32 0.0, %v985
      %v987 = vpop.f32.mrb[0].mxu0
      %988 = vmatprep.mubr.bf16.mxu0 0
      %989 = vmatmul.mubr.bf16.gmra.mrb[0].mxu0 %v886
      %v990 = vpop.f32.mrb[0].mxu0
      %v991 = vadd.f32 0.0, %v990
      %v992 = vpop.f32.mrb[0].mxu0
      %v993 = vpop.f32.mrb[0].mxu0
      %v994 = vadd.f32 0.0, %v993
      %v995 = vpop.f32.mrb[0].mxu0
      %996 = vmatprep.mubr.bf16.mxu0 0
      %997 = vmatmul.mubr.bf16.gmra.mrb[0].mxu0 %v887
      %v998 = vpop.f32.mrb[0].mxu0
      %v999 = vadd.f32 0.0, %v998
      %v1000 = vpop.f32.mrb[0].mxu0
      %v1001 = vpop.f32.mrb[0].mxu0
      %v1002 = vadd.f32 0.0, %v1001
      %v1003 = vpop.f32.mrb[0].mxu0
      %1004 = vdwg.mxu0
      %v1005 = vadd.f32 %v832, %v975
      %v1006 = vadd.f32 %v833, %v978
      %v1007 = vadd.f32 %v834, %v983
      %v1008 = vadd.f32 %v835, %v986
      %v1009 = vadd.f32 %v836, %v991
      %v1010 = vadd.f32 %v837, %v994
      %v1011 = vadd.f32 %v838, %v999
      %v1012 = vadd.f32 %v839, %v1002
      %v1013 = vld [vmem:[%s842] sm:$0xf]
      %v1014 = vld [vmem:[%s842 + $0x4] sm:$0x1]
      %v1015 = vld [vmem:[%s842 + $0x8] sm:$0xf]
      %v1016 = vld [vmem:[%s842 + $0xc] sm:$0x1]
      %v1017 = vld [vmem:[%s842 + $0x10] sm:$0xf]
      %v1018 = vld [vmem:[%s842 + $0x14] sm:$0x1]
      %v1019 = vld [vmem:[%s842 + $0x18] sm:$0xf]
      %v1020 = vld [vmem:[%s842 + $0x1c] sm:$0x1]
      %v1021 = vld [vmem:[%s842 + $0x20] sm:$0xf]
      %v1022 = vld [vmem:[%s842 + $0x24] sm:$0x1]
      %v1023 = vld [vmem:[%s842 + $0x28] sm:$0xf]
      %v1024 = vld [vmem:[%s842 + $0x2c] sm:$0x1]
      %v1025 = vld [vmem:[%s842 + $0x30] sm:$0xf]
      %v1026 = vld [vmem:[%s842 + $0x34] sm:$0x1]
      %v1027 = vld [vmem:[%s842 + $0x38] sm:$0xf]
      %v1028 = vld [vmem:[%s842 + $0x3c] sm:$0x1]
      %v1030 = vshrl.u32 %v1013, 16
      %v1032 = vrot.slane %v1030, 4
      %v1033 = vshll.u32 %v1013, 16
      %v1035 = vrot.slane %v1033, 5
      %v1036 = vor.u32 %v1032, %v1035
      %v1037 = vrot.slane %v1036, 4
      %v1039 = vshll.u32 %v1014, 16
      %v1041 = vrot.slane %v1039, 5
      %v1042 = vsel %vm231, %v1037, %v1041
      %v1044 = vshrl.u32 %v1015, 16
      %v1046 = vrot.slane %v1044, 4
      %v1047 = vshll.u32 %v1015, 16
      %v1049 = vrot.slane %v1047, 5
      %v1050 = vor.u32 %v1046, %v1049
      %v1051 = vrot.slane %v1050, 4
      %v1053 = vshll.u32 %v1016, 16
      %v1055 = vrot.slane %v1053, 5
      %v1056 = vsel %vm231, %v1051, %v1055
      %v1058 = vshrl.u32 %v1017, 16
      %v1060 = vrot.slane %v1058, 4
      %v1061 = vshll.u32 %v1017, 16
      %v1063 = vrot.slane %v1061, 5
      %v1064 = vor.u32 %v1060, %v1063
      %v1065 = vrot.slane %v1064, 4
      %v1067 = vshll.u32 %v1018, 16
      %v1069 = vrot.slane %v1067, 5
      %v1070 = vsel %vm231, %v1065, %v1069
      %v1072 = vshrl.u32 %v1019, 16
      %v1074 = vrot.slane %v1072, 4
      %v1075 = vshll.u32 %v1019, 16
      %v1077 = vrot.slane %v1075, 5
      %v1078 = vor.u32 %v1074, %v1077
      %v1079 = vrot.slane %v1078, 4
      %v1081 = vshll.u32 %v1020, 16
      %v1083 = vrot.slane %v1081, 5
      %v1084 = vsel %vm231, %v1079, %v1083
      %v1086 = vshrl.u32 %v1021, 16
      %v1088 = vrot.slane %v1086, 4
      %v1089 = vshll.u32 %v1021, 16
      %v1091 = vrot.slane %v1089, 5
      %v1092 = vor.u32 %v1088, %v1091
      %v1093 = vrot.slane %v1092, 4
      %v1095 = vshll.u32 %v1022, 16
      %v1097 = vrot.slane %v1095, 5
      %v1098 = vsel %vm231, %v1093, %v1097
      %v1100 = vshrl.u32 %v1023, 16
      %v1102 = vrot.slane %v1100, 4
      %v1103 = vshll.u32 %v1023, 16
      %v1105 = vrot.slane %v1103, 5
      %v1106 = vor.u32 %v1102, %v1105
      %v1107 = vrot.slane %v1106, 4
      %v1109 = vshll.u32 %v1024, 16
      %v1111 = vrot.slane %v1109, 5
      %v1112 = vsel %vm231, %v1107, %v1111
      %v1114 = vshrl.u32 %v1025, 16
      %v1116 = vrot.slane %v1114, 4
      %v1117 = vshll.u32 %v1025, 16
      %v1119 = vrot.slane %v1117, 5
      %v1120 = vor.u32 %v1116, %v1119
      %v1121 = vrot.slane %v1120, 4
      %v1123 = vshll.u32 %v1026, 16
      %v1125 = vrot.slane %v1123, 5
      %v1126 = vsel %vm231, %v1121, %v1125
      %v1128 = vshrl.u32 %v1027, 16
      %v1130 = vrot.slane %v1128, 4
      %v1131 = vshll.u32 %v1027, 16
      %v1133 = vrot.slane %v1131, 5
      %v1134 = vor.u32 %v1130, %v1133
      %v1135 = vrot.slane %v1134, 4
      %v1137 = vshll.u32 %v1028, 16
      %v1139 = vrot.slane %v1137, 5
      %v1140 = vsel %vm231, %v1135, %v1139
      %s1141 = scalar_lea.vmem %s1, 256
      %v1142 = vld [vmem:[%s1141] sm:$0xf]
      %v1143 = vld [vmem:[%s1141 + $0x4] sm:$0xf]
      %v1144 = vld [vmem:[%s1141 + $0x8] sm:$0xf]
      %v1145 = vld [vmem:[%s1141 + $0xc] sm:$0xf]
      %v1146 = vld [vmem:[%s1141 + $0x10] sm:$0xf]
      %v1147 = vld [vmem:[%s1141 + $0x14] sm:$0xf]
      %v1148 = vld [vmem:[%s1141 + $0x18] sm:$0xf]
      %v1149 = vld [vmem:[%s1141 + $0x1c] sm:$0xf]
      %v1150 = vld [vmem:[%s1141 + $0x20] sm:$0xf]
      %v1151 = vld [vmem:[%s1141 + $0x24] sm:$0xf]
      %v1152 = vld [vmem:[%s1141 + $0x28] sm:$0xf]
      %v1153 = vld [vmem:[%s1141 + $0x2c] sm:$0xf]
      %v1154 = vld [vmem:[%s1141 + $0x30] sm:$0xf]
      %v1155 = vld [vmem:[%s1141 + $0x34] sm:$0xf]
      %v1156 = vld [vmem:[%s1141 + $0x38] sm:$0xf]
      %v1157 = vld [vmem:[%s1141 + $0x3c] sm:$0xf]
      %v1158 = vunpack.c.l.b16 %v1042
      %v1159 = vunpack.c.l.b16 %v1056
      %v1160 = vunpack.c.l.b16 %v1070
      %v1161 = vunpack.c.l.b16 %v1084
      %v1162 = vunpack.c.l.b16 %v1098
      %v1163 = vunpack.c.l.b16 %v1112
      %v1164 = vunpack.c.l.b16 %v1126
      %v1165 = vunpack.c.l.b16 %v1140
      %v1166 = vpack.c.b16 %v1159, %v1158
      %v1167 = vpack.c.b16 %v1161, %v1160
      %v1168 = vpack.c.b16 %v1163, %v1162
      %v1169 = vpack.c.b16 %v1165, %v1164
      %v1190 = vunpack.c.l.b16 %v1142
      %v1191 = vunpack.c.l.b16 %v1143
      %v1192 = vunpack.c.l.b16 %v1144
      %v1193 = vunpack.c.l.b16 %v1145
      %v1194 = vunpack.c.l.b16 %v1146
      %v1195 = vunpack.c.l.b16 %v1147
      %v1196 = vunpack.c.l.b16 %v1148
      %v1197 = vunpack.c.l.b16 %v1149
      %v1198 = vunpack.c.l.b16 %v1150
      %v1199 = vunpack.c.l.b16 %v1151
      %v1200 = vunpack.c.l.b16 %v1152
      %v1201 = vunpack.c.l.b16 %v1153
      %v1202 = vunpack.c.l.b16 %v1154
      %v1203 = vunpack.c.l.b16 %v1155
      %v1204 = vunpack.c.l.b16 %v1156
      %v1205 = vunpack.c.l.b16 %v1157
      %v1206 = vpack.c.b16 %v1191, %v1190
      %v1207 = vpack.c.b16 %v1193, %v1192
      %v1208 = vpack.c.b16 %v1195, %v1194
      %v1209 = vpack.c.b16 %v1197, %v1196
      %v1210 = vpack.c.b16 %v1199, %v1198
      %v1211 = vpack.c.b16 %v1201, %v1200
      %v1212 = vpack.c.b16 %v1203, %v1202
      %v1213 = vpack.c.b16 %v1205, %v1204
      %1222 = vmatprep.subr.bf16.mxu0 0
      %1223 = vmatpush1.bf16.msra.mxu0 %v1206
      %1224 = vmatprep.subr.bf16.mxu0 0
      %1225 = vmatpush1.bf16.msra.mxu0 %v1207
      %1226 = vmatprep.subr.bf16.mxu0 0
      %1227 = vmatpush1.bf16.msra.mxu0 %v1208
      %1228 = vmatprep.subr.bf16.mxu0 0
      %1229 = vmatpush1.bf16.msra.mxu0 %v1209
      %1230 = vmatprep.subr.bf16.mxu0 0
      %1231 = vmatpush1.bf16.msra.mxu0 %v1210
      %1232 = vmatprep.subr.bf16.mxu0 0
      %1233 = vmatpush1.bf16.msra.mxu0 %v1211
      %1234 = vmatprep.subr.bf16.mxu0 0
      %1235 = vmatpush1.bf16.msra.mxu0 %v1212
      %1236 = vmatprep.subr.bf16.mxu0 0
      %1237 = vmatpush1.bf16.msra.mxu0 %v1213
      %1238 = vmatprep.subr.bf16.mxu0 0
      %1239 = vmatpush1.bf16.msra.mxu0 0
      %1240 = vmatprep.subr.bf16.mxu0 0
      %1241 = vmatpush1.bf16.msra.mxu0 0
      %1242 = vmatprep.subr.bf16.mxu0 0
      %1243 = vmatpush1.bf16.msra.mxu0 0
      %1244 = vmatprep.subr.bf16.mxu0 0
      %1245 = vmatpush1.bf16.msra.mxu0 0
      %1246 = vmatprep.subr.bf16.mxu0 0
      %1247 = vmatpush1.bf16.msra.mxu0 0
      %1248 = vmatprep.subr.bf16.mxu0 0
      %1249 = vmatpush1.bf16.msra.mxu0 0
      %1250 = vmatprep.subr.bf16.mxu0 0
      %1251 = vmatpush1.bf16.msra.mxu0 0
      %1252 = vmatprep.subr.bf16.mxu0 0
      %1253 = vmatpush1.bf16.msra.mxu0 0
      %1254 = vmatprep.mubr.bf16.mxu0 0
      %1255 = vmatmul.mubr.bf16.gmra.mrb[0].mxu0 %v1166
      %v1256 = vpop.f32.mrb[0].mxu0
      %v1257 = vadd.f32 0.0, %v1256
      %v1258 = vpop.f32.mrb[0].mxu0
      %v1259 = vpop.f32.mrb[0].mxu0
      %v1260 = vadd.f32 0.0, %v1259
      %v1261 = vpop.f32.mrb[0].mxu0
      %1262 = vmatprep.mubr.bf16.mxu0 0
      %1263 = vmatmul.mubr.bf16.gmra.mrb[0].mxu0 %v1167
      %v1264 = vpop.f32.mrb[0].mxu0
      %v1265 = vadd.f32 0.0, %v1264
      %v1266 = vpop.f32.mrb[0].mxu0
      %v1267 = vpop.f32.mrb[0].mxu0
      %v1268 = vadd.f32 0.0, %v1267
      %v1269 = vpop.f32.mrb[0].mxu0
      %1270 = vmatprep.mubr.bf16.mxu0 0
      %1271 = vmatmul.mubr.bf16.gmra.mrb[0].mxu0 %v1168
      %v1272 = vpop.f32.mrb[0].mxu0
      %v1273 = vadd.f32 0.0, %v1272
      %v1274 = vpop.f32.mrb[0].mxu0
      %v1275 = vpop.f32.mrb[0].mxu0
      %v1276 = vadd.f32 0.0, %v1275
      %v1277 = vpop.f32.mrb[0].mxu0
      %1278 = vmatprep.mubr.bf16.mxu0 0
      %1279 = vmatmul.mubr.bf16.gmra.mrb[0].mxu0 %v1169
      %v1280 = vpop.f32.mrb[0].mxu0
      %v1281 = vadd.f32 0.0, %v1280
      %v1282 = vpop.f32.mrb[0].mxu0
      %v1283 = vpop.f32.mrb[0].mxu0
      %v1284 = vadd.f32 0.0, %v1283
      %v1285 = vpop.f32.mrb[0].mxu0
      %1286 = vdwg.mxu0
      %v1287 = vadd.f32 %v1005, %v1257
      %v1288 = vadd.f32 %v1006, %v1260
      %v1289 = vadd.f32 %v1007, %v1265
      %v1290 = vadd.f32 %v1008, %v1268
      %v1291 = vadd.f32 %v1009, %v1273
      %v1292 = vadd.f32 %v1010, %v1276
      %v1293 = vadd.f32 %v1011, %v1281
      %v1294 = vadd.f32 %v1012, %v1284
      %v1295 = vld [vmem:[%s842] sm:$0xe]
      %v1296 = vld [vmem:[%s842 + $0x8] sm:$0xe]
      %v1297 = vld [vmem:[%s842 + $0x10] sm:$0xe]
      %v1298 = vld [vmem:[%s842 + $0x18] sm:$0xe]
      %v1299 = vld [vmem:[%s842 + $0x20] sm:$0xe]
      %v1300 = vld [vmem:[%s842 + $0x28] sm:$0xe]
      %v1301 = vld [vmem:[%s842 + $0x30] sm:$0xe]
      %v1302 = vld [vmem:[%s842 + $0x38] sm:$0xe]
      %v1319 = vrot.slane %v1295, 5
      %v1320 = vrot.slane %v1319, 4
      %v1321 = vrot.slane %v1014, 5
      %v1322 = vsel %vm653, %v1320, %v1321
      %v1323 = vrot.slane %v1296, 5
      %v1324 = vrot.slane %v1323, 4
      %v1325 = vrot.slane %v1016, 5
      %v1326 = vsel %vm653, %v1324, %v1325
      %v1327 = vrot.slane %v1297, 5
      %v1328 = vrot.slane %v1327, 4
      %v1329 = vrot.slane %v1018, 5
      %v1330 = vsel %vm653, %v1328, %v1329
      %v1331 = vrot.slane %v1298, 5
      %v1332 = vrot.slane %v1331, 4
      %v1333 = vrot.slane %v1020, 5
      %v1334 = vsel %vm653, %v1332, %v1333
      %v1335 = vrot.slane %v1299, 5
      %v1336 = vrot.slane %v1335, 4
      %v1337 = vrot.slane %v1022, 5
      %v1338 = vsel %vm653, %v1336, %v1337
      %v1339 = vrot.slane %v1300, 5
      %v1340 = vrot.slane %v1339, 4
      %v1341 = vrot.slane %v1024, 5
      %v1342 = vsel %vm653, %v1340, %v1341
      %v1343 = vrot.slane %v1301, 5
      %v1344 = vrot.slane %v1343, 4
      %v1345 = vrot.slane %v1026, 5
      %v1346 = vsel %vm653, %v1344, %v1345
      %v1347 = vrot.slane %v1302, 5
      %v1348 = vrot.slane %v1347, 4
      %v1349 = vrot.slane %v1028, 5
      %v1350 = vsel %vm653, %v1348, %v1349
      %s1351 = scalar_lea.vmem %s1, 320
      %v1352 = vld [vmem:[%s1351] sm:$0xf]
      %v1353 = vld [vmem:[%s1351 + $0x4] sm:$0xf]
      %v1354 = vld [vmem:[%s1351 + $0x8] sm:$0xf]
      %v1355 = vld [vmem:[%s1351 + $0xc] sm:$0xf]
      %v1356 = vld [vmem:[%s1351 + $0x10] sm:$0xf]
      %v1357 = vld [vmem:[%s1351 + $0x14] sm:$0xf]
      %v1358 = vld [vmem:[%s1351 + $0x18] sm:$0xf]
      %v1359 = vld [vmem:[%s1351 + $0x1c] sm:$0xf]
      %v1360 = vld [vmem:[%s1351 + $0x20] sm:$0xf]
      %v1361 = vld [vmem:[%s1351 + $0x24] sm:$0xf]
      %v1362 = vld [vmem:[%s1351 + $0x28] sm:$0xf]
      %v1363 = vld [vmem:[%s1351 + $0x2c] sm:$0xf]
      %v1364 = vld [vmem:[%s1351 + $0x30] sm:$0xf]
      %v1365 = vld [vmem:[%s1351 + $0x34] sm:$0xf]
      %v1366 = vld [vmem:[%s1351 + $0x38] sm:$0xf]
      %v1367 = vld [vmem:[%s1351 + $0x3c] sm:$0xf]
      %v1368 = vunpack.c.l.b16 %v1322
      %v1369 = vunpack.c.l.b16 %v1326
      %v1370 = vunpack.c.l.b16 %v1330
      %v1371 = vunpack.c.l.b16 %v1334
      %v1372 = vunpack.c.l.b16 %v1338
      %v1373 = vunpack.c.l.b16 %v1342
      %v1374 = vunpack.c.l.b16 %v1346
      %v1375 = vunpack.c.l.b16 %v1350
      %v1376 = vpack.c.b16 %v1369, %v1368
      %v1377 = vpack.c.b16 %v1371, %v1370
      %v1378 = vpack.c.b16 %v1373, %v1372
      %v1379 = vpack.c.b16 %v1375, %v1374
      %v1400 = vunpack.c.l.b16 %v1352
      %v1401 = vunpack.c.l.b16 %v1353
      %v1402 = vunpack.c.l.b16 %v1354
      %v1403 = vunpack.c.l.b16 %v1355
      %v1404 = vunpack.c.l.b16 %v1356
      %v1405 = vunpack.c.l.b16 %v1357
      %v1406 = vunpack.c.l.b16 %v1358
      %v1407 = vunpack.c.l.b16 %v1359
      %v1408 = vunpack.c.l.b16 %v1360
      %v1409 = vunpack.c.l.b16 %v1361
      %v1410 = vunpack.c.l.b16 %v1362
      %v1411 = vunpack.c.l.b16 %v1363
      %v1412 = vunpack.c.l.b16 %v1364
      %v1413 = vunpack.c.l.b16 %v1365
      %v1414 = vunpack.c.l.b16 %v1366
      %v1415 = vunpack.c.l.b16 %v1367
      %v1416 = vpack.c.b16 %v1401, %v1400
      %v1417 = vpack.c.b16 %v1403, %v1402
      %v1418 = vpack.c.b16 %v1405, %v1404
      %v1419 = vpack.c.b16 %v1407, %v1406
      %v1420 = vpack.c.b16 %v1409, %v1408
      %v1421 = vpack.c.b16 %v1411, %v1410
      %v1422 = vpack.c.b16 %v1413, %v1412
      %v1423 = vpack.c.b16 %v1415, %v1414
      %1432 = vmatprep.subr.bf16.mxu0 0
      %1433 = vmatpush1.bf16.msra.mxu0 %v1416
      %1434 = vmatprep.subr.bf16.mxu0 0
      %1435 = vmatpush1.bf16.msra.mxu0 %v1417
      %1436 = vmatprep.subr.bf16.mxu0 0
      %1437 = vmatpush1.bf16.msra.mxu0 %v1418
      %1438 = vmatprep.subr.bf16.mxu0 0
      %1439 = vmatpush1.bf16.msra.mxu0 %v1419
      %1440 = vmatprep.subr.bf16.mxu0 0
      %1441 = vmatpush1.bf16.msra.mxu0 %v1420
      %1442 = vmatprep.subr.bf16.mxu0 0
      %1443 = vmatpush1.bf16.msra.mxu0 %v1421
      %1444 = vmatprep.subr.bf16.mxu0 0
      %1445 = vmatpush1.bf16.msra.mxu0 %v1422
      %1446 = vmatprep.subr.bf16.mxu0 0
      %1447 = vmatpush1.bf16.msra.mxu0 %v1423
      %1448 = vmatprep.subr.bf16.mxu0 0
      %1449 = vmatpush1.bf16.msra.mxu0 0
      %1450 = vmatprep.subr.bf16.mxu0 0
      %1451 = vmatpush1.bf16.msra.mxu0 0
      %1452 = vmatprep.subr.bf16.mxu0 0
      %1453 = vmatpush1.bf16.msra.mxu0 0
      %1454 = vmatprep.subr.bf16.mxu0 0
      %1455 = vmatpush1.bf16.msra.mxu0 0
      %1456 = vmatprep.subr.bf16.mxu0 0
      %1457 = vmatpush1.bf16.msra.mxu0 0
      %1458 = vmatprep.subr.bf16.mxu0 0
      %1459 = vmatpush1.bf16.msra.mxu0 0
      %1460 = vmatprep.subr.bf16.mxu0 0
      %1461 = vmatpush1.bf16.msra.mxu0 0
      %1462 = vmatprep.subr.bf16.mxu0 0
      %1463 = vmatpush1.bf16.msra.mxu0 0
      %1464 = vmatprep.mubr.bf16.mxu0 0
      %1465 = vmatmul.mubr.bf16.gmra.mrb[0].mxu0 %v1376
      %v1466 = vpop.f32.mrb[0].mxu0
      %v1467 = vadd.f32 0.0, %v1466
      %v1468 = vpop.f32.mrb[0].mxu0
      %v1469 = vpop.f32.mrb[0].mxu0
      %v1470 = vadd.f32 0.0, %v1469
      %v1471 = vpop.f32.mrb[0].mxu0
      %1472 = vmatprep.mubr.bf16.mxu0 0
      %1473 = vmatmul.mubr.bf16.gmra.mrb[0].mxu0 %v1377
      %v1474 = vpop.f32.mrb[0].mxu0
      %v1475 = vadd.f32 0.0, %v1474
      %v1476 = vpop.f32.mrb[0].mxu0
      %v1477 = vpop.f32.mrb[0].mxu0
      %v1478 = vadd.f32 0.0, %v1477
      %v1479 = vpop.f32.mrb[0].mxu0
      %1480 = vmatprep.mubr.bf16.mxu0 0
      %1481 = vmatmul.mubr.bf16.gmra.mrb[0].mxu0 %v1378
      %v1482 = vpop.f32.mrb[0].mxu0
      %v1483 = vadd.f32 0.0, %v1482
      %v1484 = vpop.f32.mrb[0].mxu0
      %v1485 = vpop.f32.mrb[0].mxu0
      %v1486 = vadd.f32 0.0, %v1485
      %v1487 = vpop.f32.mrb[0].mxu0
      %1488 = vmatprep.mubr.bf16.mxu0 0
      %1489 = vmatmul.mubr.bf16.gmra.mrb[0].mxu0 %v1379
      %v1490 = vpop.f32.mrb[0].mxu0
      %v1491 = vadd.f32 0.0, %v1490
      %v1492 = vpop.f32.mrb[0].mxu0
      %v1493 = vpop.f32.mrb[0].mxu0
      %v1494 = vadd.f32 0.0, %v1493
      %v1495 = vpop.f32.mrb[0].mxu0
      %1496 = vdwg.mxu0
      %v1497 = vadd.f32 %v1287, %v1467
      %v1498 = vadd.f32 %v1288, %v1470
      %v1499 = vadd.f32 %v1289, %v1475
      %v1500 = vadd.f32 %v1290, %v1478
      %v1501 = vadd.f32 %v1291, %v1483
      %v1502 = vadd.f32 %v1292, %v1486
      %v1503 = vadd.f32 %v1293, %v1491
      %v1504 = vadd.f32 %v1294, %v1494
      %s1505 = sadd.s32 4, %s194
      %s1506 = smul.addr %s1505, 4
      %s1507 = scalar_lea.vmem %s183, %s1506
      %v1508 = vld [vmem:[%s1507] sm:$0xf]
      %v1509 = vld [vmem:[%s1507 + $0x8] sm:$0xf]
      %v1510 = vld [vmem:[%s1507 + $0x10] sm:$0xf]
      %v1511 = vld [vmem:[%s1507 + $0x18] sm:$0xf]
      %v1512 = vld [vmem:[%s1507 + $0x20] sm:$0xf]
      %v1513 = vld [vmem:[%s1507 + $0x28] sm:$0xf]
      %v1514 = vld [vmem:[%s1507 + $0x30] sm:$0xf]
      %v1515 = vld [vmem:[%s1507 + $0x38] sm:$0xf]
      %s1516 = scalar_lea.vmem %s1, 384
      %v1517 = vld [vmem:[%s1516] sm:$0xf]
      %v1518 = vld [vmem:[%s1516 + $0x4] sm:$0xf]
      %v1519 = vld [vmem:[%s1516 + $0x8] sm:$0xf]
      %v1520 = vld [vmem:[%s1516 + $0xc] sm:$0xf]
      %v1521 = vld [vmem:[%s1516 + $0x10] sm:$0xf]
      %v1522 = vld [vmem:[%s1516 + $0x14] sm:$0xf]
      %v1523 = vld [vmem:[%s1516 + $0x18] sm:$0xf]
      %v1524 = vld [vmem:[%s1516 + $0x1c] sm:$0xf]
      %v1525 = vld [vmem:[%s1516 + $0x20] sm:$0xf]
      %v1526 = vld [vmem:[%s1516 + $0x24] sm:$0xf]
      %v1527 = vld [vmem:[%s1516 + $0x28] sm:$0xf]
      %v1528 = vld [vmem:[%s1516 + $0x2c] sm:$0xf]
      %v1529 = vld [vmem:[%s1516 + $0x30] sm:$0xf]
      %v1530 = vld [vmem:[%s1516 + $0x34] sm:$0xf]
      %v1531 = vld [vmem:[%s1516 + $0x38] sm:$0xf]
      %v1532 = vld [vmem:[%s1516 + $0x3c] sm:$0xf]
      %v1541 = vunpack.c.l.b16 %v1508
      %v1542 = vunpack.c.l.b16 %v1509
      %v1543 = vunpack.c.l.b16 %v1510
      %v1544 = vunpack.c.l.b16 %v1511
      %v1545 = vunpack.c.l.b16 %v1512
      %v1546 = vunpack.c.l.b16 %v1513
      %v1547 = vunpack.c.l.b16 %v1514
      %v1548 = vunpack.c.l.b16 %v1515
      %v1549 = vpack.c.b16 %v1542, %v1541
      %v1550 = vpack.c.b16 %v1544, %v1543
      %v1551 = vpack.c.b16 %v1546, %v1545
      %v1552 = vpack.c.b16 %v1548, %v1547
      %v1573 = vunpack.c.l.b16 %v1517
      %v1574 = vunpack.c.l.b16 %v1518
      %v1575 = vunpack.c.l.b16 %v1519
      %v1576 = vunpack.c.l.b16 %v1520
      %v1577 = vunpack.c.l.b16 %v1521
      %v1578 = vunpack.c.l.b16 %v1522
      %v1579 = vunpack.c.l.b16 %v1523
      %v1580 = vunpack.c.l.b16 %v1524
      %v1581 = vunpack.c.l.b16 %v1525
      %v1582 = vunpack.c.l.b16 %v1526
      %v1583 = vunpack.c.l.b16 %v1527
      %v1584 = vunpack.c.l.b16 %v1528
      %v1585 = vunpack.c.l.b16 %v1529
      %v1586 = vunpack.c.l.b16 %v1530
      %v1587 = vunpack.c.l.b16 %v1531
      %v1588 = vunpack.c.l.b16 %v1532
      %v1589 = vpack.c.b16 %v1574, %v1573
      %v1590 = vpack.c.b16 %v1576, %v1575
      %v1591 = vpack.c.b16 %v1578, %v1577
      %v1592 = vpack.c.b16 %v1580, %v1579
      %v1593 = vpack.c.b16 %v1582, %v1581
      %v1594 = vpack.c.b16 %v1584, %v1583
      %v1595 = vpack.c.b16 %v1586, %v1585
      %v1596 = vpack.c.b16 %v1588, %v1587
      %1605 = vmatprep.subr.bf16.mxu0 0
      %1606 = vmatpush1.bf16.msra.mxu0 %v1589
      %1607 = vmatprep.subr.bf16.mxu0 0
      %1608 = vmatpush1.bf16.msra.mxu0 %v1590
      %1609 = vmatprep.subr.bf16.mxu0 0
      %1610 = vmatpush1.bf16.msra.mxu0 %v1591
      %1611 = vmatprep.subr.bf16.mxu0 0
      %1612 = vmatpush1.bf16.msra.mxu0 %v1592
      %1613 = vmatprep.subr.bf16.mxu0 0
      %1614 = vmatpush1.bf16.msra.mxu0 %v1593
      %1615 = vmatprep.subr.bf16.mxu0 0
      %1616 = vmatpush1.bf16.msra.mxu0 %v1594
      %1617 = vmatprep.subr.bf16.mxu0 0
      %1618 = vmatpush1.bf16.msra.mxu0 %v1595
      %1619 = vmatprep.subr.bf16.mxu0 0
      %1620 = vmatpush1.bf16.msra.mxu0 %v1596
      %1621 = vmatprep.subr.bf16.mxu0 0
      %1622 = vmatpush1.bf16.msra.mxu0 0
      %1623 = vmatprep.subr.bf16.mxu0 0
      %1624 = vmatpush1.bf16.msra.mxu0 0
      %1625 = vmatprep.subr.bf16.mxu0 0
      %1626 = vmatpush1.bf16.msra.mxu0 0
      %1627 = vmatprep.subr.bf16.mxu0 0
      %1628 = vmatpush1.bf16.msra.mxu0 0
      %1629 = vmatprep.subr.bf16.mxu0 0
      %1630 = vmatpush1.bf16.msra.mxu0 0
      %1631 = vmatprep.subr.bf16.mxu0 0
      %1632 = vmatpush1.bf16.msra.mxu0 0
      %1633 = vmatprep.subr.bf16.mxu0 0
      %1634 = vmatpush1.bf16.msra.mxu0 0
      %1635 = vmatprep.subr.bf16.mxu0 0
      %1636 = vmatpush1.bf16.msra.mxu0 0
      %1637 = vmatprep.mubr.bf16.mxu0 0
      %1638 = vmatmul.mubr.bf16.gmra.mrb[0].mxu0 %v1549
      %v1639 = vpop.f32.mrb[0].mxu0
      %v1640 = vadd.f32 0.0, %v1639
      %v1641 = vpop.f32.mrb[0].mxu0
      %v1642 = vpop.f32.mrb[0].mxu0
      %v1643 = vadd.f32 0.0, %v1642
      %v1644 = vpop.f32.mrb[0].mxu0
      %1645 = vmatprep.mubr.bf16.mxu0 0
      %1646 = vmatmul.mubr.bf16.gmra.mrb[0].mxu0 %v1550
      %v1647 = vpop.f32.mrb[0].mxu0
      %v1648 = vadd.f32 0.0, %v1647
      %v1649 = vpop.f32.mrb[0].mxu0
      %v1650 = vpop.f32.mrb[0].mxu0
      %v1651 = vadd.f32 0.0, %v1650
      %v1652 = vpop.f32.mrb[0].mxu0
      %1653 = vmatprep.mubr.bf16.mxu0 0
      %1654 = vmatmul.mubr.bf16.gmra.mrb[0].mxu0 %v1551
      %v1655 = vpop.f32.mrb[0].mxu0
      %v1656 = vadd.f32 0.0, %v1655
      %v1657 = vpop.f32.mrb[0].mxu0
      %v1658 = vpop.f32.mrb[0].mxu0
      %v1659 = vadd.f32 0.0, %v1658
      %v1660 = vpop.f32.mrb[0].mxu0
      %1661 = vmatprep.mubr.bf16.mxu0 0
      %1662 = vmatmul.mubr.bf16.gmra.mrb[0].mxu0 %v1552
      %v1663 = vpop.f32.mrb[0].mxu0
      %v1664 = vadd.f32 0.0, %v1663
      %v1665 = vpop.f32.mrb[0].mxu0
      %v1666 = vpop.f32.mrb[0].mxu0
      %v1667 = vadd.f32 0.0, %v1666
      %v1668 = vpop.f32.mrb[0].mxu0
      %1669 = vdwg.mxu0
      %v1670 = vadd.f32 %v1497, %v1640
      %v1671 = vadd.f32 %v1498, %v1643
      %v1672 = vadd.f32 %v1499, %v1648
      %v1673 = vadd.f32 %v1500, %v1651
      %v1674 = vadd.f32 %v1501, %v1656
      %v1675 = vadd.f32 %v1502, %v1659
      %v1676 = vadd.f32 %v1503, %v1664
      %v1677 = vadd.f32 %v1504, %v1667
      %v1678 = vld [vmem:[%s1507] sm:$0xf]
      %v1679 = vld [vmem:[%s1507 + $0x4] sm:$0x1]
      %v1680 = vld [vmem:[%s1507 + $0x8] sm:$0xf]
      %v1681 = vld [vmem:[%s1507 + $0xc] sm:$0x1]
      %v1682 = vld [vmem:[%s1507 + $0x10] sm:$0xf]
      %v1683 = vld [vmem:[%s1507 + $0x14] sm:$0x1]
      %v1684 = vld [vmem:[%s1507 + $0x18] sm:$0xf]
      %v1685 = vld [vmem:[%s1507 + $0x1c] sm:$0x1]
      %v1686 = vld [vmem:[%s1507 + $0x20] sm:$0xf]
      %v1687 = vld [vmem:[%s1507 + $0x24] sm:$0x1]
      %v1688 = vld [vmem:[%s1507 + $0x28] sm:$0xf]
      %v1689 = vld [vmem:[%s1507 + $0x2c] sm:$0x1]
      %v1690 = vld [vmem:[%s1507 + $0x30] sm:$0xf]
      %v1691 = vld [vmem:[%s1507 + $0x34] sm:$0x1]
      %v1692 = vld [vmem:[%s1507 + $0x38] sm:$0xf]
      %v1693 = vld [vmem:[%s1507 + $0x3c] sm:$0x1]
      %v1695 = vshrl.u32 %v1678, 16
      %v1697 = vrot.slane %v1695, 4
      %v1698 = vshll.u32 %v1678, 16
      %v1700 = vrot.slane %v1698, 5
      %v1701 = vor.u32 %v1697, %v1700
      %v1702 = vrot.slane %v1701, 4
      %v1704 = vshll.u32 %v1679, 16
      %v1706 = vrot.slane %v1704, 5
      %v1707 = vsel %vm231, %v1702, %v1706
      %v1709 = vshrl.u32 %v1680, 16
      %v1711 = vrot.slane %v1709, 4
      %v1712 = vshll.u32 %v1680, 16
      %v1714 = vrot.slane %v1712, 5
      %v1715 = vor.u32 %v1711, %v1714
      %v1716 = vrot.slane %v1715, 4
      %v1718 = vshll.u32 %v1681, 16
      %v1720 = vrot.slane %v1718, 5
      %v1721 = vsel %vm231, %v1716, %v1720
      %v1723 = vshrl.u32 %v1682, 16
      %v1725 = vrot.slane %v1723, 4
      %v1726 = vshll.u32 %v1682, 16
      %v1728 = vrot.slane %v1726, 5
      %v1729 = vor.u32 %v1725, %v1728
      %v1730 = vrot.slane %v1729, 4
      %v1732 = vshll.u32 %v1683, 16
      %v1734 = vrot.slane %v1732, 5
      %v1735 = vsel %vm231, %v1730, %v1734
      %v1737 = vshrl.u32 %v1684, 16
      %v1739 = vrot.slane %v1737, 4
      %v1740 = vshll.u32 %v1684, 16
      %v1742 = vrot.slane %v1740, 5
      %v1743 = vor.u32 %v1739, %v1742
      %v1744 = vrot.slane %v1743, 4
      %v1746 = vshll.u32 %v1685, 16
      %v1748 = vrot.slane %v1746, 5
      %v1749 = vsel %vm231, %v1744, %v1748
      %v1751 = vshrl.u32 %v1686, 16
      %v1753 = vrot.slane %v1751, 4
      %v1754 = vshll.u32 %v1686, 16
      %v1756 = vrot.slane %v1754, 5
      %v1757 = vor.u32 %v1753, %v1756
      %v1758 = vrot.slane %v1757, 4
      %v1760 = vshll.u32 %v1687, 16
      %v1762 = vrot.slane %v1760, 5
      %v1763 = vsel %vm231, %v1758, %v1762
      %v1765 = vshrl.u32 %v1688, 16
      %v1767 = vrot.slane %v1765, 4
      %v1768 = vshll.u32 %v1688, 16
      %v1770 = vrot.slane %v1768, 5
      %v1771 = vor.u32 %v1767, %v1770
      %v1772 = vrot.slane %v1771, 4
      %v1774 = vshll.u32 %v1689, 16
      %v1776 = vrot.slane %v1774, 5
      %v1777 = vsel %vm231, %v1772, %v1776
      %v1779 = vshrl.u32 %v1690, 16
      %v1781 = vrot.slane %v1779, 4
      %v1782 = vshll.u32 %v1690, 16
      %v1784 = vrot.slane %v1782, 5
      %v1785 = vor.u32 %v1781, %v1784
      %v1786 = vrot.slane %v1785, 4
      %v1788 = vshll.u32 %v1691, 16
      %v1790 = vrot.slane %v1788, 5
      %v1791 = vsel %vm231, %v1786, %v1790
      %v1793 = vshrl.u32 %v1692, 16
      %v1795 = vrot.slane %v1793, 4
      %v1796 = vshll.u32 %v1692, 16
      %v1798 = vrot.slane %v1796, 5
      %v1799 = vor.u32 %v1795, %v1798
      %v1800 = vrot.slane %v1799, 4
      %v1802 = vshll.u32 %v1693, 16
      %v1804 = vrot.slane %v1802, 5
      %v1805 = vsel %vm231, %v1800, %v1804
      %s1806 = scalar_lea.vmem %s1, 448
      %v1807 = vld [vmem:[%s1806] sm:$0xf]
      %v1808 = vld [vmem:[%s1806 + $0x4] sm:$0xf]
      %v1809 = vld [vmem:[%s1806 + $0x8] sm:$0xf]
      %v1810 = vld [vmem:[%s1806 + $0xc] sm:$0xf]
      %v1811 = vld [vmem:[%s1806 + $0x10] sm:$0xf]
      %v1812 = vld [vmem:[%s1806 + $0x14] sm:$0xf]
      %v1813 = vld [vmem:[%s1806 + $0x18] sm:$0xf]
      %v1814 = vld [vmem:[%s1806 + $0x1c] sm:$0xf]
      %v1815 = vld [vmem:[%s1806 + $0x20] sm:$0xf]
      %v1816 = vld [vmem:[%s1806 + $0x24] sm:$0xf]
      %v1817 = vld [vmem:[%s1806 + $0x28] sm:$0xf]
      %v1818 = vld [vmem:[%s1806 + $0x2c] sm:$0xf]
      %v1819 = vld [vmem:[%s1806 + $0x30] sm:$0xf]
      %v1820 = vld [vmem:[%s1806 + $0x34] sm:$0xf]
      %v1821 = vld [vmem:[%s1806 + $0x38] sm:$0xf]
      %v1822 = vld [vmem:[%s1806 + $0x3c] sm:$0xf]
      %v1823 = vunpack.c.l.b16 %v1707
      %v1824 = vunpack.c.l.b16 %v1721
      %v1825 = vunpack.c.l.b16 %v1735
      %v1826 = vunpack.c.l.b16 %v1749
      %v1827 = vunpack.c.l.b16 %v1763
      %v1828 = vunpack.c.l.b16 %v1777
      %v1829 = vunpack.c.l.b16 %v1791
      %v1830 = vunpack.c.l.b16 %v1805
      %v1831 = vpack.c.b16 %v1824, %v1823
      %v1832 = vpack.c.b16 %v1826, %v1825
      %v1833 = vpack.c.b16 %v1828, %v1827
      %v1834 = vpack.c.b16 %v1830, %v1829
      %v1855 = vunpack.c.l.b16 %v1807
      %v1856 = vunpack.c.l.b16 %v1808
      %v1857 = vunpack.c.l.b16 %v1809
      %v1858 = vunpack.c.l.b16 %v1810
      %v1859 = vunpack.c.l.b16 %v1811
      %v1860 = vunpack.c.l.b16 %v1812
      %v1861 = vunpack.c.l.b16 %v1813
      %v1862 = vunpack.c.l.b16 %v1814
      %v1863 = vunpack.c.l.b16 %v1815
      %v1864 = vunpack.c.l.b16 %v1816
      %v1865 = vunpack.c.l.b16 %v1817
      %v1866 = vunpack.c.l.b16 %v1818
      %v1867 = vunpack.c.l.b16 %v1819
      %v1868 = vunpack.c.l.b16 %v1820
      %v1869 = vunpack.c.l.b16 %v1821
      %v1870 = vunpack.c.l.b16 %v1822
      %v1871 = vpack.c.b16 %v1856, %v1855
      %v1872 = vpack.c.b16 %v1858, %v1857
      %v1873 = vpack.c.b16 %v1860, %v1859
      %v1874 = vpack.c.b16 %v1862, %v1861
      %v1875 = vpack.c.b16 %v1864, %v1863
      %v1876 = vpack.c.b16 %v1866, %v1865
      %v1877 = vpack.c.b16 %v1868, %v1867
      %v1878 = vpack.c.b16 %v1870, %v1869
      %1887 = vmatprep.subr.bf16.mxu0 0
      %1888 = vmatpush1.bf16.msra.mxu0 %v1871
      %1889 = vmatprep.subr.bf16.mxu0 0
      %1890 = vmatpush1.bf16.msra.mxu0 %v1872
      %1891 = vmatprep.subr.bf16.mxu0 0
      %1892 = vmatpush1.bf16.msra.mxu0 %v1873
      %1893 = vmatprep.subr.bf16.mxu0 0
      %1894 = vmatpush1.bf16.msra.mxu0 %v1874
      %1895 = vmatprep.subr.bf16.mxu0 0
      %1896 = vmatpush1.bf16.msra.mxu0 %v1875
      %1897 = vmatprep.subr.bf16.mxu0 0
      %1898 = vmatpush1.bf16.msra.mxu0 %v1876
      %1899 = vmatprep.subr.bf16.mxu0 0
      %1900 = vmatpush1.bf16.msra.mxu0 %v1877
      %1901 = vmatprep.subr.bf16.mxu0 0
      %1902 = vmatpush1.bf16.msra.mxu0 %v1878
      %1903 = vmatprep.subr.bf16.mxu0 0
      %1904 = vmatpush1.bf16.msra.mxu0 0
      %1905 = vmatprep.subr.bf16.mxu0 0
      %1906 = vmatpush1.bf16.msra.mxu0 0
      %1907 = vmatprep.subr.bf16.mxu0 0
      %1908 = vmatpush1.bf16.msra.mxu0 0
      %1909 = vmatprep.subr.bf16.mxu0 0
      %1910 = vmatpush1.bf16.msra.mxu0 0
      %1911 = vmatprep.subr.bf16.mxu0 0
      %1912 = vmatpush1.bf16.msra.mxu0 0
      %1913 = vmatprep.subr.bf16.mxu0 0
      %1914 = vmatpush1.bf16.msra.mxu0 0
      %1915 = vmatprep.subr.bf16.mxu0 0
      %1916 = vmatpush1.bf16.msra.mxu0 0
      %1917 = vmatprep.subr.bf16.mxu0 0
      %1918 = vmatpush1.bf16.msra.mxu0 0
      %1919 = vmatprep.mubr.bf16.mxu0 0
      %1920 = vmatmul.mubr.bf16.gmra.mrb[0].mxu0 %v1831
      %v1921 = vpop.f32.mrb[0].mxu0
      %v1922 = vadd.f32 0.0, %v1921
      %v1923 = vpop.f32.mrb[0].mxu0
      %v1924 = vpop.f32.mrb[0].mxu0
      %v1925 = vadd.f32 0.0, %v1924
      %v1926 = vpop.f32.mrb[0].mxu0
      %1927 = vmatprep.mubr.bf16.mxu0 0
      %1928 = vmatmul.mubr.bf16.gmra.mrb[0].mxu0 %v1832
      %v1929 = vpop.f32.mrb[0].mxu0
      %v1930 = vadd.f32 0.0, %v1929
      %v1931 = vpop.f32.mrb[0].mxu0
      %v1932 = vpop.f32.mrb[0].mxu0
      %v1933 = vadd.f32 0.0, %v1932
      %v1934 = vpop.f32.mrb[0].mxu0
      %1935 = vmatprep.mubr.bf16.mxu0 0
      %1936 = vmatmul.mubr.bf16.gmra.mrb[0].mxu0 %v1833
      %v1937 = vpop.f32.mrb[0].mxu0
      %v1938 = vadd.f32 0.0, %v1937
      %v1939 = vpop.f32.mrb[0].mxu0
      %v1940 = vpop.f32.mrb[0].mxu0
      %v1941 = vadd.f32 0.0, %v1940
      %v1942 = vpop.f32.mrb[0].mxu0
      %1943 = vmatprep.mubr.bf16.mxu0 0
      %1944 = vmatmul.mubr.bf16.gmra.mrb[0].mxu0 %v1834
      %v1945 = vpop.f32.mrb[0].mxu0
      %v1946 = vadd.f32 0.0, %v1945
      %v1947 = vpop.f32.mrb[0].mxu0
      %v1948 = vpop.f32.mrb[0].mxu0
      %v1949 = vadd.f32 0.0, %v1948
      %v1950 = vpop.f32.mrb[0].mxu0
      %1951 = vdwg.mxu0
      %v1952 = vadd.f32 %v1670, %v1922
      %v1953 = vadd.f32 %v1671, %v1925
      %v1954 = vadd.f32 %v1672, %v1930
      %v1955 = vadd.f32 %v1673, %v1933
      %v1956 = vadd.f32 %v1674, %v1938
      %v1957 = vadd.f32 %v1675, %v1941
      %v1958 = vadd.f32 %v1676, %v1946
      %v1959 = vadd.f32 %v1677, %v1949
      %v1960 = vld [vmem:[%s1507] sm:$0xe]
      %v1961 = vld [vmem:[%s1507 + $0x8] sm:$0xe]
      %v1962 = vld [vmem:[%s1507 + $0x10] sm:$0xe]
      %v1963 = vld [vmem:[%s1507 + $0x18] sm:$0xe]
      %v1964 = vld [vmem:[%s1507 + $0x20] sm:$0xe]
      %v1965 = vld [vmem:[%s1507 + $0x28] sm:$0xe]
      %v1966 = vld [vmem:[%s1507 + $0x30] sm:$0xe]
      %v1967 = vld [vmem:[%s1507 + $0x38] sm:$0xe]
      %v1984 = vrot.slane %v1960, 5
      %v1985 = vrot.slane %v1984, 4
      %v1986 = vrot.slane %v1679, 5
      %v1987 = vsel %vm653, %v1985, %v1986
      %v1988 = vrot.slane %v1961, 5
      %v1989 = vrot.slane %v1988, 4
      %v1990 = vrot.slane %v1681, 5
      %v1991 = vsel %vm653, %v1989, %v1990
      %v1992 = vrot.slane %v1962, 5
      %v1993 = vrot.slane %v1992, 4
      %v1994 = vrot.slane %v1683, 5
      %v1995 = vsel %vm653, %v1993, %v1994
      %v1996 = vrot.slane %v1963, 5
      %v1997 = vrot.slane %v1996, 4
      %v1998 = vrot.slane %v1685, 5
      %v1999 = vsel %vm653, %v1997, %v1998
      %v2000 = vrot.slane %v1964, 5
      %v2001 = vrot.slane %v2000, 4
      %v2002 = vrot.slane %v1687, 5
      %v2003 = vsel %vm653, %v2001, %v2002
      %v2004 = vrot.slane %v1965, 5
      %v2005 = vrot.slane %v2004, 4
      %v2006 = vrot.slane %v1689, 5
      %v2007 = vsel %vm653, %v2005, %v2006
      %v2008 = vrot.slane %v1966, 5
      %v2009 = vrot.slane %v2008, 4
      %v2010 = vrot.slane %v1691, 5
      %v2011 = vsel %vm653, %v2009, %v2010
      %v2012 = vrot.slane %v1967, 5
      %v2013 = vrot.slane %v2012, 4
      %v2014 = vrot.slane %v1693, 5
      %v2015 = vsel %vm653, %v2013, %v2014
      %s2016 = scalar_lea.vmem %s1, 512
      %v2017 = vld [vmem:[%s2016] sm:$0xf]
      %v2018 = vld [vmem:[%s2016 + $0x4] sm:$0xf]
      %v2019 = vld [vmem:[%s2016 + $0x8] sm:$0xf]
      %v2020 = vld [vmem:[%s2016 + $0xc] sm:$0xf]
      %v2021 = vld [vmem:[%s2016 + $0x10] sm:$0xf]
      %v2022 = vld [vmem:[%s2016 + $0x14] sm:$0xf]
      %v2023 = vld [vmem:[%s2016 + $0x18] sm:$0xf]
      %v2024 = vld [vmem:[%s2016 + $0x1c] sm:$0xf]
      %v2025 = vld [vmem:[%s2016 + $0x20] sm:$0xf]
      %v2026 = vld [vmem:[%s2016 + $0x24] sm:$0xf]
      %v2027 = vld [vmem:[%s2016 + $0x28] sm:$0xf]
      %v2028 = vld [vmem:[%s2016 + $0x2c] sm:$0xf]
      %v2029 = vld [vmem:[%s2016 + $0x30] sm:$0xf]
      %v2030 = vld [vmem:[%s2016 + $0x34] sm:$0xf]
      %v2031 = vld [vmem:[%s2016 + $0x38] sm:$0xf]
      %v2032 = vld [vmem:[%s2016 + $0x3c] sm:$0xf]
      %v2033 = vunpack.c.l.b16 %v1987
      %v2034 = vunpack.c.l.b16 %v1991
      %v2035 = vunpack.c.l.b16 %v1995
      %v2036 = vunpack.c.l.b16 %v1999
      %v2037 = vunpack.c.l.b16 %v2003
      %v2038 = vunpack.c.l.b16 %v2007
      %v2039 = vunpack.c.l.b16 %v2011
      %v2040 = vunpack.c.l.b16 %v2015
      %v2041 = vpack.c.b16 %v2034, %v2033
      %v2042 = vpack.c.b16 %v2036, %v2035
      %v2043 = vpack.c.b16 %v2038, %v2037
      %v2044 = vpack.c.b16 %v2040, %v2039
      %v2065 = vunpack.c.l.b16 %v2017
      %v2066 = vunpack.c.l.b16 %v2018
      %v2067 = vunpack.c.l.b16 %v2019
      %v2068 = vunpack.c.l.b16 %v2020
      %v2069 = vunpack.c.l.b16 %v2021
      %v2070 = vunpack.c.l.b16 %v2022
      %v2071 = vunpack.c.l.b16 %v2023
      %v2072 = vunpack.c.l.b16 %v2024
      %v2073 = vunpack.c.l.b16 %v2025
      %v2074 = vunpack.c.l.b16 %v2026
      %v2075 = vunpack.c.l.b16 %v2027
      %v2076 = vunpack.c.l.b16 %v2028
      %v2077 = vunpack.c.l.b16 %v2029
      %v2078 = vunpack.c.l.b16 %v2030
      %v2079 = vunpack.c.l.b16 %v2031
      %v2080 = vunpack.c.l.b16 %v2032
      %v2081 = vpack.c.b16 %v2066, %v2065
      %v2082 = vpack.c.b16 %v2068, %v2067
      %v2083 = vpack.c.b16 %v2070, %v2069
      %v2084 = vpack.c.b16 %v2072, %v2071
      %v2085 = vpack.c.b16 %v2074, %v2073
      %v2086 = vpack.c.b16 %v2076, %v2075
      %v2087 = vpack.c.b16 %v2078, %v2077
      %v2088 = vpack.c.b16 %v2080, %v2079
      %2097 = vmatprep.subr.bf16.mxu0 0
      %2098 = vmatpush1.bf16.msra.mxu0 %v2081
      %2099 = vmatprep.subr.bf16.mxu0 0
      %2100 = vmatpush1.bf16.msra.mxu0 %v2082
      %2101 = vmatprep.subr.bf16.mxu0 0
      %2102 = vmatpush1.bf16.msra.mxu0 %v2083
      %2103 = vmatprep.subr.bf16.mxu0 0
      %2104 = vmatpush1.bf16.msra.mxu0 %v2084
      %2105 = vmatprep.subr.bf16.mxu0 0
      %2106 = vmatpush1.bf16.msra.mxu0 %v2085
      %2107 = vmatprep.subr.bf16.mxu0 0
      %2108 = vmatpush1.bf16.msra.mxu0 %v2086
      %2109 = vmatprep.subr.bf16.mxu0 0
      %2110 = vmatpush1.bf16.msra.mxu0 %v2087
      %2111 = vmatprep.subr.bf16.mxu0 0
      %2112 = vmatpush1.bf16.msra.mxu0 %v2088
      %2113 = vmatprep.subr.bf16.mxu0 0
      %2114 = vmatpush1.bf16.msra.mxu0 0
      %2115 = vmatprep.subr.bf16.mxu0 0
      %2116 = vmatpush1.bf16.msra.mxu0 0
      %2117 = vmatprep.subr.bf16.mxu0 0
      %2118 = vmatpush1.bf16.msra.mxu0 0
      %2119 = vmatprep.subr.bf16.mxu0 0
      %2120 = vmatpush1.bf16.msra.mxu0 0
      %2121 = vmatprep.subr.bf16.mxu0 0
      %2122 = vmatpush1.bf16.msra.mxu0 0
      %2123 = vmatprep.subr.bf16.mxu0 0
      %2124 = vmatpush1.bf16.msra.mxu0 0
      %2125 = vmatprep.subr.bf16.mxu0 0
      %2126 = vmatpush1.bf16.msra.mxu0 0
      %2127 = vmatprep.subr.bf16.mxu0 0
      %2128 = vmatpush1.bf16.msra.mxu0 0
      %2129 = vmatprep.mubr.bf16.mxu0 0
      %2130 = vmatmul.mubr.bf16.gmra.mrb[0].mxu0 %v2041
      %v2131 = vpop.f32.mrb[0].mxu0
      %v2132 = vadd.f32 0.0, %v2131
      %v2133 = vpop.f32.mrb[0].mxu0
      %v2134 = vpop.f32.mrb[0].mxu0
      %v2135 = vadd.f32 0.0, %v2134
      %v2136 = vpop.f32.mrb[0].mxu0
      %2137 = vmatprep.mubr.bf16.mxu0 0
      %2138 = vmatmul.mubr.bf16.gmra.mrb[0].mxu0 %v2042
      %v2139 = vpop.f32.mrb[0].mxu0
      %v2140 = vadd.f32 0.0, %v2139
      %v2141 = vpop.f32.mrb[0].mxu0
      %v2142 = vpop.f32.mrb[0].mxu0
      %v2143 = vadd.f32 0.0, %v2142
      %v2144 = vpop.f32.mrb[0].mxu0
      %2145 = vmatprep.mubr.bf16.mxu0 0
      %2146 = vmatmul.mubr.bf16.gmra.mrb[0].mxu0 %v2043
      %v2147 = vpop.f32.mrb[0].mxu0
      %v2148 = vadd.f32 0.0, %v2147
      %v2149 = vpop.f32.mrb[0].mxu0
      %v2150 = vpop.f32.mrb[0].mxu0
      %v2151 = vadd.f32 0.0, %v2150
      %v2152 = vpop.f32.mrb[0].mxu0
      %2153 = vmatprep.mubr.bf16.mxu0 0
      %2154 = vmatmul.mubr.bf16.gmra.mrb[0].mxu0 %v2044
      %v2155 = vpop.f32.mrb[0].mxu0
      %v2156 = vadd.f32 0.0, %v2155
      %v2157 = vpop.f32.mrb[0].mxu0
      %v2158 = vpop.f32.mrb[0].mxu0
      %v2159 = vadd.f32 0.0, %v2158
      %v2160 = vpop.f32.mrb[0].mxu0
      %2161 = vdwg.mxu0
      %v2162 = vadd.f32 %v1952, %v2132
      %v2163 = vadd.f32 %v1953, %v2135
      %v2164 = vadd.f32 %v1954, %v2140
      %v2165 = vadd.f32 %v1955, %v2143
      %v2166 = vadd.f32 %v1956, %v2148
      %v2167 = vadd.f32 %v1957, %v2151
      %v2168 = vadd.f32 %v1958, %v2156
      %v2169 = vadd.f32 %v1959, %v2159
      %s2170 = sadd.s32 %s19, 1
      %s2171 = smul.u32 %s2170, 20
      %s2172 = smul.addr %s2171, 4
      %s2173 = scalar_lea.vmem %s183, %s2172
      %v2174 = vld [vmem:[%s2173] sm:$0xf]
      %v2175 = vld [vmem:[%s2173 + $0x8] sm:$0xf]
      %v2176 = vld [vmem:[%s2173 + $0x10] sm:$0xf]
      %v2177 = vld [vmem:[%s2173 + $0x18] sm:$0xf]
      %v2178 = vld [vmem:[%s2173 + $0x20] sm:$0xf]
      %v2179 = vld [vmem:[%s2173 + $0x28] sm:$0xf]
      %v2180 = vld [vmem:[%s2173 + $0x30] sm:$0xf]
      %v2181 = vld [vmem:[%s2173 + $0x38] sm:$0xf]
      %s2182 = scalar_lea.vmem %s1, 576
      %v2183 = vld [vmem:[%s2182] sm:$0xf]
      %v2184 = vld [vmem:[%s2182 + $0x4] sm:$0xf]
      %v2185 = vld [vmem:[%s2182 + $0x8] sm:$0xf]
      %v2186 = vld [vmem:[%s2182 + $0xc] sm:$0xf]
      %v2187 = vld [vmem:[%s2182 + $0x10] sm:$0xf]
      %v2188 = vld [vmem:[%s2182 + $0x14] sm:$0xf]
      %v2189 = vld [vmem:[%s2182 + $0x18] sm:$0xf]
      %v2190 = vld [vmem:[%s2182 + $0x1c] sm:$0xf]
      %v2191 = vld [vmem:[%s2182 + $0x20] sm:$0xf]
      %v2192 = vld [vmem:[%s2182 + $0x24] sm:$0xf]
      %v2193 = vld [vmem:[%s2182 + $0x28] sm:$0xf]
      %v2194 = vld [vmem:[%s2182 + $0x2c] sm:$0xf]
      %v2195 = vld [vmem:[%s2182 + $0x30] sm:$0xf]
      %v2196 = vld [vmem:[%s2182 + $0x34] sm:$0xf]
      %v2197 = vld [vmem:[%s2182 + $0x38] sm:$0xf]
      %v2198 = vld [vmem:[%s2182 + $0x3c] sm:$0xf]
      %v2207 = vunpack.c.l.b16 %v2174
      %v2208 = vunpack.c.l.b16 %v2175
      %v2209 = vunpack.c.l.b16 %v2176
      %v2210 = vunpack.c.l.b16 %v2177
      %v2211 = vunpack.c.l.b16 %v2178
      %v2212 = vunpack.c.l.b16 %v2179
      %v2213 = vunpack.c.l.b16 %v2180
      %v2214 = vunpack.c.l.b16 %v2181
      %v2215 = vpack.c.b16 %v2208, %v2207
      %v2216 = vpack.c.b16 %v2210, %v2209
      %v2217 = vpack.c.b16 %v2212, %v2211
      %v2218 = vpack.c.b16 %v2214, %v2213
      %v2239 = vunpack.c.l.b16 %v2183
      %v2240 = vunpack.c.l.b16 %v2184
      %v2241 = vunpack.c.l.b16 %v2185
      %v2242 = vunpack.c.l.b16 %v2186
      %v2243 = vunpack.c.l.b16 %v2187
      %v2244 = vunpack.c.l.b16 %v2188
      %v2245 = vunpack.c.l.b16 %v2189
      %v2246 = vunpack.c.l.b16 %v2190
      %v2247 = vunpack.c.l.b16 %v2191
      %v2248 = vunpack.c.l.b16 %v2192
      %v2249 = vunpack.c.l.b16 %v2193
      %v2250 = vunpack.c.l.b16 %v2194
      %v2251 = vunpack.c.l.b16 %v2195
      %v2252 = vunpack.c.l.b16 %v2196
      %v2253 = vunpack.c.l.b16 %v2197
      %v2254 = vunpack.c.l.b16 %v2198
      %v2255 = vpack.c.b16 %v2240, %v2239
      %v2256 = vpack.c.b16 %v2242, %v2241
      %v2257 = vpack.c.b16 %v2244, %v2243
      %v2258 = vpack.c.b16 %v2246, %v2245
      %v2259 = vpack.c.b16 %v2248, %v2247
      %v2260 = vpack.c.b16 %v2250, %v2249
      %v2261 = vpack.c.b16 %v2252, %v2251
      %v2262 = vpack.c.b16 %v2254, %v2253
      %2271 = vmatprep.subr.bf16.mxu0 0
      %2272 = vmatpush1.bf16.msra.mxu0 %v2255
      %2273 = vmatprep.subr.bf16.mxu0 0
      %2274 = vmatpush1.bf16.msra.mxu0 %v2256
      %2275 = vmatprep.subr.bf16.mxu0 0
      %2276 = vmatpush1.bf16.msra.mxu0 %v2257
      %2277 = vmatprep.subr.bf16.mxu0 0
      %2278 = vmatpush1.bf16.msra.mxu0 %v2258
      %2279 = vmatprep.subr.bf16.mxu0 0
      %2280 = vmatpush1.bf16.msra.mxu0 %v2259
      %2281 = vmatprep.subr.bf16.mxu0 0
      %2282 = vmatpush1.bf16.msra.mxu0 %v2260
      %2283 = vmatprep.subr.bf16.mxu0 0
      %2284 = vmatpush1.bf16.msra.mxu0 %v2261
      %2285 = vmatprep.subr.bf16.mxu0 0
      %2286 = vmatpush1.bf16.msra.mxu0 %v2262
      %2287 = vmatprep.subr.bf16.mxu0 0
      %2288 = vmatpush1.bf16.msra.mxu0 0
      %2289 = vmatprep.subr.bf16.mxu0 0
      %2290 = vmatpush1.bf16.msra.mxu0 0
      %2291 = vmatprep.subr.bf16.mxu0 0
      %2292 = vmatpush1.bf16.msra.mxu0 0
      %2293 = vmatprep.subr.bf16.mxu0 0
      %2294 = vmatpush1.bf16.msra.mxu0 0
      %2295 = vmatprep.subr.bf16.mxu0 0
      %2296 = vmatpush1.bf16.msra.mxu0 0
      %2297 = vmatprep.subr.bf16.mxu0 0
      %2298 = vmatpush1.bf16.msra.mxu0 0
      %2299 = vmatprep.subr.bf16.mxu0 0
      %2300 = vmatpush1.bf16.msra.mxu0 0
      %2301 = vmatprep.subr.bf16.mxu0 0
      %2302 = vmatpush1.bf16.msra.mxu0 0
      %2303 = vmatprep.mubr.bf16.mxu0 0
      %2304 = vmatmul.mubr.bf16.gmra.mrb[0].mxu0 %v2215
      %v2305 = vpop.f32.mrb[0].mxu0
      %v2306 = vadd.f32 0.0, %v2305
      %v2307 = vpop.f32.mrb[0].mxu0
      %v2308 = vpop.f32.mrb[0].mxu0
      %v2309 = vadd.f32 0.0, %v2308
      %v2310 = vpop.f32.mrb[0].mxu0
      %2311 = vmatprep.mubr.bf16.mxu0 0
      %2312 = vmatmul.mubr.bf16.gmra.mrb[0].mxu0 %v2216
      %v2313 = vpop.f32.mrb[0].mxu0
      %v2314 = vadd.f32 0.0, %v2313
      %v2315 = vpop.f32.mrb[0].mxu0
      %v2316 = vpop.f32.mrb[0].mxu0
      %v2317 = vadd.f32 0.0, %v2316
      %v2318 = vpop.f32.mrb[0].mxu0
      %2319 = vmatprep.mubr.bf16.mxu0 0
      %2320 = vmatmul.mubr.bf16.gmra.mrb[0].mxu0 %v2217
      %v2321 = vpop.f32.mrb[0].mxu0
      %v2322 = vadd.f32 0.0, %v2321
      %v2323 = vpop.f32.mrb[0].mxu0
      %v2324 = vpop.f32.mrb[0].mxu0
      %v2325 = vadd.f32 0.0, %v2324
      %v2326 = vpop.f32.mrb[0].mxu0
      %2327 = vmatprep.mubr.bf16.mxu0 0
      %2328 = vmatmul.mubr.bf16.gmra.mrb[0].mxu0 %v2218
      %v2329 = vpop.f32.mrb[0].mxu0
      %v2330 = vadd.f32 0.0, %v2329
      %v2331 = vpop.f32.mrb[0].mxu0
      %v2332 = vpop.f32.mrb[0].mxu0
      %v2333 = vadd.f32 0.0, %v2332
      %v2334 = vpop.f32.mrb[0].mxu0
      %2335 = vdwg.mxu0
      %v2336 = vadd.f32 %v2162, %v2306
      %v2337 = vadd.f32 %v2163, %v2309
      %v2338 = vadd.f32 %v2164, %v2314
      %v2339 = vadd.f32 %v2165, %v2317
      %v2340 = vadd.f32 %v2166, %v2322
      %v2341 = vadd.f32 %v2167, %v2325
      %v2342 = vadd.f32 %v2168, %v2330
      %v2343 = vadd.f32 %v2169, %v2333
      %v2344 = vld [vmem:[%s2173] sm:$0xf]
      %v2345 = vld [vmem:[%s2173 + $0x4] sm:$0x1]
      %v2346 = vld [vmem:[%s2173 + $0x8] sm:$0xf]
      %v2347 = vld [vmem:[%s2173 + $0xc] sm:$0x1]
      %v2348 = vld [vmem:[%s2173 + $0x10] sm:$0xf]
      %v2349 = vld [vmem:[%s2173 + $0x14] sm:$0x1]
      %v2350 = vld [vmem:[%s2173 + $0x18] sm:$0xf]
      %v2351 = vld [vmem:[%s2173 + $0x1c] sm:$0x1]
      %v2352 = vld [vmem:[%s2173 + $0x20] sm:$0xf]
      %v2353 = vld [vmem:[%s2173 + $0x24] sm:$0x1]
      %v2354 = vld [vmem:[%s2173 + $0x28] sm:$0xf]
      %v2355 = vld [vmem:[%s2173 + $0x2c] sm:$0x1]
      %v2356 = vld [vmem:[%s2173 + $0x30] sm:$0xf]
      %v2357 = vld [vmem:[%s2173 + $0x34] sm:$0x1]
      %v2358 = vld [vmem:[%s2173 + $0x38] sm:$0xf]
      %v2359 = vld [vmem:[%s2173 + $0x3c] sm:$0x1]
      %v2361 = vshrl.u32 %v2344, 16
      %v2363 = vrot.slane %v2361, 4
      %v2364 = vshll.u32 %v2344, 16
      %v2366 = vrot.slane %v2364, 5
      %v2367 = vor.u32 %v2363, %v2366
      %v2368 = vrot.slane %v2367, 4
      %v2370 = vshll.u32 %v2345, 16
      %v2372 = vrot.slane %v2370, 5
      %v2373 = vsel %vm231, %v2368, %v2372
      %v2375 = vshrl.u32 %v2346, 16
      %v2377 = vrot.slane %v2375, 4
      %v2378 = vshll.u32 %v2346, 16
      %v2380 = vrot.slane %v2378, 5
      %v2381 = vor.u32 %v2377, %v2380
      %v2382 = vrot.slane %v2381, 4
      %v2384 = vshll.u32 %v2347, 16
      %v2386 = vrot.slane %v2384, 5
      %v2387 = vsel %vm231, %v2382, %v2386
      %v2389 = vshrl.u32 %v2348, 16
      %v2391 = vrot.slane %v2389, 4
      %v2392 = vshll.u32 %v2348, 16
      %v2394 = vrot.slane %v2392, 5
      %v2395 = vor.u32 %v2391, %v2394
      %v2396 = vrot.slane %v2395, 4
      %v2398 = vshll.u32 %v2349, 16
      %v2400 = vrot.slane %v2398, 5
      %v2401 = vsel %vm231, %v2396, %v2400
      %v2403 = vshrl.u32 %v2350, 16
      %v2405 = vrot.slane %v2403, 4
      %v2406 = vshll.u32 %v2350, 16
      %v2408 = vrot.slane %v2406, 5
      %v2409 = vor.u32 %v2405, %v2408
      %v2410 = vrot.slane %v2409, 4
      %v2412 = vshll.u32 %v2351, 16
      %v2414 = vrot.slane %v2412, 5
      %v2415 = vsel %vm231, %v2410, %v2414
      %v2417 = vshrl.u32 %v2352, 16
      %v2419 = vrot.slane %v2417, 4
      %v2420 = vshll.u32 %v2352, 16
      %v2422 = vrot.slane %v2420, 5
      %v2423 = vor.u32 %v2419, %v2422
      %v2424 = vrot.slane %v2423, 4
      %v2426 = vshll.u32 %v2353, 16
      %v2428 = vrot.slane %v2426, 5
      %v2429 = vsel %vm231, %v2424, %v2428
      %v2431 = vshrl.u32 %v2354, 16
      %v2433 = vrot.slane %v2431, 4
      %v2434 = vshll.u32 %v2354, 16
      %v2436 = vrot.slane %v2434, 5
      %v2437 = vor.u32 %v2433, %v2436
      %v2438 = vrot.slane %v2437, 4
      %v2440 = vshll.u32 %v2355, 16
      %v2442 = vrot.slane %v2440, 5
      %v2443 = vsel %vm231, %v2438, %v2442
      %v2445 = vshrl.u32 %v2356, 16
      %v2447 = vrot.slane %v2445, 4
      %v2448 = vshll.u32 %v2356, 16
      %v2450 = vrot.slane %v2448, 5
      %v2451 = vor.u32 %v2447, %v2450
      %v2452 = vrot.slane %v2451, 4
      %v2454 = vshll.u32 %v2357, 16
      %v2456 = vrot.slane %v2454, 5
      %v2457 = vsel %vm231, %v2452, %v2456
      %v2459 = vshrl.u32 %v2358, 16
      %v2461 = vrot.slane %v2459, 4
      %v2462 = vshll.u32 %v2358, 16
      %v2464 = vrot.slane %v2462, 5
      %v2465 = vor.u32 %v2461, %v2464
      %v2466 = vrot.slane %v2465, 4
      %v2468 = vshll.u32 %v2359, 16
      %v2470 = vrot.slane %v2468, 5
      %v2471 = vsel %vm231, %v2466, %v2470
      %s2472 = scalar_lea.vmem %s1, 640
      %v2473 = vld [vmem:[%s2472] sm:$0xf]
      %v2474 = vld [vmem:[%s2472 + $0x4] sm:$0xf]
      %v2475 = vld [vmem:[%s2472 + $0x8] sm:$0xf]
      %v2476 = vld [vmem:[%s2472 + $0xc] sm:$0xf]
      %v2477 = vld [vmem:[%s2472 + $0x10] sm:$0xf]
      %v2478 = vld [vmem:[%s2472 + $0x14] sm:$0xf]
      %v2479 = vld [vmem:[%s2472 + $0x18] sm:$0xf]
      %v2480 = vld [vmem:[%s2472 + $0x1c] sm:$0xf]
      %v2481 = vld [vmem:[%s2472 + $0x20] sm:$0xf]
      %v2482 = vld [vmem:[%s2472 + $0x24] sm:$0xf]
      %v2483 = vld [vmem:[%s2472 + $0x28] sm:$0xf]
      %v2484 = vld [vmem:[%s2472 + $0x2c] sm:$0xf]
      %v2485 = vld [vmem:[%s2472 + $0x30] sm:$0xf]
      %v2486 = vld [vmem:[%s2472 + $0x34] sm:$0xf]
      %v2487 = vld [vmem:[%s2472 + $0x38] sm:$0xf]
      %v2488 = vld [vmem:[%s2472 + $0x3c] sm:$0xf]
      %v2489 = vunpack.c.l.b16 %v2373
      %v2490 = vunpack.c.l.b16 %v2387
      %v2491 = vunpack.c.l.b16 %v2401
      %v2492 = vunpack.c.l.b16 %v2415
      %v2493 = vunpack.c.l.b16 %v2429
      %v2494 = vunpack.c.l.b16 %v2443
      %v2495 = vunpack.c.l.b16 %v2457
      %v2496 = vunpack.c.l.b16 %v2471
      %v2497 = vpack.c.b16 %v2490, %v2489
      %v2498 = vpack.c.b16 %v2492, %v2491
      %v2499 = vpack.c.b16 %v2494, %v2493
      %v2500 = vpack.c.b16 %v2496, %v2495
      %v2521 = vunpack.c.l.b16 %v2473
      %v2522 = vunpack.c.l.b16 %v2474
      %v2523 = vunpack.c.l.b16 %v2475
      %v2524 = vunpack.c.l.b16 %v2476
      %v2525 = vunpack.c.l.b16 %v2477
      %v2526 = vunpack.c.l.b16 %v2478
      %v2527 = vunpack.c.l.b16 %v2479
      %v2528 = vunpack.c.l.b16 %v2480
      %v2529 = vunpack.c.l.b16 %v2481
      %v2530 = vunpack.c.l.b16 %v2482
      %v2531 = vunpack.c.l.b16 %v2483
      %v2532 = vunpack.c.l.b16 %v2484
      %v2533 = vunpack.c.l.b16 %v2485
      %v2534 = vunpack.c.l.b16 %v2486
      %v2535 = vunpack.c.l.b16 %v2487
      %v2536 = vunpack.c.l.b16 %v2488
      %v2537 = vpack.c.b16 %v2522, %v2521
      %v2538 = vpack.c.b16 %v2524, %v2523
      %v2539 = vpack.c.b16 %v2526, %v2525
      %v2540 = vpack.c.b16 %v2528, %v2527
      %v2541 = vpack.c.b16 %v2530, %v2529
      %v2542 = vpack.c.b16 %v2532, %v2531
      %v2543 = vpack.c.b16 %v2534, %v2533
      %v2544 = vpack.c.b16 %v2536, %v2535
      %2553 = vmatprep.subr.bf16.mxu0 0
      %2554 = vmatpush1.bf16.msra.mxu0 %v2537
      %2555 = vmatprep.subr.bf16.mxu0 0
      %2556 = vmatpush1.bf16.msra.mxu0 %v2538
      %2557 = vmatprep.subr.bf16.mxu0 0
      %2558 = vmatpush1.bf16.msra.mxu0 %v2539
      %2559 = vmatprep.subr.bf16.mxu0 0
      %2560 = vmatpush1.bf16.msra.mxu0 %v2540
      %2561 = vmatprep.subr.bf16.mxu0 0
      %2562 = vmatpush1.bf16.msra.mxu0 %v2541
      %2563 = vmatprep.subr.bf16.mxu0 0
      %2564 = vmatpush1.bf16.msra.mxu0 %v2542
      %2565 = vmatprep.subr.bf16.mxu0 0
      %2566 = vmatpush1.bf16.msra.mxu0 %v2543
      %2567 = vmatprep.subr.bf16.mxu0 0
      %2568 = vmatpush1.bf16.msra.mxu0 %v2544
      %2569 = vmatprep.subr.bf16.mxu0 0
      %2570 = vmatpush1.bf16.msra.mxu0 0
      %2571 = vmatprep.subr.bf16.mxu0 0
      %2572 = vmatpush1.bf16.msra.mxu0 0
      %2573 = vmatprep.subr.bf16.mxu0 0
      %2574 = vmatpush1.bf16.msra.mxu0 0
      %2575 = vmatprep.subr.bf16.mxu0 0
      %2576 = vmatpush1.bf16.msra.mxu0 0
      %2577 = vmatprep.subr.bf16.mxu0 0
      %2578 = vmatpush1.bf16.msra.mxu0 0
      %2579 = vmatprep.subr.bf16.mxu0 0
      %2580 = vmatpush1.bf16.msra.mxu0 0
      %2581 = vmatprep.subr.bf16.mxu0 0
      %2582 = vmatpush1.bf16.msra.mxu0 0
      %2583 = vmatprep.subr.bf16.mxu0 0
      %2584 = vmatpush1.bf16.msra.mxu0 0
      %2585 = vmatprep.mubr.bf16.mxu0 0
      %2586 = vmatmul.mubr.bf16.gmra.mrb[0].mxu0 %v2497
      %v2587 = vpop.f32.mrb[0].mxu0
      %v2588 = vadd.f32 0.0, %v2587
      %v2589 = vpop.f32.mrb[0].mxu0
      %v2590 = vpop.f32.mrb[0].mxu0
      %v2591 = vadd.f32 0.0, %v2590
      %v2592 = vpop.f32.mrb[0].mxu0
      %2593 = vmatprep.mubr.bf16.mxu0 0
      %2594 = vmatmul.mubr.bf16.gmra.mrb[0].mxu0 %v2498
      %v2595 = vpop.f32.mrb[0].mxu0
      %v2596 = vadd.f32 0.0, %v2595
      %v2597 = vpop.f32.mrb[0].mxu0
      %v2598 = vpop.f32.mrb[0].mxu0
      %v2599 = vadd.f32 0.0, %v2598
      %v2600 = vpop.f32.mrb[0].mxu0
      %2601 = vmatprep.mubr.bf16.mxu0 0
      %2602 = vmatmul.mubr.bf16.gmra.mrb[0].mxu0 %v2499
      %v2603 = vpop.f32.mrb[0].mxu0
      %v2604 = vadd.f32 0.0, %v2603
      %v2605 = vpop.f32.mrb[0].mxu0
      %v2606 = vpop.f32.mrb[0].mxu0
      %v2607 = vadd.f32 0.0, %v2606
      %v2608 = vpop.f32.mrb[0].mxu0
      %2609 = vmatprep.mubr.bf16.mxu0 0
      %2610 = vmatmul.mubr.bf16.gmra.mrb[0].mxu0 %v2500
      %v2611 = vpop.f32.mrb[0].mxu0
      %v2612 = vadd.f32 0.0, %v2611
      %v2613 = vpop.f32.mrb[0].mxu0
      %v2614 = vpop.f32.mrb[0].mxu0
      %v2615 = vadd.f32 0.0, %v2614
      %v2616 = vpop.f32.mrb[0].mxu0
      %2617 = vdwg.mxu0
      %v2618 = vadd.f32 %v2336, %v2588
      %v2619 = vadd.f32 %v2337, %v2591
      %v2620 = vadd.f32 %v2338, %v2596
      %v2621 = vadd.f32 %v2339, %v2599
      %v2622 = vadd.f32 %v2340, %v2604
      %v2623 = vadd.f32 %v2341, %v2607
      %v2624 = vadd.f32 %v2342, %v2612
      %v2625 = vadd.f32 %v2343, %v2615
      %v2626 = vld [vmem:[%s2173] sm:$0xe]
      %v2627 = vld [vmem:[%s2173 + $0x8] sm:$0xe]
      %v2628 = vld [vmem:[%s2173 + $0x10] sm:$0xe]
      %v2629 = vld [vmem:[%s2173 + $0x18] sm:$0xe]
      %v2630 = vld [vmem:[%s2173 + $0x20] sm:$0xe]
      %v2631 = vld [vmem:[%s2173 + $0x28] sm:$0xe]
      %v2632 = vld [vmem:[%s2173 + $0x30] sm:$0xe]
      %v2633 = vld [vmem:[%s2173 + $0x38] sm:$0xe]
      %v2650 = vrot.slane %v2626, 5
      %v2651 = vrot.slane %v2650, 4
      %v2652 = vrot.slane %v2345, 5
      %v2653 = vsel %vm653, %v2651, %v2652
      %v2654 = vrot.slane %v2627, 5
      %v2655 = vrot.slane %v2654, 4
      %v2656 = vrot.slane %v2347, 5
      %v2657 = vsel %vm653, %v2655, %v2656
      %v2658 = vrot.slane %v2628, 5
      %v2659 = vrot.slane %v2658, 4
      %v2660 = vrot.slane %v2349, 5
      %v2661 = vsel %vm653, %v2659, %v2660
      %v2662 = vrot.slane %v2629, 5
      %v2663 = vrot.slane %v2662, 4
      %v2664 = vrot.slane %v2351, 5
      %v2665 = vsel %vm653, %v2663, %v2664
      %v2666 = vrot.slane %v2630, 5
      %v2667 = vrot.slane %v2666, 4
      %v2668 = vrot.slane %v2353, 5
      %v2669 = vsel %vm653, %v2667, %v2668
      %v2670 = vrot.slane %v2631, 5
      %v2671 = vrot.slane %v2670, 4
      %v2672 = vrot.slane %v2355, 5
      %v2673 = vsel %vm653, %v2671, %v2672
      %v2674 = vrot.slane %v2632, 5
      %v2675 = vrot.slane %v2674, 4
      %v2676 = vrot.slane %v2357, 5
      %v2677 = vsel %vm653, %v2675, %v2676
      %v2678 = vrot.slane %v2633, 5
      %v2679 = vrot.slane %v2678, 4
      %v2680 = vrot.slane %v2359, 5
      %v2681 = vsel %vm653, %v2679, %v2680
      %s2682 = scalar_lea.vmem %s1, 704
      %v2683 = vld [vmem:[%s2682] sm:$0xf]
      %v2684 = vld [vmem:[%s2682 + $0x4] sm:$0xf]
      %v2685 = vld [vmem:[%s2682 + $0x8] sm:$0xf]
      %v2686 = vld [vmem:[%s2682 + $0xc] sm:$0xf]
      %v2687 = vld [vmem:[%s2682 + $0x10] sm:$0xf]
      %v2688 = vld [vmem:[%s2682 + $0x14] sm:$0xf]
      %v2689 = vld [vmem:[%s2682 + $0x18] sm:$0xf]
      %v2690 = vld [vmem:[%s2682 + $0x1c] sm:$0xf]
      %v2691 = vld [vmem:[%s2682 + $0x20] sm:$0xf]
      %v2692 = vld [vmem:[%s2682 + $0x24] sm:$0xf]
      %v2693 = vld [vmem:[%s2682 + $0x28] sm:$0xf]
      %v2694 = vld [vmem:[%s2682 + $0x2c] sm:$0xf]
      %v2695 = vld [vmem:[%s2682 + $0x30] sm:$0xf]
      %v2696 = vld [vmem:[%s2682 + $0x34] sm:$0xf]
      %v2697 = vld [vmem:[%s2682 + $0x38] sm:$0xf]
      %v2698 = vld [vmem:[%s2682 + $0x3c] sm:$0xf]
      %v2699 = vunpack.c.l.b16 %v2653
      %v2700 = vunpack.c.l.b16 %v2657
      %v2701 = vunpack.c.l.b16 %v2661
      %v2702 = vunpack.c.l.b16 %v2665
      %v2703 = vunpack.c.l.b16 %v2669
      %v2704 = vunpack.c.l.b16 %v2673
      %v2705 = vunpack.c.l.b16 %v2677
      %v2706 = vunpack.c.l.b16 %v2681
      %v2707 = vpack.c.b16 %v2700, %v2699
      %v2708 = vpack.c.b16 %v2702, %v2701
      %v2709 = vpack.c.b16 %v2704, %v2703
      %v2710 = vpack.c.b16 %v2706, %v2705
      %v2731 = vunpack.c.l.b16 %v2683
      %v2732 = vunpack.c.l.b16 %v2684
      %v2733 = vunpack.c.l.b16 %v2685
      %v2734 = vunpack.c.l.b16 %v2686
      %v2735 = vunpack.c.l.b16 %v2687
      %v2736 = vunpack.c.l.b16 %v2688
      %v2737 = vunpack.c.l.b16 %v2689
      %v2738 = vunpack.c.l.b16 %v2690
      %v2739 = vunpack.c.l.b16 %v2691
      %v2740 = vunpack.c.l.b16 %v2692
      %v2741 = vunpack.c.l.b16 %v2693
      %v2742 = vunpack.c.l.b16 %v2694
      %v2743 = vunpack.c.l.b16 %v2695
      %v2744 = vunpack.c.l.b16 %v2696
      %v2745 = vunpack.c.l.b16 %v2697
      %v2746 = vunpack.c.l.b16 %v2698
      %v2747 = vpack.c.b16 %v2732, %v2731
      %v2748 = vpack.c.b16 %v2734, %v2733
      %v2749 = vpack.c.b16 %v2736, %v2735
      %v2750 = vpack.c.b16 %v2738, %v2737
      %v2751 = vpack.c.b16 %v2740, %v2739
      %v2752 = vpack.c.b16 %v2742, %v2741
      %v2753 = vpack.c.b16 %v2744, %v2743
      %v2754 = vpack.c.b16 %v2746, %v2745
      %2763 = vmatprep.subr.bf16.mxu0 0
      %2764 = vmatpush1.bf16.msra.mxu0 %v2747
      %2765 = vmatprep.subr.bf16.mxu0 0
      %2766 = vmatpush1.bf16.msra.mxu0 %v2748
      %2767 = vmatprep.subr.bf16.mxu0 0
      %2768 = vmatpush1.bf16.msra.mxu0 %v2749
      %2769 = vmatprep.subr.bf16.mxu0 0
      %2770 = vmatpush1.bf16.msra.mxu0 %v2750
      %2771 = vmatprep.subr.bf16.mxu0 0
      %2772 = vmatpush1.bf16.msra.mxu0 %v2751
      %2773 = vmatprep.subr.bf16.mxu0 0
      %2774 = vmatpush1.bf16.msra.mxu0 %v2752
      %2775 = vmatprep.subr.bf16.mxu0 0
      %2776 = vmatpush1.bf16.msra.mxu0 %v2753
      %2777 = vmatprep.subr.bf16.mxu0 0
      %2778 = vmatpush1.bf16.msra.mxu0 %v2754
      %2779 = vmatprep.subr.bf16.mxu0 0
      %2780 = vmatpush1.bf16.msra.mxu0 0
      %2781 = vmatprep.subr.bf16.mxu0 0
      %2782 = vmatpush1.bf16.msra.mxu0 0
      %2783 = vmatprep.subr.bf16.mxu0 0
      %2784 = vmatpush1.bf16.msra.mxu0 0
      %2785 = vmatprep.subr.bf16.mxu0 0
      %2786 = vmatpush1.bf16.msra.mxu0 0
      %2787 = vmatprep.subr.bf16.mxu0 0
      %2788 = vmatpush1.bf16.msra.mxu0 0
      %2789 = vmatprep.subr.bf16.mxu0 0
      %2790 = vmatpush1.bf16.msra.mxu0 0
      %2791 = vmatprep.subr.bf16.mxu0 0
      %2792 = vmatpush1.bf16.msra.mxu0 0
      %2793 = vmatprep.subr.bf16.mxu0 0
      %2794 = vmatpush1.bf16.msra.mxu0 0
      %2795 = vmatprep.mubr.bf16.mxu0 0
      %2796 = vmatmul.mubr.bf16.gmra.mrb[0].mxu0 %v2707
      %v2797 = vpop.f32.mrb[0].mxu0
      %v2798 = vadd.f32 0.0, %v2797
      %v2799 = vpop.f32.mrb[0].mxu0
      %v2800 = vpop.f32.mrb[0].mxu0
      %v2801 = vadd.f32 0.0, %v2800
      %v2802 = vpop.f32.mrb[0].mxu0
      %2803 = vmatprep.mubr.bf16.mxu0 0
      %2804 = vmatmul.mubr.bf16.gmra.mrb[0].mxu0 %v2708
      %v2805 = vpop.f32.mrb[0].mxu0
      %v2806 = vadd.f32 0.0, %v2805
      %v2807 = vpop.f32.mrb[0].mxu0
      %v2808 = vpop.f32.mrb[0].mxu0
      %v2809 = vadd.f32 0.0, %v2808
      %v2810 = vpop.f32.mrb[0].mxu0
      %2811 = vmatprep.mubr.bf16.mxu0 0
      %2812 = vmatmul.mubr.bf16.gmra.mrb[0].mxu0 %v2709
      %v2813 = vpop.f32.mrb[0].mxu0
      %v2814 = vadd.f32 0.0, %v2813
      %v2815 = vpop.f32.mrb[0].mxu0
      %v2816 = vpop.f32.mrb[0].mxu0
      %v2817 = vadd.f32 0.0, %v2816
      %v2818 = vpop.f32.mrb[0].mxu0
      %2819 = vmatprep.mubr.bf16.mxu0 0
      %2820 = vmatmul.mubr.bf16.gmra.mrb[0].mxu0 %v2710
      %v2821 = vpop.f32.mrb[0].mxu0
      %v2822 = vadd.f32 0.0, %v2821
      %v2823 = vpop.f32.mrb[0].mxu0
      %v2824 = vpop.f32.mrb[0].mxu0
      %v2825 = vadd.f32 0.0, %v2824
      %v2826 = vpop.f32.mrb[0].mxu0
      %2827 = vdwg.mxu0
      %v2828 = vadd.f32 %v2618, %v2798
      %v2829 = vadd.f32 %v2619, %v2801
      %v2830 = vadd.f32 %v2620, %v2806
      %v2831 = vadd.f32 %v2621, %v2809
      %v2832 = vadd.f32 %v2622, %v2814
      %v2833 = vadd.f32 %v2623, %v2817
      %v2834 = vadd.f32 %v2624, %v2822
      %v2835 = vadd.f32 %v2625, %v2825
      %s2836 = sadd.s32 2, %s2171
      %s2837 = smul.addr %s2836, 4
      %s2838 = scalar_lea.vmem %s183, %s2837
      %v2839 = vld [vmem:[%s2838] sm:$0xf]
      %v2840 = vld [vmem:[%s2838 + $0x8] sm:$0xf]
      %v2841 = vld [vmem:[%s2838 + $0x10] sm:$0xf]
      %v2842 = vld [vmem:[%s2838 + $0x18] sm:$0xf]
      %v2843 = vld [vmem:[%s2838 + $0x20] sm:$0xf]
      %v2844 = vld [vmem:[%s2838 + $0x28] sm:$0xf]
      %v2845 = vld [vmem:[%s2838 + $0x30] sm:$0xf]
      %v2846 = vld [vmem:[%s2838 + $0x38] sm:$0xf]
      %s2847 = scalar_lea.vmem %s1, 768
      %v2848 = vld [vmem:[%s2847] sm:$0xf]
      %v2849 = vld [vmem:[%s2847 + $0x4] sm:$0xf]
      %v2850 = vld [vmem:[%s2847 + $0x8] sm:$0xf]
      %v2851 = vld [vmem:[%s2847 + $0xc] sm:$0xf]
      %v2852 = vld [vmem:[%s2847 + $0x10] sm:$0xf]
      %v2853 = vld [vmem:[%s2847 + $0x14] sm:$0xf]
      %v2854 = vld [vmem:[%s2847 + $0x18] sm:$0xf]
      %v2855 = vld [vmem:[%s2847 + $0x1c] sm:$0xf]
      %v2856 = vld [vmem:[%s2847 + $0x20] sm:$0xf]
      %v2857 = vld [vmem:[%s2847 + $0x24] sm:$0xf]
      %v2858 = vld [vmem:[%s2847 + $0x28] sm:$0xf]
      %v2859 = vld [vmem:[%s2847 + $0x2c] sm:$0xf]
      %v2860 = vld [vmem:[%s2847 + $0x30] sm:$0xf]
      %v2861 = vld [vmem:[%s2847 + $0x34] sm:$0xf]
      %v2862 = vld [vmem:[%s2847 + $0x38] sm:$0xf]
      %v2863 = vld [vmem:[%s2847 + $0x3c] sm:$0xf]
      %v2872 = vunpack.c.l.b16 %v2839
      %v2873 = vunpack.c.l.b16 %v2840
      %v2874 = vunpack.c.l.b16 %v2841
      %v2875 = vunpack.c.l.b16 %v2842
      %v2876 = vunpack.c.l.b16 %v2843
      %v2877 = vunpack.c.l.b16 %v2844
      %v2878 = vunpack.c.l.b16 %v2845
      %v2879 = vunpack.c.l.b16 %v2846
      %v2880 = vpack.c.b16 %v2873, %v2872
      %v2881 = vpack.c.b16 %v2875, %v2874
      %v2882 = vpack.c.b16 %v2877, %v2876
      %v2883 = vpack.c.b16 %v2879, %v2878
      %v2904 = vunpack.c.l.b16 %v2848
      %v2905 = vunpack.c.l.b16 %v2849
      %v2906 = vunpack.c.l.b16 %v2850
      %v2907 = vunpack.c.l.b16 %v2851
      %v2908 = vunpack.c.l.b16 %v2852
      %v2909 = vunpack.c.l.b16 %v2853
      %v2910 = vunpack.c.l.b16 %v2854
      %v2911 = vunpack.c.l.b16 %v2855
      %v2912 = vunpack.c.l.b16 %v2856
      %v2913 = vunpack.c.l.b16 %v2857
      %v2914 = vunpack.c.l.b16 %v2858
      %v2915 = vunpack.c.l.b16 %v2859
      %v2916 = vunpack.c.l.b16 %v2860
      %v2917 = vunpack.c.l.b16 %v2861
      %v2918 = vunpack.c.l.b16 %v2862
      %v2919 = vunpack.c.l.b16 %v2863
      %v2920 = vpack.c.b16 %v2905, %v2904
      %v2921 = vpack.c.b16 %v2907, %v2906
      %v2922 = vpack.c.b16 %v2909, %v2908
      %v2923 = vpack.c.b16 %v2911, %v2910
      %v2924 = vpack.c.b16 %v2913, %v2912
      %v2925 = vpack.c.b16 %v2915, %v2914
      %v2926 = vpack.c.b16 %v2917, %v2916
      %v2927 = vpack.c.b16 %v2919, %v2918
      %2936 = vmatprep.subr.bf16.mxu0 0
      %2937 = vmatpush1.bf16.msra.mxu0 %v2920
      %2938 = vmatprep.subr.bf16.mxu0 0
      %2939 = vmatpush1.bf16.msra.mxu0 %v2921
      %2940 = vmatprep.subr.bf16.mxu0 0
      %2941 = vmatpush1.bf16.msra.mxu0 %v2922
      %2942 = vmatprep.subr.bf16.mxu0 0
      %2943 = vmatpush1.bf16.msra.mxu0 %v2923
      %2944 = vmatprep.subr.bf16.mxu0 0
      %2945 = vmatpush1.bf16.msra.mxu0 %v2924
      %2946 = vmatprep.subr.bf16.mxu0 0
      %2947 = vmatpush1.bf16.msra.mxu0 %v2925
      %2948 = vmatprep.subr.bf16.mxu0 0
      %2949 = vmatpush1.bf16.msra.mxu0 %v2926
      %2950 = vmatprep.subr.bf16.mxu0 0
      %2951 = vmatpush1.bf16.msra.mxu0 %v2927
      %2952 = vmatprep.subr.bf16.mxu0 0
      %2953 = vmatpush1.bf16.msra.mxu0 0
      %2954 = vmatprep.subr.bf16.mxu0 0
      %2955 = vmatpush1.bf16.msra.mxu0 0
      %2956 = vmatprep.subr.bf16.mxu0 0
      %2957 = vmatpush1.bf16.msra.mxu0 0
      %2958 = vmatprep.subr.bf16.mxu0 0
      %2959 = vmatpush1.bf16.msra.mxu0 0
      %2960 = vmatprep.subr.bf16.mxu0 0
      %2961 = vmatpush1.bf16.msra.mxu0 0
      %2962 = vmatprep.subr.bf16.mxu0 0
      %2963 = vmatpush1.bf16.msra.mxu0 0
      %2964 = vmatprep.subr.bf16.mxu0 0
      %2965 = vmatpush1.bf16.msra.mxu0 0
      %2966 = vmatprep.subr.bf16.mxu0 0
      %2967 = vmatpush1.bf16.msra.mxu0 0
      %2968 = vmatprep.mubr.bf16.mxu0 0
      %2969 = vmatmul.mubr.bf16.gmra.mrb[0].mxu0 %v2880
      %v2970 = vpop.f32.mrb[0].mxu0
      %v2971 = vadd.f32 0.0, %v2970
      %v2972 = vpop.f32.mrb[0].mxu0
      %v2973 = vpop.f32.mrb[0].mxu0
      %v2974 = vadd.f32 0.0, %v2973
      %v2975 = vpop.f32.mrb[0].mxu0
      %2976 = vmatprep.mubr.bf16.mxu0 0
      %2977 = vmatmul.mubr.bf16.gmra.mrb[0].mxu0 %v2881
      %v2978 = vpop.f32.mrb[0].mxu0
      %v2979 = vadd.f32 0.0, %v2978
      %v2980 = vpop.f32.mrb[0].mxu0
      %v2981 = vpop.f32.mrb[0].mxu0
      %v2982 = vadd.f32 0.0, %v2981
      %v2983 = vpop.f32.mrb[0].mxu0
      %2984 = vmatprep.mubr.bf16.mxu0 0
      %2985 = vmatmul.mubr.bf16.gmra.mrb[0].mxu0 %v2882
      %v2986 = vpop.f32.mrb[0].mxu0
      %v2987 = vadd.f32 0.0, %v2986
      %v2988 = vpop.f32.mrb[0].mxu0
      %v2989 = vpop.f32.mrb[0].mxu0
      %v2990 = vadd.f32 0.0, %v2989
      %v2991 = vpop.f32.mrb[0].mxu0
      %2992 = vmatprep.mubr.bf16.mxu0 0
      %2993 = vmatmul.mubr.bf16.gmra.mrb[0].mxu0 %v2883
      %v2994 = vpop.f32.mrb[0].mxu0
      %v2995 = vadd.f32 0.0, %v2994
      %v2996 = vpop.f32.mrb[0].mxu0
      %v2997 = vpop.f32.mrb[0].mxu0
      %v2998 = vadd.f32 0.0, %v2997
      %v2999 = vpop.f32.mrb[0].mxu0
      %3000 = vdwg.mxu0
      %v3001 = vadd.f32 %v2828, %v2971
      %v3002 = vadd.f32 %v2829, %v2974
      %v3003 = vadd.f32 %v2830, %v2979
      %v3004 = vadd.f32 %v2831, %v2982
      %v3005 = vadd.f32 %v2832, %v2987
      %v3006 = vadd.f32 %v2833, %v2990
      %v3007 = vadd.f32 %v2834, %v2995
      %v3008 = vadd.f32 %v2835, %v2998
      %v3009 = vld [vmem:[%s2838] sm:$0xf]
      %v3010 = vld [vmem:[%s2838 + $0x4] sm:$0x1]
      %v3011 = vld [vmem:[%s2838 + $0x8] sm:$0xf]
      %v3012 = vld [vmem:[%s2838 + $0xc] sm:$0x1]
      %v3013 = vld [vmem:[%s2838 + $0x10] sm:$0xf]
      %v3014 = vld [vmem:[%s2838 + $0x14] sm:$0x1]
      %v3015 = vld [vmem:[%s2838 + $0x18] sm:$0xf]
      %v3016 = vld [vmem:[%s2838 + $0x1c] sm:$0x1]
      %v3017 = vld [vmem:[%s2838 + $0x20] sm:$0xf]
      %v3018 = vld [vmem:[%s2838 + $0x24] sm:$0x1]
      %v3019 = vld [vmem:[%s2838 + $0x28] sm:$0xf]
      %v3020 = vld [vmem:[%s2838 + $0x2c] sm:$0x1]
      %v3021 = vld [vmem:[%s2838 + $0x30] sm:$0xf]
      %v3022 = vld [vmem:[%s2838 + $0x34] sm:$0x1]
      %v3023 = vld [vmem:[%s2838 + $0x38] sm:$0xf]
      %v3024 = vld [vmem:[%s2838 + $0x3c] sm:$0x1]
      %v3026 = vshrl.u32 %v3009, 16
      %v3028 = vrot.slane %v3026, 4
      %v3029 = vshll.u32 %v3009, 16
      %v3031 = vrot.slane %v3029, 5
      %v3032 = vor.u32 %v3028, %v3031
      %v3033 = vrot.slane %v3032, 4
      %v3035 = vshll.u32 %v3010, 16
      %v3037 = vrot.slane %v3035, 5
      %v3038 = vsel %vm231, %v3033, %v3037
      %v3040 = vshrl.u32 %v3011, 16
      %v3042 = vrot.slane %v3040, 4
      %v3043 = vshll.u32 %v3011, 16
      %v3045 = vrot.slane %v3043, 5
      %v3046 = vor.u32 %v3042, %v3045
      %v3047 = vrot.slane %v3046, 4
      %v3049 = vshll.u32 %v3012, 16
      %v3051 = vrot.slane %v3049, 5
      %v3052 = vsel %vm231, %v3047, %v3051
      %v3054 = vshrl.u32 %v3013, 16
      %v3056 = vrot.slane %v3054, 4
      %v3057 = vshll.u32 %v3013, 16
      %v3059 = vrot.slane %v3057, 5
      %v3060 = vor.u32 %v3056, %v3059
      %v3061 = vrot.slane %v3060, 4
      %v3063 = vshll.u32 %v3014, 16
      %v3065 = vrot.slane %v3063, 5
      %v3066 = vsel %vm231, %v3061, %v3065
      %v3068 = vshrl.u32 %v3015, 16
      %v3070 = vrot.slane %v3068, 4
      %v3071 = vshll.u32 %v3015, 16
      %v3073 = vrot.slane %v3071, 5
      %v3074 = vor.u32 %v3070, %v3073
      %v3075 = vrot.slane %v3074, 4
      %v3077 = vshll.u32 %v3016, 16
      %v3079 = vrot.slane %v3077, 5
      %v3080 = vsel %vm231, %v3075, %v3079
      %v3082 = vshrl.u32 %v3017, 16
      %v3084 = vrot.slane %v3082, 4
      %v3085 = vshll.u32 %v3017, 16
      %v3087 = vrot.slane %v3085, 5
      %v3088 = vor.u32 %v3084, %v3087
      %v3089 = vrot.slane %v3088, 4
      %v3091 = vshll.u32 %v3018, 16
      %v3093 = vrot.slane %v3091, 5
      %v3094 = vsel %vm231, %v3089, %v3093
      %v3096 = vshrl.u32 %v3019, 16
      %v3098 = vrot.slane %v3096, 4
      %v3099 = vshll.u32 %v3019, 16
      %v3101 = vrot.slane %v3099, 5
      %v3102 = vor.u32 %v3098, %v3101
      %v3103 = vrot.slane %v3102, 4
      %v3105 = vshll.u32 %v3020, 16
      %v3107 = vrot.slane %v3105, 5
      %v3108 = vsel %vm231, %v3103, %v3107
      %v3110 = vshrl.u32 %v3021, 16
      %v3112 = vrot.slane %v3110, 4
      %v3113 = vshll.u32 %v3021, 16
      %v3115 = vrot.slane %v3113, 5
      %v3116 = vor.u32 %v3112, %v3115
      %v3117 = vrot.slane %v3116, 4
      %v3119 = vshll.u32 %v3022, 16
      %v3121 = vrot.slane %v3119, 5
      %v3122 = vsel %vm231, %v3117, %v3121
      %v3124 = vshrl.u32 %v3023, 16
      %v3126 = vrot.slane %v3124, 4
      %v3127 = vshll.u32 %v3023, 16
      %v3129 = vrot.slane %v3127, 5
      %v3130 = vor.u32 %v3126, %v3129
      %v3131 = vrot.slane %v3130, 4
      %v3133 = vshll.u32 %v3024, 16
      %v3135 = vrot.slane %v3133, 5
      %v3136 = vsel %vm231, %v3131, %v3135
      %s3137 = scalar_lea.vmem %s1, 832
      %v3138 = vld [vmem:[%s3137] sm:$0xf]
      %v3139 = vld [vmem:[%s3137 + $0x4] sm:$0xf]
      %v3140 = vld [vmem:[%s3137 + $0x8] sm:$0xf]
      %v3141 = vld [vmem:[%s3137 + $0xc] sm:$0xf]
      %v3142 = vld [vmem:[%s3137 + $0x10] sm:$0xf]
      %v3143 = vld [vmem:[%s3137 + $0x14] sm:$0xf]
      %v3144 = vld [vmem:[%s3137 + $0x18] sm:$0xf]
      %v3145 = vld [vmem:[%s3137 + $0x1c] sm:$0xf]
      %v3146 = vld [vmem:[%s3137 + $0x20] sm:$0xf]
      %v3147 = vld [vmem:[%s3137 + $0x24] sm:$0xf]
      %v3148 = vld [vmem:[%s3137 + $0x28] sm:$0xf]
      %v3149 = vld [vmem:[%s3137 + $0x2c] sm:$0xf]
      %v3150 = vld [vmem:[%s3137 + $0x30] sm:$0xf]
      %v3151 = vld [vmem:[%s3137 + $0x34] sm:$0xf]
      %v3152 = vld [vmem:[%s3137 + $0x38] sm:$0xf]
      %v3153 = vld [vmem:[%s3137 + $0x3c] sm:$0xf]
      %v3154 = vunpack.c.l.b16 %v3038
      %v3155 = vunpack.c.l.b16 %v3052
      %v3156 = vunpack.c.l.b16 %v3066
      %v3157 = vunpack.c.l.b16 %v3080
      %v3158 = vunpack.c.l.b16 %v3094
      %v3159 = vunpack.c.l.b16 %v3108
      %v3160 = vunpack.c.l.b16 %v3122
      %v3161 = vunpack.c.l.b16 %v3136
      %v3162 = vpack.c.b16 %v3155, %v3154
      %v3163 = vpack.c.b16 %v3157, %v3156
      %v3164 = vpack.c.b16 %v3159, %v3158
      %v3165 = vpack.c.b16 %v3161, %v3160
      %v3186 = vunpack.c.l.b16 %v3138
      %v3187 = vunpack.c.l.b16 %v3139
      %v3188 = vunpack.c.l.b16 %v3140
      %v3189 = vunpack.c.l.b16 %v3141
      %v3190 = vunpack.c.l.b16 %v3142
      %v3191 = vunpack.c.l.b16 %v3143
      %v3192 = vunpack.c.l.b16 %v3144
      %v3193 = vunpack.c.l.b16 %v3145
      %v3194 = vunpack.c.l.b16 %v3146
      %v3195 = vunpack.c.l.b16 %v3147
      %v3196 = vunpack.c.l.b16 %v3148
      %v3197 = vunpack.c.l.b16 %v3149
      %v3198 = vunpack.c.l.b16 %v3150
      %v3199 = vunpack.c.l.b16 %v3151
      %v3200 = vunpack.c.l.b16 %v3152
      %v3201 = vunpack.c.l.b16 %v3153
      %v3202 = vpack.c.b16 %v3187, %v3186
      %v3203 = vpack.c.b16 %v3189, %v3188
      %v3204 = vpack.c.b16 %v3191, %v3190
      %v3205 = vpack.c.b16 %v3193, %v3192
      %v3206 = vpack.c.b16 %v3195, %v3194
      %v3207 = vpack.c.b16 %v3197, %v3196
      %v3208 = vpack.c.b16 %v3199, %v3198
      %v3209 = vpack.c.b16 %v3201, %v3200
      %3218 = vmatprep.subr.bf16.mxu0 0
      %3219 = vmatpush1.bf16.msra.mxu0 %v3202
      %3220 = vmatprep.subr.bf16.mxu0 0
      %3221 = vmatpush1.bf16.msra.mxu0 %v3203
      %3222 = vmatprep.subr.bf16.mxu0 0
      %3223 = vmatpush1.bf16.msra.mxu0 %v3204
      %3224 = vmatprep.subr.bf16.mxu0 0
      %3225 = vmatpush1.bf16.msra.mxu0 %v3205
      %3226 = vmatprep.subr.bf16.mxu0 0
      %3227 = vmatpush1.bf16.msra.mxu0 %v3206
      %3228 = vmatprep.subr.bf16.mxu0 0
      %3229 = vmatpush1.bf16.msra.mxu0 %v3207
      %3230 = vmatprep.subr.bf16.mxu0 0
      %3231 = vmatpush1.bf16.msra.mxu0 %v3208
      %3232 = vmatprep.subr.bf16.mxu0 0
      %3233 = vmatpush1.bf16.msra.mxu0 %v3209
      %3234 = vmatprep.subr.bf16.mxu0 0
      %3235 = vmatpush1.bf16.msra.mxu0 0
      %3236 = vmatprep.subr.bf16.mxu0 0
      %3237 = vmatpush1.bf16.msra.mxu0 0
      %3238 = vmatprep.subr.bf16.mxu0 0
      %3239 = vmatpush1.bf16.msra.mxu0 0
      %3240 = vmatprep.subr.bf16.mxu0 0
      %3241 = vmatpush1.bf16.msra.mxu0 0
      %3242 = vmatprep.subr.bf16.mxu0 0
      %3243 = vmatpush1.bf16.msra.mxu0 0
      %3244 = vmatprep.subr.bf16.mxu0 0
      %3245 = vmatpush1.bf16.msra.mxu0 0
      %3246 = vmatprep.subr.bf16.mxu0 0
      %3247 = vmatpush1.bf16.msra.mxu0 0
      %3248 = vmatprep.subr.bf16.mxu0 0
      %3249 = vmatpush1.bf16.msra.mxu0 0
      %3250 = vmatprep.mubr.bf16.mxu0 0
      %3251 = vmatmul.mubr.bf16.gmra.mrb[0].mxu0 %v3162
      %v3252 = vpop.f32.mrb[0].mxu0
      %v3253 = vadd.f32 0.0, %v3252
      %v3254 = vpop.f32.mrb[0].mxu0
      %v3255 = vpop.f32.mrb[0].mxu0
      %v3256 = vadd.f32 0.0, %v3255
      %v3257 = vpop.f32.mrb[0].mxu0
      %3258 = vmatprep.mubr.bf16.mxu0 0
      %3259 = vmatmul.mubr.bf16.gmra.mrb[0].mxu0 %v3163
      %v3260 = vpop.f32.mrb[0].mxu0
      %v3261 = vadd.f32 0.0, %v3260
      %v3262 = vpop.f32.mrb[0].mxu0
      %v3263 = vpop.f32.mrb[0].mxu0
      %v3264 = vadd.f32 0.0, %v3263
      %v3265 = vpop.f32.mrb[0].mxu0
      %3266 = vmatprep.mubr.bf16.mxu0 0
      %3267 = vmatmul.mubr.bf16.gmra.mrb[0].mxu0 %v3164
      %v3268 = vpop.f32.mrb[0].mxu0
      %v3269 = vadd.f32 0.0, %v3268
      %v3270 = vpop.f32.mrb[0].mxu0
      %v3271 = vpop.f32.mrb[0].mxu0
      %v3272 = vadd.f32 0.0, %v3271
      %v3273 = vpop.f32.mrb[0].mxu0
      %3274 = vmatprep.mubr.bf16.mxu0 0
      %3275 = vmatmul.mubr.bf16.gmra.mrb[0].mxu0 %v3165
      %v3276 = vpop.f32.mrb[0].mxu0
      %v3277 = vadd.f32 0.0, %v3276
      %v3278 = vpop.f32.mrb[0].mxu0
      %v3279 = vpop.f32.mrb[0].mxu0
      %v3280 = vadd.f32 0.0, %v3279
      %v3281 = vpop.f32.mrb[0].mxu0
      %3282 = vdwg.mxu0
      %v3283 = vadd.f32 %v3001, %v3253
      %v3284 = vadd.f32 %v3002, %v3256
      %v3285 = vadd.f32 %v3003, %v3261
      %v3286 = vadd.f32 %v3004, %v3264
      %v3287 = vadd.f32 %v3005, %v3269
      %v3288 = vadd.f32 %v3006, %v3272
      %v3289 = vadd.f32 %v3007, %v3277
      %v3290 = vadd.f32 %v3008, %v3280
      %v3291 = vld [vmem:[%s2838] sm:$0xe]
      %v3292 = vld [vmem:[%s2838 + $0x8] sm:$0xe]
      %v3293 = vld [vmem:[%s2838 + $0x10] sm:$0xe]
      %v3294 = vld [vmem:[%s2838 + $0x18] sm:$0xe]
      %v3295 = vld [vmem:[%s2838 + $0x20] sm:$0xe]
      %v3296 = vld [vmem:[%s2838 + $0x28] sm:$0xe]
      %v3297 = vld [vmem:[%s2838 + $0x30] sm:$0xe]
      %v3298 = vld [vmem:[%s2838 + $0x38] sm:$0xe]
      %v3315 = vrot.slane %v3291, 5
      %v3316 = vrot.slane %v3315, 4
      %v3317 = vrot.slane %v3010, 5
      %v3318 = vsel %vm653, %v3316, %v3317
      %v3319 = vrot.slane %v3292, 5
      %v3320 = vrot.slane %v3319, 4
      %v3321 = vrot.slane %v3012, 5
      %v3322 = vsel %vm653, %v3320, %v3321
      %v3323 = vrot.slane %v3293, 5
      %v3324 = vrot.slane %v3323, 4
      %v3325 = vrot.slane %v3014, 5
      %v3326 = vsel %vm653, %v3324, %v3325
      %v3327 = vrot.slane %v3294, 5
      %v3328 = vrot.slane %v3327, 4
      %v3329 = vrot.slane %v3016, 5
      %v3330 = vsel %vm653, %v3328, %v3329
      %v3331 = vrot.slane %v3295, 5
      %v3332 = vrot.slane %v3331, 4
      %v3333 = vrot.slane %v3018, 5
      %v3334 = vsel %vm653, %v3332, %v3333
      %v3335 = vrot.slane %v3296, 5
      %v3336 = vrot.slane %v3335, 4
      %v3337 = vrot.slane %v3020, 5
      %v3338 = vsel %vm653, %v3336, %v3337
      %v3339 = vrot.slane %v3297, 5
      %v3340 = vrot.slane %v3339, 4
      %v3341 = vrot.slane %v3022, 5
      %v3342 = vsel %vm653, %v3340, %v3341
      %v3343 = vrot.slane %v3298, 5
      %v3344 = vrot.slane %v3343, 4
      %v3345 = vrot.slane %v3024, 5
      %v3346 = vsel %vm653, %v3344, %v3345
      %s3347 = scalar_lea.vmem %s1, 896
      %v3348 = vld [vmem:[%s3347] sm:$0xf]
      %v3349 = vld [vmem:[%s3347 + $0x4] sm:$0xf]
      %v3350 = vld [vmem:[%s3347 + $0x8] sm:$0xf]
      %v3351 = vld [vmem:[%s3347 + $0xc] sm:$0xf]
      %v3352 = vld [vmem:[%s3347 + $0x10] sm:$0xf]
      %v3353 = vld [vmem:[%s3347 + $0x14] sm:$0xf]
      %v3354 = vld [vmem:[%s3347 + $0x18] sm:$0xf]
      %v3355 = vld [vmem:[%s3347 + $0x1c] sm:$0xf]
      %v3356 = vld [vmem:[%s3347 + $0x20] sm:$0xf]
      %v3357 = vld [vmem:[%s3347 + $0x24] sm:$0xf]
      %v3358 = vld [vmem:[%s3347 + $0x28] sm:$0xf]
      %v3359 = vld [vmem:[%s3347 + $0x2c] sm:$0xf]
      %v3360 = vld [vmem:[%s3347 + $0x30] sm:$0xf]
      %v3361 = vld [vmem:[%s3347 + $0x34] sm:$0xf]
      %v3362 = vld [vmem:[%s3347 + $0x38] sm:$0xf]
      %v3363 = vld [vmem:[%s3347 + $0x3c] sm:$0xf]
      %v3364 = vunpack.c.l.b16 %v3318
      %v3365 = vunpack.c.l.b16 %v3322
      %v3366 = vunpack.c.l.b16 %v3326
      %v3367 = vunpack.c.l.b16 %v3330
      %v3368 = vunpack.c.l.b16 %v3334
      %v3369 = vunpack.c.l.b16 %v3338
      %v3370 = vunpack.c.l.b16 %v3342
      %v3371 = vunpack.c.l.b16 %v3346
      %v3372 = vpack.c.b16 %v3365, %v3364
      %v3373 = vpack.c.b16 %v3367, %v3366
      %v3374 = vpack.c.b16 %v3369, %v3368
      %v3375 = vpack.c.b16 %v3371, %v3370
      %v3396 = vunpack.c.l.b16 %v3348
      %v3397 = vunpack.c.l.b16 %v3349
      %v3398 = vunpack.c.l.b16 %v3350
      %v3399 = vunpack.c.l.b16 %v3351
      %v3400 = vunpack.c.l.b16 %v3352
      %v3401 = vunpack.c.l.b16 %v3353
      %v3402 = vunpack.c.l.b16 %v3354
      %v3403 = vunpack.c.l.b16 %v3355
      %v3404 = vunpack.c.l.b16 %v3356
      %v3405 = vunpack.c.l.b16 %v3357
      %v3406 = vunpack.c.l.b16 %v3358
      %v3407 = vunpack.c.l.b16 %v3359
      %v3408 = vunpack.c.l.b16 %v3360
      %v3409 = vunpack.c.l.b16 %v3361
      %v3410 = vunpack.c.l.b16 %v3362
      %v3411 = vunpack.c.l.b16 %v3363
      %v3412 = vpack.c.b16 %v3397, %v3396
      %v3413 = vpack.c.b16 %v3399, %v3398
      %v3414 = vpack.c.b16 %v3401, %v3400
      %v3415 = vpack.c.b16 %v3403, %v3402
      %v3416 = vpack.c.b16 %v3405, %v3404
      %v3417 = vpack.c.b16 %v3407, %v3406
      %v3418 = vpack.c.b16 %v3409, %v3408
      %v3419 = vpack.c.b16 %v3411, %v3410
      %3428 = vmatprep.subr.bf16.mxu0 0
      %3429 = vmatpush1.bf16.msra.mxu0 %v3412
      %3430 = vmatprep.subr.bf16.mxu0 0
      %3431 = vmatpush1.bf16.msra.mxu0 %v3413
      %3432 = vmatprep.subr.bf16.mxu0 0
      %3433 = vmatpush1.bf16.msra.mxu0 %v3414
      %3434 = vmatprep.subr.bf16.mxu0 0
      %3435 = vmatpush1.bf16.msra.mxu0 %v3415
      %3436 = vmatprep.subr.bf16.mxu0 0
      %3437 = vmatpush1.bf16.msra.mxu0 %v3416
      %3438 = vmatprep.subr.bf16.mxu0 0
      %3439 = vmatpush1.bf16.msra.mxu0 %v3417
      %3440 = vmatprep.subr.bf16.mxu0 0
      %3441 = vmatpush1.bf16.msra.mxu0 %v3418
      %3442 = vmatprep.subr.bf16.mxu0 0
      %3443 = vmatpush1.bf16.msra.mxu0 %v3419
      %3444 = vmatprep.subr.bf16.mxu0 0
      %3445 = vmatpush1.bf16.msra.mxu0 0
      %3446 = vmatprep.subr.bf16.mxu0 0
      %3447 = vmatpush1.bf16.msra.mxu0 0
      %3448 = vmatprep.subr.bf16.mxu0 0
      %3449 = vmatpush1.bf16.msra.mxu0 0
      %3450 = vmatprep.subr.bf16.mxu0 0
      %3451 = vmatpush1.bf16.msra.mxu0 0
      %3452 = vmatprep.subr.bf16.mxu0 0
      %3453 = vmatpush1.bf16.msra.mxu0 0
      %3454 = vmatprep.subr.bf16.mxu0 0
      %3455 = vmatpush1.bf16.msra.mxu0 0
      %3456 = vmatprep.subr.bf16.mxu0 0
      %3457 = vmatpush1.bf16.msra.mxu0 0
      %3458 = vmatprep.subr.bf16.mxu0 0
      %3459 = vmatpush1.bf16.msra.mxu0 0
      %3460 = vmatprep.mubr.bf16.mxu0 0
      %3461 = vmatmul.mubr.bf16.gmra.mrb[0].mxu0 %v3372
      %v3462 = vpop.f32.mrb[0].mxu0
      %v3463 = vadd.f32 0.0, %v3462
      %v3464 = vpop.f32.mrb[0].mxu0
      %v3465 = vpop.f32.mrb[0].mxu0
      %v3466 = vadd.f32 0.0, %v3465
      %v3467 = vpop.f32.mrb[0].mxu0
      %3468 = vmatprep.mubr.bf16.mxu0 0
      %3469 = vmatmul.mubr.bf16.gmra.mrb[0].mxu0 %v3373
      %v3470 = vpop.f32.mrb[0].mxu0
      %v3471 = vadd.f32 0.0, %v3470
      %v3472 = vpop.f32.mrb[0].mxu0
      %v3473 = vpop.f32.mrb[0].mxu0
      %v3474 = vadd.f32 0.0, %v3473
      %v3475 = vpop.f32.mrb[0].mxu0
      %3476 = vmatprep.mubr.bf16.mxu0 0
      %3477 = vmatmul.mubr.bf16.gmra.mrb[0].mxu0 %v3374
      %v3478 = vpop.f32.mrb[0].mxu0
      %v3479 = vadd.f32 0.0, %v3478
      %v3480 = vpop.f32.mrb[0].mxu0
      %v3481 = vpop.f32.mrb[0].mxu0
      %v3482 = vadd.f32 0.0, %v3481
      %v3483 = vpop.f32.mrb[0].mxu0
      %3484 = vmatprep.mubr.bf16.mxu0 0
      %3485 = vmatmul.mubr.bf16.gmra.mrb[0].mxu0 %v3375
      %v3486 = vpop.f32.mrb[0].mxu0
      %v3487 = vadd.f32 0.0, %v3486
      %v3488 = vpop.f32.mrb[0].mxu0
      %v3489 = vpop.f32.mrb[0].mxu0
      %v3490 = vadd.f32 0.0, %v3489
      %v3491 = vpop.f32.mrb[0].mxu0
      %3492 = vdwg.mxu0
      %v3493 = vadd.f32 %v3283, %v3463
      %v3494 = vadd.f32 %v3284, %v3466
      %v3495 = vadd.f32 %v3285, %v3471
      %v3496 = vadd.f32 %v3286, %v3474
      %v3497 = vadd.f32 %v3287, %v3479
      %v3498 = vadd.f32 %v3288, %v3482
      %v3499 = vadd.f32 %v3289, %v3487
      %v3500 = vadd.f32 %v3290, %v3490
      %s3501 = sadd.s32 4, %s2171
      %s3502 = smul.addr %s3501, 4
      %s3503 = scalar_lea.vmem %s183, %s3502
      %v3504 = vld [vmem:[%s3503] sm:$0xf]
      %v3505 = vld [vmem:[%s3503 + $0x8] sm:$0xf]
      %v3506 = vld [vmem:[%s3503 + $0x10] sm:$0xf]
      %v3507 = vld [vmem:[%s3503 + $0x18] sm:$0xf]
      %v3508 = vld [vmem:[%s3503 + $0x20] sm:$0xf]
      %v3509 = vld [vmem:[%s3503 + $0x28] sm:$0xf]
      %v3510 = vld [vmem:[%s3503 + $0x30] sm:$0xf]
      %v3511 = vld [vmem:[%s3503 + $0x38] sm:$0xf]
      %s3512 = scalar_lea.vmem %s1, 960
      %v3513 = vld [vmem:[%s3512] sm:$0xf]
      %v3514 = vld [vmem:[%s3512 + $0x4] sm:$0xf]
      %v3515 = vld [vmem:[%s3512 + $0x8] sm:$0xf]
      %v3516 = vld [vmem:[%s3512 + $0xc] sm:$0xf]
      %v3517 = vld [vmem:[%s3512 + $0x10] sm:$0xf]
      %v3518 = vld [vmem:[%s3512 + $0x14] sm:$0xf]
      %v3519 = vld [vmem:[%s3512 + $0x18] sm:$0xf]
      %v3520 = vld [vmem:[%s3512 + $0x1c] sm:$0xf]
      %v3521 = vld [vmem:[%s3512 + $0x20] sm:$0xf]
      %v3522 = vld [vmem:[%s3512 + $0x24] sm:$0xf]
      %v3523 = vld [vmem:[%s3512 + $0x28] sm:$0xf]
      %v3524 = vld [vmem:[%s3512 + $0x2c] sm:$0xf]
      %v3525 = vld [vmem:[%s3512 + $0x30] sm:$0xf]
      %v3526 = vld [vmem:[%s3512 + $0x34] sm:$0xf]
      %v3527 = vld [vmem:[%s3512 + $0x38] sm:$0xf]
      %v3528 = vld [vmem:[%s3512 + $0x3c] sm:$0xf]
      %v3537 = vunpack.c.l.b16 %v3504
      %v3538 = vunpack.c.l.b16 %v3505
      %v3539 = vunpack.c.l.b16 %v3506
      %v3540 = vunpack.c.l.b16 %v3507
      %v3541 = vunpack.c.l.b16 %v3508
      %v3542 = vunpack.c.l.b16 %v3509
      %v3543 = vunpack.c.l.b16 %v3510
      %v3544 = vunpack.c.l.b16 %v3511
      %v3545 = vpack.c.b16 %v3538, %v3537
      %v3546 = vpack.c.b16 %v3540, %v3539
      %v3547 = vpack.c.b16 %v3542, %v3541
      %v3548 = vpack.c.b16 %v3544, %v3543
      %v3569 = vunpack.c.l.b16 %v3513
      %v3570 = vunpack.c.l.b16 %v3514
      %v3571 = vunpack.c.l.b16 %v3515
      %v3572 = vunpack.c.l.b16 %v3516
      %v3573 = vunpack.c.l.b16 %v3517
      %v3574 = vunpack.c.l.b16 %v3518
      %v3575 = vunpack.c.l.b16 %v3519
      %v3576 = vunpack.c.l.b16 %v3520
      %v3577 = vunpack.c.l.b16 %v3521
      %v3578 = vunpack.c.l.b16 %v3522
      %v3579 = vunpack.c.l.b16 %v3523
      %v3580 = vunpack.c.l.b16 %v3524
      %v3581 = vunpack.c.l.b16 %v3525
      %v3582 = vunpack.c.l.b16 %v3526
      %v3583 = vunpack.c.l.b16 %v3527
      %v3584 = vunpack.c.l.b16 %v3528
      %v3585 = vpack.c.b16 %v3570, %v3569
      %v3586 = vpack.c.b16 %v3572, %v3571
      %v3587 = vpack.c.b16 %v3574, %v3573
      %v3588 = vpack.c.b16 %v3576, %v3575
      %v3589 = vpack.c.b16 %v3578, %v3577
      %v3590 = vpack.c.b16 %v3580, %v3579
      %v3591 = vpack.c.b16 %v3582, %v3581
      %v3592 = vpack.c.b16 %v3584, %v3583
      %3601 = vmatprep.subr.bf16.mxu0 0
      %3602 = vmatpush1.bf16.msra.mxu0 %v3585
      %3603 = vmatprep.subr.bf16.mxu0 0
      %3604 = vmatpush1.bf16.msra.mxu0 %v3586
      %3605 = vmatprep.subr.bf16.mxu0 0
      %3606 = vmatpush1.bf16.msra.mxu0 %v3587
      %3607 = vmatprep.subr.bf16.mxu0 0
      %3608 = vmatpush1.bf16.msra.mxu0 %v3588
      %3609 = vmatprep.subr.bf16.mxu0 0
      %3610 = vmatpush1.bf16.msra.mxu0 %v3589
      %3611 = vmatprep.subr.bf16.mxu0 0
      %3612 = vmatpush1.bf16.msra.mxu0 %v3590
      %3613 = vmatprep.subr.bf16.mxu0 0
      %3614 = vmatpush1.bf16.msra.mxu0 %v3591
      %3615 = vmatprep.subr.bf16.mxu0 0
      %3616 = vmatpush1.bf16.msra.mxu0 %v3592
      %3617 = vmatprep.subr.bf16.mxu0 0
      %3618 = vmatpush1.bf16.msra.mxu0 0
      %3619 = vmatprep.subr.bf16.mxu0 0
      %3620 = vmatpush1.bf16.msra.mxu0 0
      %3621 = vmatprep.subr.bf16.mxu0 0
      %3622 = vmatpush1.bf16.msra.mxu0 0
      %3623 = vmatprep.subr.bf16.mxu0 0
      %3624 = vmatpush1.bf16.msra.mxu0 0
      %3625 = vmatprep.subr.bf16.mxu0 0
      %3626 = vmatpush1.bf16.msra.mxu0 0
      %3627 = vmatprep.subr.bf16.mxu0 0
      %3628 = vmatpush1.bf16.msra.mxu0 0
      %3629 = vmatprep.subr.bf16.mxu0 0
      %3630 = vmatpush1.bf16.msra.mxu0 0
      %3631 = vmatprep.subr.bf16.mxu0 0
      %3632 = vmatpush1.bf16.msra.mxu0 0
      %3633 = vmatprep.mubr.bf16.mxu0 0
      %3634 = vmatmul.mubr.bf16.gmra.mrb[0].mxu0 %v3545
      %v3635 = vpop.f32.mrb[0].mxu0
      %v3636 = vadd.f32 0.0, %v3635
      %v3637 = vpop.f32.mrb[0].mxu0
      %v3638 = vpop.f32.mrb[0].mxu0
      %v3639 = vadd.f32 0.0, %v3638
      %v3640 = vpop.f32.mrb[0].mxu0
      %3641 = vmatprep.mubr.bf16.mxu0 0
      %3642 = vmatmul.mubr.bf16.gmra.mrb[0].mxu0 %v3546
      %v3643 = vpop.f32.mrb[0].mxu0
      %v3644 = vadd.f32 0.0, %v3643
      %v3645 = vpop.f32.mrb[0].mxu0
      %v3646 = vpop.f32.mrb[0].mxu0
      %v3647 = vadd.f32 0.0, %v3646
      %v3648 = vpop.f32.mrb[0].mxu0
      %3649 = vmatprep.mubr.bf16.mxu0 0
      %3650 = vmatmul.mubr.bf16.gmra.mrb[0].mxu0 %v3547
      %v3651 = vpop.f32.mrb[0].mxu0
      %v3652 = vadd.f32 0.0, %v3651
      %v3653 = vpop.f32.mrb[0].mxu0
      %v3654 = vpop.f32.mrb[0].mxu0
      %v3655 = vadd.f32 0.0, %v3654
      %v3656 = vpop.f32.mrb[0].mxu0
      %3657 = vmatprep.mubr.bf16.mxu0 0
      %3658 = vmatmul.mubr.bf16.gmra.mrb[0].mxu0 %v3548
      %v3659 = vpop.f32.mrb[0].mxu0
      %v3660 = vadd.f32 0.0, %v3659
      %v3661 = vpop.f32.mrb[0].mxu0
      %v3662 = vpop.f32.mrb[0].mxu0
      %v3663 = vadd.f32 0.0, %v3662
      %v3664 = vpop.f32.mrb[0].mxu0
      %3665 = vdwg.mxu0
      %v3666 = vadd.f32 %v3493, %v3636
      %v3667 = vadd.f32 %v3494, %v3639
      %v3668 = vadd.f32 %v3495, %v3644
      %v3669 = vadd.f32 %v3496, %v3647
      %v3670 = vadd.f32 %v3497, %v3652
      %v3671 = vadd.f32 %v3498, %v3655
      %v3672 = vadd.f32 %v3499, %v3660
      %v3673 = vadd.f32 %v3500, %v3663
      %v3674 = vld [vmem:[%s3503] sm:$0xf]
      %v3675 = vld [vmem:[%s3503 + $0x4] sm:$0x1]
      %v3676 = vld [vmem:[%s3503 + $0x8] sm:$0xf]
      %v3677 = vld [vmem:[%s3503 + $0xc] sm:$0x1]
      %v3678 = vld [vmem:[%s3503 + $0x10] sm:$0xf]
      %v3679 = vld [vmem:[%s3503 + $0x14] sm:$0x1]
      %v3680 = vld [vmem:[%s3503 + $0x18] sm:$0xf]
      %v3681 = vld [vmem:[%s3503 + $0x1c] sm:$0x1]
      %v3682 = vld [vmem:[%s3503 + $0x20] sm:$0xf]
      %v3683 = vld [vmem:[%s3503 + $0x24] sm:$0x1]
      %v3684 = vld [vmem:[%s3503 + $0x28] sm:$0xf]
      %v3685 = vld [vmem:[%s3503 + $0x2c] sm:$0x1]
      %v3686 = vld [vmem:[%s3503 + $0x30] sm:$0xf]
      %v3687 = vld [vmem:[%s3503 + $0x34] sm:$0x1]
      %v3688 = vld [vmem:[%s3503 + $0x38] sm:$0xf]
      %v3689 = vld [vmem:[%s3503 + $0x3c] sm:$0x1]
      %v3691 = vshrl.u32 %v3674, 16
      %v3693 = vrot.slane %v3691, 4
      %v3694 = vshll.u32 %v3674, 16
      %v3696 = vrot.slane %v3694, 5
      %v3697 = vor.u32 %v3693, %v3696
      %v3698 = vrot.slane %v3697, 4
      %v3700 = vshll.u32 %v3675, 16
      %v3702 = vrot.slane %v3700, 5
      %v3703 = vsel %vm231, %v3698, %v3702
      %v3705 = vshrl.u32 %v3676, 16
      %v3707 = vrot.slane %v3705, 4
      %v3708 = vshll.u32 %v3676, 16
      %v3710 = vrot.slane %v3708, 5
      %v3711 = vor.u32 %v3707, %v3710
      %v3712 = vrot.slane %v3711, 4
      %v3714 = vshll.u32 %v3677, 16
      %v3716 = vrot.slane %v3714, 5
      %v3717 = vsel %vm231, %v3712, %v3716
      %v3719 = vshrl.u32 %v3678, 16
      %v3721 = vrot.slane %v3719, 4
      %v3722 = vshll.u32 %v3678, 16
      %v3724 = vrot.slane %v3722, 5
      %v3725 = vor.u32 %v3721, %v3724
      %v3726 = vrot.slane %v3725, 4
      %v3728 = vshll.u32 %v3679, 16
      %v3730 = vrot.slane %v3728, 5
      %v3731 = vsel %vm231, %v3726, %v3730
      %v3733 = vshrl.u32 %v3680, 16
      %v3735 = vrot.slane %v3733, 4
      %v3736 = vshll.u32 %v3680, 16
      %v3738 = vrot.slane %v3736, 5
      %v3739 = vor.u32 %v3735, %v3738
      %v3740 = vrot.slane %v3739, 4
      %v3742 = vshll.u32 %v3681, 16
      %v3744 = vrot.slane %v3742, 5
      %v3745 = vsel %vm231, %v3740, %v3744
      %v3747 = vshrl.u32 %v3682, 16
      %v3749 = vrot.slane %v3747, 4
      %v3750 = vshll.u32 %v3682, 16
      %v3752 = vrot.slane %v3750, 5
      %v3753 = vor.u32 %v3749, %v3752
      %v3754 = vrot.slane %v3753, 4
      %v3756 = vshll.u32 %v3683, 16
      %v3758 = vrot.slane %v3756, 5
      %v3759 = vsel %vm231, %v3754, %v3758
      %v3761 = vshrl.u32 %v3684, 16
      %v3763 = vrot.slane %v3761, 4
      %v3764 = vshll.u32 %v3684, 16
      %v3766 = vrot.slane %v3764, 5
      %v3767 = vor.u32 %v3763, %v3766
      %v3768 = vrot.slane %v3767, 4
      %v3770 = vshll.u32 %v3685, 16
      %v3772 = vrot.slane %v3770, 5
      %v3773 = vsel %vm231, %v3768, %v3772
      %v3775 = vshrl.u32 %v3686, 16
      %v3777 = vrot.slane %v3775, 4
      %v3778 = vshll.u32 %v3686, 16
      %v3780 = vrot.slane %v3778, 5
      %v3781 = vor.u32 %v3777, %v3780
      %v3782 = vrot.slane %v3781, 4
      %v3784 = vshll.u32 %v3687, 16
      %v3786 = vrot.slane %v3784, 5
      %v3787 = vsel %vm231, %v3782, %v3786
      %v3789 = vshrl.u32 %v3688, 16
      %v3791 = vrot.slane %v3789, 4
      %v3792 = vshll.u32 %v3688, 16
      %v3794 = vrot.slane %v3792, 5
      %v3795 = vor.u32 %v3791, %v3794
      %v3796 = vrot.slane %v3795, 4
      %v3798 = vshll.u32 %v3689, 16
      %v3800 = vrot.slane %v3798, 5
      %v3801 = vsel %vm231, %v3796, %v3800
      %s3802 = scalar_lea.vmem %s1, 1024
      %v3803 = vld [vmem:[%s3802] sm:$0xf]
      %v3804 = vld [vmem:[%s3802 + $0x4] sm:$0xf]
      %v3805 = vld [vmem:[%s3802 + $0x8] sm:$0xf]
      %v3806 = vld [vmem:[%s3802 + $0xc] sm:$0xf]
      %v3807 = vld [vmem:[%s3802 + $0x10] sm:$0xf]
      %v3808 = vld [vmem:[%s3802 + $0x14] sm:$0xf]
      %v3809 = vld [vmem:[%s3802 + $0x18] sm:$0xf]
      %v3810 = vld [vmem:[%s3802 + $0x1c] sm:$0xf]
      %v3811 = vld [vmem:[%s3802 + $0x20] sm:$0xf]
      %v3812 = vld [vmem:[%s3802 + $0x24] sm:$0xf]
      %v3813 = vld [vmem:[%s3802 + $0x28] sm:$0xf]
      %v3814 = vld [vmem:[%s3802 + $0x2c] sm:$0xf]
      %v3815 = vld [vmem:[%s3802 + $0x30] sm:$0xf]
      %v3816 = vld [vmem:[%s3802 + $0x34] sm:$0xf]
      %v3817 = vld [vmem:[%s3802 + $0x38] sm:$0xf]
      %v3818 = vld [vmem:[%s3802 + $0x3c] sm:$0xf]
      %v3819 = vunpack.c.l.b16 %v3703
      %v3820 = vunpack.c.l.b16 %v3717
      %v3821 = vunpack.c.l.b16 %v3731
      %v3822 = vunpack.c.l.b16 %v3745
      %v3823 = vunpack.c.l.b16 %v3759
      %v3824 = vunpack.c.l.b16 %v3773
      %v3825 = vunpack.c.l.b16 %v3787
      %v3826 = vunpack.c.l.b16 %v3801
      %v3827 = vpack.c.b16 %v3820, %v3819
      %v3828 = vpack.c.b16 %v3822, %v3821
      %v3829 = vpack.c.b16 %v3824, %v3823
      %v3830 = vpack.c.b16 %v3826, %v3825
      %v3851 = vunpack.c.l.b16 %v3803
      %v3852 = vunpack.c.l.b16 %v3804
      %v3853 = vunpack.c.l.b16 %v3805
      %v3854 = vunpack.c.l.b16 %v3806
      %v3855 = vunpack.c.l.b16 %v3807
      %v3856 = vunpack.c.l.b16 %v3808
      %v3857 = vunpack.c.l.b16 %v3809
      %v3858 = vunpack.c.l.b16 %v3810
      %v3859 = vunpack.c.l.b16 %v3811
      %v3860 = vunpack.c.l.b16 %v3812
      %v3861 = vunpack.c.l.b16 %v3813
      %v3862 = vunpack.c.l.b16 %v3814
      %v3863 = vunpack.c.l.b16 %v3815
      %v3864 = vunpack.c.l.b16 %v3816
      %v3865 = vunpack.c.l.b16 %v3817
      %v3866 = vunpack.c.l.b16 %v3818
      %v3867 = vpack.c.b16 %v3852, %v3851
      %v3868 = vpack.c.b16 %v3854, %v3853
      %v3869 = vpack.c.b16 %v3856, %v3855
      %v3870 = vpack.c.b16 %v3858, %v3857
      %v3871 = vpack.c.b16 %v3860, %v3859
      %v3872 = vpack.c.b16 %v3862, %v3861
      %v3873 = vpack.c.b16 %v3864, %v3863
      %v3874 = vpack.c.b16 %v3866, %v3865
      %3883 = vmatprep.subr.bf16.mxu0 0
      %3884 = vmatpush1.bf16.msra.mxu0 %v3867
      %3885 = vmatprep.subr.bf16.mxu0 0
      %3886 = vmatpush1.bf16.msra.mxu0 %v3868
      %3887 = vmatprep.subr.bf16.mxu0 0
      %3888 = vmatpush1.bf16.msra.mxu0 %v3869
      %3889 = vmatprep.subr.bf16.mxu0 0
      %3890 = vmatpush1.bf16.msra.mxu0 %v3870
      %3891 = vmatprep.subr.bf16.mxu0 0
      %3892 = vmatpush1.bf16.msra.mxu0 %v3871
      %3893 = vmatprep.subr.bf16.mxu0 0
      %3894 = vmatpush1.bf16.msra.mxu0 %v3872
      %3895 = vmatprep.subr.bf16.mxu0 0
      %3896 = vmatpush1.bf16.msra.mxu0 %v3873
      %3897 = vmatprep.subr.bf16.mxu0 0
      %3898 = vmatpush1.bf16.msra.mxu0 %v3874
      %3899 = vmatprep.subr.bf16.mxu0 0
      %3900 = vmatpush1.bf16.msra.mxu0 0
      %3901 = vmatprep.subr.bf16.mxu0 0
      %3902 = vmatpush1.bf16.msra.mxu0 0
      %3903 = vmatprep.subr.bf16.mxu0 0
      %3904 = vmatpush1.bf16.msra.mxu0 0
      %3905 = vmatprep.subr.bf16.mxu0 0
      %3906 = vmatpush1.bf16.msra.mxu0 0
      %3907 = vmatprep.subr.bf16.mxu0 0
      %3908 = vmatpush1.bf16.msra.mxu0 0
      %3909 = vmatprep.subr.bf16.mxu0 0
      %3910 = vmatpush1.bf16.msra.mxu0 0
      %3911 = vmatprep.subr.bf16.mxu0 0
      %3912 = vmatpush1.bf16.msra.mxu0 0
      %3913 = vmatprep.subr.bf16.mxu0 0
      %3914 = vmatpush1.bf16.msra.mxu0 0
      %3915 = vmatprep.mubr.bf16.mxu0 0
      %3916 = vmatmul.mubr.bf16.gmra.mrb[0].mxu0 %v3827
      %v3917 = vpop.f32.mrb[0].mxu0
      %v3918 = vadd.f32 0.0, %v3917
      %v3919 = vpop.f32.mrb[0].mxu0
      %v3920 = vpop.f32.mrb[0].mxu0
      %v3921 = vadd.f32 0.0, %v3920
      %v3922 = vpop.f32.mrb[0].mxu0
      %3923 = vmatprep.mubr.bf16.mxu0 0
      %3924 = vmatmul.mubr.bf16.gmra.mrb[0].mxu0 %v3828
      %v3925 = vpop.f32.mrb[0].mxu0
      %v3926 = vadd.f32 0.0, %v3925
      %v3927 = vpop.f32.mrb[0].mxu0
      %v3928 = vpop.f32.mrb[0].mxu0
      %v3929 = vadd.f32 0.0, %v3928
      %v3930 = vpop.f32.mrb[0].mxu0
      %3931 = vmatprep.mubr.bf16.mxu0 0
      %3932 = vmatmul.mubr.bf16.gmra.mrb[0].mxu0 %v3829
      %v3933 = vpop.f32.mrb[0].mxu0
      %v3934 = vadd.f32 0.0, %v3933
      %v3935 = vpop.f32.mrb[0].mxu0
      %v3936 = vpop.f32.mrb[0].mxu0
      %v3937 = vadd.f32 0.0, %v3936
      %v3938 = vpop.f32.mrb[0].mxu0
      %3939 = vmatprep.mubr.bf16.mxu0 0
      %3940 = vmatmul.mubr.bf16.gmra.mrb[0].mxu0 %v3830
      %v3941 = vpop.f32.mrb[0].mxu0
      %v3942 = vadd.f32 0.0, %v3941
      %v3943 = vpop.f32.mrb[0].mxu0
      %v3944 = vpop.f32.mrb[0].mxu0
      %v3945 = vadd.f32 0.0, %v3944
      %v3946 = vpop.f32.mrb[0].mxu0
      %3947 = vdwg.mxu0
      %v3948 = vadd.f32 %v3666, %v3918
      %v3949 = vadd.f32 %v3667, %v3921
      %v3950 = vadd.f32 %v3668, %v3926
      %v3951 = vadd.f32 %v3669, %v3929
      %v3952 = vadd.f32 %v3670, %v3934
      %v3953 = vadd.f32 %v3671, %v3937
      %v3954 = vadd.f32 %v3672, %v3942
      %v3955 = vadd.f32 %v3673, %v3945
      %v3956 = vld [vmem:[%s3503] sm:$0xe]
      %v3957 = vld [vmem:[%s3503 + $0x8] sm:$0xe]
      %v3958 = vld [vmem:[%s3503 + $0x10] sm:$0xe]
      %v3959 = vld [vmem:[%s3503 + $0x18] sm:$0xe]
      %v3960 = vld [vmem:[%s3503 + $0x20] sm:$0xe]
      %v3961 = vld [vmem:[%s3503 + $0x28] sm:$0xe]
      %v3962 = vld [vmem:[%s3503 + $0x30] sm:$0xe]
      %v3963 = vld [vmem:[%s3503 + $0x38] sm:$0xe]
      %v3980 = vrot.slane %v3956, 5
      %v3981 = vrot.slane %v3980, 4
      %v3982 = vrot.slane %v3675, 5
      %v3983 = vsel %vm653, %v3981, %v3982
      %v3984 = vrot.slane %v3957, 5
      %v3985 = vrot.slane %v3984, 4
      %v3986 = vrot.slane %v3677, 5
      %v3987 = vsel %vm653, %v3985, %v3986
      %v3988 = vrot.slane %v3958, 5
      %v3989 = vrot.slane %v3988, 4
      %v3990 = vrot.slane %v3679, 5
      %v3991 = vsel %vm653, %v3989, %v3990
      %v3992 = vrot.slane %v3959, 5
      %v3993 = vrot.slane %v3992, 4
      %v3994 = vrot.slane %v3681, 5
      %v3995 = vsel %vm653, %v3993, %v3994
      %v3996 = vrot.slane %v3960, 5
      %v3997 = vrot.slane %v3996, 4
      %v3998 = vrot.slane %v3683, 5
      %v3999 = vsel %vm653, %v3997, %v3998
      %v4000 = vrot.slane %v3961, 5
      %v4001 = vrot.slane %v4000, 4
      %v4002 = vrot.slane %v3685, 5
      %v4003 = vsel %vm653, %v4001, %v4002
      %v4004 = vrot.slane %v3962, 5
      %v4005 = vrot.slane %v4004, 4
      %v4006 = vrot.slane %v3687, 5
      %v4007 = vsel %vm653, %v4005, %v4006
      %v4008 = vrot.slane %v3963, 5
      %v4009 = vrot.slane %v4008, 4
      %v4010 = vrot.slane %v3689, 5
      %v4011 = vsel %vm653, %v4009, %v4010
      %s4012 = scalar_lea.vmem %s1, 1088
      %v4013 = vld [vmem:[%s4012] sm:$0xf]
      %v4014 = vld [vmem:[%s4012 + $0x4] sm:$0xf]
      %v4015 = vld [vmem:[%s4012 + $0x8] sm:$0xf]
      %v4016 = vld [vmem:[%s4012 + $0xc] sm:$0xf]
      %v4017 = vld [vmem:[%s4012 + $0x10] sm:$0xf]
      %v4018 = vld [vmem:[%s4012 + $0x14] sm:$0xf]
      %v4019 = vld [vmem:[%s4012 + $0x18] sm:$0xf]
      %v4020 = vld [vmem:[%s4012 + $0x1c] sm:$0xf]
      %v4021 = vld [vmem:[%s4012 + $0x20] sm:$0xf]
      %v4022 = vld [vmem:[%s4012 + $0x24] sm:$0xf]
      %v4023 = vld [vmem:[%s4012 + $0x28] sm:$0xf]
      %v4024 = vld [vmem:[%s4012 + $0x2c] sm:$0xf]
      %v4025 = vld [vmem:[%s4012 + $0x30] sm:$0xf]
      %v4026 = vld [vmem:[%s4012 + $0x34] sm:$0xf]
      %v4027 = vld [vmem:[%s4012 + $0x38] sm:$0xf]
      %v4028 = vld [vmem:[%s4012 + $0x3c] sm:$0xf]
      %v4029 = vunpack.c.l.b16 %v3983
      %v4030 = vunpack.c.l.b16 %v3987
      %v4031 = vunpack.c.l.b16 %v3991
      %v4032 = vunpack.c.l.b16 %v3995
      %v4033 = vunpack.c.l.b16 %v3999
      %v4034 = vunpack.c.l.b16 %v4003
      %v4035 = vunpack.c.l.b16 %v4007
      %v4036 = vunpack.c.l.b16 %v4011
      %v4037 = vpack.c.b16 %v4030, %v4029
      %v4038 = vpack.c.b16 %v4032, %v4031
      %v4039 = vpack.c.b16 %v4034, %v4033
      %v4040 = vpack.c.b16 %v4036, %v4035
      %v4061 = vunpack.c.l.b16 %v4013
      %v4062 = vunpack.c.l.b16 %v4014
      %v4063 = vunpack.c.l.b16 %v4015
      %v4064 = vunpack.c.l.b16 %v4016
      %v4065 = vunpack.c.l.b16 %v4017
      %v4066 = vunpack.c.l.b16 %v4018
      %v4067 = vunpack.c.l.b16 %v4019
      %v4068 = vunpack.c.l.b16 %v4020
      %v4069 = vunpack.c.l.b16 %v4021
      %v4070 = vunpack.c.l.b16 %v4022
      %v4071 = vunpack.c.l.b16 %v4023
      %v4072 = vunpack.c.l.b16 %v4024
      %v4073 = vunpack.c.l.b16 %v4025
      %v4074 = vunpack.c.l.b16 %v4026
      %v4075 = vunpack.c.l.b16 %v4027
      %v4076 = vunpack.c.l.b16 %v4028
      %v4077 = vpack.c.b16 %v4062, %v4061
      %v4078 = vpack.c.b16 %v4064, %v4063
      %v4079 = vpack.c.b16 %v4066, %v4065
      %v4080 = vpack.c.b16 %v4068, %v4067
      %v4081 = vpack.c.b16 %v4070, %v4069
      %v4082 = vpack.c.b16 %v4072, %v4071
      %v4083 = vpack.c.b16 %v4074, %v4073
      %v4084 = vpack.c.b16 %v4076, %v4075
      %4093 = vmatprep.subr.bf16.mxu0 0
      %4094 = vmatpush1.bf16.msra.mxu0 %v4077
      %4095 = vmatprep.subr.bf16.mxu0 0
      %4096 = vmatpush1.bf16.msra.mxu0 %v4078
      %4097 = vmatprep.subr.bf16.mxu0 0
      %4098 = vmatpush1.bf16.msra.mxu0 %v4079
      %4099 = vmatprep.subr.bf16.mxu0 0
      %4100 = vmatpush1.bf16.msra.mxu0 %v4080
      %4101 = vmatprep.subr.bf16.mxu0 0
      %4102 = vmatpush1.bf16.msra.mxu0 %v4081
      %4103 = vmatprep.subr.bf16.mxu0 0
      %4104 = vmatpush1.bf16.msra.mxu0 %v4082
      %4105 = vmatprep.subr.bf16.mxu0 0
      %4106 = vmatpush1.bf16.msra.mxu0 %v4083
      %4107 = vmatprep.subr.bf16.mxu0 0
      %4108 = vmatpush1.bf16.msra.mxu0 %v4084
      %4109 = vmatprep.subr.bf16.mxu0 0
      %4110 = vmatpush1.bf16.msra.mxu0 0
      %4111 = vmatprep.subr.bf16.mxu0 0
      %4112 = vmatpush1.bf16.msra.mxu0 0
      %4113 = vmatprep.subr.bf16.mxu0 0
      %4114 = vmatpush1.bf16.msra.mxu0 0
      %4115 = vmatprep.subr.bf16.mxu0 0
      %4116 = vmatpush1.bf16.msra.mxu0 0
      %4117 = vmatprep.subr.bf16.mxu0 0
      %4118 = vmatpush1.bf16.msra.mxu0 0
      %4119 = vmatprep.subr.bf16.mxu0 0
      %4120 = vmatpush1.bf16.msra.mxu0 0
      %4121 = vmatprep.subr.bf16.mxu0 0
      %4122 = vmatpush1.bf16.msra.mxu0 0
      %4123 = vmatprep.subr.bf16.mxu0 0
      %4124 = vmatpush1.bf16.msra.mxu0 0
      %4125 = vmatprep.mubr.bf16.mxu0 0
      %4126 = vmatmul.mubr.bf16.gmra.mrb[0].mxu0 %v4037
      %v4127 = vpop.f32.mrb[0].mxu0
      %v4128 = vadd.f32 0.0, %v4127
      %v4129 = vpop.f32.mrb[0].mxu0
      %v4130 = vpop.f32.mrb[0].mxu0
      %v4131 = vadd.f32 0.0, %v4130
      %v4132 = vpop.f32.mrb[0].mxu0
      %4133 = vmatprep.mubr.bf16.mxu0 0
      %4134 = vmatmul.mubr.bf16.gmra.mrb[0].mxu0 %v4038
      %v4135 = vpop.f32.mrb[0].mxu0
      %v4136 = vadd.f32 0.0, %v4135
      %v4137 = vpop.f32.mrb[0].mxu0
      %v4138 = vpop.f32.mrb[0].mxu0
      %v4139 = vadd.f32 0.0, %v4138
      %v4140 = vpop.f32.mrb[0].mxu0
      %4141 = vmatprep.mubr.bf16.mxu0 0
      %4142 = vmatmul.mubr.bf16.gmra.mrb[0].mxu0 %v4039
      %v4143 = vpop.f32.mrb[0].mxu0
      %v4144 = vadd.f32 0.0, %v4143
      %v4145 = vpop.f32.mrb[0].mxu0
      %v4146 = vpop.f32.mrb[0].mxu0
      %v4147 = vadd.f32 0.0, %v4146
      %v4148 = vpop.f32.mrb[0].mxu0
      %4149 = vmatprep.mubr.bf16.mxu0 0
      %4150 = vmatmul.mubr.bf16.gmra.mrb[0].mxu0 %v4040
      %v4151 = vpop.f32.mrb[0].mxu0
      %v4152 = vadd.f32 0.0, %v4151
      %v4153 = vpop.f32.mrb[0].mxu0
      %v4154 = vpop.f32.mrb[0].mxu0
      %v4155 = vadd.f32 0.0, %v4154
      %v4156 = vpop.f32.mrb[0].mxu0
      %4157 = vdwg.mxu0
      %v4158 = vadd.f32 %v3948, %v4128
      %v4159 = vadd.f32 %v3949, %v4131
      %v4160 = vadd.f32 %v3950, %v4136
      %v4161 = vadd.f32 %v3951, %v4139
      %v4162 = vadd.f32 %v3952, %v4144
      %v4163 = vadd.f32 %v3953, %v4147
      %v4164 = vadd.f32 %v3954, %v4152
      %v4165 = vadd.f32 %v3955, %v4155
      %s4166 = sadd.s32 %s19, 2
      %s4167 = smul.u32 %s4166, 20
      %s4168 = smul.addr %s4167, 4
      %s4169 = scalar_lea.vmem %s183, %s4168
      %v4170 = vld [vmem:[%s4169] sm:$0xf]
      %v4171 = vld [vmem:[%s4169 + $0x8] sm:$0xf]
      %v4172 = vld [vmem:[%s4169 + $0x10] sm:$0xf]
      %v4173 = vld [vmem:[%s4169 + $0x18] sm:$0xf]
      %v4174 = vld [vmem:[%s4169 + $0x20] sm:$0xf]
      %v4175 = vld [vmem:[%s4169 + $0x28] sm:$0xf]
      %v4176 = vld [vmem:[%s4169 + $0x30] sm:$0xf]
      %v4177 = vld [vmem:[%s4169 + $0x38] sm:$0xf]
      %s4178 = scalar_lea.vmem %s1, 1152
      %v4179 = vld [vmem:[%s4178] sm:$0xf]
      %v4180 = vld [vmem:[%s4178 + $0x4] sm:$0xf]
      %v4181 = vld [vmem:[%s4178 + $0x8] sm:$0xf]
      %v4182 = vld [vmem:[%s4178 + $0xc] sm:$0xf]
      %v4183 = vld [vmem:[%s4178 + $0x10] sm:$0xf]
      %v4184 = vld [vmem:[%s4178 + $0x14] sm:$0xf]
      %v4185 = vld [vmem:[%s4178 + $0x18] sm:$0xf]
      %v4186 = vld [vmem:[%s4178 + $0x1c] sm:$0xf]
      %v4187 = vld [vmem:[%s4178 + $0x20] sm:$0xf]
      %v4188 = vld [vmem:[%s4178 + $0x24] sm:$0xf]
      %v4189 = vld [vmem:[%s4178 + $0x28] sm:$0xf]
      %v4190 = vld [vmem:[%s4178 + $0x2c] sm:$0xf]
      %v4191 = vld [vmem:[%s4178 + $0x30] sm:$0xf]
      %v4192 = vld [vmem:[%s4178 + $0x34] sm:$0xf]
      %v4193 = vld [vmem:[%s4178 + $0x38] sm:$0xf]
      %v4194 = vld [vmem:[%s4178 + $0x3c] sm:$0xf]
      %v4203 = vunpack.c.l.b16 %v4170
      %v4204 = vunpack.c.l.b16 %v4171
      %v4205 = vunpack.c.l.b16 %v4172
      %v4206 = vunpack.c.l.b16 %v4173
      %v4207 = vunpack.c.l.b16 %v4174
      %v4208 = vunpack.c.l.b16 %v4175
      %v4209 = vunpack.c.l.b16 %v4176
      %v4210 = vunpack.c.l.b16 %v4177
      %v4211 = vpack.c.b16 %v4204, %v4203
      %v4212 = vpack.c.b16 %v4206, %v4205
      %v4213 = vpack.c.b16 %v4208, %v4207
      %v4214 = vpack.c.b16 %v4210, %v4209
      %v4235 = vunpack.c.l.b16 %v4179
      %v4236 = vunpack.c.l.b16 %v4180
      %v4237 = vunpack.c.l.b16 %v4181
      %v4238 = vunpack.c.l.b16 %v4182
      %v4239 = vunpack.c.l.b16 %v4183
      %v4240 = vunpack.c.l.b16 %v4184
      %v4241 = vunpack.c.l.b16 %v4185
      %v4242 = vunpack.c.l.b16 %v4186
      %v4243 = vunpack.c.l.b16 %v4187
      %v4244 = vunpack.c.l.b16 %v4188
      %v4245 = vunpack.c.l.b16 %v4189
      %v4246 = vunpack.c.l.b16 %v4190
      %v4247 = vunpack.c.l.b16 %v4191
      %v4248 = vunpack.c.l.b16 %v4192
      %v4249 = vunpack.c.l.b16 %v4193
      %v4250 = vunpack.c.l.b16 %v4194
      %v4251 = vpack.c.b16 %v4236, %v4235
      %v4252 = vpack.c.b16 %v4238, %v4237
      %v4253 = vpack.c.b16 %v4240, %v4239
      %v4254 = vpack.c.b16 %v4242, %v4241
      %v4255 = vpack.c.b16 %v4244, %v4243
      %v4256 = vpack.c.b16 %v4246, %v4245
      %v4257 = vpack.c.b16 %v4248, %v4247
      %v4258 = vpack.c.b16 %v4250, %v4249
      %4267 = vmatprep.subr.bf16.mxu0 0
      %4268 = vmatpush1.bf16.msra.mxu0 %v4251
      %4269 = vmatprep.subr.bf16.mxu0 0
      %4270 = vmatpush1.bf16.msra.mxu0 %v4252
      %4271 = vmatprep.subr.bf16.mxu0 0
      %4272 = vmatpush1.bf16.msra.mxu0 %v4253
      %4273 = vmatprep.subr.bf16.mxu0 0
      %4274 = vmatpush1.bf16.msra.mxu0 %v4254
      %4275 = vmatprep.subr.bf16.mxu0 0
      %4276 = vmatpush1.bf16.msra.mxu0 %v4255
      %4277 = vmatprep.subr.bf16.mxu0 0
      %4278 = vmatpush1.bf16.msra.mxu0 %v4256
      %4279 = vmatprep.subr.bf16.mxu0 0
      %4280 = vmatpush1.bf16.msra.mxu0 %v4257
      %4281 = vmatprep.subr.bf16.mxu0 0
      %4282 = vmatpush1.bf16.msra.mxu0 %v4258
      %4283 = vmatprep.subr.bf16.mxu0 0
      %4284 = vmatpush1.bf16.msra.mxu0 0
      %4285 = vmatprep.subr.bf16.mxu0 0
      %4286 = vmatpush1.bf16.msra.mxu0 0
      %4287 = vmatprep.subr.bf16.mxu0 0
      %4288 = vmatpush1.bf16.msra.mxu0 0
      %4289 = vmatprep.subr.bf16.mxu0 0
      %4290 = vmatpush1.bf16.msra.mxu0 0
      %4291 = vmatprep.subr.bf16.mxu0 0
      %4292 = vmatpush1.bf16.msra.mxu0 0
      %4293 = vmatprep.subr.bf16.mxu0 0
      %4294 = vmatpush1.bf16.msra.mxu0 0
      %4295 = vmatprep.subr.bf16.mxu0 0
      %4296 = vmatpush1.bf16.msra.mxu0 0
      %4297 = vmatprep.subr.bf16.mxu0 0
      %4298 = vmatpush1.bf16.msra.mxu0 0
      %4299 = vmatprep.mubr.bf16.mxu0 0
      %4300 = vmatmul.mubr.bf16.gmra.mrb[0].mxu0 %v4211
      %v4301 = vpop.f32.mrb[0].mxu0
      %v4302 = vadd.f32 0.0, %v4301
      %v4303 = vpop.f32.mrb[0].mxu0
      %v4304 = vpop.f32.mrb[0].mxu0
      %v4305 = vadd.f32 0.0, %v4304
      %v4306 = vpop.f32.mrb[0].mxu0
      %4307 = vmatprep.mubr.bf16.mxu0 0
      %4308 = vmatmul.mubr.bf16.gmra.mrb[0].mxu0 %v4212
      %v4309 = vpop.f32.mrb[0].mxu0
      %v4310 = vadd.f32 0.0, %v4309
      %v4311 = vpop.f32.mrb[0].mxu0
      %v4312 = vpop.f32.mrb[0].mxu0
      %v4313 = vadd.f32 0.0, %v4312
      %v4314 = vpop.f32.mrb[0].mxu0
      %4315 = vmatprep.mubr.bf16.mxu0 0
      %4316 = vmatmul.mubr.bf16.gmra.mrb[0].mxu0 %v4213
      %v4317 = vpop.f32.mrb[0].mxu0
      %v4318 = vadd.f32 0.0, %v4317
      %v4319 = vpop.f32.mrb[0].mxu0
      %v4320 = vpop.f32.mrb[0].mxu0
      %v4321 = vadd.f32 0.0, %v4320
      %v4322 = vpop.f32.mrb[0].mxu0
      %4323 = vmatprep.mubr.bf16.mxu0 0
      %4324 = vmatmul.mubr.bf16.gmra.mrb[0].mxu0 %v4214
      %v4325 = vpop.f32.mrb[0].mxu0
      %v4326 = vadd.f32 0.0, %v4325
      %v4327 = vpop.f32.mrb[0].mxu0
      %v4328 = vpop.f32.mrb[0].mxu0
      %v4329 = vadd.f32 0.0, %v4328
      %v4330 = vpop.f32.mrb[0].mxu0
      %4331 = vdwg.mxu0
      %v4332 = vadd.f32 %v4158, %v4302
      %v4333 = vadd.f32 %v4159, %v4305
      %v4334 = vadd.f32 %v4160, %v4310
      %v4335 = vadd.f32 %v4161, %v4313
      %v4336 = vadd.f32 %v4162, %v4318
      %v4337 = vadd.f32 %v4163, %v4321
      %v4338 = vadd.f32 %v4164, %v4326
      %v4339 = vadd.f32 %v4165, %v4329
      %v4340 = vld [vmem:[%s4169] sm:$0xf]
      %v4341 = vld [vmem:[%s4169 + $0x4] sm:$0x1]
      %v4342 = vld [vmem:[%s4169 + $0x8] sm:$0xf]
      %v4343 = vld [vmem:[%s4169 + $0xc] sm:$0x1]
      %v4344 = vld [vmem:[%s4169 + $0x10] sm:$0xf]
      %v4345 = vld [vmem:[%s4169 + $0x14] sm:$0x1]
      %v4346 = vld [vmem:[%s4169 + $0x18] sm:$0xf]
      %v4347 = vld [vmem:[%s4169 + $0x1c] sm:$0x1]
      %v4348 = vld [vmem:[%s4169 + $0x20] sm:$0xf]
      %v4349 = vld [vmem:[%s4169 + $0x24] sm:$0x1]
      %v4350 = vld [vmem:[%s4169 + $0x28] sm:$0xf]
      %v4351 = vld [vmem:[%s4169 + $0x2c] sm:$0x1]
      %v4352 = vld [vmem:[%s4169 + $0x30] sm:$0xf]
      %v4353 = vld [vmem:[%s4169 + $0x34] sm:$0x1]
      %v4354 = vld [vmem:[%s4169 + $0x38] sm:$0xf]
      %v4355 = vld [vmem:[%s4169 + $0x3c] sm:$0x1]
      %v4357 = vshrl.u32 %v4340, 16
      %v4359 = vrot.slane %v4357, 4
      %v4360 = vshll.u32 %v4340, 16
      %v4362 = vrot.slane %v4360, 5
      %v4363 = vor.u32 %v4359, %v4362
      %v4364 = vrot.slane %v4363, 4
      %v4366 = vshll.u32 %v4341, 16
      %v4368 = vrot.slane %v4366, 5
      %v4369 = vsel %vm231, %v4364, %v4368
      %v4371 = vshrl.u32 %v4342, 16
      %v4373 = vrot.slane %v4371, 4
      %v4374 = vshll.u32 %v4342, 16
      %v4376 = vrot.slane %v4374, 5
      %v4377 = vor.u32 %v4373, %v4376
      %v4378 = vrot.slane %v4377, 4
      %v4380 = vshll.u32 %v4343, 16
      %v4382 = vrot.slane %v4380, 5
      %v4383 = vsel %vm231, %v4378, %v4382
      %v4385 = vshrl.u32 %v4344, 16
      %v4387 = vrot.slane %v4385, 4
      %v4388 = vshll.u32 %v4344, 16
      %v4390 = vrot.slane %v4388, 5
      %v4391 = vor.u32 %v4387, %v4390
      %v4392 = vrot.slane %v4391, 4
      %v4394 = vshll.u32 %v4345, 16
      %v4396 = vrot.slane %v4394, 5
      %v4397 = vsel %vm231, %v4392, %v4396
      %v4399 = vshrl.u32 %v4346, 16
      %v4401 = vrot.slane %v4399, 4
      %v4402 = vshll.u32 %v4346, 16
      %v4404 = vrot.slane %v4402, 5
      %v4405 = vor.u32 %v4401, %v4404
      %v4406 = vrot.slane %v4405, 4
      %v4408 = vshll.u32 %v4347, 16
      %v4410 = vrot.slane %v4408, 5
      %v4411 = vsel %vm231, %v4406, %v4410
      %v4413 = vshrl.u32 %v4348, 16
      %v4415 = vrot.slane %v4413, 4
      %v4416 = vshll.u32 %v4348, 16
      %v4418 = vrot.slane %v4416, 5
      %v4419 = vor.u32 %v4415, %v4418
      %v4420 = vrot.slane %v4419, 4
      %v4422 = vshll.u32 %v4349, 16
      %v4424 = vrot.slane %v4422, 5
      %v4425 = vsel %vm231, %v4420, %v4424
      %v4427 = vshrl.u32 %v4350, 16
      %v4429 = vrot.slane %v4427, 4
      %v4430 = vshll.u32 %v4350, 16
      %v4432 = vrot.slane %v4430, 5
      %v4433 = vor.u32 %v4429, %v4432
      %v4434 = vrot.slane %v4433, 4
      %v4436 = vshll.u32 %v4351, 16
      %v4438 = vrot.slane %v4436, 5
      %v4439 = vsel %vm231, %v4434, %v4438
      %v4441 = vshrl.u32 %v4352, 16
      %v4443 = vrot.slane %v4441, 4
      %v4444 = vshll.u32 %v4352, 16
      %v4446 = vrot.slane %v4444, 5
      %v4447 = vor.u32 %v4443, %v4446
      %v4448 = vrot.slane %v4447, 4
      %v4450 = vshll.u32 %v4353, 16
      %v4452 = vrot.slane %v4450, 5
      %v4453 = vsel %vm231, %v4448, %v4452
      %v4455 = vshrl.u32 %v4354, 16
      %v4457 = vrot.slane %v4455, 4
      %v4458 = vshll.u32 %v4354, 16
      %v4460 = vrot.slane %v4458, 5
      %v4461 = vor.u32 %v4457, %v4460
      %v4462 = vrot.slane %v4461, 4
      %v4464 = vshll.u32 %v4355, 16
      %v4466 = vrot.slane %v4464, 5
      %v4467 = vsel %vm231, %v4462, %v4466
      %s4468 = scalar_lea.vmem %s1, 1216
      %v4469 = vld [vmem:[%s4468] sm:$0xf]
      %v4470 = vld [vmem:[%s4468 + $0x4] sm:$0xf]
      %v4471 = vld [vmem:[%s4468 + $0x8] sm:$0xf]
      %v4472 = vld [vmem:[%s4468 + $0xc] sm:$0xf]
      %v4473 = vld [vmem:[%s4468 + $0x10] sm:$0xf]
      %v4474 = vld [vmem:[%s4468 + $0x14] sm:$0xf]
      %v4475 = vld [vmem:[%s4468 + $0x18] sm:$0xf]
      %v4476 = vld [vmem:[%s4468 + $0x1c] sm:$0xf]
      %v4477 = vld [vmem:[%s4468 + $0x20] sm:$0xf]
      %v4478 = vld [vmem:[%s4468 + $0x24] sm:$0xf]
      %v4479 = vld [vmem:[%s4468 + $0x28] sm:$0xf]
      %v4480 = vld [vmem:[%s4468 + $0x2c] sm:$0xf]
      %v4481 = vld [vmem:[%s4468 + $0x30] sm:$0xf]
      %v4482 = vld [vmem:[%s4468 + $0x34] sm:$0xf]
      %v4483 = vld [vmem:[%s4468 + $0x38] sm:$0xf]
      %v4484 = vld [vmem:[%s4468 + $0x3c] sm:$0xf]
      %v4485 = vunpack.c.l.b16 %v4369
      %v4486 = vunpack.c.l.b16 %v4383
      %v4487 = vunpack.c.l.b16 %v4397
      %v4488 = vunpack.c.l.b16 %v4411
      %v4489 = vunpack.c.l.b16 %v4425
      %v4490 = vunpack.c.l.b16 %v4439
      %v4491 = vunpack.c.l.b16 %v4453
      %v4492 = vunpack.c.l.b16 %v4467
      %v4493 = vpack.c.b16 %v4486, %v4485
      %v4494 = vpack.c.b16 %v4488, %v4487
      %v4495 = vpack.c.b16 %v4490, %v4489
      %v4496 = vpack.c.b16 %v4492, %v4491
      %v4517 = vunpack.c.l.b16 %v4469
      %v4518 = vunpack.c.l.b16 %v4470
      %v4519 = vunpack.c.l.b16 %v4471
      %v4520 = vunpack.c.l.b16 %v4472
      %v4521 = vunpack.c.l.b16 %v4473
      %v4522 = vunpack.c.l.b16 %v4474
      %v4523 = vunpack.c.l.b16 %v4475
      %v4524 = vunpack.c.l.b16 %v4476
      %v4525 = vunpack.c.l.b16 %v4477
      %v4526 = vunpack.c.l.b16 %v4478
      %v4527 = vunpack.c.l.b16 %v4479
      %v4528 = vunpack.c.l.b16 %v4480
      %v4529 = vunpack.c.l.b16 %v4481
      %v4530 = vunpack.c.l.b16 %v4482
      %v4531 = vunpack.c.l.b16 %v4483
      %v4532 = vunpack.c.l.b16 %v4484
      %v4533 = vpack.c.b16 %v4518, %v4517
      %v4534 = vpack.c.b16 %v4520, %v4519
      %v4535 = vpack.c.b16 %v4522, %v4521
      %v4536 = vpack.c.b16 %v4524, %v4523
      %v4537 = vpack.c.b16 %v4526, %v4525
      %v4538 = vpack.c.b16 %v4528, %v4527
      %v4539 = vpack.c.b16 %v4530, %v4529
      %v4540 = vpack.c.b16 %v4532, %v4531
      %4549 = vmatprep.subr.bf16.mxu0 0
      %4550 = vmatpush1.bf16.msra.mxu0 %v4533
      %4551 = vmatprep.subr.bf16.mxu0 0
      %4552 = vmatpush1.bf16.msra.mxu0 %v4534
      %4553 = vmatprep.subr.bf16.mxu0 0
      %4554 = vmatpush1.bf16.msra.mxu0 %v4535
      %4555 = vmatprep.subr.bf16.mxu0 0
      %4556 = vmatpush1.bf16.msra.mxu0 %v4536
      %4557 = vmatprep.subr.bf16.mxu0 0
      %4558 = vmatpush1.bf16.msra.mxu0 %v4537
      %4559 = vmatprep.subr.bf16.mxu0 0
      %4560 = vmatpush1.bf16.msra.mxu0 %v4538
      %4561 = vmatprep.subr.bf16.mxu0 0
      %4562 = vmatpush1.bf16.msra.mxu0 %v4539
      %4563 = vmatprep.subr.bf16.mxu0 0
      %4564 = vmatpush1.bf16.msra.mxu0 %v4540
      %4565 = vmatprep.subr.bf16.mxu0 0
      %4566 = vmatpush1.bf16.msra.mxu0 0
      %4567 = vmatprep.subr.bf16.mxu0 0
      %4568 = vmatpush1.bf16.msra.mxu0 0
      %4569 = vmatprep.subr.bf16.mxu0 0
      %4570 = vmatpush1.bf16.msra.mxu0 0
      %4571 = vmatprep.subr.bf16.mxu0 0
      %4572 = vmatpush1.bf16.msra.mxu0 0
      %4573 = vmatprep.subr.bf16.mxu0 0
      %4574 = vmatpush1.bf16.msra.mxu0 0
      %4575 = vmatprep.subr.bf16.mxu0 0
      %4576 = vmatpush1.bf16.msra.mxu0 0
      %4577 = vmatprep.subr.bf16.mxu0 0
      %4578 = vmatpush1.bf16.msra.mxu0 0
      %4579 = vmatprep.subr.bf16.mxu0 0
      %4580 = vmatpush1.bf16.msra.mxu0 0
      %4581 = vmatprep.mubr.bf16.mxu0 0
      %4582 = vmatmul.mubr.bf16.gmra.mrb[0].mxu0 %v4493
      %v4583 = vpop.f32.mrb[0].mxu0
      %v4584 = vadd.f32 0.0, %v4583
      %v4585 = vpop.f32.mrb[0].mxu0
      %v4586 = vpop.f32.mrb[0].mxu0
      %v4587 = vadd.f32 0.0, %v4586
      %v4588 = vpop.f32.mrb[0].mxu0
      %4589 = vmatprep.mubr.bf16.mxu0 0
      %4590 = vmatmul.mubr.bf16.gmra.mrb[0].mxu0 %v4494
      %v4591 = vpop.f32.mrb[0].mxu0
      %v4592 = vadd.f32 0.0, %v4591
      %v4593 = vpop.f32.mrb[0].mxu0
      %v4594 = vpop.f32.mrb[0].mxu0
      %v4595 = vadd.f32 0.0, %v4594
      %v4596 = vpop.f32.mrb[0].mxu0
      %4597 = vmatprep.mubr.bf16.mxu0 0
      %4598 = vmatmul.mubr.bf16.gmra.mrb[0].mxu0 %v4495
      %v4599 = vpop.f32.mrb[0].mxu0
      %v4600 = vadd.f32 0.0, %v4599
      %v4601 = vpop.f32.mrb[0].mxu0
      %v4602 = vpop.f32.mrb[0].mxu0
      %v4603 = vadd.f32 0.0, %v4602
      %v4604 = vpop.f32.mrb[0].mxu0
      %4605 = vmatprep.mubr.bf16.mxu0 0
      %4606 = vmatmul.mubr.bf16.gmra.mrb[0].mxu0 %v4496
      %v4607 = vpop.f32.mrb[0].mxu0
      %v4608 = vadd.f32 0.0, %v4607
      %v4609 = vpop.f32.mrb[0].mxu0
      %v4610 = vpop.f32.mrb[0].mxu0
      %v4611 = vadd.f32 0.0, %v4610
      %v4612 = vpop.f32.mrb[0].mxu0
      %4613 = vdwg.mxu0
      %v4614 = vadd.f32 %v4332, %v4584
      %v4615 = vadd.f32 %v4333, %v4587
      %v4616 = vadd.f32 %v4334, %v4592
      %v4617 = vadd.f32 %v4335, %v4595
      %v4618 = vadd.f32 %v4336, %v4600
      %v4619 = vadd.f32 %v4337, %v4603
      %v4620 = vadd.f32 %v4338, %v4608
      %v4621 = vadd.f32 %v4339, %v4611
      %v4622 = vld [vmem:[%s4169] sm:$0xe]
      %v4623 = vld [vmem:[%s4169 + $0x8] sm:$0xe]
      %v4624 = vld [vmem:[%s4169 + $0x10] sm:$0xe]
      %v4625 = vld [vmem:[%s4169 + $0x18] sm:$0xe]
      %v4626 = vld [vmem:[%s4169 + $0x20] sm:$0xe]
      %v4627 = vld [vmem:[%s4169 + $0x28] sm:$0xe]
      %v4628 = vld [vmem:[%s4169 + $0x30] sm:$0xe]
      %v4629 = vld [vmem:[%s4169 + $0x38] sm:$0xe]
      %v4646 = vrot.slane %v4622, 5
      %v4647 = vrot.slane %v4646, 4
      %v4648 = vrot.slane %v4341, 5
      %v4649 = vsel %vm653, %v4647, %v4648
      %v4650 = vrot.slane %v4623, 5
      %v4651 = vrot.slane %v4650, 4
      %v4652 = vrot.slane %v4343, 5
      %v4653 = vsel %vm653, %v4651, %v4652
      %v4654 = vrot.slane %v4624, 5
      %v4655 = vrot.slane %v4654, 4
      %v4656 = vrot.slane %v4345, 5
      %v4657 = vsel %vm653, %v4655, %v4656
      %v4658 = vrot.slane %v4625, 5
      %v4659 = vrot.slane %v4658, 4
      %v4660 = vrot.slane %v4347, 5
      %v4661 = vsel %vm653, %v4659, %v4660
      %v4662 = vrot.slane %v4626, 5
      %v4663 = vrot.slane %v4662, 4
      %v4664 = vrot.slane %v4349, 5
      %v4665 = vsel %vm653, %v4663, %v4664
      %v4666 = vrot.slane %v4627, 5
      %v4667 = vrot.slane %v4666, 4
      %v4668 = vrot.slane %v4351, 5
      %v4669 = vsel %vm653, %v4667, %v4668
      %v4670 = vrot.slane %v4628, 5
      %v4671 = vrot.slane %v4670, 4
      %v4672 = vrot.slane %v4353, 5
      %v4673 = vsel %vm653, %v4671, %v4672
      %v4674 = vrot.slane %v4629, 5
      %v4675 = vrot.slane %v4674, 4
      %v4676 = vrot.slane %v4355, 5
      %v4677 = vsel %vm653, %v4675, %v4676
      %s4678 = scalar_lea.vmem %s1, 1280
      %v4679 = vld [vmem:[%s4678] sm:$0xf]
      %v4680 = vld [vmem:[%s4678 + $0x4] sm:$0xf]
      %v4681 = vld [vmem:[%s4678 + $0x8] sm:$0xf]
      %v4682 = vld [vmem:[%s4678 + $0xc] sm:$0xf]
      %v4683 = vld [vmem:[%s4678 + $0x10] sm:$0xf]
      %v4684 = vld [vmem:[%s4678 + $0x14] sm:$0xf]
      %v4685 = vld [vmem:[%s4678 + $0x18] sm:$0xf]
      %v4686 = vld [vmem:[%s4678 + $0x1c] sm:$0xf]
      %v4687 = vld [vmem:[%s4678 + $0x20] sm:$0xf]
      %v4688 = vld [vmem:[%s4678 + $0x24] sm:$0xf]
      %v4689 = vld [vmem:[%s4678 + $0x28] sm:$0xf]
      %v4690 = vld [vmem:[%s4678 + $0x2c] sm:$0xf]
      %v4691 = vld [vmem:[%s4678 + $0x30] sm:$0xf]
      %v4692 = vld [vmem:[%s4678 + $0x34] sm:$0xf]
      %v4693 = vld [vmem:[%s4678 + $0x38] sm:$0xf]
      %v4694 = vld [vmem:[%s4678 + $0x3c] sm:$0xf]
      %v4695 = vunpack.c.l.b16 %v4649
      %v4696 = vunpack.c.l.b16 %v4653
      %v4697 = vunpack.c.l.b16 %v4657
      %v4698 = vunpack.c.l.b16 %v4661
      %v4699 = vunpack.c.l.b16 %v4665
      %v4700 = vunpack.c.l.b16 %v4669
      %v4701 = vunpack.c.l.b16 %v4673
      %v4702 = vunpack.c.l.b16 %v4677
      %v4703 = vpack.c.b16 %v4696, %v4695
      %v4704 = vpack.c.b16 %v4698, %v4697
      %v4705 = vpack.c.b16 %v4700, %v4699
      %v4706 = vpack.c.b16 %v4702, %v4701
      %v4727 = vunpack.c.l.b16 %v4679
      %v4728 = vunpack.c.l.b16 %v4680
      %v4729 = vunpack.c.l.b16 %v4681
      %v4730 = vunpack.c.l.b16 %v4682
      %v4731 = vunpack.c.l.b16 %v4683
      %v4732 = vunpack.c.l.b16 %v4684
      %v4733 = vunpack.c.l.b16 %v4685
      %v4734 = vunpack.c.l.b16 %v4686
      %v4735 = vunpack.c.l.b16 %v4687
      %v4736 = vunpack.c.l.b16 %v4688
      %v4737 = vunpack.c.l.b16 %v4689
      %v4738 = vunpack.c.l.b16 %v4690
      %v4739 = vunpack.c.l.b16 %v4691
      %v4740 = vunpack.c.l.b16 %v4692
      %v4741 = vunpack.c.l.b16 %v4693
      %v4742 = vunpack.c.l.b16 %v4694
      %v4743 = vpack.c.b16 %v4728, %v4727
      %v4744 = vpack.c.b16 %v4730, %v4729
      %v4745 = vpack.c.b16 %v4732, %v4731
      %v4746 = vpack.c.b16 %v4734, %v4733
      %v4747 = vpack.c.b16 %v4736, %v4735
      %v4748 = vpack.c.b16 %v4738, %v4737
      %v4749 = vpack.c.b16 %v4740, %v4739
      %v4750 = vpack.c.b16 %v4742, %v4741
      %4759 = vmatprep.subr.bf16.mxu0 0
      %4760 = vmatpush1.bf16.msra.mxu0 %v4743
      %4761 = vmatprep.subr.bf16.mxu0 0
      %4762 = vmatpush1.bf16.msra.mxu0 %v4744
      %4763 = vmatprep.subr.bf16.mxu0 0
      %4764 = vmatpush1.bf16.msra.mxu0 %v4745
      %4765 = vmatprep.subr.bf16.mxu0 0
      %4766 = vmatpush1.bf16.msra.mxu0 %v4746
      %4767 = vmatprep.subr.bf16.mxu0 0
      %4768 = vmatpush1.bf16.msra.mxu0 %v4747
      %4769 = vmatprep.subr.bf16.mxu0 0
      %4770 = vmatpush1.bf16.msra.mxu0 %v4748
      %4771 = vmatprep.subr.bf16.mxu0 0
      %4772 = vmatpush1.bf16.msra.mxu0 %v4749
      %4773 = vmatprep.subr.bf16.mxu0 0
      %4774 = vmatpush1.bf16.msra.mxu0 %v4750
      %4775 = vmatprep.subr.bf16.mxu0 0
      %4776 = vmatpush1.bf16.msra.mxu0 0
      %4777 = vmatprep.subr.bf16.mxu0 0
      %4778 = vmatpush1.bf16.msra.mxu0 0
      %4779 = vmatprep.subr.bf16.mxu0 0
      %4780 = vmatpush1.bf16.msra.mxu0 0
      %4781 = vmatprep.subr.bf16.mxu0 0
      %4782 = vmatpush1.bf16.msra.mxu0 0
      %4783 = vmatprep.subr.bf16.mxu0 0
      %4784 = vmatpush1.bf16.msra.mxu0 0
      %4785 = vmatprep.subr.bf16.mxu0 0
      %4786 = vmatpush1.bf16.msra.mxu0 0
      %4787 = vmatprep.subr.bf16.mxu0 0
      %4788 = vmatpush1.bf16.msra.mxu0 0
      %4789 = vmatprep.subr.bf16.mxu0 0
      %4790 = vmatpush1.bf16.msra.mxu0 0
      %4791 = vmatprep.mubr.bf16.mxu0 0
      %4792 = vmatmul.mubr.bf16.gmra.mrb[0].mxu0 %v4703
      %v4793 = vpop.f32.mrb[0].mxu0
      %v4794 = vadd.f32 0.0, %v4793
      %v4795 = vpop.f32.mrb[0].mxu0
      %v4796 = vpop.f32.mrb[0].mxu0
      %v4797 = vadd.f32 0.0, %v4796
      %v4798 = vpop.f32.mrb[0].mxu0
      %4799 = vmatprep.mubr.bf16.mxu0 0
      %4800 = vmatmul.mubr.bf16.gmra.mrb[0].mxu0 %v4704
      %v4801 = vpop.f32.mrb[0].mxu0
      %v4802 = vadd.f32 0.0, %v4801
      %v4803 = vpop.f32.mrb[0].mxu0
      %v4804 = vpop.f32.mrb[0].mxu0
      %v4805 = vadd.f32 0.0, %v4804
      %v4806 = vpop.f32.mrb[0].mxu0
      %4807 = vmatprep.mubr.bf16.mxu0 0
      %4808 = vmatmul.mubr.bf16.gmra.mrb[0].mxu0 %v4705
      %v4809 = vpop.f32.mrb[0].mxu0
      %v4810 = vadd.f32 0.0, %v4809
      %v4811 = vpop.f32.mrb[0].mxu0
      %v4812 = vpop.f32.mrb[0].mxu0
      %v4813 = vadd.f32 0.0, %v4812
      %v4814 = vpop.f32.mrb[0].mxu0
      %4815 = vmatprep.mubr.bf16.mxu0 0
      %4816 = vmatmul.mubr.bf16.gmra.mrb[0].mxu0 %v4706
      %v4817 = vpop.f32.mrb[0].mxu0
      %v4818 = vadd.f32 0.0, %v4817
      %v4819 = vpop.f32.mrb[0].mxu0
      %v4820 = vpop.f32.mrb[0].mxu0
      %v4821 = vadd.f32 0.0, %v4820
      %v4822 = vpop.f32.mrb[0].mxu0
      %4823 = vdwg.mxu0
      %v4824 = vadd.f32 %v4614, %v4794
      %v4825 = vadd.f32 %v4615, %v4797
      %v4826 = vadd.f32 %v4616, %v4802
      %v4827 = vadd.f32 %v4617, %v4805
      %v4828 = vadd.f32 %v4618, %v4810
      %v4829 = vadd.f32 %v4619, %v4813
      %v4830 = vadd.f32 %v4620, %v4818
      %v4831 = vadd.f32 %v4621, %v4821
      %s4832 = sadd.s32 2, %s4167
      %s4833 = smul.addr %s4832, 4
      %s4834 = scalar_lea.vmem %s183, %s4833
      %v4835 = vld [vmem:[%s4834] sm:$0xf]
      %v4836 = vld [vmem:[%s4834 + $0x8] sm:$0xf]
      %v4837 = vld [vmem:[%s4834 + $0x10] sm:$0xf]
      %v4838 = vld [vmem:[%s4834 + $0x18] sm:$0xf]
      %v4839 = vld [vmem:[%s4834 + $0x20] sm:$0xf]
      %v4840 = vld [vmem:[%s4834 + $0x28] sm:$0xf]
      %v4841 = vld [vmem:[%s4834 + $0x30] sm:$0xf]
      %v4842 = vld [vmem:[%s4834 + $0x38] sm:$0xf]
      %s4843 = scalar_lea.vmem %s1, 1344
      %v4844 = vld [vmem:[%s4843] sm:$0xf]
      %v4845 = vld [vmem:[%s4843 + $0x4] sm:$0xf]
      %v4846 = vld [vmem:[%s4843 + $0x8] sm:$0xf]
      %v4847 = vld [vmem:[%s4843 + $0xc] sm:$0xf]
      %v4848 = vld [vmem:[%s4843 + $0x10] sm:$0xf]
      %v4849 = vld [vmem:[%s4843 + $0x14] sm:$0xf]
      %v4850 = vld [vmem:[%s4843 + $0x18] sm:$0xf]
      %v4851 = vld [vmem:[%s4843 + $0x1c] sm:$0xf]
      %v4852 = vld [vmem:[%s4843 + $0x20] sm:$0xf]
      %v4853 = vld [vmem:[%s4843 + $0x24] sm:$0xf]
      %v4854 = vld [vmem:[%s4843 + $0x28] sm:$0xf]
      %v4855 = vld [vmem:[%s4843 + $0x2c] sm:$0xf]
      %v4856 = vld [vmem:[%s4843 + $0x30] sm:$0xf]
      %v4857 = vld [vmem:[%s4843 + $0x34] sm:$0xf]
      %v4858 = vld [vmem:[%s4843 + $0x38] sm:$0xf]
      %v4859 = vld [vmem:[%s4843 + $0x3c] sm:$0xf]
      %v4868 = vunpack.c.l.b16 %v4835
      %v4869 = vunpack.c.l.b16 %v4836
      %v4870 = vunpack.c.l.b16 %v4837
      %v4871 = vunpack.c.l.b16 %v4838
      %v4872 = vunpack.c.l.b16 %v4839
      %v4873 = vunpack.c.l.b16 %v4840
      %v4874 = vunpack.c.l.b16 %v4841
      %v4875 = vunpack.c.l.b16 %v4842
      %v4876 = vpack.c.b16 %v4869, %v4868
      %v4877 = vpack.c.b16 %v4871, %v4870
      %v4878 = vpack.c.b16 %v4873, %v4872
      %v4879 = vpack.c.b16 %v4875, %v4874
      %v4900 = vunpack.c.l.b16 %v4844
      %v4901 = vunpack.c.l.b16 %v4845
      %v4902 = vunpack.c.l.b16 %v4846
      %v4903 = vunpack.c.l.b16 %v4847
      %v4904 = vunpack.c.l.b16 %v4848
      %v4905 = vunpack.c.l.b16 %v4849
      %v4906 = vunpack.c.l.b16 %v4850
      %v4907 = vunpack.c.l.b16 %v4851
      %v4908 = vunpack.c.l.b16 %v4852
      %v4909 = vunpack.c.l.b16 %v4853
      %v4910 = vunpack.c.l.b16 %v4854
      %v4911 = vunpack.c.l.b16 %v4855
      %v4912 = vunpack.c.l.b16 %v4856
      %v4913 = vunpack.c.l.b16 %v4857
      %v4914 = vunpack.c.l.b16 %v4858
      %v4915 = vunpack.c.l.b16 %v4859
      %v4916 = vpack.c.b16 %v4901, %v4900
      %v4917 = vpack.c.b16 %v4903, %v4902
      %v4918 = vpack.c.b16 %v4905, %v4904
      %v4919 = vpack.c.b16 %v4907, %v4906
      %v4920 = vpack.c.b16 %v4909, %v4908
      %v4921 = vpack.c.b16 %v4911, %v4910
      %v4922 = vpack.c.b16 %v4913, %v4912
      %v4923 = vpack.c.b16 %v4915, %v4914
      %4932 = vmatprep.subr.bf16.mxu0 0
      %4933 = vmatpush1.bf16.msra.mxu0 %v4916
      %4934 = vmatprep.subr.bf16.mxu0 0
      %4935 = vmatpush1.bf16.msra.mxu0 %v4917
      %4936 = vmatprep.subr.bf16.mxu0 0
      %4937 = vmatpush1.bf16.msra.mxu0 %v4918
      %4938 = vmatprep.subr.bf16.mxu0 0
      %4939 = vmatpush1.bf16.msra.mxu0 %v4919
      %4940 = vmatprep.subr.bf16.mxu0 0
      %4941 = vmatpush1.bf16.msra.mxu0 %v4920
      %4942 = vmatprep.subr.bf16.mxu0 0
      %4943 = vmatpush1.bf16.msra.mxu0 %v4921
      %4944 = vmatprep.subr.bf16.mxu0 0
      %4945 = vmatpush1.bf16.msra.mxu0 %v4922
      %4946 = vmatprep.subr.bf16.mxu0 0
      %4947 = vmatpush1.bf16.msra.mxu0 %v4923
      %4948 = vmatprep.subr.bf16.mxu0 0
      %4949 = vmatpush1.bf16.msra.mxu0 0
      %4950 = vmatprep.subr.bf16.mxu0 0
      %4951 = vmatpush1.bf16.msra.mxu0 0
      %4952 = vmatprep.subr.bf16.mxu0 0
      %4953 = vmatpush1.bf16.msra.mxu0 0
      %4954 = vmatprep.subr.bf16.mxu0 0
      %4955 = vmatpush1.bf16.msra.mxu0 0
      %4956 = vmatprep.subr.bf16.mxu0 0
      %4957 = vmatpush1.bf16.msra.mxu0 0
      %4958 = vmatprep.subr.bf16.mxu0 0
      %4959 = vmatpush1.bf16.msra.mxu0 0
      %4960 = vmatprep.subr.bf16.mxu0 0
      %4961 = vmatpush1.bf16.msra.mxu0 0
      %4962 = vmatprep.subr.bf16.mxu0 0
      %4963 = vmatpush1.bf16.msra.mxu0 0
      %4964 = vmatprep.mubr.bf16.mxu0 0
      %4965 = vmatmul.mubr.bf16.gmra.mrb[0].mxu0 %v4876
      %v4966 = vpop.f32.mrb[0].mxu0
      %v4967 = vadd.f32 0.0, %v4966
      %v4968 = vpop.f32.mrb[0].mxu0
      %v4969 = vpop.f32.mrb[0].mxu0
      %v4970 = vadd.f32 0.0, %v4969
      %v4971 = vpop.f32.mrb[0].mxu0
      %4972 = vmatprep.mubr.bf16.mxu0 0
      %4973 = vmatmul.mubr.bf16.gmra.mrb[0].mxu0 %v4877
      %v4974 = vpop.f32.mrb[0].mxu0
      %v4975 = vadd.f32 0.0, %v4974
      %v4976 = vpop.f32.mrb[0].mxu0
      %v4977 = vpop.f32.mrb[0].mxu0
      %v4978 = vadd.f32 0.0, %v4977
      %v4979 = vpop.f32.mrb[0].mxu0
      %4980 = vmatprep.mubr.bf16.mxu0 0
      %4981 = vmatmul.mubr.bf16.gmra.mrb[0].mxu0 %v4878
      %v4982 = vpop.f32.mrb[0].mxu0
      %v4983 = vadd.f32 0.0, %v4982
      %v4984 = vpop.f32.mrb[0].mxu0
      %v4985 = vpop.f32.mrb[0].mxu0
      %v4986 = vadd.f32 0.0, %v4985
      %v4987 = vpop.f32.mrb[0].mxu0
      %4988 = vmatprep.mubr.bf16.mxu0 0
      %4989 = vmatmul.mubr.bf16.gmra.mrb[0].mxu0 %v4879
      %v4990 = vpop.f32.mrb[0].mxu0
      %v4991 = vadd.f32 0.0, %v4990
      %v4992 = vpop.f32.mrb[0].mxu0
      %v4993 = vpop.f32.mrb[0].mxu0
      %v4994 = vadd.f32 0.0, %v4993
      %v4995 = vpop.f32.mrb[0].mxu0
      %4996 = vdwg.mxu0
      %v4997 = vadd.f32 %v4824, %v4967
      %v4998 = vadd.f32 %v4825, %v4970
      %v4999 = vadd.f32 %v4826, %v4975
      %v5000 = vadd.f32 %v4827, %v4978
      %v5001 = vadd.f32 %v4828, %v4983
      %v5002 = vadd.f32 %v4829, %v4986
      %v5003 = vadd.f32 %v4830, %v4991
      %v5004 = vadd.f32 %v4831, %v4994
      %v5005 = vld [vmem:[%s4834] sm:$0xf]
      %v5006 = vld [vmem:[%s4834 + $0x4] sm:$0x1]
      %v5007 = vld [vmem:[%s4834 + $0x8] sm:$0xf]
      %v5008 = vld [vmem:[%s4834 + $0xc] sm:$0x1]
      %v5009 = vld [vmem:[%s4834 + $0x10] sm:$0xf]
      %v5010 = vld [vmem:[%s4834 + $0x14] sm:$0x1]
      %v5011 = vld [vmem:[%s4834 + $0x18] sm:$0xf]
      %v5012 = vld [vmem:[%s4834 + $0x1c] sm:$0x1]
      %v5013 = vld [vmem:[%s4834 + $0x20] sm:$0xf]
      %v5014 = vld [vmem:[%s4834 + $0x24] sm:$0x1]
      %v5015 = vld [vmem:[%s4834 + $0x28] sm:$0xf]
      %v5016 = vld [vmem:[%s4834 + $0x2c] sm:$0x1]
      %v5017 = vld [vmem:[%s4834 + $0x30] sm:$0xf]
      %v5018 = vld [vmem:[%s4834 + $0x34] sm:$0x1]
      %v5019 = vld [vmem:[%s4834 + $0x38] sm:$0xf]
      %v5020 = vld [vmem:[%s4834 + $0x3c] sm:$0x1]
      %v5022 = vshrl.u32 %v5005, 16
      %v5024 = vrot.slane %v5022, 4
      %v5025 = vshll.u32 %v5005, 16
      %v5027 = vrot.slane %v5025, 5
      %v5028 = vor.u32 %v5024, %v5027
      %v5029 = vrot.slane %v5028, 4
      %v5031 = vshll.u32 %v5006, 16
      %v5033 = vrot.slane %v5031, 5
      %v5034 = vsel %vm231, %v5029, %v5033
      %v5036 = vshrl.u32 %v5007, 16
      %v5038 = vrot.slane %v5036, 4
      %v5039 = vshll.u32 %v5007, 16
      %v5041 = vrot.slane %v5039, 5
      %v5042 = vor.u32 %v5038, %v5041
      %v5043 = vrot.slane %v5042, 4
      %v5045 = vshll.u32 %v5008, 16
      %v5047 = vrot.slane %v5045, 5
      %v5048 = vsel %vm231, %v5043, %v5047
      %v5050 = vshrl.u32 %v5009, 16
      %v5052 = vrot.slane %v5050, 4
      %v5053 = vshll.u32 %v5009, 16
      %v5055 = vrot.slane %v5053, 5
      %v5056 = vor.u32 %v5052, %v5055
      %v5057 = vrot.slane %v5056, 4
      %v5059 = vshll.u32 %v5010, 16
      %v5061 = vrot.slane %v5059, 5
      %v5062 = vsel %vm231, %v5057, %v5061
      %v5064 = vshrl.u32 %v5011, 16
      %v5066 = vrot.slane %v5064, 4
      %v5067 = vshll.u32 %v5011, 16
      %v5069 = vrot.slane %v5067, 5
      %v5070 = vor.u32 %v5066, %v5069
      %v5071 = vrot.slane %v5070, 4
      %v5073 = vshll.u32 %v5012, 16
      %v5075 = vrot.slane %v5073, 5
      %v5076 = vsel %vm231, %v5071, %v5075
      %v5078 = vshrl.u32 %v5013, 16
      %v5080 = vrot.slane %v5078, 4
      %v5081 = vshll.u32 %v5013, 16
      %v5083 = vrot.slane %v5081, 5
      %v5084 = vor.u32 %v5080, %v5083
      %v5085 = vrot.slane %v5084, 4
      %v5087 = vshll.u32 %v5014, 16
      %v5089 = vrot.slane %v5087, 5
      %v5090 = vsel %vm231, %v5085, %v5089
      %v5092 = vshrl.u32 %v5015, 16
      %v5094 = vrot.slane %v5092, 4
      %v5095 = vshll.u32 %v5015, 16
      %v5097 = vrot.slane %v5095, 5
      %v5098 = vor.u32 %v5094, %v5097
      %v5099 = vrot.slane %v5098, 4
      %v5101 = vshll.u32 %v5016, 16
      %v5103 = vrot.slane %v5101, 5
      %v5104 = vsel %vm231, %v5099, %v5103
      %v5106 = vshrl.u32 %v5017, 16
      %v5108 = vrot.slane %v5106, 4
      %v5109 = vshll.u32 %v5017, 16
      %v5111 = vrot.slane %v5109, 5
      %v5112 = vor.u32 %v5108, %v5111
      %v5113 = vrot.slane %v5112, 4
      %v5115 = vshll.u32 %v5018, 16
      %v5117 = vrot.slane %v5115, 5
      %v5118 = vsel %vm231, %v5113, %v5117
      %v5120 = vshrl.u32 %v5019, 16
      %v5122 = vrot.slane %v5120, 4
      %v5123 = vshll.u32 %v5019, 16
      %v5125 = vrot.slane %v5123, 5
      %v5126 = vor.u32 %v5122, %v5125
      %v5127 = vrot.slane %v5126, 4
      %v5129 = vshll.u32 %v5020, 16
      %v5131 = vrot.slane %v5129, 5
      %v5132 = vsel %vm231, %v5127, %v5131
      %s5133 = scalar_lea.vmem %s1, 1408
      %v5134 = vld [vmem:[%s5133] sm:$0xf]
      %v5135 = vld [vmem:[%s5133 + $0x4] sm:$0xf]
      %v5136 = vld [vmem:[%s5133 + $0x8] sm:$0xf]
      %v5137 = vld [vmem:[%s5133 + $0xc] sm:$0xf]
      %v5138 = vld [vmem:[%s5133 + $0x10] sm:$0xf]
      %v5139 = vld [vmem:[%s5133 + $0x14] sm:$0xf]
      %v5140 = vld [vmem:[%s5133 + $0x18] sm:$0xf]
      %v5141 = vld [vmem:[%s5133 + $0x1c] sm:$0xf]
      %v5142 = vld [vmem:[%s5133 + $0x20] sm:$0xf]
      %v5143 = vld [vmem:[%s5133 + $0x24] sm:$0xf]
      %v5144 = vld [vmem:[%s5133 + $0x28] sm:$0xf]
      %v5145 = vld [vmem:[%s5133 + $0x2c] sm:$0xf]
      %v5146 = vld [vmem:[%s5133 + $0x30] sm:$0xf]
      %v5147 = vld [vmem:[%s5133 + $0x34] sm:$0xf]
      %v5148 = vld [vmem:[%s5133 + $0x38] sm:$0xf]
      %v5149 = vld [vmem:[%s5133 + $0x3c] sm:$0xf]
      %v5150 = vunpack.c.l.b16 %v5034
      %v5151 = vunpack.c.l.b16 %v5048
      %v5152 = vunpack.c.l.b16 %v5062
      %v5153 = vunpack.c.l.b16 %v5076
      %v5154 = vunpack.c.l.b16 %v5090
      %v5155 = vunpack.c.l.b16 %v5104
      %v5156 = vunpack.c.l.b16 %v5118
      %v5157 = vunpack.c.l.b16 %v5132
      %v5158 = vpack.c.b16 %v5151, %v5150
      %v5159 = vpack.c.b16 %v5153, %v5152
      %v5160 = vpack.c.b16 %v5155, %v5154
      %v5161 = vpack.c.b16 %v5157, %v5156
      %v5182 = vunpack.c.l.b16 %v5134
      %v5183 = vunpack.c.l.b16 %v5135
      %v5184 = vunpack.c.l.b16 %v5136
      %v5185 = vunpack.c.l.b16 %v5137
      %v5186 = vunpack.c.l.b16 %v5138
      %v5187 = vunpack.c.l.b16 %v5139
      %v5188 = vunpack.c.l.b16 %v5140
      %v5189 = vunpack.c.l.b16 %v5141
      %v5190 = vunpack.c.l.b16 %v5142
      %v5191 = vunpack.c.l.b16 %v5143
      %v5192 = vunpack.c.l.b16 %v5144
      %v5193 = vunpack.c.l.b16 %v5145
      %v5194 = vunpack.c.l.b16 %v5146
      %v5195 = vunpack.c.l.b16 %v5147
      %v5196 = vunpack.c.l.b16 %v5148
      %v5197 = vunpack.c.l.b16 %v5149
      %v5198 = vpack.c.b16 %v5183, %v5182
      %v5199 = vpack.c.b16 %v5185, %v5184
      %v5200 = vpack.c.b16 %v5187, %v5186
      %v5201 = vpack.c.b16 %v5189, %v5188
      %v5202 = vpack.c.b16 %v5191, %v5190
      %v5203 = vpack.c.b16 %v5193, %v5192
      %v5204 = vpack.c.b16 %v5195, %v5194
      %v5205 = vpack.c.b16 %v5197, %v5196
      %5214 = vmatprep.subr.bf16.mxu0 0
      %5215 = vmatpush1.bf16.msra.mxu0 %v5198
      %5216 = vmatprep.subr.bf16.mxu0 0
      %5217 = vmatpush1.bf16.msra.mxu0 %v5199
      %5218 = vmatprep.subr.bf16.mxu0 0
      %5219 = vmatpush1.bf16.msra.mxu0 %v5200
      %5220 = vmatprep.subr.bf16.mxu0 0
      %5221 = vmatpush1.bf16.msra.mxu0 %v5201
      %5222 = vmatprep.subr.bf16.mxu0 0
      %5223 = vmatpush1.bf16.msra.mxu0 %v5202
      %5224 = vmatprep.subr.bf16.mxu0 0
      %5225 = vmatpush1.bf16.msra.mxu0 %v5203
      %5226 = vmatprep.subr.bf16.mxu0 0
      %5227 = vmatpush1.bf16.msra.mxu0 %v5204
      %5228 = vmatprep.subr.bf16.mxu0 0
      %5229 = vmatpush1.bf16.msra.mxu0 %v5205
      %5230 = vmatprep.subr.bf16.mxu0 0
      %5231 = vmatpush1.bf16.msra.mxu0 0
      %5232 = vmatprep.subr.bf16.mxu0 0
      %5233 = vmatpush1.bf16.msra.mxu0 0
      %5234 = vmatprep.subr.bf16.mxu0 0
      %5235 = vmatpush1.bf16.msra.mxu0 0
      %5236 = vmatprep.subr.bf16.mxu0 0
      %5237 = vmatpush1.bf16.msra.mxu0 0
      %5238 = vmatprep.subr.bf16.mxu0 0
      %5239 = vmatpush1.bf16.msra.mxu0 0
      %5240 = vmatprep.subr.bf16.mxu0 0
      %5241 = vmatpush1.bf16.msra.mxu0 0
      %5242 = vmatprep.subr.bf16.mxu0 0
      %5243 = vmatpush1.bf16.msra.mxu0 0
      %5244 = vmatprep.subr.bf16.mxu0 0
      %5245 = vmatpush1.bf16.msra.mxu0 0
      %5246 = vmatprep.mubr.bf16.mxu0 0
      %5247 = vmatmul.mubr.bf16.gmra.mrb[0].mxu0 %v5158
      %v5248 = vpop.f32.mrb[0].mxu0
      %v5249 = vadd.f32 0.0, %v5248
      %v5250 = vpop.f32.mrb[0].mxu0
      %v5251 = vpop.f32.mrb[0].mxu0
      %v5252 = vadd.f32 0.0, %v5251
      %v5253 = vpop.f32.mrb[0].mxu0
      %5254 = vmatprep.mubr.bf16.mxu0 0
      %5255 = vmatmul.mubr.bf16.gmra.mrb[0].mxu0 %v5159
      %v5256 = vpop.f32.mrb[0].mxu0
      %v5257 = vadd.f32 0.0, %v5256
      %v5258 = vpop.f32.mrb[0].mxu0
      %v5259 = vpop.f32.mrb[0].mxu0
      %v5260 = vadd.f32 0.0, %v5259
      %v5261 = vpop.f32.mrb[0].mxu0
      %5262 = vmatprep.mubr.bf16.mxu0 0
      %5263 = vmatmul.mubr.bf16.gmra.mrb[0].mxu0 %v5160
      %v5264 = vpop.f32.mrb[0].mxu0
      %v5265 = vadd.f32 0.0, %v5264
      %v5266 = vpop.f32.mrb[0].mxu0
      %v5267 = vpop.f32.mrb[0].mxu0
      %v5268 = vadd.f32 0.0, %v5267
      %v5269 = vpop.f32.mrb[0].mxu0
      %5270 = vmatprep.mubr.bf16.mxu0 0
      %5271 = vmatmul.mubr.bf16.gmra.mrb[0].mxu0 %v5161
      %v5272 = vpop.f32.mrb[0].mxu0
      %v5273 = vadd.f32 0.0, %v5272
      %v5274 = vpop.f32.mrb[0].mxu0
      %v5275 = vpop.f32.mrb[0].mxu0
      %v5276 = vadd.f32 0.0, %v5275
      %v5277 = vpop.f32.mrb[0].mxu0
      %5278 = vdwg.mxu0
      %v5279 = vadd.f32 %v4997, %v5249
      %v5280 = vadd.f32 %v4998, %v5252
      %v5281 = vadd.f32 %v4999, %v5257
      %v5282 = vadd.f32 %v5000, %v5260
      %v5283 = vadd.f32 %v5001, %v5265
      %v5284 = vadd.f32 %v5002, %v5268
      %v5285 = vadd.f32 %v5003, %v5273
      %v5286 = vadd.f32 %v5004, %v5276
      %v5287 = vld [vmem:[%s4834] sm:$0xe]
      %v5288 = vld [vmem:[%s4834 + $0x8] sm:$0xe]
      %v5289 = vld [vmem:[%s4834 + $0x10] sm:$0xe]
      %v5290 = vld [vmem:[%s4834 + $0x18] sm:$0xe]
      %v5291 = vld [vmem:[%s4834 + $0x20] sm:$0xe]
      %v5292 = vld [vmem:[%s4834 + $0x28] sm:$0xe]
      %v5293 = vld [vmem:[%s4834 + $0x30] sm:$0xe]
      %v5294 = vld [vmem:[%s4834 + $0x38] sm:$0xe]
      %v5311 = vrot.slane %v5287, 5
      %v5312 = vrot.slane %v5311, 4
      %v5313 = vrot.slane %v5006, 5
      %v5314 = vsel %vm653, %v5312, %v5313
      %v5315 = vrot.slane %v5288, 5
      %v5316 = vrot.slane %v5315, 4
      %v5317 = vrot.slane %v5008, 5
      %v5318 = vsel %vm653, %v5316, %v5317
      %v5319 = vrot.slane %v5289, 5
      %v5320 = vrot.slane %v5319, 4
      %v5321 = vrot.slane %v5010, 5
      %v5322 = vsel %vm653, %v5320, %v5321
      %v5323 = vrot.slane %v5290, 5
      %v5324 = vrot.slane %v5323, 4
      %v5325 = vrot.slane %v5012, 5
      %v5326 = vsel %vm653, %v5324, %v5325
      %v5327 = vrot.slane %v5291, 5
      %v5328 = vrot.slane %v5327, 4
      %v5329 = vrot.slane %v5014, 5
      %v5330 = vsel %vm653, %v5328, %v5329
      %v5331 = vrot.slane %v5292, 5
      %v5332 = vrot.slane %v5331, 4
      %v5333 = vrot.slane %v5016, 5
      %v5334 = vsel %vm653, %v5332, %v5333
      %v5335 = vrot.slane %v5293, 5
      %v5336 = vrot.slane %v5335, 4
      %v5337 = vrot.slane %v5018, 5
      %v5338 = vsel %vm653, %v5336, %v5337
      %v5339 = vrot.slane %v5294, 5
      %v5340 = vrot.slane %v5339, 4
      %v5341 = vrot.slane %v5020, 5
      %v5342 = vsel %vm653, %v5340, %v5341
      %s5343 = scalar_lea.vmem %s1, 1472
      %v5344 = vld [vmem:[%s5343] sm:$0xf]
      %v5345 = vld [vmem:[%s5343 + $0x4] sm:$0xf]
      %v5346 = vld [vmem:[%s5343 + $0x8] sm:$0xf]
      %v5347 = vld [vmem:[%s5343 + $0xc] sm:$0xf]
      %v5348 = vld [vmem:[%s5343 + $0x10] sm:$0xf]
      %v5349 = vld [vmem:[%s5343 + $0x14] sm:$0xf]
      %v5350 = vld [vmem:[%s5343 + $0x18] sm:$0xf]
      %v5351 = vld [vmem:[%s5343 + $0x1c] sm:$0xf]
      %v5352 = vld [vmem:[%s5343 + $0x20] sm:$0xf]
      %v5353 = vld [vmem:[%s5343 + $0x24] sm:$0xf]
      %v5354 = vld [vmem:[%s5343 + $0x28] sm:$0xf]
      %v5355 = vld [vmem:[%s5343 + $0x2c] sm:$0xf]
      %v5356 = vld [vmem:[%s5343 + $0x30] sm:$0xf]
      %v5357 = vld [vmem:[%s5343 + $0x34] sm:$0xf]
      %v5358 = vld [vmem:[%s5343 + $0x38] sm:$0xf]
      %v5359 = vld [vmem:[%s5343 + $0x3c] sm:$0xf]
      %v5360 = vunpack.c.l.b16 %v5314
      %v5361 = vunpack.c.l.b16 %v5318
      %v5362 = vunpack.c.l.b16 %v5322
      %v5363 = vunpack.c.l.b16 %v5326
      %v5364 = vunpack.c.l.b16 %v5330
      %v5365 = vunpack.c.l.b16 %v5334
      %v5366 = vunpack.c.l.b16 %v5338
      %v5367 = vunpack.c.l.b16 %v5342
      %v5368 = vpack.c.b16 %v5361, %v5360
      %v5369 = vpack.c.b16 %v5363, %v5362
      %v5370 = vpack.c.b16 %v5365, %v5364
      %v5371 = vpack.c.b16 %v5367, %v5366
      %v5392 = vunpack.c.l.b16 %v5344
      %v5393 = vunpack.c.l.b16 %v5345
      %v5394 = vunpack.c.l.b16 %v5346
      %v5395 = vunpack.c.l.b16 %v5347
      %v5396 = vunpack.c.l.b16 %v5348
      %v5397 = vunpack.c.l.b16 %v5349
      %v5398 = vunpack.c.l.b16 %v5350
      %v5399 = vunpack.c.l.b16 %v5351
      %v5400 = vunpack.c.l.b16 %v5352
      %v5401 = vunpack.c.l.b16 %v5353
      %v5402 = vunpack.c.l.b16 %v5354
      %v5403 = vunpack.c.l.b16 %v5355
      %v5404 = vunpack.c.l.b16 %v5356
      %v5405 = vunpack.c.l.b16 %v5357
      %v5406 = vunpack.c.l.b16 %v5358
      %v5407 = vunpack.c.l.b16 %v5359
      %v5408 = vpack.c.b16 %v5393, %v5392
      %v5409 = vpack.c.b16 %v5395, %v5394
      %v5410 = vpack.c.b16 %v5397, %v5396
      %v5411 = vpack.c.b16 %v5399, %v5398
      %v5412 = vpack.c.b16 %v5401, %v5400
      %v5413 = vpack.c.b16 %v5403, %v5402
      %v5414 = vpack.c.b16 %v5405, %v5404
      %v5415 = vpack.c.b16 %v5407, %v5406
      %5424 = vmatprep.subr.bf16.mxu0 0
      %5425 = vmatpush1.bf16.msra.mxu0 %v5408
      %5426 = vmatprep.subr.bf16.mxu0 0
      %5427 = vmatpush1.bf16.msra.mxu0 %v5409
      %5428 = vmatprep.subr.bf16.mxu0 0
      %5429 = vmatpush1.bf16.msra.mxu0 %v5410
      %5430 = vmatprep.subr.bf16.mxu0 0
      %5431 = vmatpush1.bf16.msra.mxu0 %v5411
      %5432 = vmatprep.subr.bf16.mxu0 0
      %5433 = vmatpush1.bf16.msra.mxu0 %v5412
      %5434 = vmatprep.subr.bf16.mxu0 0
      %5435 = vmatpush1.bf16.msra.mxu0 %v5413
      %5436 = vmatprep.subr.bf16.mxu0 0
      %5437 = vmatpush1.bf16.msra.mxu0 %v5414
      %5438 = vmatprep.subr.bf16.mxu0 0
      %5439 = vmatpush1.bf16.msra.mxu0 %v5415
      %5440 = vmatprep.subr.bf16.mxu0 0
      %5441 = vmatpush1.bf16.msra.mxu0 0
      %5442 = vmatprep.subr.bf16.mxu0 0
      %5443 = vmatpush1.bf16.msra.mxu0 0
      %5444 = vmatprep.subr.bf16.mxu0 0
      %5445 = vmatpush1.bf16.msra.mxu0 0
      %5446 = vmatprep.subr.bf16.mxu0 0
      %5447 = vmatpush1.bf16.msra.mxu0 0
      %5448 = vmatprep.subr.bf16.mxu0 0
      %5449 = vmatpush1.bf16.msra.mxu0 0
      %5450 = vmatprep.subr.bf16.mxu0 0
      %5451 = vmatpush1.bf16.msra.mxu0 0
      %5452 = vmatprep.subr.bf16.mxu0 0
      %5453 = vmatpush1.bf16.msra.mxu0 0
      %5454 = vmatprep.subr.bf16.mxu0 0
      %5455 = vmatpush1.bf16.msra.mxu0 0
      %5456 = vmatprep.mubr.bf16.mxu0 0
      %5457 = vmatmul.mubr.bf16.gmra.mrb[0].mxu0 %v5368
      %v5458 = vpop.f32.mrb[0].mxu0
      %v5459 = vadd.f32 0.0, %v5458
      %v5460 = vpop.f32.mrb[0].mxu0
      %v5461 = vpop.f32.mrb[0].mxu0
      %v5462 = vadd.f32 0.0, %v5461
      %v5463 = vpop.f32.mrb[0].mxu0
      %5464 = vmatprep.mubr.bf16.mxu0 0
      %5465 = vmatmul.mubr.bf16.gmra.mrb[0].mxu0 %v5369
      %v5466 = vpop.f32.mrb[0].mxu0
      %v5467 = vadd.f32 0.0, %v5466
      %v5468 = vpop.f32.mrb[0].mxu0
      %v5469 = vpop.f32.mrb[0].mxu0
      %v5470 = vadd.f32 0.0, %v5469
      %v5471 = vpop.f32.mrb[0].mxu0
      %5472 = vmatprep.mubr.bf16.mxu0 0
      %5473 = vmatmul.mubr.bf16.gmra.mrb[0].mxu0 %v5370
      %v5474 = vpop.f32.mrb[0].mxu0
      %v5475 = vadd.f32 0.0, %v5474
      %v5476 = vpop.f32.mrb[0].mxu0
      %v5477 = vpop.f32.mrb[0].mxu0
      %v5478 = vadd.f32 0.0, %v5477
      %v5479 = vpop.f32.mrb[0].mxu0
      %5480 = vmatprep.mubr.bf16.mxu0 0
      %5481 = vmatmul.mubr.bf16.gmra.mrb[0].mxu0 %v5371
      %v5482 = vpop.f32.mrb[0].mxu0
      %v5483 = vadd.f32 0.0, %v5482
      %v5484 = vpop.f32.mrb[0].mxu0
      %v5485 = vpop.f32.mrb[0].mxu0
      %v5486 = vadd.f32 0.0, %v5485
      %v5487 = vpop.f32.mrb[0].mxu0
      %5488 = vdwg.mxu0
      %v5489 = vadd.f32 %v5279, %v5459
      %v5490 = vadd.f32 %v5280, %v5462
      %v5491 = vadd.f32 %v5281, %v5467
      %v5492 = vadd.f32 %v5282, %v5470
      %v5493 = vadd.f32 %v5283, %v5475
      %v5494 = vadd.f32 %v5284, %v5478
      %v5495 = vadd.f32 %v5285, %v5483
      %v5496 = vadd.f32 %v5286, %v5486
      %s5497 = sadd.s32 4, %s4167
      %s5498 = smul.addr %s5497, 4
      %s5499 = scalar_lea.vmem %s183, %s5498
      %v5500 = vld [vmem:[%s5499] sm:$0xf]
      %v5501 = vld [vmem:[%s5499 + $0x8] sm:$0xf]
      %v5502 = vld [vmem:[%s5499 + $0x10] sm:$0xf]
      %v5503 = vld [vmem:[%s5499 + $0x18] sm:$0xf]
      %v5504 = vld [vmem:[%s5499 + $0x20] sm:$0xf]
      %v5505 = vld [vmem:[%s5499 + $0x28] sm:$0xf]
      %v5506 = vld [vmem:[%s5499 + $0x30] sm:$0xf]
      %v5507 = vld [vmem:[%s5499 + $0x38] sm:$0xf]
      %s5508 = scalar_lea.vmem %s1, 1536
      %v5509 = vld [vmem:[%s5508] sm:$0xf]
      %v5510 = vld [vmem:[%s5508 + $0x4] sm:$0xf]
      %v5511 = vld [vmem:[%s5508 + $0x8] sm:$0xf]
      %v5512 = vld [vmem:[%s5508 + $0xc] sm:$0xf]
      %v5513 = vld [vmem:[%s5508 + $0x10] sm:$0xf]
      %v5514 = vld [vmem:[%s5508 + $0x14] sm:$0xf]
      %v5515 = vld [vmem:[%s5508 + $0x18] sm:$0xf]
      %v5516 = vld [vmem:[%s5508 + $0x1c] sm:$0xf]
      %v5517 = vld [vmem:[%s5508 + $0x20] sm:$0xf]
      %v5518 = vld [vmem:[%s5508 + $0x24] sm:$0xf]
      %v5519 = vld [vmem:[%s5508 + $0x28] sm:$0xf]
      %v5520 = vld [vmem:[%s5508 + $0x2c] sm:$0xf]
      %v5521 = vld [vmem:[%s5508 + $0x30] sm:$0xf]
      %v5522 = vld [vmem:[%s5508 + $0x34] sm:$0xf]
      %v5523 = vld [vmem:[%s5508 + $0x38] sm:$0xf]
      %v5524 = vld [vmem:[%s5508 + $0x3c] sm:$0xf]
      %v5533 = vunpack.c.l.b16 %v5500
      %v5534 = vunpack.c.l.b16 %v5501
      %v5535 = vunpack.c.l.b16 %v5502
      %v5536 = vunpack.c.l.b16 %v5503
      %v5537 = vunpack.c.l.b16 %v5504
      %v5538 = vunpack.c.l.b16 %v5505
      %v5539 = vunpack.c.l.b16 %v5506
      %v5540 = vunpack.c.l.b16 %v5507
      %v5541 = vpack.c.b16 %v5534, %v5533
      %v5542 = vpack.c.b16 %v5536, %v5535
      %v5543 = vpack.c.b16 %v5538, %v5537
      %v5544 = vpack.c.b16 %v5540, %v5539
      %v5565 = vunpack.c.l.b16 %v5509
      %v5566 = vunpack.c.l.b16 %v5510
      %v5567 = vunpack.c.l.b16 %v5511
      %v5568 = vunpack.c.l.b16 %v5512
      %v5569 = vunpack.c.l.b16 %v5513
      %v5570 = vunpack.c.l.b16 %v5514
      %v5571 = vunpack.c.l.b16 %v5515
      %v5572 = vunpack.c.l.b16 %v5516
      %v5573 = vunpack.c.l.b16 %v5517
      %v5574 = vunpack.c.l.b16 %v5518
      %v5575 = vunpack.c.l.b16 %v5519
      %v5576 = vunpack.c.l.b16 %v5520
      %v5577 = vunpack.c.l.b16 %v5521
      %v5578 = vunpack.c.l.b16 %v5522
      %v5579 = vunpack.c.l.b16 %v5523
      %v5580 = vunpack.c.l.b16 %v5524
      %v5581 = vpack.c.b16 %v5566, %v5565
      %v5582 = vpack.c.b16 %v5568, %v5567
      %v5583 = vpack.c.b16 %v5570, %v5569
      %v5584 = vpack.c.b16 %v5572, %v5571
      %v5585 = vpack.c.b16 %v5574, %v5573
      %v5586 = vpack.c.b16 %v5576, %v5575
      %v5587 = vpack.c.b16 %v5578, %v5577
      %v5588 = vpack.c.b16 %v5580, %v5579
      %5597 = vmatprep.subr.bf16.mxu0 0
      %5598 = vmatpush1.bf16.msra.mxu0 %v5581
      %5599 = vmatprep.subr.bf16.mxu0 0
      %5600 = vmatpush1.bf16.msra.mxu0 %v5582
      %5601 = vmatprep.subr.bf16.mxu0 0
      %5602 = vmatpush1.bf16.msra.mxu0 %v5583
      %5603 = vmatprep.subr.bf16.mxu0 0
      %5604 = vmatpush1.bf16.msra.mxu0 %v5584
      %5605 = vmatprep.subr.bf16.mxu0 0
      %5606 = vmatpush1.bf16.msra.mxu0 %v5585
      %5607 = vmatprep.subr.bf16.mxu0 0
      %5608 = vmatpush1.bf16.msra.mxu0 %v5586
      %5609 = vmatprep.subr.bf16.mxu0 0
      %5610 = vmatpush1.bf16.msra.mxu0 %v5587
      %5611 = vmatprep.subr.bf16.mxu0 0
      %5612 = vmatpush1.bf16.msra.mxu0 %v5588
      %5613 = vmatprep.subr.bf16.mxu0 0
      %5614 = vmatpush1.bf16.msra.mxu0 0
      %5615 = vmatprep.subr.bf16.mxu0 0
      %5616 = vmatpush1.bf16.msra.mxu0 0
      %5617 = vmatprep.subr.bf16.mxu0 0
      %5618 = vmatpush1.bf16.msra.mxu0 0
      %5619 = vmatprep.subr.bf16.mxu0 0
      %5620 = vmatpush1.bf16.msra.mxu0 0
      %5621 = vmatprep.subr.bf16.mxu0 0
      %5622 = vmatpush1.bf16.msra.mxu0 0
      %5623 = vmatprep.subr.bf16.mxu0 0
      %5624 = vmatpush1.bf16.msra.mxu0 0
      %5625 = vmatprep.subr.bf16.mxu0 0
      %5626 = vmatpush1.bf16.msra.mxu0 0
      %5627 = vmatprep.subr.bf16.mxu0 0
      %5628 = vmatpush1.bf16.msra.mxu0 0
      %5629 = vmatprep.mubr.bf16.mxu0 0
      %5630 = vmatmul.mubr.bf16.gmra.mrb[0].mxu0 %v5541
      %v5631 = vpop.f32.mrb[0].mxu0
      %v5632 = vadd.f32 0.0, %v5631
      %v5633 = vpop.f32.mrb[0].mxu0
      %v5634 = vpop.f32.mrb[0].mxu0
      %v5635 = vadd.f32 0.0, %v5634
      %v5636 = vpop.f32.mrb[0].mxu0
      %5637 = vmatprep.mubr.bf16.mxu0 0
      %5638 = vmatmul.mubr.bf16.gmra.mrb[0].mxu0 %v5542
      %v5639 = vpop.f32.mrb[0].mxu0
      %v5640 = vadd.f32 0.0, %v5639
      %v5641 = vpop.f32.mrb[0].mxu0
      %v5642 = vpop.f32.mrb[0].mxu0
      %v5643 = vadd.f32 0.0, %v5642
      %v5644 = vpop.f32.mrb[0].mxu0
      %5645 = vmatprep.mubr.bf16.mxu0 0
      %5646 = vmatmul.mubr.bf16.gmra.mrb[0].mxu0 %v5543
      %v5647 = vpop.f32.mrb[0].mxu0
      %v5648 = vadd.f32 0.0, %v5647
      %v5649 = vpop.f32.mrb[0].mxu0
      %v5650 = vpop.f32.mrb[0].mxu0
      %v5651 = vadd.f32 0.0, %v5650
      %v5652 = vpop.f32.mrb[0].mxu0
      %5653 = vmatprep.mubr.bf16.mxu0 0
      %5654 = vmatmul.mubr.bf16.gmra.mrb[0].mxu0 %v5544
      %v5655 = vpop.f32.mrb[0].mxu0
      %v5656 = vadd.f32 0.0, %v5655
      %v5657 = vpop.f32.mrb[0].mxu0
      %v5658 = vpop.f32.mrb[0].mxu0
      %v5659 = vadd.f32 0.0, %v5658
      %v5660 = vpop.f32.mrb[0].mxu0
      %5661 = vdwg.mxu0
      %v5662 = vadd.f32 %v5489, %v5632
      %v5663 = vadd.f32 %v5490, %v5635
      %v5664 = vadd.f32 %v5491, %v5640
      %v5665 = vadd.f32 %v5492, %v5643
      %v5666 = vadd.f32 %v5493, %v5648
      %v5667 = vadd.f32 %v5494, %v5651
      %v5668 = vadd.f32 %v5495, %v5656
      %v5669 = vadd.f32 %v5496, %v5659
      %v5670 = vld [vmem:[%s5499] sm:$0xf]
      %v5671 = vld [vmem:[%s5499 + $0x4] sm:$0x1]
      %v5672 = vld [vmem:[%s5499 + $0x8] sm:$0xf]
      %v5673 = vld [vmem:[%s5499 + $0xc] sm:$0x1]
      %v5674 = vld [vmem:[%s5499 + $0x10] sm:$0xf]
      %v5675 = vld [vmem:[%s5499 + $0x14] sm:$0x1]
      %v5676 = vld [vmem:[%s5499 + $0x18] sm:$0xf]
      %v5677 = vld [vmem:[%s5499 + $0x1c] sm:$0x1]
      %v5678 = vld [vmem:[%s5499 + $0x20] sm:$0xf]
      %v5679 = vld [vmem:[%s5499 + $0x24] sm:$0x1]
      %v5680 = vld [vmem:[%s5499 + $0x28] sm:$0xf]
      %v5681 = vld [vmem:[%s5499 + $0x2c] sm:$0x1]
      %v5682 = vld [vmem:[%s5499 + $0x30] sm:$0xf]
      %v5683 = vld [vmem:[%s5499 + $0x34] sm:$0x1]
      %v5684 = vld [vmem:[%s5499 + $0x38] sm:$0xf]
      %v5685 = vld [vmem:[%s5499 + $0x3c] sm:$0x1]
      %v5687 = vshrl.u32 %v5670, 16
      %v5689 = vrot.slane %v5687, 4
      %v5690 = vshll.u32 %v5670, 16
      %v5692 = vrot.slane %v5690, 5
      %v5693 = vor.u32 %v5689, %v5692
      %v5694 = vrot.slane %v5693, 4
      %v5696 = vshll.u32 %v5671, 16
      %v5698 = vrot.slane %v5696, 5
      %v5699 = vsel %vm231, %v5694, %v5698
      %v5701 = vshrl.u32 %v5672, 16
      %v5703 = vrot.slane %v5701, 4
      %v5704 = vshll.u32 %v5672, 16
      %v5706 = vrot.slane %v5704, 5
      %v5707 = vor.u32 %v5703, %v5706
      %v5708 = vrot.slane %v5707, 4
      %v5710 = vshll.u32 %v5673, 16
      %v5712 = vrot.slane %v5710, 5
      %v5713 = vsel %vm231, %v5708, %v5712
      %v5715 = vshrl.u32 %v5674, 16
      %v5717 = vrot.slane %v5715, 4
      %v5718 = vshll.u32 %v5674, 16
      %v5720 = vrot.slane %v5718, 5
      %v5721 = vor.u32 %v5717, %v5720
      %v5722 = vrot.slane %v5721, 4
      %v5724 = vshll.u32 %v5675, 16
      %v5726 = vrot.slane %v5724, 5
      %v5727 = vsel %vm231, %v5722, %v5726
      %v5729 = vshrl.u32 %v5676, 16
      %v5731 = vrot.slane %v5729, 4
      %v5732 = vshll.u32 %v5676, 16
      %v5734 = vrot.slane %v5732, 5
      %v5735 = vor.u32 %v5731, %v5734
      %v5736 = vrot.slane %v5735, 4
      %v5738 = vshll.u32 %v5677, 16
      %v5740 = vrot.slane %v5738, 5
      %v5741 = vsel %vm231, %v5736, %v5740
      %v5743 = vshrl.u32 %v5678, 16
      %v5745 = vrot.slane %v5743, 4
      %v5746 = vshll.u32 %v5678, 16
      %v5748 = vrot.slane %v5746, 5
      %v5749 = vor.u32 %v5745, %v5748
      %v5750 = vrot.slane %v5749, 4
      %v5752 = vshll.u32 %v5679, 16
      %v5754 = vrot.slane %v5752, 5
      %v5755 = vsel %vm231, %v5750, %v5754
      %v5757 = vshrl.u32 %v5680, 16
      %v5759 = vrot.slane %v5757, 4
      %v5760 = vshll.u32 %v5680, 16
      %v5762 = vrot.slane %v5760, 5
      %v5763 = vor.u32 %v5759, %v5762
      %v5764 = vrot.slane %v5763, 4
      %v5766 = vshll.u32 %v5681, 16
      %v5768 = vrot.slane %v5766, 5
      %v5769 = vsel %vm231, %v5764, %v5768
      %v5771 = vshrl.u32 %v5682, 16
      %v5773 = vrot.slane %v5771, 4
      %v5774 = vshll.u32 %v5682, 16
      %v5776 = vrot.slane %v5774, 5
      %v5777 = vor.u32 %v5773, %v5776
      %v5778 = vrot.slane %v5777, 4
      %v5780 = vshll.u32 %v5683, 16
      %v5782 = vrot.slane %v5780, 5
      %v5783 = vsel %vm231, %v5778, %v5782
      %v5785 = vshrl.u32 %v5684, 16
      %v5787 = vrot.slane %v5785, 4
      %v5788 = vshll.u32 %v5684, 16
      %v5790 = vrot.slane %v5788, 5
      %v5791 = vor.u32 %v5787, %v5790
      %v5792 = vrot.slane %v5791, 4
      %v5794 = vshll.u32 %v5685, 16
      %v5796 = vrot.slane %v5794, 5
      %v5797 = vsel %vm231, %v5792, %v5796
      %s5798 = scalar_lea.vmem %s1, 1600
      %v5799 = vld [vmem:[%s5798] sm:$0xf]
      %v5800 = vld [vmem:[%s5798 + $0x4] sm:$0xf]
      %v5801 = vld [vmem:[%s5798 + $0x8] sm:$0xf]
      %v5802 = vld [vmem:[%s5798 + $0xc] sm:$0xf]
      %v5803 = vld [vmem:[%s5798 + $0x10] sm:$0xf]
      %v5804 = vld [vmem:[%s5798 + $0x14] sm:$0xf]
      %v5805 = vld [vmem:[%s5798 + $0x18] sm:$0xf]
      %v5806 = vld [vmem:[%s5798 + $0x1c] sm:$0xf]
      %v5807 = vld [vmem:[%s5798 + $0x20] sm:$0xf]
      %v5808 = vld [vmem:[%s5798 + $0x24] sm:$0xf]
      %v5809 = vld [vmem:[%s5798 + $0x28] sm:$0xf]
      %v5810 = vld [vmem:[%s5798 + $0x2c] sm:$0xf]
      %v5811 = vld [vmem:[%s5798 + $0x30] sm:$0xf]
      %v5812 = vld [vmem:[%s5798 + $0x34] sm:$0xf]
      %v5813 = vld [vmem:[%s5798 + $0x38] sm:$0xf]
      %v5814 = vld [vmem:[%s5798 + $0x3c] sm:$0xf]
      %v5815 = vunpack.c.l.b16 %v5699
      %v5816 = vunpack.c.l.b16 %v5713
      %v5817 = vunpack.c.l.b16 %v5727
      %v5818 = vunpack.c.l.b16 %v5741
      %v5819 = vunpack.c.l.b16 %v5755
      %v5820 = vunpack.c.l.b16 %v5769
      %v5821 = vunpack.c.l.b16 %v5783
      %v5822 = vunpack.c.l.b16 %v5797
      %v5823 = vpack.c.b16 %v5816, %v5815
      %v5824 = vpack.c.b16 %v5818, %v5817
      %v5825 = vpack.c.b16 %v5820, %v5819
      %v5826 = vpack.c.b16 %v5822, %v5821
      %v5847 = vunpack.c.l.b16 %v5799
      %v5848 = vunpack.c.l.b16 %v5800
      %v5849 = vunpack.c.l.b16 %v5801
      %v5850 = vunpack.c.l.b16 %v5802
      %v5851 = vunpack.c.l.b16 %v5803
      %v5852 = vunpack.c.l.b16 %v5804
      %v5853 = vunpack.c.l.b16 %v5805
      %v5854 = vunpack.c.l.b16 %v5806
      %v5855 = vunpack.c.l.b16 %v5807
      %v5856 = vunpack.c.l.b16 %v5808
      %v5857 = vunpack.c.l.b16 %v5809
      %v5858 = vunpack.c.l.b16 %v5810
      %v5859 = vunpack.c.l.b16 %v5811
      %v5860 = vunpack.c.l.b16 %v5812
      %v5861 = vunpack.c.l.b16 %v5813
      %v5862 = vunpack.c.l.b16 %v5814
      %v5863 = vpack.c.b16 %v5848, %v5847
      %v5864 = vpack.c.b16 %v5850, %v5849
      %v5865 = vpack.c.b16 %v5852, %v5851
      %v5866 = vpack.c.b16 %v5854, %v5853
      %v5867 = vpack.c.b16 %v5856, %v5855
      %v5868 = vpack.c.b16 %v5858, %v5857
      %v5869 = vpack.c.b16 %v5860, %v5859
      %v5870 = vpack.c.b16 %v5862, %v5861
      %5879 = vmatprep.subr.bf16.mxu0 0
      %5880 = vmatpush1.bf16.msra.mxu0 %v5863
      %5881 = vmatprep.subr.bf16.mxu0 0
      %5882 = vmatpush1.bf16.msra.mxu0 %v5864
      %5883 = vmatprep.subr.bf16.mxu0 0
      %5884 = vmatpush1.bf16.msra.mxu0 %v5865
      %5885 = vmatprep.subr.bf16.mxu0 0
      %5886 = vmatpush1.bf16.msra.mxu0 %v5866
      %5887 = vmatprep.subr.bf16.mxu0 0
      %5888 = vmatpush1.bf16.msra.mxu0 %v5867
      %5889 = vmatprep.subr.bf16.mxu0 0
      %5890 = vmatpush1.bf16.msra.mxu0 %v5868
      %5891 = vmatprep.subr.bf16.mxu0 0
      %5892 = vmatpush1.bf16.msra.mxu0 %v5869
      %5893 = vmatprep.subr.bf16.mxu0 0
      %5894 = vmatpush1.bf16.msra.mxu0 %v5870
      %5895 = vmatprep.subr.bf16.mxu0 0
      %5896 = vmatpush1.bf16.msra.mxu0 0
      %5897 = vmatprep.subr.bf16.mxu0 0
      %5898 = vmatpush1.bf16.msra.mxu0 0
      %5899 = vmatprep.subr.bf16.mxu0 0
      %5900 = vmatpush1.bf16.msra.mxu0 0
      %5901 = vmatprep.subr.bf16.mxu0 0
      %5902 = vmatpush1.bf16.msra.mxu0 0
      %5903 = vmatprep.subr.bf16.mxu0 0
      %5904 = vmatpush1.bf16.msra.mxu0 0
      %5905 = vmatprep.subr.bf16.mxu0 0
      %5906 = vmatpush1.bf16.msra.mxu0 0
      %5907 = vmatprep.subr.bf16.mxu0 0
      %5908 = vmatpush1.bf16.msra.mxu0 0
      %5909 = vmatprep.subr.bf16.mxu0 0
      %5910 = vmatpush1.bf16.msra.mxu0 0
      %5911 = vmatprep.mubr.bf16.mxu0 0
      %5912 = vmatmul.mubr.bf16.gmra.mrb[0].mxu0 %v5823
      %v5913 = vpop.f32.mrb[0].mxu0
      %v5914 = vadd.f32 0.0, %v5913
      %v5915 = vpop.f32.mrb[0].mxu0
      %v5916 = vpop.f32.mrb[0].mxu0
      %v5917 = vadd.f32 0.0, %v5916
      %v5918 = vpop.f32.mrb[0].mxu0
      %5919 = vmatprep.mubr.bf16.mxu0 0
      %5920 = vmatmul.mubr.bf16.gmra.mrb[0].mxu0 %v5824
      %v5921 = vpop.f32.mrb[0].mxu0
      %v5922 = vadd.f32 0.0, %v5921
      %v5923 = vpop.f32.mrb[0].mxu0
      %v5924 = vpop.f32.mrb[0].mxu0
      %v5925 = vadd.f32 0.0, %v5924
      %v5926 = vpop.f32.mrb[0].mxu0
      %5927 = vmatprep.mubr.bf16.mxu0 0
      %5928 = vmatmul.mubr.bf16.gmra.mrb[0].mxu0 %v5825
      %v5929 = vpop.f32.mrb[0].mxu0
      %v5930 = vadd.f32 0.0, %v5929
      %v5931 = vpop.f32.mrb[0].mxu0
      %v5932 = vpop.f32.mrb[0].mxu0
      %v5933 = vadd.f32 0.0, %v5932
      %v5934 = vpop.f32.mrb[0].mxu0
      %5935 = vmatprep.mubr.bf16.mxu0 0
      %5936 = vmatmul.mubr.bf16.gmra.mrb[0].mxu0 %v5826
      %v5937 = vpop.f32.mrb[0].mxu0
      %v5938 = vadd.f32 0.0, %v5937
      %v5939 = vpop.f32.mrb[0].mxu0
      %v5940 = vpop.f32.mrb[0].mxu0
      %v5941 = vadd.f32 0.0, %v5940
      %v5942 = vpop.f32.mrb[0].mxu0
      %5943 = vdwg.mxu0
      %v5944 = vadd.f32 %v5662, %v5914
      %v5945 = vadd.f32 %v5663, %v5917
      %v5946 = vadd.f32 %v5664, %v5922
      %v5947 = vadd.f32 %v5665, %v5925
      %v5948 = vadd.f32 %v5666, %v5930
      %v5949 = vadd.f32 %v5667, %v5933
      %v5950 = vadd.f32 %v5668, %v5938
      %v5951 = vadd.f32 %v5669, %v5941
      %v5952 = vld [vmem:[%s5499] sm:$0xe]
      %v5953 = vld [vmem:[%s5499 + $0x8] sm:$0xe]
      %v5954 = vld [vmem:[%s5499 + $0x10] sm:$0xe]
      %v5955 = vld [vmem:[%s5499 + $0x18] sm:$0xe]
      %v5956 = vld [vmem:[%s5499 + $0x20] sm:$0xe]
      %v5957 = vld [vmem:[%s5499 + $0x28] sm:$0xe]
      %v5958 = vld [vmem:[%s5499 + $0x30] sm:$0xe]
      %v5959 = vld [vmem:[%s5499 + $0x38] sm:$0xe]
      %v5976 = vrot.slane %v5952, 5
      %v5977 = vrot.slane %v5976, 4
      %v5978 = vrot.slane %v5671, 5
      %v5979 = vsel %vm653, %v5977, %v5978
      %v5980 = vrot.slane %v5953, 5
      %v5981 = vrot.slane %v5980, 4
      %v5982 = vrot.slane %v5673, 5
      %v5983 = vsel %vm653, %v5981, %v5982
      %v5984 = vrot.slane %v5954, 5
      %v5985 = vrot.slane %v5984, 4
      %v5986 = vrot.slane %v5675, 5
      %v5987 = vsel %vm653, %v5985, %v5986
      %v5988 = vrot.slane %v5955, 5
      %v5989 = vrot.slane %v5988, 4
      %v5990 = vrot.slane %v5677, 5
      %v5991 = vsel %vm653, %v5989, %v5990
      %v5992 = vrot.slane %v5956, 5
      %v5993 = vrot.slane %v5992, 4
      %v5994 = vrot.slane %v5679, 5
      %v5995 = vsel %vm653, %v5993, %v5994
      %v5996 = vrot.slane %v5957, 5
      %v5997 = vrot.slane %v5996, 4
      %v5998 = vrot.slane %v5681, 5
      %v5999 = vsel %vm653, %v5997, %v5998
      %v6000 = vrot.slane %v5958, 5
      %v6001 = vrot.slane %v6000, 4
      %v6002 = vrot.slane %v5683, 5
      %v6003 = vsel %vm653, %v6001, %v6002
      %v6004 = vrot.slane %v5959, 5
      %v6005 = vrot.slane %v6004, 4
      %v6006 = vrot.slane %v5685, 5
      %v6007 = vsel %vm653, %v6005, %v6006
      %s6008 = scalar_lea.vmem %s1, 1664
      %v6009 = vld [vmem:[%s6008] sm:$0xf]
      %v6010 = vld [vmem:[%s6008 + $0x4] sm:$0xf]
      %v6011 = vld [vmem:[%s6008 + $0x8] sm:$0xf]
      %v6012 = vld [vmem:[%s6008 + $0xc] sm:$0xf]
      %v6013 = vld [vmem:[%s6008 + $0x10] sm:$0xf]
      %v6014 = vld [vmem:[%s6008 + $0x14] sm:$0xf]
      %v6015 = vld [vmem:[%s6008 + $0x18] sm:$0xf]
      %v6016 = vld [vmem:[%s6008 + $0x1c] sm:$0xf]
      %v6017 = vld [vmem:[%s6008 + $0x20] sm:$0xf]
      %v6018 = vld [vmem:[%s6008 + $0x24] sm:$0xf]
      %v6019 = vld [vmem:[%s6008 + $0x28] sm:$0xf]
      %v6020 = vld [vmem:[%s6008 + $0x2c] sm:$0xf]
      %v6021 = vld [vmem:[%s6008 + $0x30] sm:$0xf]
      %v6022 = vld [vmem:[%s6008 + $0x34] sm:$0xf]
      %v6023 = vld [vmem:[%s6008 + $0x38] sm:$0xf]
      %v6024 = vld [vmem:[%s6008 + $0x3c] sm:$0xf]
      %v6025 = vunpack.c.l.b16 %v5979
      %v6026 = vunpack.c.l.b16 %v5983
      %v6027 = vunpack.c.l.b16 %v5987
      %v6028 = vunpack.c.l.b16 %v5991
      %v6029 = vunpack.c.l.b16 %v5995
      %v6030 = vunpack.c.l.b16 %v5999
      %v6031 = vunpack.c.l.b16 %v6003
      %v6032 = vunpack.c.l.b16 %v6007
      %v6033 = vpack.c.b16 %v6026, %v6025
      %v6034 = vpack.c.b16 %v6028, %v6027
      %v6035 = vpack.c.b16 %v6030, %v6029
      %v6036 = vpack.c.b16 %v6032, %v6031
      %v6057 = vunpack.c.l.b16 %v6009
      %v6058 = vunpack.c.l.b16 %v6010
      %v6059 = vunpack.c.l.b16 %v6011
      %v6060 = vunpack.c.l.b16 %v6012
      %v6061 = vunpack.c.l.b16 %v6013
      %v6062 = vunpack.c.l.b16 %v6014
      %v6063 = vunpack.c.l.b16 %v6015
      %v6064 = vunpack.c.l.b16 %v6016
      %v6065 = vunpack.c.l.b16 %v6017
      %v6066 = vunpack.c.l.b16 %v6018
      %v6067 = vunpack.c.l.b16 %v6019
      %v6068 = vunpack.c.l.b16 %v6020
      %v6069 = vunpack.c.l.b16 %v6021
      %v6070 = vunpack.c.l.b16 %v6022
      %v6071 = vunpack.c.l.b16 %v6023
      %v6072 = vunpack.c.l.b16 %v6024
      %v6073 = vpack.c.b16 %v6058, %v6057
      %v6074 = vpack.c.b16 %v6060, %v6059
      %v6075 = vpack.c.b16 %v6062, %v6061
      %v6076 = vpack.c.b16 %v6064, %v6063
      %v6077 = vpack.c.b16 %v6066, %v6065
      %v6078 = vpack.c.b16 %v6068, %v6067
      %v6079 = vpack.c.b16 %v6070, %v6069
      %v6080 = vpack.c.b16 %v6072, %v6071
      %6089 = vmatprep.subr.bf16.mxu0 0
      %6090 = vmatpush1.bf16.msra.mxu0 %v6073
      %6091 = vmatprep.subr.bf16.mxu0 0
      %6092 = vmatpush1.bf16.msra.mxu0 %v6074
      %6093 = vmatprep.subr.bf16.mxu0 0
      %6094 = vmatpush1.bf16.msra.mxu0 %v6075
      %6095 = vmatprep.subr.bf16.mxu0 0
      %6096 = vmatpush1.bf16.msra.mxu0 %v6076
      %6097 = vmatprep.subr.bf16.mxu0 0
      %6098 = vmatpush1.bf16.msra.mxu0 %v6077
      %6099 = vmatprep.subr.bf16.mxu0 0
      %6100 = vmatpush1.bf16.msra.mxu0 %v6078
      %6101 = vmatprep.subr.bf16.mxu0 0
      %6102 = vmatpush1.bf16.msra.mxu0 %v6079
      %6103 = vmatprep.subr.bf16.mxu0 0
      %6104 = vmatpush1.bf16.msra.mxu0 %v6080
      %6105 = vmatprep.subr.bf16.mxu0 0
      %6106 = vmatpush1.bf16.msra.mxu0 0
      %6107 = vmatprep.subr.bf16.mxu0 0
      %6108 = vmatpush1.bf16.msra.mxu0 0
      %6109 = vmatprep.subr.bf16.mxu0 0
      %6110 = vmatpush1.bf16.msra.mxu0 0
      %6111 = vmatprep.subr.bf16.mxu0 0
      %6112 = vmatpush1.bf16.msra.mxu0 0
      %6113 = vmatprep.subr.bf16.mxu0 0
      %6114 = vmatpush1.bf16.msra.mxu0 0
      %6115 = vmatprep.subr.bf16.mxu0 0
      %6116 = vmatpush1.bf16.msra.mxu0 0
      %6117 = vmatprep.subr.bf16.mxu0 0
      %6118 = vmatpush1.bf16.msra.mxu0 0
      %6119 = vmatprep.subr.bf16.mxu0 0
      %6120 = vmatpush1.bf16.msra.mxu0 0
      %6121 = vmatprep.mubr.bf16.mxu0 0
      %6122 = vmatmul.mubr.bf16.gmra.mrb[0].mxu0 %v6033
      %v6123 = vpop.f32.mrb[0].mxu0
      %v6124 = vadd.f32 0.0, %v6123
      %v6125 = vpop.f32.mrb[0].mxu0
      %v6126 = vpop.f32.mrb[0].mxu0
      %v6127 = vadd.f32 0.0, %v6126
      %v6128 = vpop.f32.mrb[0].mxu0
      %6129 = vmatprep.mubr.bf16.mxu0 0
      %6130 = vmatmul.mubr.bf16.gmra.mrb[0].mxu0 %v6034
      %v6131 = vpop.f32.mrb[0].mxu0
      %v6132 = vadd.f32 0.0, %v6131
      %v6133 = vpop.f32.mrb[0].mxu0
      %v6134 = vpop.f32.mrb[0].mxu0
      %v6135 = vadd.f32 0.0, %v6134
      %v6136 = vpop.f32.mrb[0].mxu0
      %6137 = vmatprep.mubr.bf16.mxu0 0
      %6138 = vmatmul.mubr.bf16.gmra.mrb[0].mxu0 %v6035
      %v6139 = vpop.f32.mrb[0].mxu0
      %v6140 = vadd.f32 0.0, %v6139
      %v6141 = vpop.f32.mrb[0].mxu0
      %v6142 = vpop.f32.mrb[0].mxu0
      %v6143 = vadd.f32 0.0, %v6142
      %v6144 = vpop.f32.mrb[0].mxu0
      %6145 = vmatprep.mubr.bf16.mxu0 0
      %6146 = vmatmul.mubr.bf16.gmra.mrb[0].mxu0 %v6036
      %v6147 = vpop.f32.mrb[0].mxu0
      %v6148 = vadd.f32 0.0, %v6147
      %v6149 = vpop.f32.mrb[0].mxu0
      %v6150 = vpop.f32.mrb[0].mxu0
      %v6151 = vadd.f32 0.0, %v6150
      %v6152 = vpop.f32.mrb[0].mxu0
      %6153 = vdwg.mxu0
      %v6154 = vadd.f32 %v5944, %v6124
      %v6155 = vadd.f32 %v5945, %v6127
      %v6156 = vadd.f32 %v5946, %v6132
      %v6157 = vadd.f32 %v5947, %v6135
      %v6158 = vadd.f32 %v5948, %v6140
      %v6159 = vadd.f32 %v5949, %v6143
      %v6160 = vadd.f32 %v5950, %v6148
      %v6161 = vadd.f32 %v5951, %v6151
      %v6162 = vld [vmem:[%s2] sm:$0x1]
      %v6164 = vlaneseq
      %v6165 = vshrl.u32 %v6164, 7
      %v6166 = vsub.s32 0, %v6165
      %v6167 = vrot.slane %v6162, %v6166
      %v6169 = vadd.f32 %v6154, %v6167
      %v6170 = vadd.f32 %v6155, %v6167
      %v6171 = vadd.f32 %v6156, %v6167
      %v6172 = vadd.f32 %v6157, %v6167
      %v6173 = vadd.f32 %v6158, %v6167
      %v6174 = vadd.f32 %v6159, %v6167
      %v6175 = vadd.f32 %v6160, %v6167
      %v6176 = vadd.f32 %v6161, %v6167
      %v6177 = vmax.f32 %v6169, 0.0
      %v6178 = vmax.f32 %v6170, 0.0
      %v6179 = vmax.f32 %v6171, 0.0
      %v6180 = vmax.f32 %v6172, 0.0
      %v6181 = vmax.f32 %v6173, 0.0
      %v6182 = vmax.f32 %v6174, 0.0
      %v6183 = vmax.f32 %v6175, 0.0
      %v6184 = vmax.f32 %v6176, 0.0
      %v6185 = vpack.c.bf16 %v6177, %v6177
      %v6186 = vpack.c.bf16 %v6178, %v6178
      %v6187 = vpack.c.bf16 %v6179, %v6179
      %v6188 = vpack.c.bf16 %v6180, %v6180
      %v6189 = vpack.c.bf16 %v6181, %v6181
      %v6190 = vpack.c.bf16 %v6182, %v6182
      %v6191 = vpack.c.bf16 %v6183, %v6183
      %v6192 = vpack.c.bf16 %v6184, %v6184
      %6193 = vst [vmem:[%s192] sm:$0xf] %v6185
      %6194 = vst [vmem:[%s192 + $0x4] sm:$0xf] %v6186
      %6195 = vst [vmem:[%s192 + $0x8] sm:$0xf] %v6187
      %6196 = vst [vmem:[%s192 + $0xc] sm:$0xf] %v6188
      %6197 = vst [vmem:[%s192 + $0x10] sm:$0xf] %v6189
      %6198 = vst [vmem:[%s192 + $0x14] sm:$0xf] %v6190
      %6199 = vst [vmem:[%s192 + $0x18] sm:$0xf] %v6191
      %6200 = vst [vmem:[%s192 + $0x1c] sm:$0xf] %v6192
      %p6201 = scmp.lt.s32.totalorder %s18, 1
      %s6202 = scalar_select %p6201, %s18, 1
      %p6203 = scmp.lt.s32.totalorder %s19, 3
      %s6204 = scalar_select %p6203, %s19, 3
      %s6205 = smul.addr %s6204, 8
      %s6206 = smul.addr %s6202, 32
      %s6207 = sadd.s32 %s6205, %s6206
      %s6208 = smul.addr %s6207, 4
      %s6209 = scalar_lea.vmem %s3, %s6208
      // Predicated region
      $region33: #{a_call__.4} parent=31 // pred_check
        %p6210 = pneg %p114
      $region34: #{a_call__.4} parent=31 // pred_check_branch
        %6212 = sbr.rel (%p6210) target = $region36
      $region35: #{a_call__.4} parent=31 // pred_region
        _
      $region36: #{a_call__.4} parent=31 // pred_fallthru
        _
    $region32: #{a_call__.4} parent=5 // pred_fallthru
      _
    %p6213 = scmp.le.s32.totalorder 2, %s9
    // Predicated region
    $region37: #{a_call__.4} parent=5 // pred_check
      %p6214 = pneg %p6213
    $region38: #{a_call__.4} parent=5 // pred_check_branch
      %6216 = sbr.rel (%p6214) target = $region40
    $region39: #{a_call__.4} parent=5 // pred_region
      %s6217 = ssub.s32 %s9, 2
      // Predicated region
      $region41: #{a_call__.4} parent=39 // pred_check
        %p6218 = pneg %p120
      $region42: #{a_call__.4} parent=39 // pred_check_branch
        %6220 = sbr.rel (%p6218) target = $region44
      $region43: #{a_call__.4} parent=39 // pred_region
        %p6221 = scmp.lt.s32.totalorder %s20, 1
        %s6222 = scalar_select %p6221, %s20, 1
        %p6223 = scmp.lt.s32.totalorder %s21, 3
        %s6224 = scalar_select %p6223, %s21, 3
        %s6225 = smul.addr %s6224, 8
        %s6226 = smul.addr %s6222, 32
        %s6227 = sadd.s32 %s6225, %s6226
        %s6228 = smul.addr %s6227, 4
        %s6229 = scalar_lea.vmem %s3, %s6228
      $region44: #{a_call__.4} parent=39 // pred_fallthru
        _
    $region40: #{a_call__.4} parent=5 // pred_fallthru
      _
  $region6: #{a_call__.4} parent=0 // loop_footer
    %s13 = sadd.s32 1, %s9
  $region7: #{a_call__.4} parent=0 // loop_footer_branch
    %8 = sbr.rel target = $region3
  $region8: #{a_call__.4} parent=0 // loop_exit
    _

</llo_original>
